<compile_context>
chip_gen: v7x
topology: tpu7x:2x2x1
jax: 0.10.0
libtpu: 0.0.40
codegen_flags: <defaults>
</compile_context>

<pallas_src>
import functools

import jax
import jax.numpy as jnp
from jax.experimental import pallas as pl
from jax.experimental.pallas import tpu as pltpu


# -----------------------------------------------------------------------------
# Kernel bodies. Blocks are NHWC with TB images per grid step:
#   lane dim    = C (channels)   -> per-channel constants broadcast for free
#   sublane dim = W (spatial)
#   major dims  = TB, H
# -----------------------------------------------------------------------------
def _stage1_kernel(x_ref, dw_ref, pw_ref,
                   z_ref, s_ref, m2_ref,
                   pad_ref, *, K, S, P, H, W, H1, W1, TB, C_in, C_mid):
    """ReLU -> depthwise KxK (stride S, pad P) -> pointwise 1x1 (MXU) -> BN1 partials."""
    f32 = jnp.float32
    Hp, Wp = H + 2 * P, W + 2 * P

    # Zero only the P-wide border of the padded scratch (done every step; must
    # NOT be gated on program_id while the grid axis is "parallel").
    if P > 0:
        pad_ref[:, :P, :, :] = jnp.zeros((TB, P, Wp, C_in), f32)
        pad_ref[:, Hp - P:, :, :] = jnp.zeros((TB, P, Wp, C_in), f32)
        pad_ref[:, :, :P, :] = jnp.zeros((TB, Hp, P, C_in), f32)
        pad_ref[:, :, Wp - P:, :] = jnp.zeros((TB, Hp, P, C_in), f32)

    # Fused ReLU + zero-pad (relu(0) == 0, so padding after ReLU is equivalent).
    pad_ref[:, P:P + H, P:P + W, :] = jnp.maximum(x_ref[...], 0.0)
    yp = pad_ref[...]                                   # (TB, Hp, Wp, C_in)

    # Depthwise KxK, stride S: K*K shifted FMAs; weights broadcast along lanes.
    dwv = dw_ref[...]                                   # (K*K, 1, 1, C_in)
    acc = jnp.zeros((TB, H1, W1, C_in), f32)
    for kh in range(K):
        for kw in range(K):
            patch = yp[:, kh:kh + (H1 - 1) * S + 1:S,
                          kw:kw + (W1 - 1) * S + 1:S, :]     # (TB, H1, W1, C_in)
            acc = acc + patch * dwv[kh * K + kw]             # * (1, 1, C_in)

    # Pointwise 1x1 (C_in -> C_mid) as a single MXU matmul over all pixels.
    z = jnp.dot(acc.reshape(TB * H1 * W1, C_in), pw_ref[...],
                preferred_element_type=f32)
    z = z.reshape(TB, H1, W1, C_mid)
    z_ref[...] = z

    # Per-block BN partials: sum and centered second moment (combined Chan-style
    # in the wrapper; avoids E[x^2]-E[x]^2 cancellation).
    n = TB * H1 * W1
    s4 = jnp.sum(z, axis=(0, 1, 2), keepdims=True)      # (1, 1, 1, C_mid)
    d = z - s4 / n
    m2 = jnp.sum(d * d, axis=(0, 1, 2), keepdims=True)
    s_ref[...] = s4.reshape(1, 1, C_mid)
    m2_ref[...] = m2.reshape(1, 1, C_mid)


def _stage2_kernel(z_ref, sc_ref, sh_ref, dw_ref, pw_ref,
                   w_ref, s_ref, m2_ref,
                   pad_ref, *, K, P, H1, W1, H2, W2, TB, C_mid, C_out):
    """Folded-BN1 affine + ReLU -> depthwise KxK (stride 1) -> pointwise 1x1 (MXU)
    -> BN2 partials."""
    f32 = jnp.float32
    Hp, Wp = H1 + 2 * P, W1 + 2 * P

    if P > 0:
        pad_ref[:, :P, :, :] = jnp.zeros((TB, P, Wp, C_mid), f32)
        pad_ref[:, Hp - P:, :, :] = jnp.zeros((TB, P, Wp, C_mid), f32)
        pad_ref[:, :, :P, :] = jnp.zeros((TB, Hp, P, C_mid), f32)
        pad_ref[:, :, Wp - P:, :] = jnp.zeros((TB, Hp, P, C_mid), f32)

    # BN1 folded into one per-channel FMA (lane broadcast), fused with ReLU and
    # with the padded-scratch interior store.
    a = jnp.maximum(z_ref[...] * sc_ref[...] + sh_ref[...], 0.0)
    pad_ref[:, P:P + H1, P:P + W1, :] = a
    yp = pad_ref[...]                                   # (TB, Hp, Wp, C_mid)

    dwv = dw_ref[...]                                   # (K*K, 1, 1, C_mid)
    acc = jnp.zeros((TB, H2, W2, C_mid), f32)
    for kh in range(K):
        for kw in range(K):
            acc = acc + yp[:, kh:kh + H2, kw:kw + W2, :] * dwv[kh * K + kw]

    w = jnp.dot(acc.reshape(TB * H2 * W2, C_mid), pw_ref[...],
                preferred_element_type=f32)
    w = w.reshape(TB, H2, W2, C_out)
    w_ref[...] = w

    n = TB * H2 * W2
    s4 = jnp.sum(w, axis=(0, 1, 2), keepdims=True)
    d = w - s4 / n
    m2 = jnp.sum(d * d, axis=(0, 1, 2), keepdims=True)
    s_ref[...] = s4.reshape(1, 1, C_out)
    m2_ref[...] = m2.reshape(1, 1, C_out)


# -----------------------------------------------------------------------------
# Wrapper helpers
# -----------------------------------------------------------------------------
def _round_up(n, m):
    return ((n + m - 1) // m) * m


def _padded_bytes(shape, itemsize=4):
    """VMEM footprint of one f32 buffer with (8,128) padding on the last two dims."""
    if len(shape) < 2:
        return _round_up((int(shape[0]) if shape else 1) * itemsize, 4096)
    lead = 1
    for d in shape[:-2]:
        lead *= int(d)
    return lead * _round_up(int(shape[-2]), 8) * _round_up(int(shape[-1]), 128) * itemsize


def _choose_tb(B, per_image_bytes, budget_bytes):
    """Largest divisor of B whose double-buffered working set fits the budget."""
    for cand in range(B, 0, -1):
        if B % cand == 0 and cand * per_image_bytes <= budget_bytes:
            return cand
    return 1


def _fold_bn(s, m2, n_blk, gamma, beta, eps):
    """Combine per-block (sum, centered M2) partials (Chan/Welford) and fold
    training-mode (batch-stat, biased-variance) BN into per-channel scale/shift."""
    G, _, C = s.shape
    total = jnp.float32(G * n_blk)
    sum_all = jnp.sum(s, axis=0)                          # (1, C)
    mean = sum_all / total
    mean_i = s / jnp.float32(n_blk)                       # (G, 1, C)
    m2_total = jnp.sum(m2, axis=0) + jnp.float32(n_blk) * jnp.sum(
        (mean_i - mean) ** 2, axis=0)
    var = jnp.maximum(m2_total / total, 0.0)
    scale = gamma.astype(jnp.float32).reshape(1, C) * jax.lax.rsqrt(var + eps)
    shift = beta.astype(jnp.float32).reshape(1, C) - mean * scale
    return scale.reshape(1, 1, 1, C), shift.reshape(1, 1, 1, C)


@functools.partial(jax.jit, static_argnames=("kernel_size", "stride", "padding", "eps"))
def sepconv_forward(x_nchw, params, *, kernel_size, stride, padding, eps=1e-5):
    B, C_in, H, W = x_nchw.shape
    K, S, P = kernel_size, stride, padding
    C_mid = params["pw1"].shape[0]        # == C_in for SepConv
    C_out = params["pw2"].shape[0]
    H1 = (H + 2 * P - K) // S + 1
    W1 = (W + 2 * P - K) // S + 1
    H2 = H1 + 2 * P - K + 1
    W2 = W1 + 2 * P - K + 1

    # Channels-last activations (single XLA transpose in/out; everything in the
    # kernels is lane-dense along C).
    x = jnp.transpose(x_nchw.astype(jnp.float32), (0, 2, 3, 1))   # (B, H, W, C_in)

    # Channels-last weight layouts (trace-time glue from the PyTorch layouts).
    dw1 = params["dw1"].reshape(C_in, K * K).T.reshape(K * K, 1, 1, C_in).astype(jnp.float32)
    dw2 = params["dw2"].reshape(C_mid, K * K).T.reshape(K * K, 1, 1, C_mid).astype(jnp.float32)
    pw1 = params["pw1"][:, :, 0, 0].T.astype(jnp.float32)         # (C_in,  C_mid)
    pw2 = params["pw2"][:, :, 0, 0].T.astype(jnp.float32)         # (C_mid, C_out)

    # --- choose images-per-step and VMEM limit (generation-aware: 48 MiB cap
    # keeps us safe on v7x's 64 MiB physical VMEM; v5e/v6e have 128 MiB). ---
    per_image = (
        _padded_bytes((1, H, W, C_in)) + _padded_bytes((1, H1, W1, C_mid)) +
        _padded_bytes((1, H2, W2, C_out)) +
        _padded_bytes((1, H + 2 * P, W + 2 * P, C_in)) +
        _padded_bytes((1, H1 + 2 * P, W1 + 2 * P, C_mid)))
    TB = _choose_tb(B, 3 * per_image, 40 << 20)   # ~3x for double-buffered in/out
    G = B // TB

    weight_bytes = sum(_padded_bytes(s) for s in
                       [(K * K, 1, 1, C_in), (K * K, 1, 1, C_mid),
                        (C_in, C_mid), (C_mid, C_out),
                        (1, 1, 1, C_mid), (1, 1, 1, C_mid)])
    vmem_limit = int(max(16 << 20, min(3 * TB * per_image + weight_bytes + (4 << 20),
                                       48 << 20)))
    cparams = pltpu.CompilerParams(
        dimension_semantics=("parallel",),   # independent batch tiles -> megacore on v7x
        vmem_limit_bytes=vmem_limit,
    )

    def batch_block(h, w, c):
        return pl.BlockSpec((TB, h, w, c), lambda b: (b, 0, 0, 0))

    def stat_block(c):
        return pl.BlockSpec((1, 1, c), lambda b: (b, 0, 0))

    def const_block(shape):
        return pl.BlockSpec(shape, lambda b: (0,) * len(shape))

    # ---- stage 1: ReLU -> depthwise (stride S) -> pointwise (MXU) -> BN1 partials ----
    z, s1, m21 = pl.pallas_call(
        functools.partial(_stage1_kernel, K=K, S=S, P=P, H=H, W=W,
                          H1=H1, W1=W1, TB=TB, C_in=C_in, C_mid=C_mid),
        grid=(G,),
        in_specs=[batch_block(H, W, C_in),
                  const_block((K * K, 1, 1, C_in)),
                  const_block((C_in, C_mid))],
        out_specs=[batch_block(H1, W1, C_mid),
                   stat_block(C_mid),
                   stat_block(C_mid)],
        out_shape=[jax.ShapeDtypeStruct((B, H1, W1, C_mid), jnp.float32),
                   jax.ShapeDtypeStruct((G, 1, C_mid), jnp.float32),
                   jax.ShapeDtypeStruct((G, 1, C_mid), jnp.float32)],
        scratch_shapes=[pltpu.VMEM((TB, H + 2 * P, W + 2 * P, C_in), jnp.float32)],
        compiler_params=cparams,
    )(x, dw1, pw1)

    # Finalize BN1: fold global batch statistics into per-channel scale/shift (tiny).
    scale1, shift1 = _fold_bn(s1, m21, TB * H1 * W1, params["g1"], params["b1"], eps)

    # ---- stage 2: BN1 affine + ReLU -> depthwise (stride 1) -> pointwise (MXU) -> BN2 partials ----
    w, s2, m22 = pl.pallas_call(
        functools.partial(_stage2_kernel, K=K, P=P, H1=H1, W1=W1,
                          H2=H2, W2=W2, TB=TB, C_mid=C_mid, C_out=C_out),
        grid=(G,),
        in_specs=[batch_block(H1, W1, C_mid),
                  const_block((1, 1, 1, C_mid)),
                  const_block((1, 1, 1, C_mid)),
                  const_block((K * K, 1, 1, C_mid)),
                  const_block((C_mid, C_out))],
        out_specs=[batch_block(H2, W2, C_out),
                   stat_block(C_out),
                   stat_block(C_out)],
        out_shape=[jax.ShapeDtypeStruct((B, H2, W2, C_out), jnp.float32),
                   jax.ShapeDtypeStruct((G, 1, C_out), jnp.float32),
                   jax.ShapeDtypeStruct((G, 1, C_out), jnp.float32)],
        scratch_shapes=[pltpu.VMEM((TB, H1 + 2 * P, W1 + 2 * P, C_mid), jnp.float32)],
        compiler_params=cparams,
    )(z, scale1, shift1, dw2, pw2)

    # Finalize BN2 and apply it as plain (fused) XLA — no third pallas_call /
    # extra HBM pass. Transpose back to the module's NCHW output layout.
    scale2, shift2 = _fold_bn(s2, m22, TB * H2 * W2, params["g2"], params["b2"], eps)
    out_nhwc = w * scale2 + shift2
    return jnp.transpose(out_nhwc, (0, 3, 1, 2))


# ---------------- pure-JAX reference (for correctness check only) -------------
def sepconv_ref(x, params, *, kernel_size, stride, padding, eps=1e-5):
    P = padding

    def dwconv(x, w, s):
        return jax.lax.conv_general_dilated(
            x, w, (s, s), [(P, P), (P, P)],
            dimension_numbers=("NCHW", "OIHW", "NCHW"),
            feature_group_count=x.shape[1])

    def pwconv(x, w):
        return jax.lax.conv_general_dilated(
            x, w, (1, 1), [(0, 0), (0, 0)],
            dimension_numbers=("NCHW", "OIHW", "NCHW"))

    def bn(x, g, b):
        mean = jnp.mean(x, axis=(0, 2, 3), keepdims=True)
        var = jnp.mean((x - mean) ** 2, axis=(0, 2, 3), keepdims=True)
        return ((x - mean) * jax.lax.rsqrt(var + eps)
                * g.reshape(1, -1, 1, 1) + b.reshape(1, -1, 1, 1))

    y = jax.nn.relu(x)
    y = dwconv(y, params["dw1"], stride)
    y = pwconv(y, params["pw1"])
    y = bn(y, params["g1"], params["b1"])
    y = jax.nn.relu(y)
    y = dwconv(y, params["dw2"], 1)
    y = pwconv(y, params["pw2"])
    y = bn(y, params["g2"], params["b2"])
    return y


if __name__ == "__main__":
    B, C_in, C_out, H, W = 2, 4, 8, 16, 16
    K, S, P = 3, 1, 1

    key = jax.random.PRNGKey(0)
    kx, k1, k2, k3, k4, k5, k6, k7, k8 = jax.random.split(key, 9)

    x = jax.random.normal(kx, (B, C_in, H, W), jnp.float32)
    params = {
        # PyTorch weight layouts:
        "dw1": jax.random.normal(k1, (C_in, 1, K, K), jnp.float32) * 0.3,
        "pw1": jax.random.normal(k2, (C_in, C_in, 1, 1), jnp.float32) * 0.3,
        "g1": 1.0 + 0.1 * jax.random.normal(k3, (C_in,), jnp.float32),
        "b1": 0.1 * jax.random.normal(k4, (C_in,), jnp.float32),
        "dw2": jax.random.normal(k5, (C_in, 1, K, K), jnp.float32) * 0.3,
        "pw2": jax.random.normal(k6, (C_out, C_in, 1, 1), jnp.float32) * 0.3,
        "g2": 1.0 + 0.1 * jax.random.normal(k7, (C_out,), jnp.float32),
        "b2": 0.1 * jax.random.normal(k8, (C_out,), jnp.float32),
    }

    out = sepconv_forward(x, params, kernel_size=K, stride=S, padding=P)
    out = jax.block_until_ready(out)

    ref = sepconv_ref(x, params, kernel_size=K, stride=S, padding=P)
    assert out.shape == (B, C_out, H, W), out.shape
    max_err = float(jnp.max(jnp.abs(out - ref)))
    assert jnp.allclose(out, ref, atol=2e-4, rtol=2e-4), max_err

    print("KERNEL_OK")
</pallas_src>

<mosaic_0001>
module attributes {stable_mosaic.version = 11 : i64} {
  func.func @_stage1_kernel(%arg0: i32, %arg1: memref<2x16x16x4xf32, #tpu.memory_space<vmem>>, %arg2: memref<9x1x1x4xf32, #tpu.memory_space<vmem>>, %arg3: memref<4x4xf32, #tpu.memory_space<vmem>>, %arg4: memref<2x16x16x4xf32, #tpu.memory_space<vmem>>, %arg5: memref<1x1x4xf32, #tpu.memory_space<vmem>>, %arg6: memref<1x1x4xf32, #tpu.memory_space<vmem>>, %arg7: memref<2x18x18x4xf32, #tpu.memory_space<vmem>>) attributes {dimension_semantics = [#tpu.dimension_semantics<parallel>], iteration_bounds = array<i64: 1>, scalar_prefetch = 0 : i64, scratch_operands = 1 : i64, tpu.core_type = #tpu.core_type<tc>, window_params = [{transform_indices = @transform_0, window_bounds = array<i64: 2, 16, 16, 4>}, {pipeline_mode = #tpu.pipeline_mode<synchronous>, transform_indices = @transform_1, window_bounds = array<i64: 9, 1, 1, 4>}, {pipeline_mode = #tpu.pipeline_mode<synchronous>, transform_indices = @transform_2, window_bounds = array<i64: 4, 4>}, {transform_indices = @transform_3, window_bounds = array<i64: 2, 16, 16, 4>}, {transform_indices = @transform_4, window_bounds = array<i64: 1, 1, 4>}, {transform_indices = @transform_5, window_bounds = array<i64: 1, 1, 4>}]} {
    %cst = arith.constant 0.000000e+00 : f32
    %0 = vector.broadcast %cst : f32 to vector<2x1x18x4xf32>
    %c0 = arith.constant 0 : index
    %c0_0 = arith.constant 0 : index
    %c0_1 = arith.constant 0 : index
    %c0_2 = arith.constant 0 : index
    %1 = vector.load %arg7[%c0, %c0_0, %c0_1, %c0_2] : memref<2x18x18x4xf32, #tpu.memory_space<vmem>>, vector<2x1x18x4xf32>
    tpu.vector_store %arg7[%c0, %c0_0, %c0_1, %c0_2], %0 {strides = array<i32>} : memref<2x18x18x4xf32, #tpu.memory_space<vmem>>, vector<2x1x18x4xf32>,
    %cst_3 = arith.constant 0.000000e+00 : f32
    %2 = vector.broadcast %cst_3 : f32 to vector<2x1x18x4xf32>
    %c0_4 = arith.constant 0 : index
    %c17 = arith.constant 17 : index
    %c0_5 = arith.constant 0 : index
    %c0_6 = arith.constant 0 : index
    %3 = vector.load %arg7[%c0_4, %c17, %c0_5, %c0_6] : memref<2x18x18x4xf32, #tpu.memory_space<vmem>>, vector<2x1x18x4xf32>
    tpu.vector_store %arg7[%c0_4, %c17, %c0_5, %c0_6], %2 {strides = array<i32>} : memref<2x18x18x4xf32, #tpu.memory_space<vmem>>, vector<2x1x18x4xf32>,
    %cst_7 = arith.constant 0.000000e+00 : f32
    %4 = vector.broadcast %cst_7 : f32 to vector<2x18x1x4xf32>
    %c0_8 = arith.constant 0 : index
    %c0_9 = arith.constant 0 : index
    %c0_10 = arith.constant 0 : index
    %c0_11 = arith.constant 0 : index
    %5 = vector.load %arg7[%c0_8, %c0_9, %c0_10, %c0_11] : memref<2x18x18x4xf32, #tpu.memory_space<vmem>>, vector<2x18x1x4xf32>
    tpu.vector_store %arg7[%c0_8, %c0_9, %c0_10, %c0_11], %4 {strides = array<i32>} : memref<2x18x18x4xf32, #tpu.memory_space<vmem>>, vector<2x18x1x4xf32>,
    %cst_12 = arith.constant 0.000000e+00 : f32
    %6 = vector.broadcast %cst_12 : f32 to vector<2x18x1x4xf32>
    %c0_13 = arith.constant 0 : index
    %c0_14 = arith.constant 0 : index
    %c17_15 = arith.constant 17 : index
    %c0_16 = arith.constant 0 : index
    %7 = vector.load %arg7[%c0_13, %c0_14, %c17_15, %c0_16] : memref<2x18x18x4xf32, #tpu.memory_space<vmem>>, vector<2x18x1x4xf32>
    tpu.vector_store %arg7[%c0_13, %c0_14, %c17_15, %c0_16], %6 {strides = array<i32>} : memref<2x18x18x4xf32, #tpu.memory_space<vmem>>, vector<2x18x1x4xf32>,
    %c0_17 = arith.constant 0 : index
    %c0_18 = arith.constant 0 : index
    %c0_19 = arith.constant 0 : index
    %c0_20 = arith.constant 0 : index
    %8 = vector.load %arg1[%c0_17, %c0_18, %c0_19, %c0_20] : memref<2x16x16x4xf32, #tpu.memory_space<vmem>>, vector<2x16x16x4xf32>
    %cst_21 = arith.constant 0.000000e+00 : f32
    %9 = vector.broadcast %cst_21 : f32 to vector<2x16x16x4xf32>
    %10 = arith.maximumf %8, %9 : vector<2x16x16x4xf32>
    %c0_22 = arith.constant 0 : index
    %c1 = arith.constant 1 : index
    %c1_23 = arith.constant 1 : index
    %c0_24 = arith.constant 0 : index
    %11 = vector.load %arg7[%c0_22, %c1, %c1_23, %c0_24] : memref<2x18x18x4xf32, #tpu.memory_space<vmem>>, vector<2x16x16x4xf32>
    tpu.vector_store %arg7[%c0_22, %c1, %c1_23, %c0_24], %10 {strides = array<i32>} : memref<2x18x18x4xf32, #tpu.memory_space<vmem>>, vector<2x16x16x4xf32>,
    %c0_25 = arith.constant 0 : index
    %c0_26 = arith.constant 0 : index
    %c0_27 = arith.constant 0 : index
    %c0_28 = arith.constant 0 : index
    %12 = vector.load %arg7[%c0_25, %c0_26, %c0_27, %c0_28] : memref<2x18x18x4xf32, #tpu.memory_space<vmem>>, vector<2x18x18x4xf32>
    %c0_29 = arith.constant 0 : index
    %c0_30 = arith.constant 0 : index
    %c0_31 = arith.constant 0 : index
    %c0_32 = arith.constant 0 : index
    %13 = vector.load %arg2[%c0_29, %c0_30, %c0_31, %c0_32] : memref<9x1x1x4xf32, #tpu.memory_space<vmem>>, vector<9x1x1x4xf32>
    %cst_33 = arith.constant 0.000000e+00 : f32
    %14 = vector.broadcast %cst_33 : f32 to vector<2x16x16x4xf32>
    %15 = vector.extract_strided_slice %12 {offsets = [0, 0, 0, 0], sizes = [2, 16, 16, 4], strides = [1, 1, 1, 1]} : vector<2x18x18x4xf32> to vector<2x16x16x4xf32>
    %16 = vector.extract_strided_slice %13 {offsets = [0, 0, 0, 0], sizes = [1, 1, 1, 4], strides = [1, 1, 1, 1]} : vector<9x1x1x4xf32> to vector<1x1x1x4xf32>
    %17 = vector.shape_cast %16 : vector<1x1x1x4xf32> to vector<1x1x4xf32>
    %18 = vector.shape_cast %17 : vector<1x1x4xf32> to vector<1x1x1x4xf32>
    %19 = vector.broadcast %18 : vector<1x1x1x4xf32> to vector<2x16x16x4xf32>
    %20 = arith.mulf %15, %19 : vector<2x16x16x4xf32>
    %21 = arith.addf %14, %20 : vector<2x16x16x4xf32>
    %22 = vector.extract_strided_slice %12 {offsets = [0, 0, 1, 0], sizes = [2, 16, 16, 4], strides = [1, 1, 1, 1]} : vector<2x18x18x4xf32> to vector<2x16x16x4xf32>
    %23 = vector.extract_strided_slice %13 {offsets = [1, 0, 0, 0], sizes = [1, 1, 1, 4], strides = [1, 1, 1, 1]} : vector<9x1x1x4xf32> to vector<1x1x1x4xf32>
    %24 = vector.shape_cast %23 : vector<1x1x1x4xf32> to vector<1x1x4xf32>
    %25 = vector.shape_cast %24 : vector<1x1x4xf32> to vector<1x1x1x4xf32>
    %26 = vector.broadcast %25 : vector<1x1x1x4xf32> to vector<2x16x16x4xf32>
    %27 = arith.mulf %22, %26 : vector<2x16x16x4xf32>
    %28 = arith.addf %21, %27 : vector<2x16x16x4xf32>
    %29 = vector.extract_strided_slice %12 {offsets = [0, 0, 2, 0], sizes = [2, 16, 16, 4], strides = [1, 1, 1, 1]} : vector<2x18x18x4xf32> to vector<2x16x16x4xf32>
    %30 = vector.extract_strided_slice %13 {offsets = [2, 0, 0, 0], sizes = [1, 1, 1, 4], strides = [1, 1, 1, 1]} : vector<9x1x1x4xf32> to vector<1x1x1x4xf32>
    %31 = vector.shape_cast %30 : vector<1x1x1x4xf32> to vector<1x1x4xf32>
    %32 = vector.shape_cast %31 : vector<1x1x4xf32> to vector<1x1x1x4xf32>
    %33 = vector.broadcast %32 : vector<1x1x1x4xf32> to vector<2x16x16x4xf32>
    %34 = arith.mulf %29, %33 : vector<2x16x16x4xf32>
    %35 = arith.addf %28, %34 : vector<2x16x16x4xf32>
    %36 = vector.extract_strided_slice %12 {offsets = [0, 1, 0, 0], sizes = [2, 16, 16, 4], strides = [1, 1, 1, 1]} : vector<2x18x18x4xf32> to vector<2x16x16x4xf32>
    %37 = vector.extract_strided_slice %13 {offsets = [3, 0, 0, 0], sizes = [1, 1, 1, 4], strides = [1, 1, 1, 1]} : vector<9x1x1x4xf32> to vector<1x1x1x4xf32>
    %38 = vector.shape_cast %37 : vector<1x1x1x4xf32> to vector<1x1x4xf32>
    %39 = vector.shape_cast %38 : vector<1x1x4xf32> to vector<1x1x1x4xf32>
    %40 = vector.broadcast %39 : vector<1x1x1x4xf32> to vector<2x16x16x4xf32>
    %41 = arith.mulf %36, %40 : vector<2x16x16x4xf32>
    %42 = arith.addf %35, %41 : vector<2x16x16x4xf32>
    %43 = vector.extract_strided_slice %12 {offsets = [0, 1, 1, 0], sizes = [2, 16, 16, 4], strides = [1, 1, 1, 1]} : vector<2x18x18x4xf32> to vector<2x16x16x4xf32>
    %44 = vector.extract_strided_slice %13 {offsets = [4, 0, 0, 0], sizes = [1, 1, 1, 4], strides = [1, 1, 1, 1]} : vector<9x1x1x4xf32> to vector<1x1x1x4xf32>
    %45 = vector.shape_cast %44 : vector<1x1x1x4xf32> to vector<1x1x4xf32>
    %46 = vector.shape_cast %45 : vector<1x1x4xf32> to vector<1x1x1x4xf32>
    %47 = vector.broadcast %46 : vector<1x1x1x4xf32> to vector<2x16x16x4xf32>
    %48 = arith.mulf %43, %47 : vector<2x16x16x4xf32>
    %49 = arith.addf %42, %48 : vector<2x16x16x4xf32>
    %50 = vector.extract_strided_slice %12 {offsets = [0, 1, 2, 0], sizes = [2, 16, 16, 4], strides = [1, 1, 1, 1]} : vector<2x18x18x4xf32> to vector<2x16x16x4xf32>
    %51 = vector.extract_strided_slice %13 {offsets = [5, 0, 0, 0], sizes = [1, 1, 1, 4], strides = [1, 1, 1, 1]} : vector<9x1x1x4xf32> to vector<1x1x1x4xf32>
    %52 = vector.shape_cast %51 : vector<1x1x1x4xf32> to vector<1x1x4xf32>
    %53 = vector.shape_cast %52 : vector<1x1x4xf32> to vector<1x1x1x4xf32>
    %54 = vector.broadcast %53 : vector<1x1x1x4xf32> to vector<2x16x16x4xf32>
    %55 = arith.mulf %50, %54 : vector<2x16x16x4xf32>
    %56 = arith.addf %49, %55 : vector<2x16x16x4xf32>
    %57 = vector.extract_strided_slice %12 {offsets = [0, 2, 0, 0], sizes = [2, 16, 16, 4], strides = [1, 1, 1, 1]} : vector<2x18x18x4xf32> to vector<2x16x16x4xf32>
    %58 = vector.extract_strided_slice %13 {offsets = [6, 0, 0, 0], sizes = [1, 1, 1, 4], strides = [1, 1, 1, 1]} : vector<9x1x1x4xf32> to vector<1x1x1x4xf32>
    %59 = vector.shape_cast %58 : vector<1x1x1x4xf32> to vector<1x1x4xf32>
    %60 = vector.shape_cast %59 : vector<1x1x4xf32> to vector<1x1x1x4xf32>
    %61 = vector.broadcast %60 : vector<1x1x1x4xf32> to vector<2x16x16x4xf32>
    %62 = arith.mulf %57, %61 : vector<2x16x16x4xf32>
    %63 = arith.addf %56, %62 : vector<2x16x16x4xf32>
    %64 = vector.extract_strided_slice %12 {offsets = [0, 2, 1, 0], sizes = [2, 16, 16, 4], strides = [1, 1, 1, 1]} : vector<2x18x18x4xf32> to vector<2x16x16x4xf32>
    %65 = vector.extract_strided_slice %13 {offsets = [7, 0, 0, 0], sizes = [1, 1, 1, 4], strides = [1, 1, 1, 1]} : vector<9x1x1x4xf32> to vector<1x1x1x4xf32>
    %66 = vector.shape_cast %65 : vector<1x1x1x4xf32> to vector<1x1x4xf32>
    %67 = vector.shape_cast %66 : vector<1x1x4xf32> to vector<1x1x1x4xf32>
    %68 = vector.broadcast %67 : vector<1x1x1x4xf32> to vector<2x16x16x4xf32>
    %69 = arith.mulf %64, %68 : vector<2x16x16x4xf32>
    %70 = arith.addf %63, %69 : vector<2x16x16x4xf32>
    %71 = vector.extract_strided_slice %12 {offsets = [0, 2, 2, 0], sizes = [2, 16, 16, 4], strides = [1, 1, 1, 1]} : vector<2x18x18x4xf32> to vector<2x16x16x4xf32>
    %72 = vector.extract_strided_slice %13 {offsets = [8, 0, 0, 0], sizes = [1, 1, 1, 4], strides = [1, 1, 1, 1]} : vector<9x1x1x4xf32> to vector<1x1x1x4xf32>
    %73 = vector.shape_cast %72 : vector<1x1x1x4xf32> to vector<1x1x4xf32>
    %74 = vector.shape_cast %73 : vector<1x1x4xf32> to vector<1x1x1x4xf32>
    %75 = vector.broadcast %74 : vector<1x1x1x4xf32> to vector<2x16x16x4xf32>
    %76 = arith.mulf %71, %75 : vector<2x16x16x4xf32>
    %77 = arith.addf %70, %76 : vector<2x16x16x4xf32>
    %78 = vector.shape_cast %77 : vector<2x16x16x4xf32> to vector<512x4xf32>
    %c0_34 = arith.constant 0 : index
    %c0_35 = arith.constant 0 : index
    %79 = vector.load %arg3[%c0_34, %c0_35] : memref<4x4xf32, #tpu.memory_space<vmem>>, vector<4x4xf32>
    %cst_36 = arith.constant dense<0.000000e+00> : vector<512x4xf32>
    %80 = tpu.matmul %78, %79, %cst_36 {dimension_numbers = #tpu.dot_dimension_numbers<[1], [0], [0], [1], [0, 0, 1, 1], [], []>} : vector<512x4xf32>, vector<4x4xf32>, vector<512x4xf32> -> vector<512x4xf32>
    %81 = vector.shape_cast %80 : vector<512x4xf32> to vector<2x16x16x4xf32>
    %c0_37 = arith.constant 0 : index
    %c0_38 = arith.constant 0 : index
    %c0_39 = arith.constant 0 : index
    %c0_40 = arith.constant 0 : index
    %82 = vector.load %arg4[%c0_37, %c0_38, %c0_39, %c0_40] : memref<2x16x16x4xf32, #tpu.memory_space<vmem>>, vector<2x16x16x4xf32>
    tpu.vector_store %arg4[%c0_37, %c0_38, %c0_39, %c0_40], %81 {strides = array<i32>} : memref<2x16x16x4xf32, #tpu.memory_space<vmem>>, vector<2x16x16x4xf32>,
    %cst_41 = arith.constant dense<0.000000e+00> : vector<4xf32>
    %83 = vector.multi_reduction <add>, %81, %cst_41 [0, 1, 2] : vector<2x16x16x4xf32> to vector<4xf32>
    %84 = vector.shape_cast %83 : vector<4xf32> to vector<1x1x1x4xf32>
    %cst_42 = arith.constant 5.120000e+02 : f32
    %85 = vector.broadcast %cst_42 : f32 to vector<1x1x1x4xf32>
    %86 = arith.divf %84, %85 : vector<1x1x1x4xf32>
    %87 = vector.broadcast %86 : vector<1x1x1x4xf32> to vector<2x16x16x4xf32>
    %88 = arith.subf %81, %87 : vector<2x16x16x4xf32>
    %89 = arith.mulf %88, %88 : vector<2x16x16x4xf32>
    %cst_43 = arith.constant dense<0.000000e+00> : vector<4xf32>
    %90 = vector.multi_reduction <add>, %89, %cst_43 [0, 1, 2] : vector<2x16x16x4xf32> to vector<4xf32>
    %91 = vector.shape_cast %90 : vector<4xf32> to vector<1x1x1x4xf32>
    %92 = vector.shape_cast %84 : vector<1x1x1x4xf32> to vector<1x1x4xf32>
    %c0_44 = arith.constant 0 : index
    %c0_45 = arith.constant 0 : index
    %c0_46 = arith.constant 0 : index
    %93 = vector.load %arg5[%c0_44, %c0_45, %c0_46] : memref<1x1x4xf32, #tpu.memory_space<vmem>>, vector<1x1x4xf32>
    tpu.vector_store %arg5[%c0_44, %c0_45, %c0_46], %92 {strides = array<i32>} : memref<1x1x4xf32, #tpu.memory_space<vmem>>, vector<1x1x4xf32>,
    %94 = vector.shape_cast %91 : vector<1x1x1x4xf32> to vector<1x1x4xf32>
    %c0_47 = arith.constant 0 : index
    %c0_48 = arith.constant 0 : index
    %c0_49 = arith.constant 0 : index
    %95 = vector.load %arg6[%c0_47, %c0_48, %c0_49] : memref<1x1x4xf32, #tpu.memory_space<vmem>>, vector<1x1x4xf32>
    tpu.vector_store %arg6[%c0_47, %c0_48, %c0_49], %94 {strides = array<i32>} : memref<1x1x4xf32, #tpu.memory_space<vmem>>, vector<1x1x4xf32>,
    return
  }
  func.func @transform_0(%arg0: i32) -> (i32, i32, i32, i32) {
    %c0_i32 = arith.constant 0 : i32
    %c0_i32_0 = arith.constant 0 : i32
    %c0_i32_1 = arith.constant 0 : i32
    %c0_i32_2 = arith.constant 0 : i32
    return %arg0, %c0_i32, %c0_i32_0, %c0_i32_1 : i32, i32, i32, i32
  }
  func.func @transform_1(%arg0: i32) -> (i32, i32, i32, i32) {
    %c0_i32 = arith.constant 0 : i32
    %c0_i32_0 = arith.constant 0 : i32
    %c0_i32_1 = arith.constant 0 : i32
    %c0_i32_2 = arith.constant 0 : i32
    %c0_i32_3 = arith.constant 0 : i32
    return %c0_i32, %c0_i32_0, %c0_i32_1, %c0_i32_2 : i32, i32, i32, i32
  }
  func.func @transform_2(%arg0: i32) -> (i32, i32) {
    %c0_i32 = arith.constant 0 : i32
    %c0_i32_0 = arith.constant 0 : i32
    %c0_i32_1 = arith.constant 0 : i32
    return %c0_i32, %c0_i32_0 : i32, i32
  }
  func.func @transform_3(%arg0: i32) -> (i32, i32, i32, i32) {
    %c0_i32 = arith.constant 0 : i32
    %c0_i32_0 = arith.constant 0 : i32
    %c0_i32_1 = arith.constant 0 : i32
    %c0_i32_2 = arith.constant 0 : i32
    return %arg0, %c0_i32, %c0_i32_0, %c0_i32_1 : i32, i32, i32, i32
  }
  func.func @transform_4(%arg0: i32) -> (i32, i32, i32) {
    %c0_i32 = arith.constant 0 : i32
    %c0_i32_0 = arith.constant 0 : i32
    %c0_i32_1 = arith.constant 0 : i32
    return %arg0, %c0_i32, %c0_i32_0 : i32, i32, i32
  }
  func.func @transform_5(%arg0: i32) -> (i32, i32, i32) {
    %c0_i32 = arith.constant 0 : i32
    %c0_i32_0 = arith.constant 0 : i32
    %c0_i32_1 = arith.constant 0 : i32
    return %arg0, %c0_i32, %c0_i32_0 : i32, i32, i32
  }
}

module attributes {stable_mosaic.version = 11 : i64} {
  func.func @_stage2_kernel(%arg0: i32, %arg1: memref<2x16x16x4xf32, #tpu.memory_space<vmem>>, %arg2: memref<1x1x1x4xf32, #tpu.memory_space<vmem>>, %arg3: memref<1x1x1x4xf32, #tpu.memory_space<vmem>>, %arg4: memref<9x1x1x4xf32, #tpu.memory_space<vmem>>, %arg5: memref<4x8xf32, #tpu.memory_space<vmem>>, %arg6: memref<2x16x16x8xf32, #tpu.memory_space<vmem>>, %arg7: memref<1x1x8xf32, #tpu.memory_space<vmem>>, %arg8: memref<1x1x8xf32, #tpu.memory_space<vmem>>, %arg9: memref<2x18x18x4xf32, #tpu.memory_space<vmem>>) attributes {dimension_semantics = [#tpu.dimension_semantics<parallel>], iteration_bounds = array<i64: 1>, scalar_prefetch = 0 : i64, scratch_operands = 1 : i64, tpu.core_type = #tpu.core_type<tc>, window_params = [{transform_indices = @transform_0, window_bounds = array<i64: 2, 16, 16, 4>}, {pipeline_mode = #tpu.pipeline_mode<synchronous>, transform_indices = @transform_1, window_bounds = array<i64: 1, 1, 1, 4>}, {pipeline_mode = #tpu.pipeline_mode<synchronous>, transform_indices = @transform_2, window_bounds = array<i64: 1, 1, 1, 4>}, {pipeline_mode = #tpu.pipeline_mode<synchronous>, transform_indices = @transform_3, window_bounds = array<i64: 9, 1, 1, 4>}, {pipeline_mode = #tpu.pipeline_mode<synchronous>, transform_indices = @transform_4, window_bounds = array<i64: 4, 8>}, {transform_indices = @transform_5, window_bounds = array<i64: 2, 16, 16, 8>}, {transform_indices = @transform_6, window_bounds = array<i64: 1, 1, 8>}, {transform_indices = @transform_7, window_bounds = array<i64: 1, 1, 8>}]} {
    %cst = arith.constant 0.000000e+00 : f32
    %0 = vector.broadcast %cst : f32 to vector<2x1x18x4xf32>
    %c0 = arith.constant 0 : index
    %c0_0 = arith.constant 0 : index
    %c0_1 = arith.constant 0 : index
    %c0_2 = arith.constant 0 : index
    %1 = vector.load %arg9[%c0, %c0_0, %c0_1, %c0_2] : memref<2x18x18x4xf32, #tpu.memory_space<vmem>>, vector<2x1x18x4xf32>
    tpu.vector_store %arg9[%c0, %c0_0, %c0_1, %c0_2], %0 {strides = array<i32>} : memref<2x18x18x4xf32, #tpu.memory_space<vmem>>, vector<2x1x18x4xf32>,
    %cst_3 = arith.constant 0.000000e+00 : f32
    %2 = vector.broadcast %cst_3 : f32 to vector<2x1x18x4xf32>
    %c0_4 = arith.constant 0 : index
    %c17 = arith.constant 17 : index
    %c0_5 = arith.constant 0 : index
    %c0_6 = arith.constant 0 : index
    %3 = vector.load %arg9[%c0_4, %c17, %c0_5, %c0_6] : memref<2x18x18x4xf32, #tpu.memory_space<vmem>>, vector<2x1x18x4xf32>
    tpu.vector_store %arg9[%c0_4, %c17, %c0_5, %c0_6], %2 {strides = array<i32>} : memref<2x18x18x4xf32, #tpu.memory_space<vmem>>, vector<2x1x18x4xf32>,
    %cst_7 = arith.constant 0.000000e+00 : f32
    %4 = vector.broadcast %cst_7 : f32 to vector<2x18x1x4xf32>
    %c0_8 = arith.constant 0 : index
    %c0_9 = arith.constant 0 : index
    %c0_10 = arith.constant 0 : index
    %c0_11 = arith.constant 0 : index
    %5 = vector.load %arg9[%c0_8, %c0_9, %c0_10, %c0_11] : memref<2x18x18x4xf32, #tpu.memory_space<vmem>>, vector<2x18x1x4xf32>
    tpu.vector_store %arg9[%c0_8, %c0_9, %c0_10, %c0_11], %4 {strides = array<i32>} : memref<2x18x18x4xf32, #tpu.memory_space<vmem>>, vector<2x18x1x4xf32>,
    %cst_12 = arith.constant 0.000000e+00 : f32
    %6 = vector.broadcast %cst_12 : f32 to vector<2x18x1x4xf32>
    %c0_13 = arith.constant 0 : index
    %c0_14 = arith.constant 0 : index
    %c17_15 = arith.constant 17 : index
    %c0_16 = arith.constant 0 : index
    %7 = vector.load %arg9[%c0_13, %c0_14, %c17_15, %c0_16] : memref<2x18x18x4xf32, #tpu.memory_space<vmem>>, vector<2x18x1x4xf32>
    tpu.vector_store %arg9[%c0_13, %c0_14, %c17_15, %c0_16], %6 {strides = array<i32>} : memref<2x18x18x4xf32, #tpu.memory_space<vmem>>, vector<2x18x1x4xf32>,
    %c0_17 = arith.constant 0 : index
    %c0_18 = arith.constant 0 : index
    %c0_19 = arith.constant 0 : index
    %c0_20 = arith.constant 0 : index
    %8 = vector.load %arg1[%c0_17, %c0_18, %c0_19, %c0_20] : memref<2x16x16x4xf32, #tpu.memory_space<vmem>>, vector<2x16x16x4xf32>
    %c0_21 = arith.constant 0 : index
    %c0_22 = arith.constant 0 : index
    %c0_23 = arith.constant 0 : index
    %c0_24 = arith.constant 0 : index
    %9 = vector.load %arg2[%c0_21, %c0_22, %c0_23, %c0_24] : memref<1x1x1x4xf32, #tpu.memory_space<vmem>>, vector<1x1x1x4xf32>
    %10 = vector.broadcast %9 : vector<1x1x1x4xf32> to vector<2x16x16x4xf32>
    %11 = arith.mulf %8, %10 : vector<2x16x16x4xf32>
    %c0_25 = arith.constant 0 : index
    %c0_26 = arith.constant 0 : index
    %c0_27 = arith.constant 0 : index
    %c0_28 = arith.constant 0 : index
    %12 = vector.load %arg3[%c0_25, %c0_26, %c0_27, %c0_28] : memref<1x1x1x4xf32, #tpu.memory_space<vmem>>, vector<1x1x1x4xf32>
    %13 = vector.broadcast %12 : vector<1x1x1x4xf32> to vector<2x16x16x4xf32>
    %14 = arith.addf %11, %13 : vector<2x16x16x4xf32>
    %cst_29 = arith.constant 0.000000e+00 : f32
    %15 = vector.broadcast %cst_29 : f32 to vector<2x16x16x4xf32>
    %16 = arith.maximumf %14, %15 : vector<2x16x16x4xf32>
    %c0_30 = arith.constant 0 : index
    %c1 = arith.constant 1 : index
    %c1_31 = arith.constant 1 : index
    %c0_32 = arith.constant 0 : index
    %17 = vector.load %arg9[%c0_30, %c1, %c1_31, %c0_32] : memref<2x18x18x4xf32, #tpu.memory_space<vmem>>, vector<2x16x16x4xf32>
    tpu.vector_store %arg9[%c0_30, %c1, %c1_31, %c0_32], %16 {strides = array<i32>} : memref<2x18x18x4xf32, #tpu.memory_space<vmem>>, vector<2x16x16x4xf32>,
    %c0_33 = arith.constant 0 : index
    %c0_34 = arith.constant 0 : index
    %c0_35 = arith.constant 0 : index
    %c0_36 = arith.constant 0 : index
    %18 = vector.load %arg9[%c0_33, %c0_34, %c0_35, %c0_36] : memref<2x18x18x4xf32, #tpu.memory_space<vmem>>, vector<2x18x18x4xf32>
    %c0_37 = arith.constant 0 : index
    %c0_38 = arith.constant 0 : index
    %c0_39 = arith.constant 0 : index
    %c0_40 = arith.constant 0 : index
    %19 = vector.load %arg4[%c0_37, %c0_38, %c0_39, %c0_40] : memref<9x1x1x4xf32, #tpu.memory_space<vmem>>, vector<9x1x1x4xf32>
    %cst_41 = arith.constant 0.000000e+00 : f32
    %20 = vector.broadcast %cst_41 : f32 to vector<2x16x16x4xf32>
    %21 = vector.extract_strided_slice %18 {offsets = [0, 0, 0, 0], sizes = [2, 16, 16, 4], strides = [1, 1, 1, 1]} : vector<2x18x18x4xf32> to vector<2x16x16x4xf32>
    %22 = vector.extract_strided_slice %19 {offsets = [0, 0, 0, 0], sizes = [1, 1, 1, 4], strides = [1, 1, 1, 1]} : vector<9x1x1x4xf32> to vector<1x1x1x4xf32>
    %23 = vector.shape_cast %22 : vector<1x1x1x4xf32> to vector<1x1x4xf32>
    %24 = vector.shape_cast %23 : vector<1x1x4xf32> to vector<1x1x1x4xf32>
    %25 = vector.broadcast %24 : vector<1x1x1x4xf32> to vector<2x16x16x4xf32>
    %26 = arith.mulf %21, %25 : vector<2x16x16x4xf32>
    %27 = arith.addf %20, %26 : vector<2x16x16x4xf32>
    %28 = vector.extract_strided_slice %18 {offsets = [0, 0, 1, 0], sizes = [2, 16, 16, 4], strides = [1, 1, 1, 1]} : vector<2x18x18x4xf32> to vector<2x16x16x4xf32>
    %29 = vector.extract_strided_slice %19 {offsets = [1, 0, 0, 0], sizes = [1, 1, 1, 4], strides = [1, 1, 1, 1]} : vector<9x1x1x4xf32> to vector<1x1x1x4xf32>
    %30 = vector.shape_cast %29 : vector<1x1x1x4xf32> to vector<1x1x4xf32>
    %31 = vector.shape_cast %30 : vector<1x1x4xf32> to vector<1x1x1x4xf32>
    %32 = vector.broadcast %31 : vector<1x1x1x4xf32> to vector<2x16x16x4xf32>
    %33 = arith.mulf %28, %32 : vector<2x16x16x4xf32>
    %34 = arith.addf %27, %33 : vector<2x16x16x4xf32>
    %35 = vector.extract_strided_slice %18 {offsets = [0, 0, 2, 0], sizes = [2, 16, 16, 4], strides = [1, 1, 1, 1]} : vector<2x18x18x4xf32> to vector<2x16x16x4xf32>
    %36 = vector.extract_strided_slice %19 {offsets = [2, 0, 0, 0], sizes = [1, 1, 1, 4], strides = [1, 1, 1, 1]} : vector<9x1x1x4xf32> to vector<1x1x1x4xf32>
    %37 = vector.shape_cast %36 : vector<1x1x1x4xf32> to vector<1x1x4xf32>
    %38 = vector.shape_cast %37 : vector<1x1x4xf32> to vector<1x1x1x4xf32>
    %39 = vector.broadcast %38 : vector<1x1x1x4xf32> to vector<2x16x16x4xf32>
    %40 = arith.mulf %35, %39 : vector<2x16x16x4xf32>
    %41 = arith.addf %34, %40 : vector<2x16x16x4xf32>
    %42 = vector.extract_strided_slice %18 {offsets = [0, 1, 0, 0], sizes = [2, 16, 16, 4], strides = [1, 1, 1, 1]} : vector<2x18x18x4xf32> to vector<2x16x16x4xf32>
    %43 = vector.extract_strided_slice %19 {offsets = [3, 0, 0, 0], sizes = [1, 1, 1, 4], strides = [1, 1, 1, 1]} : vector<9x1x1x4xf32> to vector<1x1x1x4xf32>
    %44 = vector.shape_cast %43 : vector<1x1x1x4xf32> to vector<1x1x4xf32>
    %45 = vector.shape_cast %44 : vector<1x1x4xf32> to vector<1x1x1x4xf32>
    %46 = vector.broadcast %45 : vector<1x1x1x4xf32> to vector<2x16x16x4xf32>
    %47 = arith.mulf %42, %46 : vector<2x16x16x4xf32>
    %48 = arith.addf %41, %47 : vector<2x16x16x4xf32>
    %49 = vector.extract_strided_slice %18 {offsets = [0, 1, 1, 0], sizes = [2, 16, 16, 4], strides = [1, 1, 1, 1]} : vector<2x18x18x4xf32> to vector<2x16x16x4xf32>
    %50 = vector.extract_strided_slice %19 {offsets = [4, 0, 0, 0], sizes = [1, 1, 1, 4], strides = [1, 1, 1, 1]} : vector<9x1x1x4xf32> to vector<1x1x1x4xf32>
    %51 = vector.shape_cast %50 : vector<1x1x1x4xf32> to vector<1x1x4xf32>
    %52 = vector.shape_cast %51 : vector<1x1x4xf32> to vector<1x1x1x4xf32>
    %53 = vector.broadcast %52 : vector<1x1x1x4xf32> to vector<2x16x16x4xf32>
    %54 = arith.mulf %49, %53 : vector<2x16x16x4xf32>
    %55 = arith.addf %48, %54 : vector<2x16x16x4xf32>
    %56 = vector.extract_strided_slice %18 {offsets = [0, 1, 2, 0], sizes = [2, 16, 16, 4], strides = [1, 1, 1, 1]} : vector<2x18x18x4xf32> to vector<2x16x16x4xf32>
    %57 = vector.extract_strided_slice %19 {offsets = [5, 0, 0, 0], sizes = [1, 1, 1, 4], strides = [1, 1, 1, 1]} : vector<9x1x1x4xf32> to vector<1x1x1x4xf32>
    %58 = vector.shape_cast %57 : vector<1x1x1x4xf32> to vector<1x1x4xf32>
    %59 = vector.shape_cast %58 : vector<1x1x4xf32> to vector<1x1x1x4xf32>
    %60 = vector.broadcast %59 : vector<1x1x1x4xf32> to vector<2x16x16x4xf32>
    %61 = arith.mulf %56, %60 : vector<2x16x16x4xf32>
    %62 = arith.addf %55, %61 : vector<2x16x16x4xf32>
    %63 = vector.extract_strided_slice %18 {offsets = [0, 2, 0, 0], sizes = [2, 16, 16, 4], strides = [1, 1, 1, 1]} : vector<2x18x18x4xf32> to vector<2x16x16x4xf32>
    %64 = vector.extract_strided_slice %19 {offsets = [6, 0, 0, 0], sizes = [1, 1, 1, 4], strides = [1, 1, 1, 1]} : vector<9x1x1x4xf32> to vector<1x1x1x4xf32>
    %65 = vector.shape_cast %64 : vector<1x1x1x4xf32> to vector<1x1x4xf32>
    %66 = vector.shape_cast %65 : vector<1x1x4xf32> to vector<1x1x1x4xf32>
    %67 = vector.broadcast %66 : vector<1x1x1x4xf32> to vector<2x16x16x4xf32>
    %68 = arith.mulf %63, %67 : vector<2x16x16x4xf32>
    %69 = arith.addf %62, %68 : vector<2x16x16x4xf32>
    %70 = vector.extract_strided_slice %18 {offsets = [0, 2, 1, 0], sizes = [2, 16, 16, 4], strides = [1, 1, 1, 1]} : vector<2x18x18x4xf32> to vector<2x16x16x4xf32>
    %71 = vector.extract_strided_slice %19 {offsets = [7, 0, 0, 0], sizes = [1, 1, 1, 4], strides = [1, 1, 1, 1]} : vector<9x1x1x4xf32> to vector<1x1x1x4xf32>
    %72 = vector.shape_cast %71 : vector<1x1x1x4xf32> to vector<1x1x4xf32>
    %73 = vector.shape_cast %72 : vector<1x1x4xf32> to vector<1x1x1x4xf32>
    %74 = vector.broadcast %73 : vector<1x1x1x4xf32> to vector<2x16x16x4xf32>
    %75 = arith.mulf %70, %74 : vector<2x16x16x4xf32>
    %76 = arith.addf %69, %75 : vector<2x16x16x4xf32>
    %77 = vector.extract_strided_slice %18 {offsets = [0, 2, 2, 0], sizes = [2, 16, 16, 4], strides = [1, 1, 1, 1]} : vector<2x18x18x4xf32> to vector<2x16x16x4xf32>
    %78 = vector.extract_strided_slice %19 {offsets = [8, 0, 0, 0], sizes = [1, 1, 1, 4], strides = [1, 1, 1, 1]} : vector<9x1x1x4xf32> to vector<1x1x1x4xf32>
    %79 = vector.shape_cast %78 : vector<1x1x1x4xf32> to vector<1x1x4xf32>
    %80 = vector.shape_cast %79 : vector<1x1x4xf32> to vector<1x1x1x4xf32>
    %81 = vector.broadcast %80 : vector<1x1x1x4xf32> to vector<2x16x16x4xf32>
    %82 = arith.mulf %77, %81 : vector<2x16x16x4xf32>
    %83 = arith.addf %76, %82 : vector<2x16x16x4xf32>
    %84 = vector.shape_cast %83 : vector<2x16x16x4xf32> to vector<512x4xf32>
    %c0_42 = arith.constant 0 : index
    %c0_43 = arith.constant 0 : index
    %85 = vector.load %arg5[%c0_42, %c0_43] : memref<4x8xf32, #tpu.memory_space<vmem>>, vector<4x8xf32>
    %cst_44 = arith.constant dense<0.000000e+00> : vector<512x8xf32>
    %86 = tpu.matmul %84, %85, %cst_44 {dimension_numbers = #tpu.dot_dimension_numbers<[1], [0], [0], [1], [0, 0, 1, 1], [], []>} : vector<512x4xf32>, vector<4x8xf32>, vector<512x8xf32> -> vector<512x8xf32>
    %87 = vector.shape_cast %86 : vector<512x8xf32> to vector<2x16x16x8xf32>
    %c0_45 = arith.constant 0 : index
    %c0_46 = arith.constant 0 : index
    %c0_47 = arith.constant 0 : index
    %c0_48 = arith.constant 0 : index
    %88 = vector.load %arg6[%c0_45, %c0_46, %c0_47, %c0_48] : memref<2x16x16x8xf32, #tpu.memory_space<vmem>>, vector<2x16x16x8xf32>
    tpu.vector_store %arg6[%c0_45, %c0_46, %c0_47, %c0_48], %87 {strides = array<i32>} : memref<2x16x16x8xf32, #tpu.memory_space<vmem>>, vector<2x16x16x8xf32>,
    %cst_49 = arith.constant dense<0.000000e+00> : vector<8xf32>
    %89 = vector.multi_reduction <add>, %87, %cst_49 [0, 1, 2] : vector<2x16x16x8xf32> to vector<8xf32>
    %90 = vector.shape_cast %89 : vector<8xf32> to vector<1x1x1x8xf32>
    %cst_50 = arith.constant 5.120000e+02 : f32
    %91 = vector.broadcast %cst_50 : f32 to vector<1x1x1x8xf32>
    %92 = arith.divf %90, %91 : vector<1x1x1x8xf32>
    %93 = vector.broadcast %92 : vector<1x1x1x8xf32> to vector<2x16x16x8xf32>
    %94 = arith.subf %87, %93 : vector<2x16x16x8xf32>
    %95 = arith.mulf %94, %94 : vector<2x16x16x8xf32>
    %cst_51 = arith.constant dense<0.000000e+00> : vector<8xf32>
    %96 = vector.multi_reduction <add>, %95, %cst_51 [0, 1, 2] : vector<2x16x16x8xf32> to vector<8xf32>
    %97 = vector.shape_cast %96 : vector<8xf32> to vector<1x1x1x8xf32>
    %98 = vector.shape_cast %90 : vector<1x1x1x8xf32> to vector<1x1x8xf32>
    %c0_52 = arith.constant 0 : index
    %c0_53 = arith.constant 0 : index
    %c0_54 = arith.constant 0 : index
    %99 = vector.load %arg7[%c0_52, %c0_53, %c0_54] : memref<1x1x8xf32, #tpu.memory_space<vmem>>, vector<1x1x8xf32>
    tpu.vector_store %arg7[%c0_52, %c0_53, %c0_54], %98 {strides = array<i32>} : memref<1x1x8xf32, #tpu.memory_space<vmem>>, vector<1x1x8xf32>,
    %100 = vector.shape_cast %97 : vector<1x1x1x8xf32> to vector<1x1x8xf32>
    %c0_55 = arith.constant 0 : index
    %c0_56 = arith.constant 0 : index
    %c0_57 = arith.constant 0 : index
    %101 = vector.load %arg8[%c0_55, %c0_56, %c0_57] : memref<1x1x8xf32, #tpu.memory_space<vmem>>, vector<1x1x8xf32>
    tpu.vector_store %arg8[%c0_55, %c0_56, %c0_57], %100 {strides = array<i32>} : memref<1x1x8xf32, #tpu.memory_space<vmem>>, vector<1x1x8xf32>,
    return
  }
  func.func @transform_0(%arg0: i32) -> (i32, i32, i32, i32) {
    %c0_i32 = arith.constant 0 : i32
    %c0_i32_0 = arith.constant 0 : i32
    %c0_i32_1 = arith.constant 0 : i32
    %c0_i32_2 = arith.constant 0 : i32
    return %arg0, %c0_i32, %c0_i32_0, %c0_i32_1 : i32, i32, i32, i32
  }
  func.func @transform_1(%arg0: i32) -> (i32, i32, i32, i32) {
    %c0_i32 = arith.constant 0 : i32
    %c0_i32_0 = arith.constant 0 : i32
    %c0_i32_1 = arith.constant 0 : i32
    %c0_i32_2 = arith.constant 0 : i32
    %c0_i32_3 = arith.constant 0 : i32
    return %c0_i32, %c0_i32_0, %c0_i32_1, %c0_i32_2 : i32, i32, i32, i32
  }
  func.func @transform_2(%arg0: i32) -> (i32, i32, i32, i32) {
    %c0_i32 = arith.constant 0 : i32
    %c0_i32_0 = arith.constant 0 : i32
    %c0_i32_1 = arith.constant 0 : i32
    %c0_i32_2 = arith.constant 0 : i32
    %c0_i32_3 = arith.constant 0 : i32
    return %c0_i32, %c0_i32_0, %c0_i32_1, %c0_i32_2 : i32, i32, i32, i32
  }
  func.func @transform_3(%arg0: i32) -> (i32, i32, i32, i32) {
    %c0_i32 = arith.constant 0 : i32
    %c0_i32_0 = arith.constant 0 : i32
    %c0_i32_1 = arith.constant 0 : i32
    %c0_i32_2 = arith.constant 0 : i32
    %c0_i32_3 = arith.constant 0 : i32
    return %c0_i32, %c0_i32_0, %c0_i32_1, %c0_i32_2 : i32, i32, i32, i32
  }
  func.func @transform_4(%arg0: i32) -> (i32, i32) {
    %c0_i32 = arith.constant 0 : i32
    %c0_i32_0 = arith.constant 0 : i32
    %c0_i32_1 = arith.constant 0 : i32
    return %c0_i32, %c0_i32_0 : i32, i32
  }
  func.func @transform_5(%arg0: i32) -> (i32, i32, i32, i32) {
    %c0_i32 = arith.constant 0 : i32
    %c0_i32_0 = arith.constant 0 : i32
    %c0_i32_1 = arith.constant 0 : i32
    %c0_i32_2 = arith.constant 0 : i32
    return %arg0, %c0_i32, %c0_i32_0, %c0_i32_1 : i32, i32, i32, i32
  }
  func.func @transform_6(%arg0: i32) -> (i32, i32, i32) {
    %c0_i32 = arith.constant 0 : i32
    %c0_i32_0 = arith.constant 0 : i32
    %c0_i32_1 = arith.constant 0 : i32
    return %arg0, %c0_i32, %c0_i32_0 : i32, i32, i32
  }
  func.func @transform_7(%arg0: i32) -> (i32, i32, i32) {
    %c0_i32 = arith.constant 0 : i32
    %c0_i32_0 = arith.constant 0 : i32
    %c0_i32_1 = arith.constant 0 : i32
    return %arg0, %c0_i32, %c0_i32_0 : i32, i32, i32
  }
}

</mosaic_0001>

<llo_original>
// kernel: sepconv_forward.2
$region0: #{sepconv_forward.2}
  #allocation0 [shape = 'u32[]', space=smem, size = 0x4, offset = 0x4, fixed_abs, tag = 'smem constant byte address 0x4 - core index']
  #allocation1 [shape = 'u32[144,128]{1,0:T(1,128)}', space=vmem, size = 0x12000, scoped, tag = 'internal scratch']
  #allocation2 [shape = 'f32[2,18,18,4]{3,2,1,0:T(8,128)}', space=vmem, size = 0x6c000, scoped, tag = 'scratch operand']
  %s0 = inlined_call_operand.vmem [shape: f32[2,16,16,4], index: 0, kind: input, shape index: {}]
  %s1 = inlined_call_operand.vmem [shape: f32[9,1,1,4], index: 1, kind: input, shape index: {}]
  %s2 = inlined_call_operand.vmem [shape: f32[4,4], index: 2, kind: input, shape index: {}]
  %s3 = inlined_call_operand.vmem [shape: f32[2,16,16,4], index: 3, kind: output, shape index: {0}]
  %s4 = inlined_call_operand.vmem [shape: f32[1,1,4], index: 4, kind: output, shape index: {1}]
  %s5 = inlined_call_operand.vmem [shape: f32[1,1,4], index: 5, kind: output, shape index: {2}]
  %6 = xla_tuple %s3, %s4, %s5
  %s7 = sld [smem:[#allocation0]]
  $region38: #{sepconv_forward.2} parent=0
    _
  %s9 = ssub.s32 1, %s7
  %s10 = scalar_select 0, %s9, %s7
  // Predicated region
  $region2: #{sepconv_forward.2} parent=0 // pred_check
    _
  $region3: #{sepconv_forward.2} parent=0 // pred_check_branch
    %12 = sbr.rel (0) target = $region5
  $region4: #{sepconv_forward.2} parent=0 // pred_region
    _
  $region5: #{sepconv_forward.2} parent=0 // pred_fallthru
    _
  // Predicated region
  $region6: #{sepconv_forward.2} parent=0 // pred_check
    _
  $region7: #{sepconv_forward.2} parent=0 // pred_check_branch
    %14 = sbr.rel (0) target = $region9
  $region8: #{sepconv_forward.2} parent=0 // pred_region
    _
  $region9: #{sepconv_forward.2} parent=0 // pred_fallthru
    _
  // Predicated region
  $region10: #{sepconv_forward.2} parent=0 // pred_check
    _
  $region11: #{sepconv_forward.2} parent=0 // pred_check_branch
    %16 = sbr.rel (0) target = $region13
  $region12: #{sepconv_forward.2} parent=0 // pred_region
    _
  $region13: #{sepconv_forward.2} parent=0 // pred_fallthru
    _
  %vm17 = vcmask 31744
  %18 = vst.msk [vmem:[#allocation2] sm:$0xff] %vm17, 0.0
  %19 = vst.msk [vmem:[#allocation2 + $0x8] sm:$0xff] %vm17, 0.0
  %vm20 = vcmask 25600
  %21 = vst.msk [vmem:[#allocation2 + $0x10] sm:$0x3] %vm20, 0.0
  %22 = vst.msk [vmem:[#allocation2 + $0x1b0] sm:$0xff] %vm17, 0.0
  %23 = vst.msk [vmem:[#allocation2 + $0x1b8] sm:$0xff] %vm17, 0.0
  %24 = vst.msk [vmem:[#allocation2 + $0x1c0] sm:$0x3] %vm20, 0.0
  %s25 = scalar_lea.vmem [#allocation2], 408
  %26 = vst.msk [vmem:[%s25] sm:$0xff] %vm17, 0.0
  %27 = vst.msk [vmem:[%s25 + $0x8] sm:$0xff] %vm17, 0.0
  %28 = vst.msk [vmem:[%s25 + $0x10] sm:$0x3] %vm20, 0.0
  %29 = vst.msk [vmem:[%s25 + $0x1b0] sm:$0xff] %vm17, 0.0
  %30 = vst.msk [vmem:[%s25 + $0x1b8] sm:$0xff] %vm17, 0.0
  %31 = vst.msk [vmem:[%s25 + $0x1c0] sm:$0x3] %vm20, 0.0
  %vm32 = vcmask 24576
  %33 = vst.msk [vmem:[#allocation2] sm:$0x1] %vm32, 0.0
  %34 = vst.msk [vmem:[#allocation2 + $0x18] sm:$0x1] %vm32, 0.0
  %35 = vst.msk [vmem:[#allocation2 + $0x30] sm:$0x1] %vm32, 0.0
  %36 = vst.msk [vmem:[#allocation2 + $0x48] sm:$0x1] %vm32, 0.0
  %37 = vst.msk [vmem:[#allocation2 + $0x60] sm:$0x1] %vm32, 0.0
  %38 = vst.msk [vmem:[#allocation2 + $0x78] sm:$0x1] %vm32, 0.0
  %39 = vst.msk [vmem:[#allocation2 + $0x90] sm:$0x1] %vm32, 0.0
  %40 = vst.msk [vmem:[#allocation2 + $0xa8] sm:$0x1] %vm32, 0.0
  %41 = vst.msk [vmem:[#allocation2 + $0xc0] sm:$0x1] %vm32, 0.0
  %42 = vst.msk [vmem:[#allocation2 + $0xd8] sm:$0x1] %vm32, 0.0
  %43 = vst.msk [vmem:[#allocation2 + $0xf0] sm:$0x1] %vm32, 0.0
  %44 = vst.msk [vmem:[#allocation2 + $0x108] sm:$0x1] %vm32, 0.0
  %45 = vst.msk [vmem:[#allocation2 + $0x120] sm:$0x1] %vm32, 0.0
  %46 = vst.msk [vmem:[#allocation2 + $0x138] sm:$0x1] %vm32, 0.0
  %47 = vst.msk [vmem:[#allocation2 + $0x150] sm:$0x1] %vm32, 0.0
  %48 = vst.msk [vmem:[#allocation2 + $0x168] sm:$0x1] %vm32, 0.0
  %49 = vst.msk [vmem:[#allocation2 + $0x180] sm:$0x1] %vm32, 0.0
  %50 = vst.msk [vmem:[#allocation2 + $0x198] sm:$0x1] %vm32, 0.0
  %51 = vst.msk [vmem:[#allocation2 + $0x1b0] sm:$0x1] %vm32, 0.0
  %52 = vst.msk [vmem:[#allocation2 + $0x1c8] sm:$0x1] %vm32, 0.0
  %53 = vst.msk [vmem:[#allocation2 + $0x1e0] sm:$0x1] %vm32, 0.0
  %54 = vst.msk [vmem:[#allocation2 + $0x1f8] sm:$0x1] %vm32, 0.0
  %55 = vst.msk [vmem:[#allocation2 + $0x210] sm:$0x1] %vm32, 0.0
  %56 = vst.msk [vmem:[#allocation2 + $0x228] sm:$0x1] %vm32, 0.0
  %57 = vst.msk [vmem:[#allocation2 + $0x240] sm:$0x1] %vm32, 0.0
  %58 = vst.msk [vmem:[#allocation2 + $0x258] sm:$0x1] %vm32, 0.0
  %59 = vst.msk [vmem:[#allocation2 + $0x270] sm:$0x1] %vm32, 0.0
  %60 = vst.msk [vmem:[#allocation2 + $0x288] sm:$0x1] %vm32, 0.0
  %61 = vst.msk [vmem:[#allocation2 + $0x2a0] sm:$0x1] %vm32, 0.0
  %62 = vst.msk [vmem:[#allocation2 + $0x2b8] sm:$0x1] %vm32, 0.0
  %63 = vst.msk [vmem:[#allocation2 + $0x2d0] sm:$0x1] %vm32, 0.0
  %64 = vst.msk [vmem:[#allocation2 + $0x2e8] sm:$0x1] %vm32, 0.0
  %65 = vst.msk [vmem:[#allocation2 + $0x300] sm:$0x1] %vm32, 0.0
  %66 = vst.msk [vmem:[#allocation2 + $0x318] sm:$0x1] %vm32, 0.0
  %67 = vst.msk [vmem:[#allocation2 + $0x330] sm:$0x1] %vm32, 0.0
  %68 = vst.msk [vmem:[#allocation2 + $0x348] sm:$0x1] %vm32, 0.0
  %69 = vst.msk [vmem:[#allocation2 + $0x11] sm:$0x1] %vm32, 0.0
  %70 = vst.msk [vmem:[#allocation2 + $0x29] sm:$0x1] %vm32, 0.0
  %71 = vst.msk [vmem:[#allocation2 + $0x41] sm:$0x1] %vm32, 0.0
  %72 = vst.msk [vmem:[#allocation2 + $0x59] sm:$0x1] %vm32, 0.0
  %73 = vst.msk [vmem:[#allocation2 + $0x71] sm:$0x1] %vm32, 0.0
  %74 = vst.msk [vmem:[#allocation2 + $0x89] sm:$0x1] %vm32, 0.0
  %75 = vst.msk [vmem:[#allocation2 + $0xa1] sm:$0x1] %vm32, 0.0
  %76 = vst.msk [vmem:[#allocation2 + $0xb9] sm:$0x1] %vm32, 0.0
  %77 = vst.msk [vmem:[#allocation2 + $0xd1] sm:$0x1] %vm32, 0.0
  %78 = vst.msk [vmem:[#allocation2 + $0xe9] sm:$0x1] %vm32, 0.0
  %79 = vst.msk [vmem:[#allocation2 + $0x101] sm:$0x1] %vm32, 0.0
  %80 = vst.msk [vmem:[#allocation2 + $0x119] sm:$0x1] %vm32, 0.0
  %81 = vst.msk [vmem:[#allocation2 + $0x131] sm:$0x1] %vm32, 0.0
  %82 = vst.msk [vmem:[#allocation2 + $0x149] sm:$0x1] %vm32, 0.0
  %83 = vst.msk [vmem:[#allocation2 + $0x161] sm:$0x1] %vm32, 0.0
  %84 = vst.msk [vmem:[#allocation2 + $0x179] sm:$0x1] %vm32, 0.0
  %85 = vst.msk [vmem:[#allocation2 + $0x191] sm:$0x1] %vm32, 0.0
  %86 = vst.msk [vmem:[#allocation2 + $0x1a9] sm:$0x1] %vm32, 0.0
  %87 = vst.msk [vmem:[#allocation2 + $0x1c1] sm:$0x1] %vm32, 0.0
  %88 = vst.msk [vmem:[#allocation2 + $0x1d9] sm:$0x1] %vm32, 0.0
  %89 = vst.msk [vmem:[#allocation2 + $0x1f1] sm:$0x1] %vm32, 0.0
  %90 = vst.msk [vmem:[#allocation2 + $0x209] sm:$0x1] %vm32, 0.0
  %91 = vst.msk [vmem:[#allocation2 + $0x221] sm:$0x1] %vm32, 0.0
  %92 = vst.msk [vmem:[#allocation2 + $0x239] sm:$0x1] %vm32, 0.0
  %93 = vst.msk [vmem:[#allocation2 + $0x251] sm:$0x1] %vm32, 0.0
  %94 = vst.msk [vmem:[#allocation2 + $0x269] sm:$0x1] %vm32, 0.0
  %95 = vst.msk [vmem:[#allocation2 + $0x281] sm:$0x1] %vm32, 0.0
  %96 = vst.msk [vmem:[#allocation2 + $0x299] sm:$0x1] %vm32, 0.0
  %97 = vst.msk [vmem:[#allocation2 + $0x2b1] sm:$0x1] %vm32, 0.0
  %98 = vst.msk [vmem:[#allocation2 + $0x2c9] sm:$0x1] %vm32, 0.0
  %99 = vst.msk [vmem:[#allocation2 + $0x2e1] sm:$0x1] %vm32, 0.0
  %100 = vst.msk [vmem:[#allocation2 + $0x2f9] sm:$0x1] %vm32, 0.0
  %101 = vst.msk [vmem:[#allocation2 + $0x311] sm:$0x1] %vm32, 0.0
  %102 = vst.msk [vmem:[#allocation2 + $0x329] sm:$0x1] %vm32, 0.0
  %103 = vst.msk [vmem:[#allocation2 + $0x341] sm:$0x1] %vm32, 0.0
  %104 = vst.msk [vmem:[#allocation2 + $0x359] sm:$0x1] %vm32, 0.0
  %v105 = vld [vmem:[%s0] sm:$0xff]
  %v106 = vld [vmem:[%s0 + $0x8] sm:$0xff]
  %v107 = vld [vmem:[%s0 + $0x10] sm:$0xff]
  %v108 = vld [vmem:[%s0 + $0x18] sm:$0xff]
  %v109 = vld [vmem:[%s0 + $0x20] sm:$0xff]
  %v110 = vld [vmem:[%s0 + $0x28] sm:$0xff]
  %v111 = vld [vmem:[%s0 + $0x30] sm:$0xff]
  %v112 = vld [vmem:[%s0 + $0x38] sm:$0xff]
  %v113 = vld [vmem:[%s0 + $0x40] sm:$0xff]
  %v114 = vld [vmem:[%s0 + $0x48] sm:$0xff]
  %v115 = vld [vmem:[%s0 + $0x50] sm:$0xff]
  %v116 = vld [vmem:[%s0 + $0x58] sm:$0xff]
  %v117 = vld [vmem:[%s0 + $0x60] sm:$0xff]
  %v118 = vld [vmem:[%s0 + $0x68] sm:$0xff]
  %v119 = vld [vmem:[%s0 + $0x70] sm:$0xff]
  %v120 = vld [vmem:[%s0 + $0x78] sm:$0xff]
  %v121 = vld [vmem:[%s0 + $0x80] sm:$0xff]
  %v122 = vld [vmem:[%s0 + $0x88] sm:$0xff]
  %v123 = vld [vmem:[%s0 + $0x90] sm:$0xff]
  %v124 = vld [vmem:[%s0 + $0x98] sm:$0xff]
  %v125 = vld [vmem:[%s0 + $0xa0] sm:$0xff]
  %v126 = vld [vmem:[%s0 + $0xa8] sm:$0xff]
  %v127 = vld [vmem:[%s0 + $0xb0] sm:$0xff]
  %v128 = vld [vmem:[%s0 + $0xb8] sm:$0xff]
  %v129 = vld [vmem:[%s0 + $0xc0] sm:$0xff]
  %v130 = vld [vmem:[%s0 + $0xc8] sm:$0xff]
  %v131 = vld [vmem:[%s0 + $0xd0] sm:$0xff]
  %v132 = vld [vmem:[%s0 + $0xd8] sm:$0xff]
  %v133 = vld [vmem:[%s0 + $0xe0] sm:$0xff]
  %v134 = vld [vmem:[%s0 + $0xe8] sm:$0xff]
  %v135 = vld [vmem:[%s0 + $0xf0] sm:$0xff]
  %v136 = vld [vmem:[%s0 + $0xf8] sm:$0xff]
  %v137 = vld [vmem:[%s0 + $0x100] sm:$0xff]
  %v138 = vld [vmem:[%s0 + $0x108] sm:$0xff]
  %v139 = vld [vmem:[%s0 + $0x110] sm:$0xff]
  %v140 = vld [vmem:[%s0 + $0x118] sm:$0xff]
  %v141 = vld [vmem:[%s0 + $0x120] sm:$0xff]
  %v142 = vld [vmem:[%s0 + $0x128] sm:$0xff]
  %v143 = vld [vmem:[%s0 + $0x130] sm:$0xff]
  %v144 = vld [vmem:[%s0 + $0x138] sm:$0xff]
  %v145 = vld [vmem:[%s0 + $0x140] sm:$0xff]
  %v146 = vld [vmem:[%s0 + $0x148] sm:$0xff]
  %v147 = vld [vmem:[%s0 + $0x150] sm:$0xff]
  %v148 = vld [vmem:[%s0 + $0x158] sm:$0xff]
  %v149 = vld [vmem:[%s0 + $0x160] sm:$0xff]
  %v150 = vld [vmem:[%s0 + $0x168] sm:$0xff]
  %v151 = vld [vmem:[%s0 + $0x170] sm:$0xff]
  %v152 = vld [vmem:[%s0 + $0x178] sm:$0xff]
  %v153 = vld [vmem:[%s0 + $0x180] sm:$0xff]
  %v154 = vld [vmem:[%s0 + $0x188] sm:$0xff]
  %v155 = vld [vmem:[%s0 + $0x190] sm:$0xff]
  %v156 = vld [vmem:[%s0 + $0x198] sm:$0xff]
  %v157 = vld [vmem:[%s0 + $0x1a0] sm:$0xff]
  %v158 = vld [vmem:[%s0 + $0x1a8] sm:$0xff]
  %v159 = vld [vmem:[%s0 + $0x1b0] sm:$0xff]
  %v160 = vld [vmem:[%s0 + $0x1b8] sm:$0xff]
  %v161 = vld [vmem:[%s0 + $0x1c0] sm:$0xff]
  %v162 = vld [vmem:[%s0 + $0x1c8] sm:$0xff]
  %v163 = vld [vmem:[%s0 + $0x1d0] sm:$0xff]
  %v164 = vld [vmem:[%s0 + $0x1d8] sm:$0xff]
  %v165 = vld [vmem:[%s0 + $0x1e0] sm:$0xff]
  %v166 = vld [vmem:[%s0 + $0x1e8] sm:$0xff]
  %v167 = vld [vmem:[%s0 + $0x1f0] sm:$0xff]
  %v168 = vld [vmem:[%s0 + $0x1f8] sm:$0xff]
  %v169 = vmax.f32 %v105, 0.0
  %v170 = vmax.f32 %v106, 0.0
  %v171 = vmax.f32 %v107, 0.0
  %v172 = vmax.f32 %v108, 0.0
  %v173 = vmax.f32 %v109, 0.0
  %v174 = vmax.f32 %v110, 0.0
  %v175 = vmax.f32 %v111, 0.0
  %v176 = vmax.f32 %v112, 0.0
  %v177 = vmax.f32 %v113, 0.0
  %v178 = vmax.f32 %v114, 0.0
  %v179 = vmax.f32 %v115, 0.0
  %v180 = vmax.f32 %v116, 0.0
  %v181 = vmax.f32 %v117, 0.0
  %v182 = vmax.f32 %v118, 0.0
  %v183 = vmax.f32 %v119, 0.0
  %v184 = vmax.f32 %v120, 0.0
  %v185 = vmax.f32 %v121, 0.0
  %v186 = vmax.f32 %v122, 0.0
  %v187 = vmax.f32 %v123, 0.0
  %v188 = vmax.f32 %v124, 0.0
  %v189 = vmax.f32 %v125, 0.0
  %v190 = vmax.f32 %v126, 0.0
  %v191 = vmax.f32 %v127, 0.0
  %v192 = vmax.f32 %v128, 0.0
  %v193 = vmax.f32 %v129, 0.0
  %v194 = vmax.f32 %v130, 0.0
  %v195 = vmax.f32 %v131, 0.0
  %v196 = vmax.f32 %v132, 0.0
  %v197 = vmax.f32 %v133, 0.0
  %v198 = vmax.f32 %v134, 0.0
  %v199 = vmax.f32 %v135, 0.0
  %v200 = vmax.f32 %v136, 0.0
  %v201 = vmax.f32 %v137, 0.0
  %v202 = vmax.f32 %v138, 0.0
  %v203 = vmax.f32 %v139, 0.0
  %v204 = vmax.f32 %v140, 0.0
  %v205 = vmax.f32 %v141, 0.0
  %v206 = vmax.f32 %v142, 0.0
  %v207 = vmax.f32 %v143, 0.0
  %v208 = vmax.f32 %v144, 0.0
  %v209 = vmax.f32 %v145, 0.0
  %v210 = vmax.f32 %v146, 0.0
  %v211 = vmax.f32 %v147, 0.0
  %v212 = vmax.f32 %v148, 0.0
  %v213 = vmax.f32 %v149, 0.0
  %v214 = vmax.f32 %v150, 0.0
  %v215 = vmax.f32 %v151, 0.0
  %v216 = vmax.f32 %v152, 0.0
  %v217 = vmax.f32 %v153, 0.0
  %v218 = vmax.f32 %v154, 0.0
  %v219 = vmax.f32 %v155, 0.0
  %v220 = vmax.f32 %v156, 0.0
  %v221 = vmax.f32 %v157, 0.0
  %v222 = vmax.f32 %v158, 0.0
  %v223 = vmax.f32 %v159, 0.0
  %v224 = vmax.f32 %v160, 0.0
  %v225 = vmax.f32 %v161, 0.0
  %v226 = vmax.f32 %v162, 0.0
  %v227 = vmax.f32 %v163, 0.0
  %v228 = vmax.f32 %v164, 0.0
  %v229 = vmax.f32 %v165, 0.0
  %v230 = vmax.f32 %v166, 0.0
  %v231 = vmax.f32 %v167, 0.0
  %v232 = vmax.f32 %v168, 0.0
  %s233 = scalar_lea.vmem [#allocation2], 24
  %234 = vst.msk [vmem:[%s233 + $0x1] sm:$0xff] %vm17, %v169
  %235 = vst.msk [vmem:[%s233 + $0x9] sm:$0xff] %vm17, %v170
  %236 = vst.msk [vmem:[%s233 + $0x19] sm:$0xff] %vm17, %v171
  %237 = vst.msk [vmem:[%s233 + $0x21] sm:$0xff] %vm17, %v172
  %238 = vst.msk [vmem:[%s233 + $0x31] sm:$0xff] %vm17, %v173
  %239 = vst.msk [vmem:[%s233 + $0x39] sm:$0xff] %vm17, %v174
  %240 = vst.msk [vmem:[%s233 + $0x49] sm:$0xff] %vm17, %v175
  %241 = vst.msk [vmem:[%s233 + $0x51] sm:$0xff] %vm17, %v176
  %242 = vst.msk [vmem:[%s233 + $0x61] sm:$0xff] %vm17, %v177
  %243 = vst.msk [vmem:[%s233 + $0x69] sm:$0xff] %vm17, %v178
  %244 = vst.msk [vmem:[%s233 + $0x79] sm:$0xff] %vm17, %v179
  %245 = vst.msk [vmem:[%s233 + $0x81] sm:$0xff] %vm17, %v180
  %246 = vst.msk [vmem:[%s233 + $0x91] sm:$0xff] %vm17, %v181
  %247 = vst.msk [vmem:[%s233 + $0x99] sm:$0xff] %vm17, %v182
  %248 = vst.msk [vmem:[%s233 + $0xa9] sm:$0xff] %vm17, %v183
  %249 = vst.msk [vmem:[%s233 + $0xb1] sm:$0xff] %vm17, %v184
  %250 = vst.msk [vmem:[%s233 + $0xc1] sm:$0xff] %vm17, %v185
  %251 = vst.msk [vmem:[%s233 + $0xc9] sm:$0xff] %vm17, %v186
  %252 = vst.msk [vmem:[%s233 + $0xd9] sm:$0xff] %vm17, %v187
  %253 = vst.msk [vmem:[%s233 + $0xe1] sm:$0xff] %vm17, %v188
  %254 = vst.msk [vmem:[%s233 + $0xf1] sm:$0xff] %vm17, %v189
  %255 = vst.msk [vmem:[%s233 + $0xf9] sm:$0xff] %vm17, %v190
  %256 = vst.msk [vmem:[%s233 + $0x109] sm:$0xff] %vm17, %v191
  %257 = vst.msk [vmem:[%s233 + $0x111] sm:$0xff] %vm17, %v192
  %258 = vst.msk [vmem:[%s233 + $0x121] sm:$0xff] %vm17, %v193
  %259 = vst.msk [vmem:[%s233 + $0x129] sm:$0xff] %vm17, %v194
  %260 = vst.msk [vmem:[%s233 + $0x139] sm:$0xff] %vm17, %v195
  %261 = vst.msk [vmem:[%s233 + $0x141] sm:$0xff] %vm17, %v196
  %262 = vst.msk [vmem:[%s233 + $0x151] sm:$0xff] %vm17, %v197
  %263 = vst.msk [vmem:[%s233 + $0x159] sm:$0xff] %vm17, %v198
  %264 = vst.msk [vmem:[%s233 + $0x169] sm:$0xff] %vm17, %v199
  %265 = vst.msk [vmem:[%s233 + $0x171] sm:$0xff] %vm17, %v200
  %266 = vst.msk [vmem:[%s233 + $0x1b1] sm:$0xff] %vm17, %v201
  %267 = vst.msk [vmem:[%s233 + $0x1b9] sm:$0xff] %vm17, %v202
  %268 = vst.msk [vmem:[%s233 + $0x1c9] sm:$0xff] %vm17, %v203
  %269 = vst.msk [vmem:[%s233 + $0x1d1] sm:$0xff] %vm17, %v204
  %270 = vst.msk [vmem:[%s233 + $0x1e1] sm:$0xff] %vm17, %v205
  %271 = vst.msk [vmem:[%s233 + $0x1e9] sm:$0xff] %vm17, %v206
  %272 = vst.msk [vmem:[%s233 + $0x1f9] sm:$0xff] %vm17, %v207
  %273 = vst.msk [vmem:[%s233 + $0x201] sm:$0xff] %vm17, %v208
  %274 = vst.msk [vmem:[%s233 + $0x211] sm:$0xff] %vm17, %v209
  %275 = vst.msk [vmem:[%s233 + $0x219] sm:$0xff] %vm17, %v210
  %276 = vst.msk [vmem:[%s233 + $0x229] sm:$0xff] %vm17, %v211
  %277 = vst.msk [vmem:[%s233 + $0x231] sm:$0xff] %vm17, %v212
  %278 = vst.msk [vmem:[%s233 + $0x241] sm:$0xff] %vm17, %v213
  %279 = vst.msk [vmem:[%s233 + $0x249] sm:$0xff] %vm17, %v214
  %280 = vst.msk [vmem:[%s233 + $0x259] sm:$0xff] %vm17, %v215
  %281 = vst.msk [vmem:[%s233 + $0x261] sm:$0xff] %vm17, %v216
  %282 = vst.msk [vmem:[%s233 + $0x271] sm:$0xff] %vm17, %v217
  %283 = vst.msk [vmem:[%s233 + $0x279] sm:$0xff] %vm17, %v218
  %284 = vst.msk [vmem:[%s233 + $0x289] sm:$0xff] %vm17, %v219
  %285 = vst.msk [vmem:[%s233 + $0x291] sm:$0xff] %vm17, %v220
  %286 = vst.msk [vmem:[%s233 + $0x2a1] sm:$0xff] %vm17, %v221
  %287 = vst.msk [vmem:[%s233 + $0x2a9] sm:$0xff] %vm17, %v222
  %288 = vst.msk [vmem:[%s233 + $0x2b9] sm:$0xff] %vm17, %v223
  %289 = vst.msk [vmem:[%s233 + $0x2c1] sm:$0xff] %vm17, %v224
  %290 = vst.msk [vmem:[%s233 + $0x2d1] sm:$0xff] %vm17, %v225
  %291 = vst.msk [vmem:[%s233 + $0x2d9] sm:$0xff] %vm17, %v226
  %292 = vst.msk [vmem:[%s233 + $0x2e9] sm:$0xff] %vm17, %v227
  %293 = vst.msk [vmem:[%s233 + $0x2f1] sm:$0xff] %vm17, %v228
  %294 = vst.msk [vmem:[%s233 + $0x301] sm:$0xff] %vm17, %v229
  %295 = vst.msk [vmem:[%s233 + $0x309] sm:$0xff] %vm17, %v230
  %296 = vst.msk [vmem:[%s233 + $0x319] sm:$0xff] %vm17, %v231
  %297 = vst.msk [vmem:[%s233 + $0x321] sm:$0xff] %vm17, %v232
  %v298 = vld [vmem:[#allocation2] sm:$0xff]
  %v299 = vld [vmem:[#allocation2 + $0x8] sm:$0xff]
  %v300 = vld [vmem:[#allocation2 + $0x10] sm:$0x3]
  %v301 = vld [vmem:[#allocation2 + $0x18] sm:$0xff]
  %v302 = vld [vmem:[#allocation2 + $0x20] sm:$0xff]
  %v303 = vld [vmem:[#allocation2 + $0x28] sm:$0x3]
  %v304 = vld [vmem:[#allocation2 + $0x30] sm:$0xff]
  %v305 = vld [vmem:[#allocation2 + $0x38] sm:$0xff]
  %v306 = vld [vmem:[#allocation2 + $0x40] sm:$0x3]
  %v307 = vld [vmem:[#allocation2 + $0x48] sm:$0xff]
  %v308 = vld [vmem:[#allocation2 + $0x50] sm:$0xff]
  %v309 = vld [vmem:[#allocation2 + $0x58] sm:$0x3]
  %v310 = vld [vmem:[#allocation2 + $0x60] sm:$0xff]
  %v311 = vld [vmem:[#allocation2 + $0x68] sm:$0xff]
  %v312 = vld [vmem:[#allocation2 + $0x70] sm:$0x3]
  %v313 = vld [vmem:[#allocation2 + $0x78] sm:$0xff]
  %v314 = vld [vmem:[#allocation2 + $0x80] sm:$0xff]
  %v315 = vld [vmem:[#allocation2 + $0x88] sm:$0x3]
  %v316 = vld [vmem:[#allocation2 + $0x90] sm:$0xff]
  %v317 = vld [vmem:[#allocation2 + $0x98] sm:$0xff]
  %v318 = vld [vmem:[#allocation2 + $0xa0] sm:$0x3]
  %v319 = vld [vmem:[#allocation2 + $0xa8] sm:$0xff]
  %v320 = vld [vmem:[#allocation2 + $0xb0] sm:$0xff]
  %v321 = vld [vmem:[#allocation2 + $0xb8] sm:$0x3]
  %v322 = vld [vmem:[#allocation2 + $0xc0] sm:$0xff]
  %v323 = vld [vmem:[#allocation2 + $0xc8] sm:$0xff]
  %v324 = vld [vmem:[#allocation2 + $0xd0] sm:$0x3]
  %v325 = vld [vmem:[#allocation2 + $0xd8] sm:$0xff]
  %v326 = vld [vmem:[#allocation2 + $0xe0] sm:$0xff]
  %v327 = vld [vmem:[#allocation2 + $0xe8] sm:$0x3]
  %v328 = vld [vmem:[#allocation2 + $0xf0] sm:$0xff]
  %v329 = vld [vmem:[#allocation2 + $0xf8] sm:$0xff]
  %v330 = vld [vmem:[#allocation2 + $0x100] sm:$0x3]
  %v331 = vld [vmem:[#allocation2 + $0x108] sm:$0xff]
  %v332 = vld [vmem:[#allocation2 + $0x110] sm:$0xff]
  %v333 = vld [vmem:[#allocation2 + $0x118] sm:$0x3]
  %v334 = vld [vmem:[#allocation2 + $0x120] sm:$0xff]
  %v335 = vld [vmem:[#allocation2 + $0x128] sm:$0xff]
  %v336 = vld [vmem:[#allocation2 + $0x130] sm:$0x3]
  %v337 = vld [vmem:[#allocation2 + $0x138] sm:$0xff]
  %v338 = vld [vmem:[#allocation2 + $0x140] sm:$0xff]
  %v339 = vld [vmem:[#allocation2 + $0x148] sm:$0x3]
  %v340 = vld [vmem:[#allocation2 + $0x150] sm:$0xff]
  %v341 = vld [vmem:[#allocation2 + $0x158] sm:$0xff]
  %v342 = vld [vmem:[#allocation2 + $0x160] sm:$0x3]
  %v343 = vld [vmem:[#allocation2 + $0x168] sm:$0xff]
  %v344 = vld [vmem:[#allocation2 + $0x170] sm:$0xff]
  %v345 = vld [vmem:[#allocation2 + $0x178] sm:$0x3]
  %v346 = vld [vmem:[#allocation2 + $0x180] sm:$0xff]
  %v347 = vld [vmem:[#allocation2 + $0x188] sm:$0xff]
  %v348 = vld [vmem:[#allocation2 + $0x190] sm:$0x3]
  %v349 = vld [vmem:[#allocation2 + $0x198] sm:$0xff]
  %v350 = vld [vmem:[#allocation2 + $0x1a0] sm:$0xff]
  %v351 = vld [vmem:[#allocation2 + $0x1a8] sm:$0x3]
  %v352 = vld [vmem:[#allocation2 + $0x1b0] sm:$0xff]
  %v353 = vld [vmem:[#allocation2 + $0x1b8] sm:$0xff]
  %v354 = vld [vmem:[#allocation2 + $0x1c0] sm:$0x3]
  %v355 = vld [vmem:[#allocation2 + $0x1c8] sm:$0xff]
  %v356 = vld [vmem:[#allocation2 + $0x1d0] sm:$0xff]
  %v357 = vld [vmem:[#allocation2 + $0x1d8] sm:$0x3]
  %v358 = vld [vmem:[#allocation2 + $0x1e0] sm:$0xff]
  %v359 = vld [vmem:[#allocation2 + $0x1e8] sm:$0xff]
  %v360 = vld [vmem:[#allocation2 + $0x1f0] sm:$0x3]
  %v361 = vld [vmem:[#allocation2 + $0x1f8] sm:$0xff]
  %v362 = vld [vmem:[#allocation2 + $0x200] sm:$0xff]
  %v363 = vld [vmem:[#allocation2 + $0x208] sm:$0x3]
  %v364 = vld [vmem:[#allocation2 + $0x210] sm:$0xff]
  %v365 = vld [vmem:[#allocation2 + $0x218] sm:$0xff]
  %v366 = vld [vmem:[#allocation2 + $0x220] sm:$0x3]
  %v367 = vld [vmem:[#allocation2 + $0x228] sm:$0xff]
  %v368 = vld [vmem:[#allocation2 + $0x230] sm:$0xff]
  %v369 = vld [vmem:[#allocation2 + $0x238] sm:$0x3]
  %v370 = vld [vmem:[#allocation2 + $0x240] sm:$0xff]
  %v371 = vld [vmem:[#allocation2 + $0x248] sm:$0xff]
  %v372 = vld [vmem:[#allocation2 + $0x250] sm:$0x3]
  %v373 = vld [vmem:[#allocation2 + $0x258] sm:$0xff]
  %v374 = vld [vmem:[#allocation2 + $0x260] sm:$0xff]
  %v375 = vld [vmem:[#allocation2 + $0x268] sm:$0x3]
  %v376 = vld [vmem:[#allocation2 + $0x270] sm:$0xff]
  %v377 = vld [vmem:[#allocation2 + $0x278] sm:$0xff]
  %v378 = vld [vmem:[#allocation2 + $0x280] sm:$0x3]
  %v379 = vld [vmem:[#allocation2 + $0x288] sm:$0xff]
  %v380 = vld [vmem:[#allocation2 + $0x290] sm:$0xff]
  %v381 = vld [vmem:[#allocation2 + $0x298] sm:$0x3]
  %v382 = vld [vmem:[#allocation2 + $0x2a0] sm:$0xff]
  %v383 = vld [vmem:[#allocation2 + $0x2a8] sm:$0xff]
  %v384 = vld [vmem:[#allocation2 + $0x2b0] sm:$0x3]
  %v385 = vld [vmem:[#allocation2 + $0x2b8] sm:$0xff]
  %v386 = vld [vmem:[#allocation2 + $0x2c0] sm:$0xff]
  %v387 = vld [vmem:[#allocation2 + $0x2c8] sm:$0x3]
  %v388 = vld [vmem:[#allocation2 + $0x2d0] sm:$0xff]
  %v389 = vld [vmem:[#allocation2 + $0x2d8] sm:$0xff]
  %v390 = vld [vmem:[#allocation2 + $0x2e0] sm:$0x3]
  %v391 = vld [vmem:[#allocation2 + $0x2e8] sm:$0xff]
  %v392 = vld [vmem:[#allocation2 + $0x2f0] sm:$0xff]
  %v393 = vld [vmem:[#allocation2 + $0x2f8] sm:$0x3]
  %v394 = vld [vmem:[#allocation2 + $0x300] sm:$0xff]
  %v395 = vld [vmem:[#allocation2 + $0x308] sm:$0xff]
  %v396 = vld [vmem:[#allocation2 + $0x310] sm:$0x3]
  %v397 = vld [vmem:[#allocation2 + $0x318] sm:$0xff]
  %v398 = vld [vmem:[#allocation2 + $0x320] sm:$0xff]
  %v399 = vld [vmem:[#allocation2 + $0x328] sm:$0x3]
  %v400 = vld [vmem:[#allocation2 + $0x330] sm:$0xff]
  %v401 = vld [vmem:[#allocation2 + $0x338] sm:$0xff]
  %v402 = vld [vmem:[#allocation2 + $0x340] sm:$0x3]
  %v403 = vld [vmem:[#allocation2 + $0x348] sm:$0xff]
  %v404 = vld [vmem:[#allocation2 + $0x350] sm:$0xff]
  %v405 = vld [vmem:[#allocation2 + $0x358] sm:$0x3]
  %v406 = vld [vmem:[%s1] sm:$0x1]
  %v407 = vld [vmem:[%s1 + $0x1] sm:$0x1]
  %v408 = vld [vmem:[%s1 + $0x2] sm:$0x1]
  %v409 = vld [vmem:[%s1 + $0x3] sm:$0x1]
  %v410 = vld [vmem:[%s1 + $0x4] sm:$0x1]
  %v411 = vld [vmem:[%s1 + $0x5] sm:$0x1]
  %v412 = vld [vmem:[%s1 + $0x6] sm:$0x1]
  %v413 = vld [vmem:[%s1 + $0x7] sm:$0x1]
  %v414 = vld [vmem:[%s1 + $0x8] sm:$0x1]
  %v416 = vlaneseq
  %v417 = vshrl.u32 %v416, 7
  %v418 = vsub.s32 0, %v417
  %v419 = vrot.slane %v406, %v418
  %v421 = vmul.f32 %v298, %v419
  %v422 = vmul.f32 %v299, %v419
  %v423 = vmul.f32 %v301, %v419
  %v424 = vmul.f32 %v302, %v419
  %v425 = vmul.f32 %v304, %v419
  %v426 = vmul.f32 %v305, %v419
  %v427 = vmul.f32 %v307, %v419
  %v428 = vmul.f32 %v308, %v419
  %v429 = vmul.f32 %v310, %v419
  %v430 = vmul.f32 %v311, %v419
  %v431 = vmul.f32 %v313, %v419
  %v432 = vmul.f32 %v314, %v419
  %v433 = vmul.f32 %v316, %v419
  %v434 = vmul.f32 %v317, %v419
  %v435 = vmul.f32 %v319, %v419
  %v436 = vmul.f32 %v320, %v419
  %v437 = vmul.f32 %v322, %v419
  %v438 = vmul.f32 %v323, %v419
  %v439 = vmul.f32 %v325, %v419
  %v440 = vmul.f32 %v326, %v419
  %v441 = vmul.f32 %v328, %v419
  %v442 = vmul.f32 %v329, %v419
  %v443 = vmul.f32 %v331, %v419
  %v444 = vmul.f32 %v332, %v419
  %v445 = vmul.f32 %v334, %v419
  %v446 = vmul.f32 %v335, %v419
  %v447 = vmul.f32 %v337, %v419
  %v448 = vmul.f32 %v338, %v419
  %v449 = vmul.f32 %v340, %v419
  %v450 = vmul.f32 %v341, %v419
  %v451 = vmul.f32 %v343, %v419
  %v452 = vmul.f32 %v344, %v419
  %v453 = vmul.f32 %v352, %v419
  %v454 = vmul.f32 %v353, %v419
  %v455 = vmul.f32 %v355, %v419
  %v456 = vmul.f32 %v356, %v419
  %v457 = vmul.f32 %v358, %v419
  %v458 = vmul.f32 %v359, %v419
  %v459 = vmul.f32 %v361, %v419
  %v460 = vmul.f32 %v362, %v419
  %v461 = vmul.f32 %v364, %v419
  %v462 = vmul.f32 %v365, %v419
  %v463 = vmul.f32 %v367, %v419
  %v464 = vmul.f32 %v368, %v419
  %v465 = vmul.f32 %v370, %v419
  %v466 = vmul.f32 %v371, %v419
  %v467 = vmul.f32 %v373, %v419
  %v468 = vmul.f32 %v374, %v419
  %v469 = vmul.f32 %v376, %v419
  %v470 = vmul.f32 %v377, %v419
  %v471 = vmul.f32 %v379, %v419
  %v472 = vmul.f32 %v380, %v419
  %v473 = vmul.f32 %v382, %v419
  %v474 = vmul.f32 %v383, %v419
  %v475 = vmul.f32 %v385, %v419
  %v476 = vmul.f32 %v386, %v419
  %v477 = vmul.f32 %v388, %v419
  %v478 = vmul.f32 %v389, %v419
  %v479 = vmul.f32 %v391, %v419
  %v480 = vmul.f32 %v392, %v419
  %v481 = vmul.f32 %v394, %v419
  %v482 = vmul.f32 %v395, %v419
  %v483 = vmul.f32 %v397, %v419
  %v484 = vmul.f32 %v398, %v419
  %v485 = vadd.f32 %v421, 0.0
  %v486 = vadd.f32 %v422, 0.0
  %v487 = vadd.f32 %v423, 0.0
  %v488 = vadd.f32 %v424, 0.0
  %v489 = vadd.f32 %v425, 0.0
  %v490 = vadd.f32 %v426, 0.0
  %v491 = vadd.f32 %v427, 0.0
  %v492 = vadd.f32 %v428, 0.0
  %v493 = vadd.f32 %v429, 0.0
  %v494 = vadd.f32 %v430, 0.0
  %v495 = vadd.f32 %v431, 0.0
  %v496 = vadd.f32 %v432, 0.0
  %v497 = vadd.f32 %v433, 0.0
  %v498 = vadd.f32 %v434, 0.0
  %v499 = vadd.f32 %v435, 0.0
  %v500 = vadd.f32 %v436, 0.0
  %v501 = vadd.f32 %v437, 0.0
  %v502 = vadd.f32 %v438, 0.0
  %v503 = vadd.f32 %v439, 0.0
  %v504 = vadd.f32 %v440, 0.0
  %v505 = vadd.f32 %v441, 0.0
  %v506 = vadd.f32 %v442, 0.0
  %v507 = vadd.f32 %v443, 0.0
  %v508 = vadd.f32 %v444, 0.0
  %v509 = vadd.f32 %v445, 0.0
  %v510 = vadd.f32 %v446, 0.0
  %v511 = vadd.f32 %v447, 0.0
  %v512 = vadd.f32 %v448, 0.0
  %v513 = vadd.f32 %v449, 0.0
  %v514 = vadd.f32 %v450, 0.0
  %v515 = vadd.f32 %v451, 0.0
  %v516 = vadd.f32 %v452, 0.0
  %v517 = vadd.f32 %v453, 0.0
  %v518 = vadd.f32 %v454, 0.0
  %v519 = vadd.f32 %v455, 0.0
  %v520 = vadd.f32 %v456, 0.0
  %v521 = vadd.f32 %v457, 0.0
  %v522 = vadd.f32 %v458, 0.0
  %v523 = vadd.f32 %v459, 0.0
  %v524 = vadd.f32 %v460, 0.0
  %v525 = vadd.f32 %v461, 0.0
  %v526 = vadd.f32 %v462, 0.0
  %v527 = vadd.f32 %v463, 0.0
  %v528 = vadd.f32 %v464, 0.0
  %v529 = vadd.f32 %v465, 0.0
  %v530 = vadd.f32 %v466, 0.0
  %v531 = vadd.f32 %v467, 0.0
  %v532 = vadd.f32 %v468, 0.0
  %v533 = vadd.f32 %v469, 0.0
  %v534 = vadd.f32 %v470, 0.0
  %v535 = vadd.f32 %v471, 0.0
  %v536 = vadd.f32 %v472, 0.0
  %v537 = vadd.f32 %v473, 0.0
  %v538 = vadd.f32 %v474, 0.0
  %v539 = vadd.f32 %v475, 0.0
  %v540 = vadd.f32 %v476, 0.0
  %v541 = vadd.f32 %v477, 0.0
  %v542 = vadd.f32 %v478, 0.0
  %v543 = vadd.f32 %v479, 0.0
  %v544 = vadd.f32 %v480, 0.0
  %v545 = vadd.f32 %v481, 0.0
  %v546 = vadd.f32 %v482, 0.0
  %v547 = vadd.f32 %v483, 0.0
  %v548 = vadd.f32 %v484, 0.0
  %v550 = vlaneseq
  %v551 = vshrl.u32 %v550, 7
  %v552 = vsub.s32 0, %v551
  %v553 = vrot.slane %v407, %v552
  %v555 = vmul.f32 %v298, %v553
  %v556 = vmul.f32 %v299, %v553
  %v557 = vmul.f32 %v300, %v553
  %v558 = vmul.f32 %v301, %v553
  %v559 = vmul.f32 %v302, %v553
  %v560 = vmul.f32 %v303, %v553
  %v561 = vmul.f32 %v304, %v553
  %v562 = vmul.f32 %v305, %v553
  %v563 = vmul.f32 %v306, %v553
  %v564 = vmul.f32 %v307, %v553
  %v565 = vmul.f32 %v308, %v553
  %v566 = vmul.f32 %v309, %v553
  %v567 = vmul.f32 %v310, %v553
  %v568 = vmul.f32 %v311, %v553
  %v569 = vmul.f32 %v312, %v553
  %v570 = vmul.f32 %v313, %v553
  %v571 = vmul.f32 %v314, %v553
  %v572 = vmul.f32 %v315, %v553
  %v573 = vmul.f32 %v316, %v553
  %v574 = vmul.f32 %v317, %v553
  %v575 = vmul.f32 %v318, %v553
  %v576 = vmul.f32 %v319, %v553
  %v577 = vmul.f32 %v320, %v553
  %v578 = vmul.f32 %v321, %v553
  %v579 = vmul.f32 %v322, %v553
  %v580 = vmul.f32 %v323, %v553
  %v581 = vmul.f32 %v324, %v553
  %v582 = vmul.f32 %v325, %v553
  %v583 = vmul.f32 %v326, %v553
  %v584 = vmul.f32 %v327, %v553
  %v585 = vmul.f32 %v328, %v553
  %v586 = vmul.f32 %v329, %v553
  %v587 = vmul.f32 %v330, %v553
  %v588 = vmul.f32 %v331, %v553
  %v589 = vmul.f32 %v332, %v553
  %v590 = vmul.f32 %v333, %v553
  %v591 = vmul.f32 %v334, %v553
  %v592 = vmul.f32 %v335, %v553
  %v593 = vmul.f32 %v336, %v553
  %v594 = vmul.f32 %v337, %v553
  %v595 = vmul.f32 %v338, %v553
  %v596 = vmul.f32 %v339, %v553
  %v597 = vmul.f32 %v340, %v553
  %v598 = vmul.f32 %v341, %v553
  %v599 = vmul.f32 %v342, %v553
  %v600 = vmul.f32 %v343, %v553
  %v601 = vmul.f32 %v344, %v553
  %v602 = vmul.f32 %v345, %v553
  %v603 = vmul.f32 %v352, %v553
  %v604 = vmul.f32 %v353, %v553
  %v605 = vmul.f32 %v354, %v553
  %v606 = vmul.f32 %v355, %v553
  %v607 = vmul.f32 %v356, %v553
  %v608 = vmul.f32 %v357, %v553
  %v609 = vmul.f32 %v358, %v553
  %v610 = vmul.f32 %v359, %v553
  %v611 = vmul.f32 %v360, %v553
  %v612 = vmul.f32 %v361, %v553
  %v613 = vmul.f32 %v362, %v553
  %v614 = vmul.f32 %v363, %v553
  %v615 = vmul.f32 %v364, %v553
  %v616 = vmul.f32 %v365, %v553
  %v617 = vmul.f32 %v366, %v553
  %v618 = vmul.f32 %v367, %v553
  %v619 = vmul.f32 %v368, %v553
  %v620 = vmul.f32 %v369, %v553
  %v621 = vmul.f32 %v370, %v553
  %v622 = vmul.f32 %v371, %v553
  %v623 = vmul.f32 %v372, %v553
  %v624 = vmul.f32 %v373, %v553
  %v625 = vmul.f32 %v374, %v553
  %v626 = vmul.f32 %v375, %v553
  %v627 = vmul.f32 %v376, %v553
  %v628 = vmul.f32 %v377, %v553
  %v629 = vmul.f32 %v378, %v553
  %v630 = vmul.f32 %v379, %v553
  %v631 = vmul.f32 %v380, %v553
  %v632 = vmul.f32 %v381, %v553
  %v633 = vmul.f32 %v382, %v553
  %v634 = vmul.f32 %v383, %v553
  %v635 = vmul.f32 %v384, %v553
  %v636 = vmul.f32 %v385, %v553
  %v637 = vmul.f32 %v386, %v553
  %v638 = vmul.f32 %v387, %v553
  %v639 = vmul.f32 %v388, %v553
  %v640 = vmul.f32 %v389, %v553
  %v641 = vmul.f32 %v390, %v553
  %v642 = vmul.f32 %v391, %v553
  %v643 = vmul.f32 %v392, %v553
  %v644 = vmul.f32 %v393, %v553
  %v645 = vmul.f32 %v394, %v553
  %v646 = vmul.f32 %v395, %v553
  %v647 = vmul.f32 %v396, %v553
  %v648 = vmul.f32 %v397, %v553
  %v649 = vmul.f32 %v398, %v553
  %v650 = vmul.f32 %v399, %v553
  %vm747 = vcmask 1046528
  %v748 = vrot.slane %v555, 1
  %v749 = vrot.slane %v556, 1
  %v750 = vsel %vm747, %v748, %v749
  %v751 = vrot.slane %v557, 1
  %v752 = vsel %vm747, %v749, %v751
  %v753 = vrot.slane %v558, 1
  %v754 = vrot.slane %v559, 1
  %v755 = vsel %vm747, %v753, %v754
  %v756 = vrot.slane %v560, 1
  %v757 = vsel %vm747, %v754, %v756
  %v758 = vrot.slane %v561, 1
  %v759 = vrot.slane %v562, 1
  %v760 = vsel %vm747, %v758, %v759
  %v761 = vrot.slane %v563, 1
  %v762 = vsel %vm747, %v759, %v761
  %v763 = vrot.slane %v564, 1
  %v764 = vrot.slane %v565, 1
  %v765 = vsel %vm747, %v763, %v764
  %v766 = vrot.slane %v566, 1
  %v767 = vsel %vm747, %v764, %v766
  %v768 = vrot.slane %v567, 1
  %v769 = vrot.slane %v568, 1
  %v770 = vsel %vm747, %v768, %v769
  %v771 = vrot.slane %v569, 1
  %v772 = vsel %vm747, %v769, %v771
  %v773 = vrot.slane %v570, 1
  %v774 = vrot.slane %v571, 1
  %v775 = vsel %vm747, %v773, %v774
  %v776 = vrot.slane %v572, 1
  %v777 = vsel %vm747, %v774, %v776
  %v778 = vrot.slane %v573, 1
  %v779 = vrot.slane %v574, 1
  %v780 = vsel %vm747, %v778, %v779
  %v781 = vrot.slane %v575, 1
  %v782 = vsel %vm747, %v779, %v781
  %v783 = vrot.slane %v576, 1
  %v784 = vrot.slane %v577, 1
  %v785 = vsel %vm747, %v783, %v784
  %v786 = vrot.slane %v578, 1
  %v787 = vsel %vm747, %v784, %v786
  %v788 = vrot.slane %v579, 1
  %v789 = vrot.slane %v580, 1
  %v790 = vsel %vm747, %v788, %v789
  %v791 = vrot.slane %v581, 1
  %v792 = vsel %vm747, %v789, %v791
  %v793 = vrot.slane %v582, 1
  %v794 = vrot.slane %v583, 1
  %v795 = vsel %vm747, %v793, %v794
  %v796 = vrot.slane %v584, 1
  %v797 = vsel %vm747, %v794, %v796
  %v798 = vrot.slane %v585, 1
  %v799 = vrot.slane %v586, 1
  %v800 = vsel %vm747, %v798, %v799
  %v801 = vrot.slane %v587, 1
  %v802 = vsel %vm747, %v799, %v801
  %v803 = vrot.slane %v588, 1
  %v804 = vrot.slane %v589, 1
  %v805 = vsel %vm747, %v803, %v804
  %v806 = vrot.slane %v590, 1
  %v807 = vsel %vm747, %v804, %v806
  %v808 = vrot.slane %v591, 1
  %v809 = vrot.slane %v592, 1
  %v810 = vsel %vm747, %v808, %v809
  %v811 = vrot.slane %v593, 1
  %v812 = vsel %vm747, %v809, %v811
  %v813 = vrot.slane %v594, 1
  %v814 = vrot.slane %v595, 1
  %v815 = vsel %vm747, %v813, %v814
  %v816 = vrot.slane %v596, 1
  %v817 = vsel %vm747, %v814, %v816
  %v818 = vrot.slane %v597, 1
  %v819 = vrot.slane %v598, 1
  %v820 = vsel %vm747, %v818, %v819
  %v821 = vrot.slane %v599, 1
  %v822 = vsel %vm747, %v819, %v821
  %v823 = vrot.slane %v600, 1
  %v824 = vrot.slane %v601, 1
  %v825 = vsel %vm747, %v823, %v824
  %v826 = vrot.slane %v602, 1
  %v827 = vsel %vm747, %v824, %v826
  %v828 = vrot.slane %v603, 1
  %v829 = vrot.slane %v604, 1
  %v830 = vsel %vm747, %v828, %v829
  %v831 = vrot.slane %v605, 1
  %v832 = vsel %vm747, %v829, %v831
  %v833 = vrot.slane %v606, 1
  %v834 = vrot.slane %v607, 1
  %v835 = vsel %vm747, %v833, %v834
  %v836 = vrot.slane %v608, 1
  %v837 = vsel %vm747, %v834, %v836
  %v838 = vrot.slane %v609, 1
  %v839 = vrot.slane %v610, 1
  %v840 = vsel %vm747, %v838, %v839
  %v841 = vrot.slane %v611, 1
  %v842 = vsel %vm747, %v839, %v841
  %v843 = vrot.slane %v612, 1
  %v844 = vrot.slane %v613, 1
  %v845 = vsel %vm747, %v843, %v844
  %v846 = vrot.slane %v614, 1
  %v847 = vsel %vm747, %v844, %v846
  %v848 = vrot.slane %v615, 1
  %v849 = vrot.slane %v616, 1
  %v850 = vsel %vm747, %v848, %v849
  %v851 = vrot.slane %v617, 1
  %v852 = vsel %vm747, %v849, %v851
  %v853 = vrot.slane %v618, 1
  %v854 = vrot.slane %v619, 1
  %v855 = vsel %vm747, %v853, %v854
  %v856 = vrot.slane %v620, 1
  %v857 = vsel %vm747, %v854, %v856
  %v858 = vrot.slane %v621, 1
  %v859 = vrot.slane %v622, 1
  %v860 = vsel %vm747, %v858, %v859
  %v861 = vrot.slane %v623, 1
  %v862 = vsel %vm747, %v859, %v861
  %v863 = vrot.slane %v624, 1
  %v864 = vrot.slane %v625, 1
  %v865 = vsel %vm747, %v863, %v864
  %v866 = vrot.slane %v626, 1
  %v867 = vsel %vm747, %v864, %v866
  %v868 = vrot.slane %v627, 1
  %v869 = vrot.slane %v628, 1
  %v870 = vsel %vm747, %v868, %v869
  %v871 = vrot.slane %v629, 1
  %v872 = vsel %vm747, %v869, %v871
  %v873 = vrot.slane %v630, 1
  %v874 = vrot.slane %v631, 1
  %v875 = vsel %vm747, %v873, %v874
  %v876 = vrot.slane %v632, 1
  %v877 = vsel %vm747, %v874, %v876
  %v878 = vrot.slane %v633, 1
  %v879 = vrot.slane %v634, 1
  %v880 = vsel %vm747, %v878, %v879
  %v881 = vrot.slane %v635, 1
  %v882 = vsel %vm747, %v879, %v881
  %v883 = vrot.slane %v636, 1
  %v884 = vrot.slane %v637, 1
  %v885 = vsel %vm747, %v883, %v884
  %v886 = vrot.slane %v638, 1
  %v887 = vsel %vm747, %v884, %v886
  %v888 = vrot.slane %v639, 1
  %v889 = vrot.slane %v640, 1
  %v890 = vsel %vm747, %v888, %v889
  %v891 = vrot.slane %v641, 1
  %v892 = vsel %vm747, %v889, %v891
  %v893 = vrot.slane %v642, 1
  %v894 = vrot.slane %v643, 1
  %v895 = vsel %vm747, %v893, %v894
  %v896 = vrot.slane %v644, 1
  %v897 = vsel %vm747, %v894, %v896
  %v898 = vrot.slane %v645, 1
  %v899 = vrot.slane %v646, 1
  %v900 = vsel %vm747, %v898, %v899
  %v901 = vrot.slane %v647, 1
  %v902 = vsel %vm747, %v899, %v901
  %v903 = vrot.slane %v648, 1
  %v904 = vrot.slane %v649, 1
  %v905 = vsel %vm747, %v903, %v904
  %v906 = vrot.slane %v650, 1
  %v907 = vsel %vm747, %v904, %v906
  %v972 = vadd.f32 %v485, %v750
  %v973 = vadd.f32 %v486, %v752
  %v974 = vadd.f32 %v487, %v755
  %v975 = vadd.f32 %v488, %v757
  %v976 = vadd.f32 %v489, %v760
  %v977 = vadd.f32 %v490, %v762
  %v978 = vadd.f32 %v491, %v765
  %v979 = vadd.f32 %v492, %v767
  %v980 = vadd.f32 %v493, %v770
  %v981 = vadd.f32 %v494, %v772
  %v982 = vadd.f32 %v495, %v775
  %v983 = vadd.f32 %v496, %v777
  %v984 = vadd.f32 %v497, %v780
  %v985 = vadd.f32 %v498, %v782
  %v986 = vadd.f32 %v499, %v785
  %v987 = vadd.f32 %v500, %v787
  %v988 = vadd.f32 %v501, %v790
  %v989 = vadd.f32 %v502, %v792
  %v990 = vadd.f32 %v503, %v795
  %v991 = vadd.f32 %v504, %v797
  %v992 = vadd.f32 %v505, %v800
  %v993 = vadd.f32 %v506, %v802
  %v994 = vadd.f32 %v507, %v805
  %v995 = vadd.f32 %v508, %v807
  %v996 = vadd.f32 %v509, %v810
  %v997 = vadd.f32 %v510, %v812
  %v998 = vadd.f32 %v511, %v815
  %v999 = vadd.f32 %v512, %v817
  %v1000 = vadd.f32 %v513, %v820
  %v1001 = vadd.f32 %v514, %v822
  %v1002 = vadd.f32 %v515, %v825
  %v1003 = vadd.f32 %v516, %v827
  %v1004 = vadd.f32 %v517, %v830
  %v1005 = vadd.f32 %v518, %v832
  %v1006 = vadd.f32 %v519, %v835
  %v1007 = vadd.f32 %v520, %v837
  %v1008 = vadd.f32 %v521, %v840
  %v1009 = vadd.f32 %v522, %v842
  %v1010 = vadd.f32 %v523, %v845
  %v1011 = vadd.f32 %v524, %v847
  %v1012 = vadd.f32 %v525, %v850
  %v1013 = vadd.f32 %v526, %v852
  %v1014 = vadd.f32 %v527, %v855
  %v1015 = vadd.f32 %v528, %v857
  %v1016 = vadd.f32 %v529, %v860
  %v1017 = vadd.f32 %v530, %v862
  %v1018 = vadd.f32 %v531, %v865
  %v1019 = vadd.f32 %v532, %v867
  %v1020 = vadd.f32 %v533, %v870
  %v1021 = vadd.f32 %v534, %v872
  %v1022 = vadd.f32 %v535, %v875
  %v1023 = vadd.f32 %v536, %v877
  %v1024 = vadd.f32 %v537, %v880
  %v1025 = vadd.f32 %v538, %v882
  %v1026 = vadd.f32 %v539, %v885
  %v1027 = vadd.f32 %v540, %v887
  %v1028 = vadd.f32 %v541, %v890
  %v1029 = vadd.f32 %v542, %v892
  %v1030 = vadd.f32 %v543, %v895
  %v1031 = vadd.f32 %v544, %v897
  %v1032 = vadd.f32 %v545, %v900
  %v1033 = vadd.f32 %v546, %v902
  %v1034 = vadd.f32 %v547, %v905
  %v1035 = vadd.f32 %v548, %v907
  %v1037 = vlaneseq
  %v1038 = vshrl.u32 %v1037, 7
  %v1039 = vsub.s32 0, %v1038
  %v1040 = vrot.slane %v408, %v1039
  %v1042 = vmul.f32 %v298, %v1040
  %v1043 = vmul.f32 %v299, %v1040
  %v1044 = vmul.f32 %v300, %v1040
  %v1045 = vmul.f32 %v301, %v1040
  %v1046 = vmul.f32 %v302, %v1040
  %v1047 = vmul.f32 %v303, %v1040
  %v1048 = vmul.f32 %v304, %v1040
  %v1049 = vmul.f32 %v305, %v1040
  %v1050 = vmul.f32 %v306, %v1040
  %v1051 = vmul.f32 %v307, %v1040
  %v1052 = vmul.f32 %v308, %v1040
  %v1053 = vmul.f32 %v309, %v1040
  %v1054 = vmul.f32 %v310, %v1040
  %v1055 = vmul.f32 %v311, %v1040
  %v1056 = vmul.f32 %v312, %v1040
  %v1057 = vmul.f32 %v313, %v1040
  %v1058 = vmul.f32 %v314, %v1040
  %v1059 = vmul.f32 %v315, %v1040
  %v1060 = vmul.f32 %v316, %v1040
  %v1061 = vmul.f32 %v317, %v1040
  %v1062 = vmul.f32 %v318, %v1040
  %v1063 = vmul.f32 %v319, %v1040
  %v1064 = vmul.f32 %v320, %v1040
  %v1065 = vmul.f32 %v321, %v1040
  %v1066 = vmul.f32 %v322, %v1040
  %v1067 = vmul.f32 %v323, %v1040
  %v1068 = vmul.f32 %v324, %v1040
  %v1069 = vmul.f32 %v325, %v1040
  %v1070 = vmul.f32 %v326, %v1040
  %v1071 = vmul.f32 %v327, %v1040
  %v1072 = vmul.f32 %v328, %v1040
  %v1073 = vmul.f32 %v329, %v1040
  %v1074 = vmul.f32 %v330, %v1040
  %v1075 = vmul.f32 %v331, %v1040
  %v1076 = vmul.f32 %v332, %v1040
  %v1077 = vmul.f32 %v333, %v1040
  %v1078 = vmul.f32 %v334, %v1040
  %v1079 = vmul.f32 %v335, %v1040
  %v1080 = vmul.f32 %v336, %v1040
  %v1081 = vmul.f32 %v337, %v1040
  %v1082 = vmul.f32 %v338, %v1040
  %v1083 = vmul.f32 %v339, %v1040
  %v1084 = vmul.f32 %v340, %v1040
  %v1085 = vmul.f32 %v341, %v1040
  %v1086 = vmul.f32 %v342, %v1040
  %v1087 = vmul.f32 %v343, %v1040
  %v1088 = vmul.f32 %v344, %v1040
  %v1089 = vmul.f32 %v345, %v1040
  %v1090 = vmul.f32 %v352, %v1040
  %v1091 = vmul.f32 %v353, %v1040
  %v1092 = vmul.f32 %v354, %v1040
  %v1093 = vmul.f32 %v355, %v1040
  %v1094 = vmul.f32 %v356, %v1040
  %v1095 = vmul.f32 %v357, %v1040
  %v1096 = vmul.f32 %v358, %v1040
  %v1097 = vmul.f32 %v359, %v1040
  %v1098 = vmul.f32 %v360, %v1040
  %v1099 = vmul.f32 %v361, %v1040
  %v1100 = vmul.f32 %v362, %v1040
  %v1101 = vmul.f32 %v363, %v1040
  %v1102 = vmul.f32 %v364, %v1040
  %v1103 = vmul.f32 %v365, %v1040
  %v1104 = vmul.f32 %v366, %v1040
  %v1105 = vmul.f32 %v367, %v1040
  %v1106 = vmul.f32 %v368, %v1040
  %v1107 = vmul.f32 %v369, %v1040
  %v1108 = vmul.f32 %v370, %v1040
  %v1109 = vmul.f32 %v371, %v1040
  %v1110 = vmul.f32 %v372, %v1040
  %v1111 = vmul.f32 %v373, %v1040
  %v1112 = vmul.f32 %v374, %v1040
  %v1113 = vmul.f32 %v375, %v1040
  %v1114 = vmul.f32 %v376, %v1040
  %v1115 = vmul.f32 %v377, %v1040
  %v1116 = vmul.f32 %v378, %v1040
  %v1117 = vmul.f32 %v379, %v1040
  %v1118 = vmul.f32 %v380, %v1040
  %v1119 = vmul.f32 %v381, %v1040
  %v1120 = vmul.f32 %v382, %v1040
  %v1121 = vmul.f32 %v383, %v1040
  %v1122 = vmul.f32 %v384, %v1040
  %v1123 = vmul.f32 %v385, %v1040
  %v1124 = vmul.f32 %v386, %v1040
  %v1125 = vmul.f32 %v387, %v1040
  %v1126 = vmul.f32 %v388, %v1040
  %v1127 = vmul.f32 %v389, %v1040
  %v1128 = vmul.f32 %v390, %v1040
  %v1129 = vmul.f32 %v391, %v1040
  %v1130 = vmul.f32 %v392, %v1040
  %v1131 = vmul.f32 %v393, %v1040
  %v1132 = vmul.f32 %v394, %v1040
  %v1133 = vmul.f32 %v395, %v1040
  %v1134 = vmul.f32 %v396, %v1040
  %v1135 = vmul.f32 %v397, %v1040
  %v1136 = vmul.f32 %v398, %v1040
  %v1137 = vmul.f32 %v399, %v1040
  %vm1234 = vcmask 1045504
  %v1235 = vrot.slane %v1042, 2
  %v1236 = vrot.slane %v1043, 2
  %v1237 = vsel %vm1234, %v1235, %v1236
  %v1238 = vrot.slane %v1044, 2
  %v1239 = vsel %vm1234, %v1236, %v1238
  %v1240 = vrot.slane %v1045, 2
  %v1241 = vrot.slane %v1046, 2
  %v1242 = vsel %vm1234, %v1240, %v1241
  %v1243 = vrot.slane %v1047, 2
  %v1244 = vsel %vm1234, %v1241, %v1243
  %v1245 = vrot.slane %v1048, 2
  %v1246 = vrot.slane %v1049, 2
  %v1247 = vsel %vm1234, %v1245, %v1246
  %v1248 = vrot.slane %v1050, 2
  %v1249 = vsel %vm1234, %v1246, %v1248
  %v1250 = vrot.slane %v1051, 2
  %v1251 = vrot.slane %v1052, 2
  %v1252 = vsel %vm1234, %v1250, %v1251
  %v1253 = vrot.slane %v1053, 2
  %v1254 = vsel %vm1234, %v1251, %v1253
  %v1255 = vrot.slane %v1054, 2
  %v1256 = vrot.slane %v1055, 2
  %v1257 = vsel %vm1234, %v1255, %v1256
  %v1258 = vrot.slane %v1056, 2
  %v1259 = vsel %vm1234, %v1256, %v1258
  %v1260 = vrot.slane %v1057, 2
  %v1261 = vrot.slane %v1058, 2
  %v1262 = vsel %vm1234, %v1260, %v1261
  %v1263 = vrot.slane %v1059, 2
  %v1264 = vsel %vm1234, %v1261, %v1263
  %v1265 = vrot.slane %v1060, 2
  %v1266 = vrot.slane %v1061, 2
  %v1267 = vsel %vm1234, %v1265, %v1266
  %v1268 = vrot.slane %v1062, 2
  %v1269 = vsel %vm1234, %v1266, %v1268
  %v1270 = vrot.slane %v1063, 2
  %v1271 = vrot.slane %v1064, 2
  %v1272 = vsel %vm1234, %v1270, %v1271
  %v1273 = vrot.slane %v1065, 2
  %v1274 = vsel %vm1234, %v1271, %v1273
  %v1275 = vrot.slane %v1066, 2
  %v1276 = vrot.slane %v1067, 2
  %v1277 = vsel %vm1234, %v1275, %v1276
  %v1278 = vrot.slane %v1068, 2
  %v1279 = vsel %vm1234, %v1276, %v1278
  %v1280 = vrot.slane %v1069, 2
  %v1281 = vrot.slane %v1070, 2
  %v1282 = vsel %vm1234, %v1280, %v1281
  %v1283 = vrot.slane %v1071, 2
  %v1284 = vsel %vm1234, %v1281, %v1283
  %v1285 = vrot.slane %v1072, 2
  %v1286 = vrot.slane %v1073, 2
  %v1287 = vsel %vm1234, %v1285, %v1286
  %v1288 = vrot.slane %v1074, 2
  %v1289 = vsel %vm1234, %v1286, %v1288
  %v1290 = vrot.slane %v1075, 2
  %v1291 = vrot.slane %v1076, 2
  %v1292 = vsel %vm1234, %v1290, %v1291
  %v1293 = vrot.slane %v1077, 2
  %v1294 = vsel %vm1234, %v1291, %v1293
  %v1295 = vrot.slane %v1078, 2
  %v1296 = vrot.slane %v1079, 2
  %v1297 = vsel %vm1234, %v1295, %v1296
  %v1298 = vrot.slane %v1080, 2
  %v1299 = vsel %vm1234, %v1296, %v1298
  %v1300 = vrot.slane %v1081, 2
  %v1301 = vrot.slane %v1082, 2
  %v1302 = vsel %vm1234, %v1300, %v1301
  %v1303 = vrot.slane %v1083, 2
  %v1304 = vsel %vm1234, %v1301, %v1303
  %v1305 = vrot.slane %v1084, 2
  %v1306 = vrot.slane %v1085, 2
  %v1307 = vsel %vm1234, %v1305, %v1306
  %v1308 = vrot.slane %v1086, 2
  %v1309 = vsel %vm1234, %v1306, %v1308
  %v1310 = vrot.slane %v1087, 2
  %v1311 = vrot.slane %v1088, 2
  %v1312 = vsel %vm1234, %v1310, %v1311
  %v1313 = vrot.slane %v1089, 2
  %v1314 = vsel %vm1234, %v1311, %v1313
  %v1315 = vrot.slane %v1090, 2
  %v1316 = vrot.slane %v1091, 2
  %v1317 = vsel %vm1234, %v1315, %v1316
  %v1318 = vrot.slane %v1092, 2
  %v1319 = vsel %vm1234, %v1316, %v1318
  %v1320 = vrot.slane %v1093, 2
  %v1321 = vrot.slane %v1094, 2
  %v1322 = vsel %vm1234, %v1320, %v1321
  %v1323 = vrot.slane %v1095, 2
  %v1324 = vsel %vm1234, %v1321, %v1323
  %v1325 = vrot.slane %v1096, 2
  %v1326 = vrot.slane %v1097, 2
  %v1327 = vsel %vm1234, %v1325, %v1326
  %v1328 = vrot.slane %v1098, 2
  %v1329 = vsel %vm1234, %v1326, %v1328
  %v1330 = vrot.slane %v1099, 2
  %v1331 = vrot.slane %v1100, 2
  %v1332 = vsel %vm1234, %v1330, %v1331
  %v1333 = vrot.slane %v1101, 2
  %v1334 = vsel %vm1234, %v1331, %v1333
  %v1335 = vrot.slane %v1102, 2
  %v1336 = vrot.slane %v1103, 2
  %v1337 = vsel %vm1234, %v1335, %v1336
  %v1338 = vrot.slane %v1104, 2
  %v1339 = vsel %vm1234, %v1336, %v1338
  %v1340 = vrot.slane %v1105, 2
  %v1341 = vrot.slane %v1106, 2
  %v1342 = vsel %vm1234, %v1340, %v1341
  %v1343 = vrot.slane %v1107, 2
  %v1344 = vsel %vm1234, %v1341, %v1343
  %v1345 = vrot.slane %v1108, 2
  %v1346 = vrot.slane %v1109, 2
  %v1347 = vsel %vm1234, %v1345, %v1346
  %v1348 = vrot.slane %v1110, 2
  %v1349 = vsel %vm1234, %v1346, %v1348
  %v1350 = vrot.slane %v1111, 2
  %v1351 = vrot.slane %v1112, 2
  %v1352 = vsel %vm1234, %v1350, %v1351
  %v1353 = vrot.slane %v1113, 2
  %v1354 = vsel %vm1234, %v1351, %v1353
  %v1355 = vrot.slane %v1114, 2
  %v1356 = vrot.slane %v1115, 2
  %v1357 = vsel %vm1234, %v1355, %v1356
  %v1358 = vrot.slane %v1116, 2
  %v1359 = vsel %vm1234, %v1356, %v1358
  %v1360 = vrot.slane %v1117, 2
  %v1361 = vrot.slane %v1118, 2
  %v1362 = vsel %vm1234, %v1360, %v1361
  %v1363 = vrot.slane %v1119, 2
  %v1364 = vsel %vm1234, %v1361, %v1363
  %v1365 = vrot.slane %v1120, 2
  %v1366 = vrot.slane %v1121, 2
  %v1367 = vsel %vm1234, %v1365, %v1366
  %v1368 = vrot.slane %v1122, 2
  %v1369 = vsel %vm1234, %v1366, %v1368
  %v1370 = vrot.slane %v1123, 2
  %v1371 = vrot.slane %v1124, 2
  %v1372 = vsel %vm1234, %v1370, %v1371
  %v1373 = vrot.slane %v1125, 2
  %v1374 = vsel %vm1234, %v1371, %v1373
  %v1375 = vrot.slane %v1126, 2
  %v1376 = vrot.slane %v1127, 2
  %v1377 = vsel %vm1234, %v1375, %v1376
  %v1378 = vrot.slane %v1128, 2
  %v1379 = vsel %vm1234, %v1376, %v1378
  %v1380 = vrot.slane %v1129, 2
  %v1381 = vrot.slane %v1130, 2
  %v1382 = vsel %vm1234, %v1380, %v1381
  %v1383 = vrot.slane %v1131, 2
  %v1384 = vsel %vm1234, %v1381, %v1383
  %v1385 = vrot.slane %v1132, 2
  %v1386 = vrot.slane %v1133, 2
  %v1387 = vsel %vm1234, %v1385, %v1386
  %v1388 = vrot.slane %v1134, 2
  %v1389 = vsel %vm1234, %v1386, %v1388
  %v1390 = vrot.slane %v1135, 2
  %v1391 = vrot.slane %v1136, 2
  %v1392 = vsel %vm1234, %v1390, %v1391
  %v1393 = vrot.slane %v1137, 2
  %v1394 = vsel %vm1234, %v1391, %v1393
  %v1459 = vadd.f32 %v972, %v1237
  %v1460 = vadd.f32 %v973, %v1239
  %v1461 = vadd.f32 %v974, %v1242
  %v1462 = vadd.f32 %v975, %v1244
  %v1463 = vadd.f32 %v976, %v1247
  %v1464 = vadd.f32 %v977, %v1249
  %v1465 = vadd.f32 %v978, %v1252
  %v1466 = vadd.f32 %v979, %v1254
  %v1467 = vadd.f32 %v980, %v1257
  %v1468 = vadd.f32 %v981, %v1259
  %v1469 = vadd.f32 %v982, %v1262
  %v1470 = vadd.f32 %v983, %v1264
  %v1471 = vadd.f32 %v984, %v1267
  %v1472 = vadd.f32 %v985, %v1269
  %v1473 = vadd.f32 %v986, %v1272
  %v1474 = vadd.f32 %v987, %v1274
  %v1475 = vadd.f32 %v988, %v1277
  %v1476 = vadd.f32 %v989, %v1279
  %v1477 = vadd.f32 %v990, %v1282
  %v1478 = vadd.f32 %v991, %v1284
  %v1479 = vadd.f32 %v992, %v1287
  %v1480 = vadd.f32 %v993, %v1289
  %v1481 = vadd.f32 %v994, %v1292
  %v1482 = vadd.f32 %v995, %v1294
  %v1483 = vadd.f32 %v996, %v1297
  %v1484 = vadd.f32 %v997, %v1299
  %v1485 = vadd.f32 %v998, %v1302
  %v1486 = vadd.f32 %v999, %v1304
  %v1487 = vadd.f32 %v1000, %v1307
  %v1488 = vadd.f32 %v1001, %v1309
  %v1489 = vadd.f32 %v1002, %v1312
  %v1490 = vadd.f32 %v1003, %v1314
  %v1491 = vadd.f32 %v1004, %v1317
  %v1492 = vadd.f32 %v1005, %v1319
  %v1493 = vadd.f32 %v1006, %v1322
  %v1494 = vadd.f32 %v1007, %v1324
  %v1495 = vadd.f32 %v1008, %v1327
  %v1496 = vadd.f32 %v1009, %v1329
  %v1497 = vadd.f32 %v1010, %v1332
  %v1498 = vadd.f32 %v1011, %v1334
  %v1499 = vadd.f32 %v1012, %v1337
  %v1500 = vadd.f32 %v1013, %v1339
  %v1501 = vadd.f32 %v1014, %v1342
  %v1502 = vadd.f32 %v1015, %v1344
  %v1503 = vadd.f32 %v1016, %v1347
  %v1504 = vadd.f32 %v1017, %v1349
  %v1505 = vadd.f32 %v1018, %v1352
  %v1506 = vadd.f32 %v1019, %v1354
  %v1507 = vadd.f32 %v1020, %v1357
  %v1508 = vadd.f32 %v1021, %v1359
  %v1509 = vadd.f32 %v1022, %v1362
  %v1510 = vadd.f32 %v1023, %v1364
  %v1511 = vadd.f32 %v1024, %v1367
  %v1512 = vadd.f32 %v1025, %v1369
  %v1513 = vadd.f32 %v1026, %v1372
  %v1514 = vadd.f32 %v1027, %v1374
  %v1515 = vadd.f32 %v1028, %v1377
  %v1516 = vadd.f32 %v1029, %v1379
  %v1517 = vadd.f32 %v1030, %v1382
  %v1518 = vadd.f32 %v1031, %v1384
  %v1519 = vadd.f32 %v1032, %v1387
  %v1520 = vadd.f32 %v1033, %v1389
  %v1521 = vadd.f32 %v1034, %v1392
  %v1522 = vadd.f32 %v1035, %v1394
  %v1524 = vlaneseq
  %v1525 = vshrl.u32 %v1524, 7
  %v1526 = vsub.s32 0, %v1525
  %v1527 = vrot.slane %v409, %v1526
  %v1529 = vmul.f32 %v301, %v1527
  %v1530 = vmul.f32 %v302, %v1527
  %v1531 = vmul.f32 %v304, %v1527
  %v1532 = vmul.f32 %v305, %v1527
  %v1533 = vmul.f32 %v307, %v1527
  %v1534 = vmul.f32 %v308, %v1527
  %v1535 = vmul.f32 %v310, %v1527
  %v1536 = vmul.f32 %v311, %v1527
  %v1537 = vmul.f32 %v313, %v1527
  %v1538 = vmul.f32 %v314, %v1527
  %v1539 = vmul.f32 %v316, %v1527
  %v1540 = vmul.f32 %v317, %v1527
  %v1541 = vmul.f32 %v319, %v1527
  %v1542 = vmul.f32 %v320, %v1527
  %v1543 = vmul.f32 %v322, %v1527
  %v1544 = vmul.f32 %v323, %v1527
  %v1545 = vmul.f32 %v325, %v1527
  %v1546 = vmul.f32 %v326, %v1527
  %v1547 = vmul.f32 %v328, %v1527
  %v1548 = vmul.f32 %v329, %v1527
  %v1549 = vmul.f32 %v331, %v1527
  %v1550 = vmul.f32 %v332, %v1527
  %v1551 = vmul.f32 %v334, %v1527
  %v1552 = vmul.f32 %v335, %v1527
  %v1553 = vmul.f32 %v337, %v1527
  %v1554 = vmul.f32 %v338, %v1527
  %v1555 = vmul.f32 %v340, %v1527
  %v1556 = vmul.f32 %v341, %v1527
  %v1557 = vmul.f32 %v343, %v1527
  %v1558 = vmul.f32 %v344, %v1527
  %v1559 = vmul.f32 %v346, %v1527
  %v1560 = vmul.f32 %v347, %v1527
  %v1561 = vmul.f32 %v355, %v1527
  %v1562 = vmul.f32 %v356, %v1527
  %v1563 = vmul.f32 %v358, %v1527
  %v1564 = vmul.f32 %v359, %v1527
  %v1565 = vmul.f32 %v361, %v1527
  %v1566 = vmul.f32 %v362, %v1527
  %v1567 = vmul.f32 %v364, %v1527
  %v1568 = vmul.f32 %v365, %v1527
  %v1569 = vmul.f32 %v367, %v1527
  %v1570 = vmul.f32 %v368, %v1527
  %v1571 = vmul.f32 %v370, %v1527
  %v1572 = vmul.f32 %v371, %v1527
  %v1573 = vmul.f32 %v373, %v1527
  %v1574 = vmul.f32 %v374, %v1527
  %v1575 = vmul.f32 %v376, %v1527
  %v1576 = vmul.f32 %v377, %v1527
  %v1577 = vmul.f32 %v379, %v1527
  %v1578 = vmul.f32 %v380, %v1527
  %v1579 = vmul.f32 %v382, %v1527
  %v1580 = vmul.f32 %v383, %v1527
  %v1581 = vmul.f32 %v385, %v1527
  %v1582 = vmul.f32 %v386, %v1527
  %v1583 = vmul.f32 %v388, %v1527
  %v1584 = vmul.f32 %v389, %v1527
  %v1585 = vmul.f32 %v391, %v1527
  %v1586 = vmul.f32 %v392, %v1527
  %v1587 = vmul.f32 %v394, %v1527
  %v1588 = vmul.f32 %v395, %v1527
  %v1589 = vmul.f32 %v397, %v1527
  %v1590 = vmul.f32 %v398, %v1527
  %v1591 = vmul.f32 %v400, %v1527
  %v1592 = vmul.f32 %v401, %v1527
  %v1593 = vadd.f32 %v1459, %v1529
  %v1594 = vadd.f32 %v1460, %v1530
  %v1595 = vadd.f32 %v1461, %v1531
  %v1596 = vadd.f32 %v1462, %v1532
  %v1597 = vadd.f32 %v1463, %v1533
  %v1598 = vadd.f32 %v1464, %v1534
  %v1599 = vadd.f32 %v1465, %v1535
  %v1600 = vadd.f32 %v1466, %v1536
  %v1601 = vadd.f32 %v1467, %v1537
  %v1602 = vadd.f32 %v1468, %v1538
  %v1603 = vadd.f32 %v1469, %v1539
  %v1604 = vadd.f32 %v1470, %v1540
  %v1605 = vadd.f32 %v1471, %v1541
  %v1606 = vadd.f32 %v1472, %v1542
  %v1607 = vadd.f32 %v1473, %v1543
  %v1608 = vadd.f32 %v1474, %v1544
  %v1609 = vadd.f32 %v1475, %v1545
  %v1610 = vadd.f32 %v1476, %v1546
  %v1611 = vadd.f32 %v1477, %v1547
  %v1612 = vadd.f32 %v1478, %v1548
  %v1613 = vadd.f32 %v1479, %v1549
  %v1614 = vadd.f32 %v1480, %v1550
  %v1615 = vadd.f32 %v1481, %v1551
  %v1616 = vadd.f32 %v1482, %v1552
  %v1617 = vadd.f32 %v1483, %v1553
  %v1618 = vadd.f32 %v1484, %v1554
  %v1619 = vadd.f32 %v1485, %v1555
  %v1620 = vadd.f32 %v1486, %v1556
  %v1621 = vadd.f32 %v1487, %v1557
  %v1622 = vadd.f32 %v1488, %v1558
  %v1623 = vadd.f32 %v1489, %v1559
  %v1624 = vadd.f32 %v1490, %v1560
  %v1625 = vadd.f32 %v1491, %v1561
  %v1626 = vadd.f32 %v1492, %v1562
  %v1627 = vadd.f32 %v1493, %v1563
  %v1628 = vadd.f32 %v1494, %v1564
  %v1629 = vadd.f32 %v1495, %v1565
  %v1630 = vadd.f32 %v1496, %v1566
  %v1631 = vadd.f32 %v1497, %v1567
  %v1632 = vadd.f32 %v1498, %v1568
  %v1633 = vadd.f32 %v1499, %v1569
  %v1634 = vadd.f32 %v1500, %v1570
  %v1635 = vadd.f32 %v1501, %v1571
  %v1636 = vadd.f32 %v1502, %v1572
  %v1637 = vadd.f32 %v1503, %v1573
  %v1638 = vadd.f32 %v1504, %v1574
  %v1639 = vadd.f32 %v1505, %v1575
  %v1640 = vadd.f32 %v1506, %v1576
  %v1641 = vadd.f32 %v1507, %v1577
  %v1642 = vadd.f32 %v1508, %v1578
  %v1643 = vadd.f32 %v1509, %v1579
  %v1644 = vadd.f32 %v1510, %v1580
  %v1645 = vadd.f32 %v1511, %v1581
  %v1646 = vadd.f32 %v1512, %v1582
  %v1647 = vadd.f32 %v1513, %v1583
  %v1648 = vadd.f32 %v1514, %v1584
  %v1649 = vadd.f32 %v1515, %v1585
  %v1650 = vadd.f32 %v1516, %v1586
  %v1651 = vadd.f32 %v1517, %v1587
  %v1652 = vadd.f32 %v1518, %v1588
  %v1653 = vadd.f32 %v1519, %v1589
  %v1654 = vadd.f32 %v1520, %v1590
  %v1655 = vadd.f32 %v1521, %v1591
  %v1656 = vadd.f32 %v1522, %v1592
  %v1658 = vlaneseq
  %v1659 = vshrl.u32 %v1658, 7
  %v1660 = vsub.s32 0, %v1659
  %v1661 = vrot.slane %v410, %v1660
  %v1663 = vmul.f32 %v301, %v1661
  %v1664 = vmul.f32 %v302, %v1661
  %v1665 = vmul.f32 %v303, %v1661
  %v1666 = vmul.f32 %v304, %v1661
  %v1667 = vmul.f32 %v305, %v1661
  %v1668 = vmul.f32 %v306, %v1661
  %v1669 = vmul.f32 %v307, %v1661
  %v1670 = vmul.f32 %v308, %v1661
  %v1671 = vmul.f32 %v309, %v1661
  %v1672 = vmul.f32 %v310, %v1661
  %v1673 = vmul.f32 %v311, %v1661
  %v1674 = vmul.f32 %v312, %v1661
  %v1675 = vmul.f32 %v313, %v1661
  %v1676 = vmul.f32 %v314, %v1661
  %v1677 = vmul.f32 %v315, %v1661
  %v1678 = vmul.f32 %v316, %v1661
  %v1679 = vmul.f32 %v317, %v1661
  %v1680 = vmul.f32 %v318, %v1661
  %v1681 = vmul.f32 %v319, %v1661
  %v1682 = vmul.f32 %v320, %v1661
  %v1683 = vmul.f32 %v321, %v1661
  %v1684 = vmul.f32 %v322, %v1661
  %v1685 = vmul.f32 %v323, %v1661
  %v1686 = vmul.f32 %v324, %v1661
  %v1687 = vmul.f32 %v325, %v1661
  %v1688 = vmul.f32 %v326, %v1661
  %v1689 = vmul.f32 %v327, %v1661
  %v1690 = vmul.f32 %v328, %v1661
  %v1691 = vmul.f32 %v329, %v1661
  %v1692 = vmul.f32 %v330, %v1661
  %v1693 = vmul.f32 %v331, %v1661
  %v1694 = vmul.f32 %v332, %v1661
  %v1695 = vmul.f32 %v333, %v1661
  %v1696 = vmul.f32 %v334, %v1661
  %v1697 = vmul.f32 %v335, %v1661
  %v1698 = vmul.f32 %v336, %v1661
  %v1699 = vmul.f32 %v337, %v1661
  %v1700 = vmul.f32 %v338, %v1661
  %v1701 = vmul.f32 %v339, %v1661
  %v1702 = vmul.f32 %v340, %v1661
  %v1703 = vmul.f32 %v341, %v1661
  %v1704 = vmul.f32 %v342, %v1661
  %v1705 = vmul.f32 %v343, %v1661
  %v1706 = vmul.f32 %v344, %v1661
  %v1707 = vmul.f32 %v345, %v1661
  %v1708 = vmul.f32 %v346, %v1661
  %v1709 = vmul.f32 %v347, %v1661
  %v1710 = vmul.f32 %v348, %v1661
  %v1711 = vmul.f32 %v355, %v1661
  %v1712 = vmul.f32 %v356, %v1661
  %v1713 = vmul.f32 %v357, %v1661
  %v1714 = vmul.f32 %v358, %v1661
  %v1715 = vmul.f32 %v359, %v1661
  %v1716 = vmul.f32 %v360, %v1661
  %v1717 = vmul.f32 %v361, %v1661
  %v1718 = vmul.f32 %v362, %v1661
  %v1719 = vmul.f32 %v363, %v1661
  %v1720 = vmul.f32 %v364, %v1661
  %v1721 = vmul.f32 %v365, %v1661
  %v1722 = vmul.f32 %v366, %v1661
  %v1723 = vmul.f32 %v367, %v1661
  %v1724 = vmul.f32 %v368, %v1661
  %v1725 = vmul.f32 %v369, %v1661
  %v1726 = vmul.f32 %v370, %v1661
  %v1727 = vmul.f32 %v371, %v1661
  %v1728 = vmul.f32 %v372, %v1661
  %v1729 = vmul.f32 %v373, %v1661
  %v1730 = vmul.f32 %v374, %v1661
  %v1731 = vmul.f32 %v375, %v1661
  %v1732 = vmul.f32 %v376, %v1661
  %v1733 = vmul.f32 %v377, %v1661
  %v1734 = vmul.f32 %v378, %v1661
  %v1735 = vmul.f32 %v379, %v1661
  %v1736 = vmul.f32 %v380, %v1661
  %v1737 = vmul.f32 %v381, %v1661
  %v1738 = vmul.f32 %v382, %v1661
  %v1739 = vmul.f32 %v383, %v1661
  %v1740 = vmul.f32 %v384, %v1661
  %v1741 = vmul.f32 %v385, %v1661
  %v1742 = vmul.f32 %v386, %v1661
  %v1743 = vmul.f32 %v387, %v1661
  %v1744 = vmul.f32 %v388, %v1661
  %v1745 = vmul.f32 %v389, %v1661
  %v1746 = vmul.f32 %v390, %v1661
  %v1747 = vmul.f32 %v391, %v1661
  %v1748 = vmul.f32 %v392, %v1661
  %v1749 = vmul.f32 %v393, %v1661
  %v1750 = vmul.f32 %v394, %v1661
  %v1751 = vmul.f32 %v395, %v1661
  %v1752 = vmul.f32 %v396, %v1661
  %v1753 = vmul.f32 %v397, %v1661
  %v1754 = vmul.f32 %v398, %v1661
  %v1755 = vmul.f32 %v399, %v1661
  %v1756 = vmul.f32 %v400, %v1661
  %v1757 = vmul.f32 %v401, %v1661
  %v1758 = vmul.f32 %v402, %v1661
  %v1855 = vrot.slane %v1663, 1
  %v1856 = vrot.slane %v1664, 1
  %v1857 = vsel %vm747, %v1855, %v1856
  %v1858 = vrot.slane %v1665, 1
  %v1859 = vsel %vm747, %v1856, %v1858
  %v1860 = vrot.slane %v1666, 1
  %v1861 = vrot.slane %v1667, 1
  %v1862 = vsel %vm747, %v1860, %v1861
  %v1863 = vrot.slane %v1668, 1
  %v1864 = vsel %vm747, %v1861, %v1863
  %v1865 = vrot.slane %v1669, 1
  %v1866 = vrot.slane %v1670, 1
  %v1867 = vsel %vm747, %v1865, %v1866
  %v1868 = vrot.slane %v1671, 1
  %v1869 = vsel %vm747, %v1866, %v1868
  %v1870 = vrot.slane %v1672, 1
  %v1871 = vrot.slane %v1673, 1
  %v1872 = vsel %vm747, %v1870, %v1871
  %v1873 = vrot.slane %v1674, 1
  %v1874 = vsel %vm747, %v1871, %v1873
  %v1875 = vrot.slane %v1675, 1
  %v1876 = vrot.slane %v1676, 1
  %v1877 = vsel %vm747, %v1875, %v1876
  %v1878 = vrot.slane %v1677, 1
  %v1879 = vsel %vm747, %v1876, %v1878
  %v1880 = vrot.slane %v1678, 1
  %v1881 = vrot.slane %v1679, 1
  %v1882 = vsel %vm747, %v1880, %v1881
  %v1883 = vrot.slane %v1680, 1
  %v1884 = vsel %vm747, %v1881, %v1883
  %v1885 = vrot.slane %v1681, 1
  %v1886 = vrot.slane %v1682, 1
  %v1887 = vsel %vm747, %v1885, %v1886
  %v1888 = vrot.slane %v1683, 1
  %v1889 = vsel %vm747, %v1886, %v1888
  %v1890 = vrot.slane %v1684, 1
  %v1891 = vrot.slane %v1685, 1
  %v1892 = vsel %vm747, %v1890, %v1891
  %v1893 = vrot.slane %v1686, 1
  %v1894 = vsel %vm747, %v1891, %v1893
  %v1895 = vrot.slane %v1687, 1
  %v1896 = vrot.slane %v1688, 1
  %v1897 = vsel %vm747, %v1895, %v1896
  %v1898 = vrot.slane %v1689, 1
  %v1899 = vsel %vm747, %v1896, %v1898
  %v1900 = vrot.slane %v1690, 1
  %v1901 = vrot.slane %v1691, 1
  %v1902 = vsel %vm747, %v1900, %v1901
  %v1903 = vrot.slane %v1692, 1
  %v1904 = vsel %vm747, %v1901, %v1903
  %v1905 = vrot.slane %v1693, 1
  %v1906 = vrot.slane %v1694, 1
  %v1907 = vsel %vm747, %v1905, %v1906
  %v1908 = vrot.slane %v1695, 1
  %v1909 = vsel %vm747, %v1906, %v1908
  %v1910 = vrot.slane %v1696, 1
  %v1911 = vrot.slane %v1697, 1
  %v1912 = vsel %vm747, %v1910, %v1911
  %v1913 = vrot.slane %v1698, 1
  %v1914 = vsel %vm747, %v1911, %v1913
  %v1915 = vrot.slane %v1699, 1
  %v1916 = vrot.slane %v1700, 1
  %v1917 = vsel %vm747, %v1915, %v1916
  %v1918 = vrot.slane %v1701, 1
  %v1919 = vsel %vm747, %v1916, %v1918
  %v1920 = vrot.slane %v1702, 1
  %v1921 = vrot.slane %v1703, 1
  %v1922 = vsel %vm747, %v1920, %v1921
  %v1923 = vrot.slane %v1704, 1
  %v1924 = vsel %vm747, %v1921, %v1923
  %v1925 = vrot.slane %v1705, 1
  %v1926 = vrot.slane %v1706, 1
  %v1927 = vsel %vm747, %v1925, %v1926
  %v1928 = vrot.slane %v1707, 1
  %v1929 = vsel %vm747, %v1926, %v1928
  %v1930 = vrot.slane %v1708, 1
  %v1931 = vrot.slane %v1709, 1
  %v1932 = vsel %vm747, %v1930, %v1931
  %v1933 = vrot.slane %v1710, 1
  %v1934 = vsel %vm747, %v1931, %v1933
  %v1935 = vrot.slane %v1711, 1
  %v1936 = vrot.slane %v1712, 1
  %v1937 = vsel %vm747, %v1935, %v1936
  %v1938 = vrot.slane %v1713, 1
  %v1939 = vsel %vm747, %v1936, %v1938
  %v1940 = vrot.slane %v1714, 1
  %v1941 = vrot.slane %v1715, 1
  %v1942 = vsel %vm747, %v1940, %v1941
  %v1943 = vrot.slane %v1716, 1
  %v1944 = vsel %vm747, %v1941, %v1943
  %v1945 = vrot.slane %v1717, 1
  %v1946 = vrot.slane %v1718, 1
  %v1947 = vsel %vm747, %v1945, %v1946
  %v1948 = vrot.slane %v1719, 1
  %v1949 = vsel %vm747, %v1946, %v1948
  %v1950 = vrot.slane %v1720, 1
  %v1951 = vrot.slane %v1721, 1
  %v1952 = vsel %vm747, %v1950, %v1951
  %v1953 = vrot.slane %v1722, 1
  %v1954 = vsel %vm747, %v1951, %v1953
  %v1955 = vrot.slane %v1723, 1
  %v1956 = vrot.slane %v1724, 1
  %v1957 = vsel %vm747, %v1955, %v1956
  %v1958 = vrot.slane %v1725, 1
  %v1959 = vsel %vm747, %v1956, %v1958
  %v1960 = vrot.slane %v1726, 1
  %v1961 = vrot.slane %v1727, 1
  %v1962 = vsel %vm747, %v1960, %v1961
  %v1963 = vrot.slane %v1728, 1
  %v1964 = vsel %vm747, %v1961, %v1963
  %v1965 = vrot.slane %v1729, 1
  %v1966 = vrot.slane %v1730, 1
  %v1967 = vsel %vm747, %v1965, %v1966
  %v1968 = vrot.slane %v1731, 1
  %v1969 = vsel %vm747, %v1966, %v1968
  %v1970 = vrot.slane %v1732, 1
  %v1971 = vrot.slane %v1733, 1
  %v1972 = vsel %vm747, %v1970, %v1971
  %v1973 = vrot.slane %v1734, 1
  %v1974 = vsel %vm747, %v1971, %v1973
  %v1975 = vrot.slane %v1735, 1
  %v1976 = vrot.slane %v1736, 1
  %v1977 = vsel %vm747, %v1975, %v1976
  %v1978 = vrot.slane %v1737, 1
  %v1979 = vsel %vm747, %v1976, %v1978
  %v1980 = vrot.slane %v1738, 1
  %v1981 = vrot.slane %v1739, 1
  %v1982 = vsel %vm747, %v1980, %v1981
  %v1983 = vrot.slane %v1740, 1
  %v1984 = vsel %vm747, %v1981, %v1983
  %v1985 = vrot.slane %v1741, 1
  %v1986 = vrot.slane %v1742, 1
  %v1987 = vsel %vm747, %v1985, %v1986
  %v1988 = vrot.slane %v1743, 1
  %v1989 = vsel %vm747, %v1986, %v1988
  %v1990 = vrot.slane %v1744, 1
  %v1991 = vrot.slane %v1745, 1
  %v1992 = vsel %vm747, %v1990, %v1991
  %v1993 = vrot.slane %v1746, 1
  %v1994 = vsel %vm747, %v1991, %v1993
  %v1995 = vrot.slane %v1747, 1
  %v1996 = vrot.slane %v1748, 1
  %v1997 = vsel %vm747, %v1995, %v1996
  %v1998 = vrot.slane %v1749, 1
  %v1999 = vsel %vm747, %v1996, %v1998
  %v2000 = vrot.slane %v1750, 1
  %v2001 = vrot.slane %v1751, 1
  %v2002 = vsel %vm747, %v2000, %v2001
  %v2003 = vrot.slane %v1752, 1
  %v2004 = vsel %vm747, %v2001, %v2003
  %v2005 = vrot.slane %v1753, 1
  %v2006 = vrot.slane %v1754, 1
  %v2007 = vsel %vm747, %v2005, %v2006
  %v2008 = vrot.slane %v1755, 1
  %v2009 = vsel %vm747, %v2006, %v2008
  %v2010 = vrot.slane %v1756, 1
  %v2011 = vrot.slane %v1757, 1
  %v2012 = vsel %vm747, %v2010, %v2011
  %v2013 = vrot.slane %v1758, 1
  %v2014 = vsel %vm747, %v2011, %v2013
  %v2079 = vadd.f32 %v1593, %v1857
  %v2080 = vadd.f32 %v1594, %v1859
  %v2081 = vadd.f32 %v1595, %v1862
  %v2082 = vadd.f32 %v1596, %v1864
  %v2083 = vadd.f32 %v1597, %v1867
  %v2084 = vadd.f32 %v1598, %v1869
  %v2085 = vadd.f32 %v1599, %v1872
  %v2086 = vadd.f32 %v1600, %v1874
  %v2087 = vadd.f32 %v1601, %v1877
  %v2088 = vadd.f32 %v1602, %v1879
  %v2089 = vadd.f32 %v1603, %v1882
  %v2090 = vadd.f32 %v1604, %v1884
  %v2091 = vadd.f32 %v1605, %v1887
  %v2092 = vadd.f32 %v1606, %v1889
  %v2093 = vadd.f32 %v1607, %v1892
  %v2094 = vadd.f32 %v1608, %v1894
  %v2095 = vadd.f32 %v1609, %v1897
  %v2096 = vadd.f32 %v1610, %v1899
  %v2097 = vadd.f32 %v1611, %v1902
  %v2098 = vadd.f32 %v1612, %v1904
  %v2099 = vadd.f32 %v1613, %v1907
  %v2100 = vadd.f32 %v1614, %v1909
  %v2101 = vadd.f32 %v1615, %v1912
  %v2102 = vadd.f32 %v1616, %v1914
  %v2103 = vadd.f32 %v1617, %v1917
  %v2104 = vadd.f32 %v1618, %v1919
  %v2105 = vadd.f32 %v1619, %v1922
  %v2106 = vadd.f32 %v1620, %v1924
  %v2107 = vadd.f32 %v1621, %v1927
  %v2108 = vadd.f32 %v1622, %v1929
  %v2109 = vadd.f32 %v1623, %v1932
  %v2110 = vadd.f32 %v1624, %v1934
  %v2111 = vadd.f32 %v1625, %v1937
  %v2112 = vadd.f32 %v1626, %v1939
  %v2113 = vadd.f32 %v1627, %v1942
  %v2114 = vadd.f32 %v1628, %v1944
  %v2115 = vadd.f32 %v1629, %v1947
  %v2116 = vadd.f32 %v1630, %v1949
  %v2117 = vadd.f32 %v1631, %v1952
  %v2118 = vadd.f32 %v1632, %v1954
  %v2119 = vadd.f32 %v1633, %v1957
  %v2120 = vadd.f32 %v1634, %v1959
  %v2121 = vadd.f32 %v1635, %v1962
  %v2122 = vadd.f32 %v1636, %v1964
  %v2123 = vadd.f32 %v1637, %v1967
  %v2124 = vadd.f32 %v1638, %v1969
  %v2125 = vadd.f32 %v1639, %v1972
  %v2126 = vadd.f32 %v1640, %v1974
  %v2127 = vadd.f32 %v1641, %v1977
  %v2128 = vadd.f32 %v1642, %v1979
  %v2129 = vadd.f32 %v1643, %v1982
  %v2130 = vadd.f32 %v1644, %v1984
  %v2131 = vadd.f32 %v1645, %v1987
  %v2132 = vadd.f32 %v1646, %v1989
  %v2133 = vadd.f32 %v1647, %v1992
  %v2134 = vadd.f32 %v1648, %v1994
  %v2135 = vadd.f32 %v1649, %v1997
  %v2136 = vadd.f32 %v1650, %v1999
  %v2137 = vadd.f32 %v1651, %v2002
  %v2138 = vadd.f32 %v1652, %v2004
  %v2139 = vadd.f32 %v1653, %v2007
  %v2140 = vadd.f32 %v1654, %v2009
  %v2141 = vadd.f32 %v1655, %v2012
  %v2142 = vadd.f32 %v1656, %v2014
  %v2144 = vlaneseq
  %v2145 = vshrl.u32 %v2144, 7
  %v2146 = vsub.s32 0, %v2145
  %v2147 = vrot.slane %v411, %v2146
  %v2149 = vmul.f32 %v301, %v2147
  %v2150 = vmul.f32 %v302, %v2147
  %v2151 = vmul.f32 %v303, %v2147
  %v2152 = vmul.f32 %v304, %v2147
  %v2153 = vmul.f32 %v305, %v2147
  %v2154 = vmul.f32 %v306, %v2147
  %v2155 = vmul.f32 %v307, %v2147
  %v2156 = vmul.f32 %v308, %v2147
  %v2157 = vmul.f32 %v309, %v2147
  %v2158 = vmul.f32 %v310, %v2147
  %v2159 = vmul.f32 %v311, %v2147
  %v2160 = vmul.f32 %v312, %v2147
  %v2161 = vmul.f32 %v313, %v2147
  %v2162 = vmul.f32 %v314, %v2147
  %v2163 = vmul.f32 %v315, %v2147
  %v2164 = vmul.f32 %v316, %v2147
  %v2165 = vmul.f32 %v317, %v2147
  %v2166 = vmul.f32 %v318, %v2147
  %v2167 = vmul.f32 %v319, %v2147
  %v2168 = vmul.f32 %v320, %v2147
  %v2169 = vmul.f32 %v321, %v2147
  %v2170 = vmul.f32 %v322, %v2147
  %v2171 = vmul.f32 %v323, %v2147
  %v2172 = vmul.f32 %v324, %v2147
  %v2173 = vmul.f32 %v325, %v2147
  %v2174 = vmul.f32 %v326, %v2147
  %v2175 = vmul.f32 %v327, %v2147
  %v2176 = vmul.f32 %v328, %v2147
  %v2177 = vmul.f32 %v329, %v2147
  %v2178 = vmul.f32 %v330, %v2147
  %v2179 = vmul.f32 %v331, %v2147
  %v2180 = vmul.f32 %v332, %v2147
  %v2181 = vmul.f32 %v333, %v2147
  %v2182 = vmul.f32 %v334, %v2147
  %v2183 = vmul.f32 %v335, %v2147
  %v2184 = vmul.f32 %v336, %v2147
  %v2185 = vmul.f32 %v337, %v2147
  %v2186 = vmul.f32 %v338, %v2147
  %v2187 = vmul.f32 %v339, %v2147
  %v2188 = vmul.f32 %v340, %v2147
  %v2189 = vmul.f32 %v341, %v2147
  %v2190 = vmul.f32 %v342, %v2147
  %v2191 = vmul.f32 %v343, %v2147
  %v2192 = vmul.f32 %v344, %v2147
  %v2193 = vmul.f32 %v345, %v2147
  %v2194 = vmul.f32 %v346, %v2147
  %v2195 = vmul.f32 %v347, %v2147
  %v2196 = vmul.f32 %v348, %v2147
  %v2197 = vmul.f32 %v355, %v2147
  %v2198 = vmul.f32 %v356, %v2147
  %v2199 = vmul.f32 %v357, %v2147
  %v2200 = vmul.f32 %v358, %v2147
  %v2201 = vmul.f32 %v359, %v2147
  %v2202 = vmul.f32 %v360, %v2147
  %v2203 = vmul.f32 %v361, %v2147
  %v2204 = vmul.f32 %v362, %v2147
  %v2205 = vmul.f32 %v363, %v2147
  %v2206 = vmul.f32 %v364, %v2147
  %v2207 = vmul.f32 %v365, %v2147
  %v2208 = vmul.f32 %v366, %v2147
  %v2209 = vmul.f32 %v367, %v2147
  %v2210 = vmul.f32 %v368, %v2147
  %v2211 = vmul.f32 %v369, %v2147
  %v2212 = vmul.f32 %v370, %v2147
  %v2213 = vmul.f32 %v371, %v2147
  %v2214 = vmul.f32 %v372, %v2147
  %v2215 = vmul.f32 %v373, %v2147
  %v2216 = vmul.f32 %v374, %v2147
  %v2217 = vmul.f32 %v375, %v2147
  %v2218 = vmul.f32 %v376, %v2147
  %v2219 = vmul.f32 %v377, %v2147
  %v2220 = vmul.f32 %v378, %v2147
  %v2221 = vmul.f32 %v379, %v2147
  %v2222 = vmul.f32 %v380, %v2147
  %v2223 = vmul.f32 %v381, %v2147
  %v2224 = vmul.f32 %v382, %v2147
  %v2225 = vmul.f32 %v383, %v2147
  %v2226 = vmul.f32 %v384, %v2147
  %v2227 = vmul.f32 %v385, %v2147
  %v2228 = vmul.f32 %v386, %v2147
  %v2229 = vmul.f32 %v387, %v2147
  %v2230 = vmul.f32 %v388, %v2147
  %v2231 = vmul.f32 %v389, %v2147
  %v2232 = vmul.f32 %v390, %v2147
  %v2233 = vmul.f32 %v391, %v2147
  %v2234 = vmul.f32 %v392, %v2147
  %v2235 = vmul.f32 %v393, %v2147
  %v2236 = vmul.f32 %v394, %v2147
  %v2237 = vmul.f32 %v395, %v2147
  %v2238 = vmul.f32 %v396, %v2147
  %v2239 = vmul.f32 %v397, %v2147
  %v2240 = vmul.f32 %v398, %v2147
  %v2241 = vmul.f32 %v399, %v2147
  %v2242 = vmul.f32 %v400, %v2147
  %v2243 = vmul.f32 %v401, %v2147
  %v2244 = vmul.f32 %v402, %v2147
  %v2341 = vrot.slane %v2149, 2
  %v2342 = vrot.slane %v2150, 2
  %v2343 = vsel %vm1234, %v2341, %v2342
  %v2344 = vrot.slane %v2151, 2
  %v2345 = vsel %vm1234, %v2342, %v2344
  %v2346 = vrot.slane %v2152, 2
  %v2347 = vrot.slane %v2153, 2
  %v2348 = vsel %vm1234, %v2346, %v2347
  %v2349 = vrot.slane %v2154, 2
  %v2350 = vsel %vm1234, %v2347, %v2349
  %v2351 = vrot.slane %v2155, 2
  %v2352 = vrot.slane %v2156, 2
  %v2353 = vsel %vm1234, %v2351, %v2352
  %v2354 = vrot.slane %v2157, 2
  %v2355 = vsel %vm1234, %v2352, %v2354
  %v2356 = vrot.slane %v2158, 2
  %v2357 = vrot.slane %v2159, 2
  %v2358 = vsel %vm1234, %v2356, %v2357
  %v2359 = vrot.slane %v2160, 2
  %v2360 = vsel %vm1234, %v2357, %v2359
  %v2361 = vrot.slane %v2161, 2
  %v2362 = vrot.slane %v2162, 2
  %v2363 = vsel %vm1234, %v2361, %v2362
  %v2364 = vrot.slane %v2163, 2
  %v2365 = vsel %vm1234, %v2362, %v2364
  %v2366 = vrot.slane %v2164, 2
  %v2367 = vrot.slane %v2165, 2
  %v2368 = vsel %vm1234, %v2366, %v2367
  %v2369 = vrot.slane %v2166, 2
  %v2370 = vsel %vm1234, %v2367, %v2369
  %v2371 = vrot.slane %v2167, 2
  %v2372 = vrot.slane %v2168, 2
  %v2373 = vsel %vm1234, %v2371, %v2372
  %v2374 = vrot.slane %v2169, 2
  %v2375 = vsel %vm1234, %v2372, %v2374
  %v2376 = vrot.slane %v2170, 2
  %v2377 = vrot.slane %v2171, 2
  %v2378 = vsel %vm1234, %v2376, %v2377
  %v2379 = vrot.slane %v2172, 2
  %v2380 = vsel %vm1234, %v2377, %v2379
  %v2381 = vrot.slane %v2173, 2
  %v2382 = vrot.slane %v2174, 2
  %v2383 = vsel %vm1234, %v2381, %v2382
  %v2384 = vrot.slane %v2175, 2
  %v2385 = vsel %vm1234, %v2382, %v2384
  %v2386 = vrot.slane %v2176, 2
  %v2387 = vrot.slane %v2177, 2
  %v2388 = vsel %vm1234, %v2386, %v2387
  %v2389 = vrot.slane %v2178, 2
  %v2390 = vsel %vm1234, %v2387, %v2389
  %v2391 = vrot.slane %v2179, 2
  %v2392 = vrot.slane %v2180, 2
  %v2393 = vsel %vm1234, %v2391, %v2392
  %v2394 = vrot.slane %v2181, 2
  %v2395 = vsel %vm1234, %v2392, %v2394
  %v2396 = vrot.slane %v2182, 2
  %v2397 = vrot.slane %v2183, 2
  %v2398 = vsel %vm1234, %v2396, %v2397
  %v2399 = vrot.slane %v2184, 2
  %v2400 = vsel %vm1234, %v2397, %v2399
  %v2401 = vrot.slane %v2185, 2
  %v2402 = vrot.slane %v2186, 2
  %v2403 = vsel %vm1234, %v2401, %v2402
  %v2404 = vrot.slane %v2187, 2
  %v2405 = vsel %vm1234, %v2402, %v2404
  %v2406 = vrot.slane %v2188, 2
  %v2407 = vrot.slane %v2189, 2
  %v2408 = vsel %vm1234, %v2406, %v2407
  %v2409 = vrot.slane %v2190, 2
  %v2410 = vsel %vm1234, %v2407, %v2409
  %v2411 = vrot.slane %v2191, 2
  %v2412 = vrot.slane %v2192, 2
  %v2413 = vsel %vm1234, %v2411, %v2412
  %v2414 = vrot.slane %v2193, 2
  %v2415 = vsel %vm1234, %v2412, %v2414
  %v2416 = vrot.slane %v2194, 2
  %v2417 = vrot.slane %v2195, 2
  %v2418 = vsel %vm1234, %v2416, %v2417
  %v2419 = vrot.slane %v2196, 2
  %v2420 = vsel %vm1234, %v2417, %v2419
  %v2421 = vrot.slane %v2197, 2
  %v2422 = vrot.slane %v2198, 2
  %v2423 = vsel %vm1234, %v2421, %v2422
  %v2424 = vrot.slane %v2199, 2
  %v2425 = vsel %vm1234, %v2422, %v2424
  %v2426 = vrot.slane %v2200, 2
  %v2427 = vrot.slane %v2201, 2
  %v2428 = vsel %vm1234, %v2426, %v2427
  %v2429 = vrot.slane %v2202, 2
  %v2430 = vsel %vm1234, %v2427, %v2429
  %v2431 = vrot.slane %v2203, 2
  %v2432 = vrot.slane %v2204, 2
  %v2433 = vsel %vm1234, %v2431, %v2432
  %v2434 = vrot.slane %v2205, 2
  %v2435 = vsel %vm1234, %v2432, %v2434
  %v2436 = vrot.slane %v2206, 2
  %v2437 = vrot.slane %v2207, 2
  %v2438 = vsel %vm1234, %v2436, %v2437
  %v2439 = vrot.slane %v2208, 2
  %v2440 = vsel %vm1234, %v2437, %v2439
  %v2441 = vrot.slane %v2209, 2
  %v2442 = vrot.slane %v2210, 2
  %v2443 = vsel %vm1234, %v2441, %v2442
  %v2444 = vrot.slane %v2211, 2
  %v2445 = vsel %vm1234, %v2442, %v2444
  %v2446 = vrot.slane %v2212, 2
  %v2447 = vrot.slane %v2213, 2
  %v2448 = vsel %vm1234, %v2446, %v2447
  %v2449 = vrot.slane %v2214, 2
  %v2450 = vsel %vm1234, %v2447, %v2449
  %v2451 = vrot.slane %v2215, 2
  %v2452 = vrot.slane %v2216, 2
  %v2453 = vsel %vm1234, %v2451, %v2452
  %v2454 = vrot.slane %v2217, 2
  %v2455 = vsel %vm1234, %v2452, %v2454
  %v2456 = vrot.slane %v2218, 2
  %v2457 = vrot.slane %v2219, 2
  %v2458 = vsel %vm1234, %v2456, %v2457
  %v2459 = vrot.slane %v2220, 2
  %v2460 = vsel %vm1234, %v2457, %v2459
  %v2461 = vrot.slane %v2221, 2
  %v2462 = vrot.slane %v2222, 2
  %v2463 = vsel %vm1234, %v2461, %v2462
  %v2464 = vrot.slane %v2223, 2
  %v2465 = vsel %vm1234, %v2462, %v2464
  %v2466 = vrot.slane %v2224, 2
  %v2467 = vrot.slane %v2225, 2
  %v2468 = vsel %vm1234, %v2466, %v2467
  %v2469 = vrot.slane %v2226, 2
  %v2470 = vsel %vm1234, %v2467, %v2469
  %v2471 = vrot.slane %v2227, 2
  %v2472 = vrot.slane %v2228, 2
  %v2473 = vsel %vm1234, %v2471, %v2472
  %v2474 = vrot.slane %v2229, 2
  %v2475 = vsel %vm1234, %v2472, %v2474
  %v2476 = vrot.slane %v2230, 2
  %v2477 = vrot.slane %v2231, 2
  %v2478 = vsel %vm1234, %v2476, %v2477
  %v2479 = vrot.slane %v2232, 2
  %v2480 = vsel %vm1234, %v2477, %v2479
  %v2481 = vrot.slane %v2233, 2
  %v2482 = vrot.slane %v2234, 2
  %v2483 = vsel %vm1234, %v2481, %v2482
  %v2484 = vrot.slane %v2235, 2
  %v2485 = vsel %vm1234, %v2482, %v2484
  %v2486 = vrot.slane %v2236, 2
  %v2487 = vrot.slane %v2237, 2
  %v2488 = vsel %vm1234, %v2486, %v2487
  %v2489 = vrot.slane %v2238, 2
  %v2490 = vsel %vm1234, %v2487, %v2489
  %v2491 = vrot.slane %v2239, 2
  %v2492 = vrot.slane %v2240, 2
  %v2493 = vsel %vm1234, %v2491, %v2492
  %v2494 = vrot.slane %v2241, 2
  %v2495 = vsel %vm1234, %v2492, %v2494
  %v2496 = vrot.slane %v2242, 2
  %v2497 = vrot.slane %v2243, 2
  %v2498 = vsel %vm1234, %v2496, %v2497
  %v2499 = vrot.slane %v2244, 2
  %v2500 = vsel %vm1234, %v2497, %v2499
  %v2565 = vadd.f32 %v2079, %v2343
  %v2566 = vadd.f32 %v2080, %v2345
  %v2567 = vadd.f32 %v2081, %v2348
  %v2568 = vadd.f32 %v2082, %v2350
  %v2569 = vadd.f32 %v2083, %v2353
  %v2570 = vadd.f32 %v2084, %v2355
  %v2571 = vadd.f32 %v2085, %v2358
  %v2572 = vadd.f32 %v2086, %v2360
  %v2573 = vadd.f32 %v2087, %v2363
  %v2574 = vadd.f32 %v2088, %v2365
  %v2575 = vadd.f32 %v2089, %v2368
  %v2576 = vadd.f32 %v2090, %v2370
  %v2577 = vadd.f32 %v2091, %v2373
  %v2578 = vadd.f32 %v2092, %v2375
  %v2579 = vadd.f32 %v2093, %v2378
  %v2580 = vadd.f32 %v2094, %v2380
  %v2581 = vadd.f32 %v2095, %v2383
  %v2582 = vadd.f32 %v2096, %v2385
  %v2583 = vadd.f32 %v2097, %v2388
  %v2584 = vadd.f32 %v2098, %v2390
  %v2585 = vadd.f32 %v2099, %v2393
  %v2586 = vadd.f32 %v2100, %v2395
  %v2587 = vadd.f32 %v2101, %v2398
  %v2588 = vadd.f32 %v2102, %v2400
  %v2589 = vadd.f32 %v2103, %v2403
  %v2590 = vadd.f32 %v2104, %v2405
  %v2591 = vadd.f32 %v2105, %v2408
  %v2592 = vadd.f32 %v2106, %v2410
  %v2593 = vadd.f32 %v2107, %v2413
  %v2594 = vadd.f32 %v2108, %v2415
  %v2595 = vadd.f32 %v2109, %v2418
  %v2596 = vadd.f32 %v2110, %v2420
  %v2597 = vadd.f32 %v2111, %v2423
  %v2598 = vadd.f32 %v2112, %v2425
  %v2599 = vadd.f32 %v2113, %v2428
  %v2600 = vadd.f32 %v2114, %v2430
  %v2601 = vadd.f32 %v2115, %v2433
  %v2602 = vadd.f32 %v2116, %v2435
  %v2603 = vadd.f32 %v2117, %v2438
  %v2604 = vadd.f32 %v2118, %v2440
  %v2605 = vadd.f32 %v2119, %v2443
  %v2606 = vadd.f32 %v2120, %v2445
  %v2607 = vadd.f32 %v2121, %v2448
  %v2608 = vadd.f32 %v2122, %v2450
  %v2609 = vadd.f32 %v2123, %v2453
  %v2610 = vadd.f32 %v2124, %v2455
  %v2611 = vadd.f32 %v2125, %v2458
  %v2612 = vadd.f32 %v2126, %v2460
  %v2613 = vadd.f32 %v2127, %v2463
  %v2614 = vadd.f32 %v2128, %v2465
  %v2615 = vadd.f32 %v2129, %v2468
  %v2616 = vadd.f32 %v2130, %v2470
  %v2617 = vadd.f32 %v2131, %v2473
  %v2618 = vadd.f32 %v2132, %v2475
  %v2619 = vadd.f32 %v2133, %v2478
  %v2620 = vadd.f32 %v2134, %v2480
  %v2621 = vadd.f32 %v2135, %v2483
  %v2622 = vadd.f32 %v2136, %v2485
  %v2623 = vadd.f32 %v2137, %v2488
  %v2624 = vadd.f32 %v2138, %v2490
  %v2625 = vadd.f32 %v2139, %v2493
  %v2626 = vadd.f32 %v2140, %v2495
  %v2627 = vadd.f32 %v2141, %v2498
  %v2628 = vadd.f32 %v2142, %v2500
  %v2630 = vlaneseq
  %v2631 = vshrl.u32 %v2630, 7
  %v2632 = vsub.s32 0, %v2631
  %v2633 = vrot.slane %v412, %v2632
  %v2635 = vmul.f32 %v304, %v2633
  %v2636 = vmul.f32 %v305, %v2633
  %v2637 = vmul.f32 %v307, %v2633
  %v2638 = vmul.f32 %v308, %v2633
  %v2639 = vmul.f32 %v310, %v2633
  %v2640 = vmul.f32 %v311, %v2633
  %v2641 = vmul.f32 %v313, %v2633
  %v2642 = vmul.f32 %v314, %v2633
  %v2643 = vmul.f32 %v316, %v2633
  %v2644 = vmul.f32 %v317, %v2633
  %v2645 = vmul.f32 %v319, %v2633
  %v2646 = vmul.f32 %v320, %v2633
  %v2647 = vmul.f32 %v322, %v2633
  %v2648 = vmul.f32 %v323, %v2633
  %v2649 = vmul.f32 %v325, %v2633
  %v2650 = vmul.f32 %v326, %v2633
  %v2651 = vmul.f32 %v328, %v2633
  %v2652 = vmul.f32 %v329, %v2633
  %v2653 = vmul.f32 %v331, %v2633
  %v2654 = vmul.f32 %v332, %v2633
  %v2655 = vmul.f32 %v334, %v2633
  %v2656 = vmul.f32 %v335, %v2633
  %v2657 = vmul.f32 %v337, %v2633
  %v2658 = vmul.f32 %v338, %v2633
  %v2659 = vmul.f32 %v340, %v2633
  %v2660 = vmul.f32 %v341, %v2633
  %v2661 = vmul.f32 %v343, %v2633
  %v2662 = vmul.f32 %v344, %v2633
  %v2663 = vmul.f32 %v346, %v2633
  %v2664 = vmul.f32 %v347, %v2633
  %v2665 = vmul.f32 %v349, %v2633
  %v2666 = vmul.f32 %v350, %v2633
  %v2667 = vmul.f32 %v358, %v2633
  %v2668 = vmul.f32 %v359, %v2633
  %v2669 = vmul.f32 %v361, %v2633
  %v2670 = vmul.f32 %v362, %v2633
  %v2671 = vmul.f32 %v364, %v2633
  %v2672 = vmul.f32 %v365, %v2633
  %v2673 = vmul.f32 %v367, %v2633
  %v2674 = vmul.f32 %v368, %v2633
  %v2675 = vmul.f32 %v370, %v2633
  %v2676 = vmul.f32 %v371, %v2633
  %v2677 = vmul.f32 %v373, %v2633
  %v2678 = vmul.f32 %v374, %v2633
  %v2679 = vmul.f32 %v376, %v2633
  %v2680 = vmul.f32 %v377, %v2633
  %v2681 = vmul.f32 %v379, %v2633
  %v2682 = vmul.f32 %v380, %v2633
  %v2683 = vmul.f32 %v382, %v2633
  %v2684 = vmul.f32 %v383, %v2633
  %v2685 = vmul.f32 %v385, %v2633
  %v2686 = vmul.f32 %v386, %v2633
  %v2687 = vmul.f32 %v388, %v2633
  %v2688 = vmul.f32 %v389, %v2633
  %v2689 = vmul.f32 %v391, %v2633
  %v2690 = vmul.f32 %v392, %v2633
  %v2691 = vmul.f32 %v394, %v2633
  %v2692 = vmul.f32 %v395, %v2633
  %v2693 = vmul.f32 %v397, %v2633
  %v2694 = vmul.f32 %v398, %v2633
  %v2695 = vmul.f32 %v400, %v2633
  %v2696 = vmul.f32 %v401, %v2633
  %v2697 = vmul.f32 %v403, %v2633
  %v2698 = vmul.f32 %v404, %v2633
  %v2699 = vadd.f32 %v2565, %v2635
  %v2700 = vadd.f32 %v2566, %v2636
  %v2701 = vadd.f32 %v2567, %v2637
  %v2702 = vadd.f32 %v2568, %v2638
  %v2703 = vadd.f32 %v2569, %v2639
  %v2704 = vadd.f32 %v2570, %v2640
  %v2705 = vadd.f32 %v2571, %v2641
  %v2706 = vadd.f32 %v2572, %v2642
  %v2707 = vadd.f32 %v2573, %v2643
  %v2708 = vadd.f32 %v2574, %v2644
  %v2709 = vadd.f32 %v2575, %v2645
  %v2710 = vadd.f32 %v2576, %v2646
  %v2711 = vadd.f32 %v2577, %v2647
  %v2712 = vadd.f32 %v2578, %v2648
  %v2713 = vadd.f32 %v2579, %v2649
  %v2714 = vadd.f32 %v2580, %v2650
  %v2715 = vadd.f32 %v2581, %v2651
  %v2716 = vadd.f32 %v2582, %v2652
  %v2717 = vadd.f32 %v2583, %v2653
  %v2718 = vadd.f32 %v2584, %v2654
  %v2719 = vadd.f32 %v2585, %v2655
  %v2720 = vadd.f32 %v2586, %v2656
  %v2721 = vadd.f32 %v2587, %v2657
  %v2722 = vadd.f32 %v2588, %v2658
  %v2723 = vadd.f32 %v2589, %v2659
  %v2724 = vadd.f32 %v2590, %v2660
  %v2725 = vadd.f32 %v2591, %v2661
  %v2726 = vadd.f32 %v2592, %v2662
  %v2727 = vadd.f32 %v2593, %v2663
  %v2728 = vadd.f32 %v2594, %v2664
  %v2729 = vadd.f32 %v2595, %v2665
  %v2730 = vadd.f32 %v2596, %v2666
  %v2731 = vadd.f32 %v2597, %v2667
  %v2732 = vadd.f32 %v2598, %v2668
  %v2733 = vadd.f32 %v2599, %v2669
  %v2734 = vadd.f32 %v2600, %v2670
  %v2735 = vadd.f32 %v2601, %v2671
  %v2736 = vadd.f32 %v2602, %v2672
  %v2737 = vadd.f32 %v2603, %v2673
  %v2738 = vadd.f32 %v2604, %v2674
  %v2739 = vadd.f32 %v2605, %v2675
  %v2740 = vadd.f32 %v2606, %v2676
  %v2741 = vadd.f32 %v2607, %v2677
  %v2742 = vadd.f32 %v2608, %v2678
  %v2743 = vadd.f32 %v2609, %v2679
  %v2744 = vadd.f32 %v2610, %v2680
  %v2745 = vadd.f32 %v2611, %v2681
  %v2746 = vadd.f32 %v2612, %v2682
  %v2747 = vadd.f32 %v2613, %v2683
  %v2748 = vadd.f32 %v2614, %v2684
  %v2749 = vadd.f32 %v2615, %v2685
  %v2750 = vadd.f32 %v2616, %v2686
  %v2751 = vadd.f32 %v2617, %v2687
  %v2752 = vadd.f32 %v2618, %v2688
  %v2753 = vadd.f32 %v2619, %v2689
  %v2754 = vadd.f32 %v2620, %v2690
  %v2755 = vadd.f32 %v2621, %v2691
  %v2756 = vadd.f32 %v2622, %v2692
  %v2757 = vadd.f32 %v2623, %v2693
  %v2758 = vadd.f32 %v2624, %v2694
  %v2759 = vadd.f32 %v2625, %v2695
  %v2760 = vadd.f32 %v2626, %v2696
  %v2761 = vadd.f32 %v2627, %v2697
  %v2762 = vadd.f32 %v2628, %v2698
  %v2764 = vlaneseq
  %v2765 = vshrl.u32 %v2764, 7
  %v2766 = vsub.s32 0, %v2765
  %v2767 = vrot.slane %v413, %v2766
  %v2769 = vmul.f32 %v304, %v2767
  %v2770 = vmul.f32 %v305, %v2767
  %v2771 = vmul.f32 %v306, %v2767
  %v2772 = vmul.f32 %v307, %v2767
  %v2773 = vmul.f32 %v308, %v2767
  %v2774 = vmul.f32 %v309, %v2767
  %v2775 = vmul.f32 %v310, %v2767
  %v2776 = vmul.f32 %v311, %v2767
  %v2777 = vmul.f32 %v312, %v2767
  %v2778 = vmul.f32 %v313, %v2767
  %v2779 = vmul.f32 %v314, %v2767
  %v2780 = vmul.f32 %v315, %v2767
  %v2781 = vmul.f32 %v316, %v2767
  %v2782 = vmul.f32 %v317, %v2767
  %v2783 = vmul.f32 %v318, %v2767
  %v2784 = vmul.f32 %v319, %v2767
  %v2785 = vmul.f32 %v320, %v2767
  %v2786 = vmul.f32 %v321, %v2767
  %v2787 = vmul.f32 %v322, %v2767
  %v2788 = vmul.f32 %v323, %v2767
  %v2789 = vmul.f32 %v324, %v2767
  %v2790 = vmul.f32 %v325, %v2767
  %v2791 = vmul.f32 %v326, %v2767
  %v2792 = vmul.f32 %v327, %v2767
  %v2793 = vmul.f32 %v328, %v2767
  %v2794 = vmul.f32 %v329, %v2767
  %v2795 = vmul.f32 %v330, %v2767
  %v2796 = vmul.f32 %v331, %v2767
  %v2797 = vmul.f32 %v332, %v2767
  %v2798 = vmul.f32 %v333, %v2767
  %v2799 = vmul.f32 %v334, %v2767
  %v2800 = vmul.f32 %v335, %v2767
  %v2801 = vmul.f32 %v336, %v2767
  %v2802 = vmul.f32 %v337, %v2767
  %v2803 = vmul.f32 %v338, %v2767
  %v2804 = vmul.f32 %v339, %v2767
  %v2805 = vmul.f32 %v340, %v2767
  %v2806 = vmul.f32 %v341, %v2767
  %v2807 = vmul.f32 %v342, %v2767
  %v2808 = vmul.f32 %v343, %v2767
  %v2809 = vmul.f32 %v344, %v2767
  %v2810 = vmul.f32 %v345, %v2767
  %v2811 = vmul.f32 %v346, %v2767
  %v2812 = vmul.f32 %v347, %v2767
  %v2813 = vmul.f32 %v348, %v2767
  %v2814 = vmul.f32 %v349, %v2767
  %v2815 = vmul.f32 %v350, %v2767
  %v2816 = vmul.f32 %v351, %v2767
  %v2817 = vmul.f32 %v358, %v2767
  %v2818 = vmul.f32 %v359, %v2767
  %v2819 = vmul.f32 %v360, %v2767
  %v2820 = vmul.f32 %v361, %v2767
  %v2821 = vmul.f32 %v362, %v2767
  %v2822 = vmul.f32 %v363, %v2767
  %v2823 = vmul.f32 %v364, %v2767
  %v2824 = vmul.f32 %v365, %v2767
  %v2825 = vmul.f32 %v366, %v2767
  %v2826 = vmul.f32 %v367, %v2767
  %v2827 = vmul.f32 %v368, %v2767
  %v2828 = vmul.f32 %v369, %v2767
  %v2829 = vmul.f32 %v370, %v2767
  %v2830 = vmul.f32 %v371, %v2767
  %v2831 = vmul.f32 %v372, %v2767
  %v2832 = vmul.f32 %v373, %v2767
  %v2833 = vmul.f32 %v374, %v2767
  %v2834 = vmul.f32 %v375, %v2767
  %v2835 = vmul.f32 %v376, %v2767
  %v2836 = vmul.f32 %v377, %v2767
  %v2837 = vmul.f32 %v378, %v2767
  %v2838 = vmul.f32 %v379, %v2767
  %v2839 = vmul.f32 %v380, %v2767
  %v2840 = vmul.f32 %v381, %v2767
  %v2841 = vmul.f32 %v382, %v2767
  %v2842 = vmul.f32 %v383, %v2767
  %v2843 = vmul.f32 %v384, %v2767
  %v2844 = vmul.f32 %v385, %v2767
  %v2845 = vmul.f32 %v386, %v2767
  %v2846 = vmul.f32 %v387, %v2767
  %v2847 = vmul.f32 %v388, %v2767
  %v2848 = vmul.f32 %v389, %v2767
  %v2849 = vmul.f32 %v390, %v2767
  %v2850 = vmul.f32 %v391, %v2767
  %v2851 = vmul.f32 %v392, %v2767
  %v2852 = vmul.f32 %v393, %v2767
  %v2853 = vmul.f32 %v394, %v2767
  %v2854 = vmul.f32 %v395, %v2767
  %v2855 = vmul.f32 %v396, %v2767
  %v2856 = vmul.f32 %v397, %v2767
  %v2857 = vmul.f32 %v398, %v2767
  %v2858 = vmul.f32 %v399, %v2767
  %v2859 = vmul.f32 %v400, %v2767
  %v2860 = vmul.f32 %v401, %v2767
  %v2861 = vmul.f32 %v402, %v2767
  %v2862 = vmul.f32 %v403, %v2767
  %v2863 = vmul.f32 %v404, %v2767
  %v2864 = vmul.f32 %v405, %v2767
  %v2961 = vrot.slane %v2769, 1
  %v2962 = vrot.slane %v2770, 1
  %v2963 = vsel %vm747, %v2961, %v2962
  %v2964 = vrot.slane %v2771, 1
  %v2965 = vsel %vm747, %v2962, %v2964
  %v2966 = vrot.slane %v2772, 1
  %v2967 = vrot.slane %v2773, 1
  %v2968 = vsel %vm747, %v2966, %v2967
  %v2969 = vrot.slane %v2774, 1
  %v2970 = vsel %vm747, %v2967, %v2969
  %v2971 = vrot.slane %v2775, 1
  %v2972 = vrot.slane %v2776, 1
  %v2973 = vsel %vm747, %v2971, %v2972
  %v2974 = vrot.slane %v2777, 1
  %v2975 = vsel %vm747, %v2972, %v2974
  %v2976 = vrot.slane %v2778, 1
  %v2977 = vrot.slane %v2779, 1
  %v2978 = vsel %vm747, %v2976, %v2977
  %v2979 = vrot.slane %v2780, 1
  %v2980 = vsel %vm747, %v2977, %v2979
  %v2981 = vrot.slane %v2781, 1
  %v2982 = vrot.slane %v2782, 1
  %v2983 = vsel %vm747, %v2981, %v2982
  %v2984 = vrot.slane %v2783, 1
  %v2985 = vsel %vm747, %v2982, %v2984
  %v2986 = vrot.slane %v2784, 1
  %v2987 = vrot.slane %v2785, 1
  %v2988 = vsel %vm747, %v2986, %v2987
  %v2989 = vrot.slane %v2786, 1
  %v2990 = vsel %vm747, %v2987, %v2989
  %v2991 = vrot.slane %v2787, 1
  %v2992 = vrot.slane %v2788, 1
  %v2993 = vsel %vm747, %v2991, %v2992
  %v2994 = vrot.slane %v2789, 1
  %v2995 = vsel %vm747, %v2992, %v2994
  %v2996 = vrot.slane %v2790, 1
  %v2997 = vrot.slane %v2791, 1
  %v2998 = vsel %vm747, %v2996, %v2997
  %v2999 = vrot.slane %v2792, 1
  %v3000 = vsel %vm747, %v2997, %v2999
  %v3001 = vrot.slane %v2793, 1
  %v3002 = vrot.slane %v2794, 1
  %v3003 = vsel %vm747, %v3001, %v3002
  %v3004 = vrot.slane %v2795, 1
  %v3005 = vsel %vm747, %v3002, %v3004
  %v3006 = vrot.slane %v2796, 1
  %v3007 = vrot.slane %v2797, 1
  %v3008 = vsel %vm747, %v3006, %v3007
  %v3009 = vrot.slane %v2798, 1
  %v3010 = vsel %vm747, %v3007, %v3009
  %v3011 = vrot.slane %v2799, 1
  %v3012 = vrot.slane %v2800, 1
  %v3013 = vsel %vm747, %v3011, %v3012
  %v3014 = vrot.slane %v2801, 1
  %v3015 = vsel %vm747, %v3012, %v3014
  %v3016 = vrot.slane %v2802, 1
  %v3017 = vrot.slane %v2803, 1
  %v3018 = vsel %vm747, %v3016, %v3017
  %v3019 = vrot.slane %v2804, 1
  %v3020 = vsel %vm747, %v3017, %v3019
  %v3021 = vrot.slane %v2805, 1
  %v3022 = vrot.slane %v2806, 1
  %v3023 = vsel %vm747, %v3021, %v3022
  %v3024 = vrot.slane %v2807, 1
  %v3025 = vsel %vm747, %v3022, %v3024
  %v3026 = vrot.slane %v2808, 1
  %v3027 = vrot.slane %v2809, 1
  %v3028 = vsel %vm747, %v3026, %v3027
  %v3029 = vrot.slane %v2810, 1
  %v3030 = vsel %vm747, %v3027, %v3029
  %v3031 = vrot.slane %v2811, 1
  %v3032 = vrot.slane %v2812, 1
  %v3033 = vsel %vm747, %v3031, %v3032
  %v3034 = vrot.slane %v2813, 1
  %v3035 = vsel %vm747, %v3032, %v3034
  %v3036 = vrot.slane %v2814, 1
  %v3037 = vrot.slane %v2815, 1
  %v3038 = vsel %vm747, %v3036, %v3037
  %v3039 = vrot.slane %v2816, 1
  %v3040 = vsel %vm747, %v3037, %v3039
  %v3041 = vrot.slane %v2817, 1
  %v3042 = vrot.slane %v2818, 1
  %v3043 = vsel %vm747, %v3041, %v3042
  %v3044 = vrot.slane %v2819, 1
  %v3045 = vsel %vm747, %v3042, %v3044
  %v3046 = vrot.slane %v2820, 1
  %v3047 = vrot.slane %v2821, 1
  %v3048 = vsel %vm747, %v3046, %v3047
  %v3049 = vrot.slane %v2822, 1
  %v3050 = vsel %vm747, %v3047, %v3049
  %v3051 = vrot.slane %v2823, 1
  %v3052 = vrot.slane %v2824, 1
  %v3053 = vsel %vm747, %v3051, %v3052
  %v3054 = vrot.slane %v2825, 1
  %v3055 = vsel %vm747, %v3052, %v3054
  %v3056 = vrot.slane %v2826, 1
  %v3057 = vrot.slane %v2827, 1
  %v3058 = vsel %vm747, %v3056, %v3057
  %v3059 = vrot.slane %v2828, 1
  %v3060 = vsel %vm747, %v3057, %v3059
  %v3061 = vrot.slane %v2829, 1
  %v3062 = vrot.slane %v2830, 1
  %v3063 = vsel %vm747, %v3061, %v3062
  %v3064 = vrot.slane %v2831, 1
  %v3065 = vsel %vm747, %v3062, %v3064
  %v3066 = vrot.slane %v2832, 1
  %v3067 = vrot.slane %v2833, 1
  %v3068 = vsel %vm747, %v3066, %v3067
  %v3069 = vrot.slane %v2834, 1
  %v3070 = vsel %vm747, %v3067, %v3069
  %v3071 = vrot.slane %v2835, 1
  %v3072 = vrot.slane %v2836, 1
  %v3073 = vsel %vm747, %v3071, %v3072
  %v3074 = vrot.slane %v2837, 1
  %v3075 = vsel %vm747, %v3072, %v3074
  %v3076 = vrot.slane %v2838, 1
  %v3077 = vrot.slane %v2839, 1
  %v3078 = vsel %vm747, %v3076, %v3077
  %v3079 = vrot.slane %v2840, 1
  %v3080 = vsel %vm747, %v3077, %v3079
  %v3081 = vrot.slane %v2841, 1
  %v3082 = vrot.slane %v2842, 1
  %v3083 = vsel %vm747, %v3081, %v3082
  %v3084 = vrot.slane %v2843, 1
  %v3085 = vsel %vm747, %v3082, %v3084
  %v3086 = vrot.slane %v2844, 1
  %v3087 = vrot.slane %v2845, 1
  %v3088 = vsel %vm747, %v3086, %v3087
  %v3089 = vrot.slane %v2846, 1
  %v3090 = vsel %vm747, %v3087, %v3089
  %v3091 = vrot.slane %v2847, 1
  %v3092 = vrot.slane %v2848, 1
  %v3093 = vsel %vm747, %v3091, %v3092
  %v3094 = vrot.slane %v2849, 1
  %v3095 = vsel %vm747, %v3092, %v3094
  %v3096 = vrot.slane %v2850, 1
  %v3097 = vrot.slane %v2851, 1
  %v3098 = vsel %vm747, %v3096, %v3097
  %v3099 = vrot.slane %v2852, 1
  %v3100 = vsel %vm747, %v3097, %v3099
  %v3101 = vrot.slane %v2853, 1
  %v3102 = vrot.slane %v2854, 1
  %v3103 = vsel %vm747, %v3101, %v3102
  %v3104 = vrot.slane %v2855, 1
  %v3105 = vsel %vm747, %v3102, %v3104
  %v3106 = vrot.slane %v2856, 1
  %v3107 = vrot.slane %v2857, 1
  %v3108 = vsel %vm747, %v3106, %v3107
  %v3109 = vrot.slane %v2858, 1
  %v3110 = vsel %vm747, %v3107, %v3109
  %v3111 = vrot.slane %v2859, 1
  %v3112 = vrot.slane %v2860, 1
  %v3113 = vsel %vm747, %v3111, %v3112
  %v3114 = vrot.slane %v2861, 1
  %v3115 = vsel %vm747, %v3112, %v3114
  %v3116 = vrot.slane %v2862, 1
  %v3117 = vrot.slane %v2863, 1
  %v3118 = vsel %vm747, %v3116, %v3117
  %v3119 = vrot.slane %v2864, 1
  %v3120 = vsel %vm747, %v3117, %v3119
  %v3185 = vadd.f32 %v2699, %v2963
  %v3186 = vadd.f32 %v2700, %v2965
  %v3187 = vadd.f32 %v2701, %v2968
  %v3188 = vadd.f32 %v2702, %v2970
  %v3189 = vadd.f32 %v2703, %v2973
  %v3190 = vadd.f32 %v2704, %v2975
  %v3191 = vadd.f32 %v2705, %v2978
  %v3192 = vadd.f32 %v2706, %v2980
  %v3193 = vadd.f32 %v2707, %v2983
  %v3194 = vadd.f32 %v2708, %v2985
  %v3195 = vadd.f32 %v2709, %v2988
  %v3196 = vadd.f32 %v2710, %v2990
  %v3197 = vadd.f32 %v2711, %v2993
  %v3198 = vadd.f32 %v2712, %v2995
  %v3199 = vadd.f32 %v2713, %v2998
  %v3200 = vadd.f32 %v2714, %v3000
  %v3201 = vadd.f32 %v2715, %v3003
  %v3202 = vadd.f32 %v2716, %v3005
  %v3203 = vadd.f32 %v2717, %v3008
  %v3204 = vadd.f32 %v2718, %v3010
  %v3205 = vadd.f32 %v2719, %v3013
  %v3206 = vadd.f32 %v2720, %v3015
  %v3207 = vadd.f32 %v2721, %v3018
  %v3208 = vadd.f32 %v2722, %v3020
  %v3209 = vadd.f32 %v2723, %v3023
  %v3210 = vadd.f32 %v2724, %v3025
  %v3211 = vadd.f32 %v2725, %v3028
  %v3212 = vadd.f32 %v2726, %v3030
  %v3213 = vadd.f32 %v2727, %v3033
  %v3214 = vadd.f32 %v2728, %v3035
  %v3215 = vadd.f32 %v2729, %v3038
  %v3216 = vadd.f32 %v2730, %v3040
  %v3217 = vadd.f32 %v2731, %v3043
  %v3218 = vadd.f32 %v2732, %v3045
  %v3219 = vadd.f32 %v2733, %v3048
  %v3220 = vadd.f32 %v2734, %v3050
  %v3221 = vadd.f32 %v2735, %v3053
  %v3222 = vadd.f32 %v2736, %v3055
  %v3223 = vadd.f32 %v2737, %v3058
  %v3224 = vadd.f32 %v2738, %v3060
  %v3225 = vadd.f32 %v2739, %v3063
  %v3226 = vadd.f32 %v2740, %v3065
  %v3227 = vadd.f32 %v2741, %v3068
  %v3228 = vadd.f32 %v2742, %v3070
  %v3229 = vadd.f32 %v2743, %v3073
  %v3230 = vadd.f32 %v2744, %v3075
  %v3231 = vadd.f32 %v2745, %v3078
  %v3232 = vadd.f32 %v2746, %v3080
  %v3233 = vadd.f32 %v2747, %v3083
  %v3234 = vadd.f32 %v2748, %v3085
  %v3235 = vadd.f32 %v2749, %v3088
  %v3236 = vadd.f32 %v2750, %v3090
  %v3237 = vadd.f32 %v2751, %v3093
  %v3238 = vadd.f32 %v2752, %v3095
  %v3239 = vadd.f32 %v2753, %v3098
  %v3240 = vadd.f32 %v2754, %v3100
  %v3241 = vadd.f32 %v2755, %v3103
  %v3242 = vadd.f32 %v2756, %v3105
  %v3243 = vadd.f32 %v2757, %v3108
  %v3244 = vadd.f32 %v2758, %v3110
  %v3245 = vadd.f32 %v2759, %v3113
  %v3246 = vadd.f32 %v2760, %v3115
  %v3247 = vadd.f32 %v2761, %v3118
  %v3248 = vadd.f32 %v2762, %v3120
  %v3250 = vlaneseq
  %v3251 = vshrl.u32 %v3250, 7
  %v3252 = vsub.s32 0, %v3251
  %v3253 = vrot.slane %v414, %v3252
  %v3255 = vmul.f32 %v304, %v3253
  %v3256 = vmul.f32 %v305, %v3253
  %v3257 = vmul.f32 %v306, %v3253
  %v3258 = vmul.f32 %v307, %v3253
  %v3259 = vmul.f32 %v308, %v3253
  %v3260 = vmul.f32 %v309, %v3253
  %v3261 = vmul.f32 %v310, %v3253
  %v3262 = vmul.f32 %v311, %v3253
  %v3263 = vmul.f32 %v312, %v3253
  %v3264 = vmul.f32 %v313, %v3253
  %v3265 = vmul.f32 %v314, %v3253
  %v3266 = vmul.f32 %v315, %v3253
  %v3267 = vmul.f32 %v316, %v3253
  %v3268 = vmul.f32 %v317, %v3253
  %v3269 = vmul.f32 %v318, %v3253
  %v3270 = vmul.f32 %v319, %v3253
  %v3271 = vmul.f32 %v320, %v3253
  %v3272 = vmul.f32 %v321, %v3253
  %v3273 = vmul.f32 %v322, %v3253
  %v3274 = vmul.f32 %v323, %v3253
  %v3275 = vmul.f32 %v324, %v3253
  %v3276 = vmul.f32 %v325, %v3253
  %v3277 = vmul.f32 %v326, %v3253
  %v3278 = vmul.f32 %v327, %v3253
  %v3279 = vmul.f32 %v328, %v3253
  %v3280 = vmul.f32 %v329, %v3253
  %v3281 = vmul.f32 %v330, %v3253
  %v3282 = vmul.f32 %v331, %v3253
  %v3283 = vmul.f32 %v332, %v3253
  %v3284 = vmul.f32 %v333, %v3253
  %v3285 = vmul.f32 %v334, %v3253
  %v3286 = vmul.f32 %v335, %v3253
  %v3287 = vmul.f32 %v336, %v3253
  %v3288 = vmul.f32 %v337, %v3253
  %v3289 = vmul.f32 %v338, %v3253
  %v3290 = vmul.f32 %v339, %v3253
  %v3291 = vmul.f32 %v340, %v3253
  %v3292 = vmul.f32 %v341, %v3253
  %v3293 = vmul.f32 %v342, %v3253
  %v3294 = vmul.f32 %v343, %v3253
  %v3295 = vmul.f32 %v344, %v3253
  %v3296 = vmul.f32 %v345, %v3253
  %v3297 = vmul.f32 %v346, %v3253
  %v3298 = vmul.f32 %v347, %v3253
  %v3299 = vmul.f32 %v348, %v3253
  %v3300 = vmul.f32 %v349, %v3253
  %v3301 = vmul.f32 %v350, %v3253
  %v3302 = vmul.f32 %v351, %v3253
  %v3303 = vmul.f32 %v358, %v3253
  %v3304 = vmul.f32 %v359, %v3253
  %v3305 = vmul.f32 %v360, %v3253
  %v3306 = vmul.f32 %v361, %v3253
  %v3307 = vmul.f32 %v362, %v3253
  %v3308 = vmul.f32 %v363, %v3253
  %v3309 = vmul.f32 %v364, %v3253
  %v3310 = vmul.f32 %v365, %v3253
  %v3311 = vmul.f32 %v366, %v3253
  %v3312 = vmul.f32 %v367, %v3253
  %v3313 = vmul.f32 %v368, %v3253
  %v3314 = vmul.f32 %v369, %v3253
  %v3315 = vmul.f32 %v370, %v3253
  %v3316 = vmul.f32 %v371, %v3253
  %v3317 = vmul.f32 %v372, %v3253
  %v3318 = vmul.f32 %v373, %v3253
  %v3319 = vmul.f32 %v374, %v3253
  %v3320 = vmul.f32 %v375, %v3253
  %v3321 = vmul.f32 %v376, %v3253
  %v3322 = vmul.f32 %v377, %v3253
  %v3323 = vmul.f32 %v378, %v3253
  %v3324 = vmul.f32 %v379, %v3253
  %v3325 = vmul.f32 %v380, %v3253
  %v3326 = vmul.f32 %v381, %v3253
  %v3327 = vmul.f32 %v382, %v3253
  %v3328 = vmul.f32 %v383, %v3253
  %v3329 = vmul.f32 %v384, %v3253
  %v3330 = vmul.f32 %v385, %v3253
  %v3331 = vmul.f32 %v386, %v3253
  %v3332 = vmul.f32 %v387, %v3253
  %v3333 = vmul.f32 %v388, %v3253
  %v3334 = vmul.f32 %v389, %v3253
  %v3335 = vmul.f32 %v390, %v3253
  %v3336 = vmul.f32 %v391, %v3253
  %v3337 = vmul.f32 %v392, %v3253
  %v3338 = vmul.f32 %v393, %v3253
  %v3339 = vmul.f32 %v394, %v3253
  %v3340 = vmul.f32 %v395, %v3253
  %v3341 = vmul.f32 %v396, %v3253
  %v3342 = vmul.f32 %v397, %v3253
  %v3343 = vmul.f32 %v398, %v3253
  %v3344 = vmul.f32 %v399, %v3253
  %v3345 = vmul.f32 %v400, %v3253
  %v3346 = vmul.f32 %v401, %v3253
  %v3347 = vmul.f32 %v402, %v3253
  %v3348 = vmul.f32 %v403, %v3253
  %v3349 = vmul.f32 %v404, %v3253
  %v3350 = vmul.f32 %v405, %v3253
  %v3447 = vrot.slane %v3255, 2
  %v3448 = vrot.slane %v3256, 2
  %v3449 = vsel %vm1234, %v3447, %v3448
  %v3450 = vrot.slane %v3257, 2
  %v3451 = vsel %vm1234, %v3448, %v3450
  %v3452 = vrot.slane %v3258, 2
  %v3453 = vrot.slane %v3259, 2
  %v3454 = vsel %vm1234, %v3452, %v3453
  %v3455 = vrot.slane %v3260, 2
  %v3456 = vsel %vm1234, %v3453, %v3455
  %v3457 = vrot.slane %v3261, 2
  %v3458 = vrot.slane %v3262, 2
  %v3459 = vsel %vm1234, %v3457, %v3458
  %v3460 = vrot.slane %v3263, 2
  %v3461 = vsel %vm1234, %v3458, %v3460
  %v3462 = vrot.slane %v3264, 2
  %v3463 = vrot.slane %v3265, 2
  %v3464 = vsel %vm1234, %v3462, %v3463
  %v3465 = vrot.slane %v3266, 2
  %v3466 = vsel %vm1234, %v3463, %v3465
  %v3467 = vrot.slane %v3267, 2
  %v3468 = vrot.slane %v3268, 2
  %v3469 = vsel %vm1234, %v3467, %v3468
  %v3470 = vrot.slane %v3269, 2
  %v3471 = vsel %vm1234, %v3468, %v3470
  %v3472 = vrot.slane %v3270, 2
  %v3473 = vrot.slane %v3271, 2
  %v3474 = vsel %vm1234, %v3472, %v3473
  %v3475 = vrot.slane %v3272, 2
  %v3476 = vsel %vm1234, %v3473, %v3475
  %v3477 = vrot.slane %v3273, 2
  %v3478 = vrot.slane %v3274, 2
  %v3479 = vsel %vm1234, %v3477, %v3478
  %v3480 = vrot.slane %v3275, 2
  %v3481 = vsel %vm1234, %v3478, %v3480
  %v3482 = vrot.slane %v3276, 2
  %v3483 = vrot.slane %v3277, 2
  %v3484 = vsel %vm1234, %v3482, %v3483
  %v3485 = vrot.slane %v3278, 2
  %v3486 = vsel %vm1234, %v3483, %v3485
  %v3487 = vrot.slane %v3279, 2
  %v3488 = vrot.slane %v3280, 2
  %v3489 = vsel %vm1234, %v3487, %v3488
  %v3490 = vrot.slane %v3281, 2
  %v3491 = vsel %vm1234, %v3488, %v3490
  %v3492 = vrot.slane %v3282, 2
  %v3493 = vrot.slane %v3283, 2
  %v3494 = vsel %vm1234, %v3492, %v3493
  %v3495 = vrot.slane %v3284, 2
  %v3496 = vsel %vm1234, %v3493, %v3495
  %v3497 = vrot.slane %v3285, 2
  %v3498 = vrot.slane %v3286, 2
  %v3499 = vsel %vm1234, %v3497, %v3498
  %v3500 = vrot.slane %v3287, 2
  %v3501 = vsel %vm1234, %v3498, %v3500
  %v3502 = vrot.slane %v3288, 2
  %v3503 = vrot.slane %v3289, 2
  %v3504 = vsel %vm1234, %v3502, %v3503
  %v3505 = vrot.slane %v3290, 2
  %v3506 = vsel %vm1234, %v3503, %v3505
  %v3507 = vrot.slane %v3291, 2
  %v3508 = vrot.slane %v3292, 2
  %v3509 = vsel %vm1234, %v3507, %v3508
  %v3510 = vrot.slane %v3293, 2
  %v3511 = vsel %vm1234, %v3508, %v3510
  %v3512 = vrot.slane %v3294, 2
  %v3513 = vrot.slane %v3295, 2
  %v3514 = vsel %vm1234, %v3512, %v3513
  %v3515 = vrot.slane %v3296, 2
  %v3516 = vsel %vm1234, %v3513, %v3515
  %v3517 = vrot.slane %v3297, 2
  %v3518 = vrot.slane %v3298, 2
  %v3519 = vsel %vm1234, %v3517, %v3518
  %v3520 = vrot.slane %v3299, 2
  %v3521 = vsel %vm1234, %v3518, %v3520
  %v3522 = vrot.slane %v3300, 2
  %v3523 = vrot.slane %v3301, 2
  %v3524 = vsel %vm1234, %v3522, %v3523
  %v3525 = vrot.slane %v3302, 2
  %v3526 = vsel %vm1234, %v3523, %v3525
  %v3527 = vrot.slane %v3303, 2
  %v3528 = vrot.slane %v3304, 2
  %v3529 = vsel %vm1234, %v3527, %v3528
  %v3530 = vrot.slane %v3305, 2
  %v3531 = vsel %vm1234, %v3528, %v3530
  %v3532 = vrot.slane %v3306, 2
  %v3533 = vrot.slane %v3307, 2
  %v3534 = vsel %vm1234, %v3532, %v3533
  %v3535 = vrot.slane %v3308, 2
  %v3536 = vsel %vm1234, %v3533, %v3535
  %v3537 = vrot.slane %v3309, 2
  %v3538 = vrot.slane %v3310, 2
  %v3539 = vsel %vm1234, %v3537, %v3538
  %v3540 = vrot.slane %v3311, 2
  %v3541 = vsel %vm1234, %v3538, %v3540
  %v3542 = vrot.slane %v3312, 2
  %v3543 = vrot.slane %v3313, 2
  %v3544 = vsel %vm1234, %v3542, %v3543
  %v3545 = vrot.slane %v3314, 2
  %v3546 = vsel %vm1234, %v3543, %v3545
  %v3547 = vrot.slane %v3315, 2
  %v3548 = vrot.slane %v3316, 2
  %v3549 = vsel %vm1234, %v3547, %v3548
  %v3550 = vrot.slane %v3317, 2
  %v3551 = vsel %vm1234, %v3548, %v3550
  %v3552 = vrot.slane %v3318, 2
  %v3553 = vrot.slane %v3319, 2
  %v3554 = vsel %vm1234, %v3552, %v3553
  %v3555 = vrot.slane %v3320, 2
  %v3556 = vsel %vm1234, %v3553, %v3555
  %v3557 = vrot.slane %v3321, 2
  %v3558 = vrot.slane %v3322, 2
  %v3559 = vsel %vm1234, %v3557, %v3558
  %v3560 = vrot.slane %v3323, 2
  %v3561 = vsel %vm1234, %v3558, %v3560
  %v3562 = vrot.slane %v3324, 2
  %v3563 = vrot.slane %v3325, 2
  %v3564 = vsel %vm1234, %v3562, %v3563
  %v3565 = vrot.slane %v3326, 2
  %v3566 = vsel %vm1234, %v3563, %v3565
  %v3567 = vrot.slane %v3327, 2
  %v3568 = vrot.slane %v3328, 2
  %v3569 = vsel %vm1234, %v3567, %v3568
  %v3570 = vrot.slane %v3329, 2
  %v3571 = vsel %vm1234, %v3568, %v3570
  %v3572 = vrot.slane %v3330, 2
  %v3573 = vrot.slane %v3331, 2
  %v3574 = vsel %vm1234, %v3572, %v3573
  %v3575 = vrot.slane %v3332, 2
  %v3576 = vsel %vm1234, %v3573, %v3575
  %v3577 = vrot.slane %v3333, 2
  %v3578 = vrot.slane %v3334, 2
  %v3579 = vsel %vm1234, %v3577, %v3578
  %v3580 = vrot.slane %v3335, 2
  %v3581 = vsel %vm1234, %v3578, %v3580
  %v3582 = vrot.slane %v3336, 2
  %v3583 = vrot.slane %v3337, 2
  %v3584 = vsel %vm1234, %v3582, %v3583
  %v3585 = vrot.slane %v3338, 2
  %v3586 = vsel %vm1234, %v3583, %v3585
  %v3587 = vrot.slane %v3339, 2
  %v3588 = vrot.slane %v3340, 2
  %v3589 = vsel %vm1234, %v3587, %v3588
  %v3590 = vrot.slane %v3341, 2
  %v3591 = vsel %vm1234, %v3588, %v3590
  %v3592 = vrot.slane %v3342, 2
  %v3593 = vrot.slane %v3343, 2
  %v3594 = vsel %vm1234, %v3592, %v3593
  %v3595 = vrot.slane %v3344, 2
  %v3596 = vsel %vm1234, %v3593, %v3595
  %v3597 = vrot.slane %v3345, 2
  %v3598 = vrot.slane %v3346, 2
  %v3599 = vsel %vm1234, %v3597, %v3598
  %v3600 = vrot.slane %v3347, 2
  %v3601 = vsel %vm1234, %v3598, %v3600
  %v3602 = vrot.slane %v3348, 2
  %v3603 = vrot.slane %v3349, 2
  %v3604 = vsel %vm1234, %v3602, %v3603
  %v3605 = vrot.slane %v3350, 2
  %v3606 = vsel %vm1234, %v3603, %v3605
  %v3671 = vadd.f32 %v3185, %v3449
  %v3672 = vadd.f32 %v3186, %v3451
  %v3673 = vadd.f32 %v3187, %v3454
  %v3674 = vadd.f32 %v3188, %v3456
  %v3675 = vadd.f32 %v3189, %v3459
  %v3676 = vadd.f32 %v3190, %v3461
  %v3677 = vadd.f32 %v3191, %v3464
  %v3678 = vadd.f32 %v3192, %v3466
  %v3679 = vadd.f32 %v3193, %v3469
  %v3680 = vadd.f32 %v3194, %v3471
  %v3681 = vadd.f32 %v3195, %v3474
  %v3682 = vadd.f32 %v3196, %v3476
  %v3683 = vadd.f32 %v3197, %v3479
  %v3684 = vadd.f32 %v3198, %v3481
  %v3685 = vadd.f32 %v3199, %v3484
  %v3686 = vadd.f32 %v3200, %v3486
  %v3687 = vadd.f32 %v3201, %v3489
  %v3688 = vadd.f32 %v3202, %v3491
  %v3689 = vadd.f32 %v3203, %v3494
  %v3690 = vadd.f32 %v3204, %v3496
  %v3691 = vadd.f32 %v3205, %v3499
  %v3692 = vadd.f32 %v3206, %v3501
  %v3693 = vadd.f32 %v3207, %v3504
  %v3694 = vadd.f32 %v3208, %v3506
  %v3695 = vadd.f32 %v3209, %v3509
  %v3696 = vadd.f32 %v3210, %v3511
  %v3697 = vadd.f32 %v3211, %v3514
  %v3698 = vadd.f32 %v3212, %v3516
  %v3699 = vadd.f32 %v3213, %v3519
  %v3700 = vadd.f32 %v3214, %v3521
  %v3701 = vadd.f32 %v3215, %v3524
  %v3702 = vadd.f32 %v3216, %v3526
  %v3703 = vadd.f32 %v3217, %v3529
  %v3704 = vadd.f32 %v3218, %v3531
  %v3705 = vadd.f32 %v3219, %v3534
  %v3706 = vadd.f32 %v3220, %v3536
  %v3707 = vadd.f32 %v3221, %v3539
  %v3708 = vadd.f32 %v3222, %v3541
  %v3709 = vadd.f32 %v3223, %v3544
  %v3710 = vadd.f32 %v3224, %v3546
  %v3711 = vadd.f32 %v3225, %v3549
  %v3712 = vadd.f32 %v3226, %v3551
  %v3713 = vadd.f32 %v3227, %v3554
  %v3714 = vadd.f32 %v3228, %v3556
  %v3715 = vadd.f32 %v3229, %v3559
  %v3716 = vadd.f32 %v3230, %v3561
  %v3717 = vadd.f32 %v3231, %v3564
  %v3718 = vadd.f32 %v3232, %v3566
  %v3719 = vadd.f32 %v3233, %v3569
  %v3720 = vadd.f32 %v3234, %v3571
  %v3721 = vadd.f32 %v3235, %v3574
  %v3722 = vadd.f32 %v3236, %v3576
  %v3723 = vadd.f32 %v3237, %v3579
  %v3724 = vadd.f32 %v3238, %v3581
  %v3725 = vadd.f32 %v3239, %v3584
  %v3726 = vadd.f32 %v3240, %v3586
  %v3727 = vadd.f32 %v3241, %v3589
  %v3728 = vadd.f32 %v3242, %v3591
  %v3729 = vadd.f32 %v3243, %v3594
  %v3730 = vadd.f32 %v3244, %v3596
  %v3731 = vadd.f32 %v3245, %v3599
  %v3732 = vadd.f32 %v3246, %v3601
  %v3733 = vadd.f32 %v3247, %v3604
  %v3734 = vadd.f32 %v3248, %v3606
  %v3735 = vld [vmem:[%s2] sm:$0xf]
  %v3737 = vsel %vm17, %v3671, 0
  %v3740 = vsel %vm17, %v3672, 0
  %v3743 = vsel %vm17, %v3673, 0
  %v3746 = vsel %vm17, %v3674, 0
  %v3749 = vsel %vm17, %v3675, 0
  %v3752 = vsel %vm17, %v3676, 0
  %v3755 = vsel %vm17, %v3677, 0
  %v3758 = vsel %vm17, %v3678, 0
  %v3761 = vsel %vm17, %v3679, 0
  %v3764 = vsel %vm17, %v3680, 0
  %v3767 = vsel %vm17, %v3681, 0
  %v3770 = vsel %vm17, %v3682, 0
  %v3773 = vsel %vm17, %v3683, 0
  %v3776 = vsel %vm17, %v3684, 0
  %v3779 = vsel %vm17, %v3685, 0
  %v3782 = vsel %vm17, %v3686, 0
  %v3785 = vsel %vm17, %v3687, 0
  %v3788 = vsel %vm17, %v3688, 0
  %v3791 = vsel %vm17, %v3689, 0
  %v3794 = vsel %vm17, %v3690, 0
  %v3797 = vsel %vm17, %v3691, 0
  %v3800 = vsel %vm17, %v3692, 0
  %v3803 = vsel %vm17, %v3693, 0
  %v3806 = vsel %vm17, %v3694, 0
  %v3809 = vsel %vm17, %v3695, 0
  %v3812 = vsel %vm17, %v3696, 0
  %v3815 = vsel %vm17, %v3697, 0
  %v3818 = vsel %vm17, %v3698, 0
  %v3821 = vsel %vm17, %v3699, 0
  %v3824 = vsel %vm17, %v3700, 0
  %v3827 = vsel %vm17, %v3701, 0
  %v3830 = vsel %vm17, %v3702, 0
  %v3833 = vsel %vm17, %v3703, 0
  %v3836 = vsel %vm17, %v3704, 0
  %v3839 = vsel %vm17, %v3705, 0
  %v3842 = vsel %vm17, %v3706, 0
  %v3845 = vsel %vm17, %v3707, 0
  %v3848 = vsel %vm17, %v3708, 0
  %v3851 = vsel %vm17, %v3709, 0
  %v3854 = vsel %vm17, %v3710, 0
  %v3857 = vsel %vm17, %v3711, 0
  %v3860 = vsel %vm17, %v3712, 0
  %v3863 = vsel %vm17, %v3713, 0
  %v3866 = vsel %vm17, %v3714, 0
  %v3869 = vsel %vm17, %v3715, 0
  %v3872 = vsel %vm17, %v3716, 0
  %v3875 = vsel %vm17, %v3717, 0
  %v3878 = vsel %vm17, %v3718, 0
  %v3881 = vsel %vm17, %v3719, 0
  %v3884 = vsel %vm17, %v3720, 0
  %v3887 = vsel %vm17, %v3721, 0
  %v3890 = vsel %vm17, %v3722, 0
  %v3893 = vsel %vm17, %v3723, 0
  %v3896 = vsel %vm17, %v3724, 0
  %v3899 = vsel %vm17, %v3725, 0
  %v3902 = vsel %vm17, %v3726, 0
  %v3905 = vsel %vm17, %v3727, 0
  %v3908 = vsel %vm17, %v3728, 0
  %v3911 = vsel %vm17, %v3729, 0
  %v3914 = vsel %vm17, %v3730, 0
  %v3917 = vsel %vm17, %v3731, 0
  %v3920 = vsel %vm17, %v3732, 0
  %v3923 = vsel %vm17, %v3733, 0
  %v3926 = vsel %vm17, %v3734, 0
  %vm3928 = vcmask 1043456
  %v3930 = vsel %vm3928, %v3735, 0
  %3932 = vmatprep.subr.mxu0 0.0
  %3933 = vmatpush1.msra.mxu0 %v3930
  %3934 = vmatprep.subr.mxu0 0.0
  %3935 = vmatpush1.msra.mxu0 0.0
  %3936 = vmatprep.subr.mxu0 0.0
  %3937 = vmatpush1.msra.mxu0 0.0
  %3938 = vmatprep.subr.mxu0 0.0
  %3939 = vmatpush1.msra.mxu0 0.0
  %3940 = vmatprep.subr.mxu0 0.0
  %3941 = vmatpush1.msra.mxu0 0.0
  %3942 = vmatprep.subr.mxu0 0.0
  %3943 = vmatpush1.msra.mxu0 0.0
  %3944 = vmatprep.subr.mxu0 0.0
  %3945 = vmatpush1.msra.mxu0 0.0
  %3946 = vmatprep.subr.mxu0 0.0
  %3947 = vmatpush1.msra.mxu0 0.0
  %3948 = vmatprep.subr.mxu0 0.0
  %3949 = vmatpush1.msra.mxu0 0.0
  %3950 = vmatprep.subr.mxu0 0.0
  %3951 = vmatpush1.msra.mxu0 0.0
  %3952 = vmatprep.subr.mxu0 0.0
  %3953 = vmatpush1.msra.mxu0 0.0
  %3954 = vmatprep.subr.mxu0 0.0
  %3955 = vmatpush1.msra.mxu0 0.0
  %3956 = vmatprep.subr.mxu0 0.0
  %3957 = vmatpush1.msra.mxu0 0.0
  %3958 = vmatprep.subr.mxu0 0.0
  %3959 = vmatpush1.msra.mxu0 0.0
  %3960 = vmatprep.subr.mxu0 0.0
  %3961 = vmatpush1.msra.mxu0 0.0
  %3962 = vmatprep.subr.mxu0 0.0
  %3963 = vmatpush1.msra.mxu0 0.0
  %3964 = vmatprep.subr.mxu0 0.0
  %3965 = vmatpush1.msra.mxu0 0.0
  %3966 = vmatprep.subr.mxu0 0.0
  %3967 = vmatpush1.msra.mxu0 0.0
  %3968 = vmatprep.subr.mxu0 0.0
  %3969 = vmatpush1.msra.mxu0 0.0
  %3970 = vmatprep.subr.mxu0 0.0
  %3971 = vmatpush1.msra.mxu0 0.0
  %3972 = vmatprep.subr.mxu0 0.0
  %3973 = vmatpush1.msra.mxu0 0.0
  %3974 = vmatprep.subr.mxu0 0.0
  %3975 = vmatpush1.msra.mxu0 0.0
  %3976 = vmatprep.subr.mxu0 0.0
  %3977 = vmatpush1.msra.mxu0 0.0
  %3978 = vmatprep.subr.mxu0 0.0
  %3979 = vmatpush1.msra.mxu0 0.0
  %3980 = vmatprep.subr.mxu0 0.0
  %3981 = vmatpush1.msra.mxu0 0.0
  %3982 = vmatprep.subr.mxu0 0.0
  %3983 = vmatpush1.msra.mxu0 0.0
  %3984 = vmatprep.subr.mxu0 0.0
  %3985 = vmatpush1.msra.mxu0 0.0
  %3986 = vmatprep.subr.mxu0 0.0
  %3987 = vmatpush1.msra.mxu0 0.0
  %3988 = vmatprep.subr.mxu0 0.0
  %3989 = vmatpush1.msra.mxu0 0.0
  %3990 = vmatprep.subr.mxu0 0.0
  %3991 = vmatpush1.msra.mxu0 0.0
  %3992 = vmatprep.subr.mxu0 0.0
  %3993 = vmatpush1.msra.mxu0 0.0
  %3994 = vmatprep.subr.mxu0 0.0
  %3995 = vmatpush1.msra.mxu0 0.0
  %3996 = vmatprep.mubr.f32.mxu0 0.0
  %3997 = vmatmul.mubr.f32.gmra.mrb[0].mxu0 %v3737
  %v3998 = vpop.f32.mrb[0].mxu0
  %v3999 = vadd.f32 0.0, %v3998
  %v4000 = vpop.f32.mrb[0].mxu0
  %4001 = vmatprep.mubr.f32.mxu0 0.0
  %4002 = vmatmul.mubr.f32.gmra.mrb[0].mxu0 %v3740
  %v4003 = vpop.f32.mrb[0].mxu0
  %v4004 = vadd.f32 0.0, %v4003
  %v4005 = vpop.f32.mrb[0].mxu0
  %4006 = vmatprep.mubr.f32.mxu0 0.0
  %4007 = vmatmul.mubr.f32.gmra.mrb[0].mxu0 %v3743
  %v4008 = vpop.f32.mrb[0].mxu0
  %v4009 = vadd.f32 0.0, %v4008
  %v4010 = vpop.f32.mrb[0].mxu0
  %4011 = vmatprep.mubr.f32.mxu0 0.0
  %4012 = vmatmul.mubr.f32.gmra.mrb[0].mxu0 %v3746
  %v4013 = vpop.f32.mrb[0].mxu0
  %v4014 = vadd.f32 0.0, %v4013
  %v4015 = vpop.f32.mrb[0].mxu0
  %4016 = vmatprep.mubr.f32.mxu0 0.0
  %4017 = vmatmul.mubr.f32.gmra.mrb[0].mxu0 %v3749
  %v4018 = vpop.f32.mrb[0].mxu0
  %v4019 = vadd.f32 0.0, %v4018
  %v4020 = vpop.f32.mrb[0].mxu0
  %4021 = vmatprep.mubr.f32.mxu0 0.0
  %4022 = vmatmul.mubr.f32.gmra.mrb[0].mxu0 %v3752
  %v4023 = vpop.f32.mrb[0].mxu0
  %v4024 = vadd.f32 0.0, %v4023
  %v4025 = vpop.f32.mrb[0].mxu0
  %4026 = vmatprep.mubr.f32.mxu0 0.0
  %4027 = vmatmul.mubr.f32.gmra.mrb[0].mxu0 %v3755
  %v4028 = vpop.f32.mrb[0].mxu0
  %v4029 = vadd.f32 0.0, %v4028
  %v4030 = vpop.f32.mrb[0].mxu0
  %4031 = vmatprep.mubr.f32.mxu0 0.0
  %4032 = vmatmul.mubr.f32.gmra.mrb[0].mxu0 %v3758
  %v4033 = vpop.f32.mrb[0].mxu0
  %v4034 = vadd.f32 0.0, %v4033
  %v4035 = vpop.f32.mrb[0].mxu0
  %4036 = vmatprep.mubr.f32.mxu0 0.0
  %4037 = vmatmul.mubr.f32.gmra.mrb[0].mxu0 %v3761
  %v4038 = vpop.f32.mrb[0].mxu0
  %v4039 = vadd.f32 0.0, %v4038
  %v4040 = vpop.f32.mrb[0].mxu0
  %4041 = vmatprep.mubr.f32.mxu0 0.0
  %4042 = vmatmul.mubr.f32.gmra.mrb[0].mxu0 %v3764
  %v4043 = vpop.f32.mrb[0].mxu0
  %v4044 = vadd.f32 0.0, %v4043
  %v4045 = vpop.f32.mrb[0].mxu0
  %4046 = vmatprep.mubr.f32.mxu0 0.0
  %4047 = vmatmul.mubr.f32.gmra.mrb[0].mxu0 %v3767
  %v4048 = vpop.f32.mrb[0].mxu0
  %v4049 = vadd.f32 0.0, %v4048
  %v4050 = vpop.f32.mrb[0].mxu0
  %4051 = vmatprep.mubr.f32.mxu0 0.0
  %4052 = vmatmul.mubr.f32.gmra.mrb[0].mxu0 %v3770
  %v4053 = vpop.f32.mrb[0].mxu0
  %v4054 = vadd.f32 0.0, %v4053
  %v4055 = vpop.f32.mrb[0].mxu0
  %4056 = vmatprep.mubr.f32.mxu0 0.0
  %4057 = vmatmul.mubr.f32.gmra.mrb[0].mxu0 %v3773
  %v4058 = vpop.f32.mrb[0].mxu0
  %v4059 = vadd.f32 0.0, %v4058
  %v4060 = vpop.f32.mrb[0].mxu0
  %4061 = vmatprep.mubr.f32.mxu0 0.0
  %4062 = vmatmul.mubr.f32.gmra.mrb[0].mxu0 %v3776
  %v4063 = vpop.f32.mrb[0].mxu0
  %v4064 = vadd.f32 0.0, %v4063
  %v4065 = vpop.f32.mrb[0].mxu0
  %4066 = vmatprep.mubr.f32.mxu0 0.0
  %4067 = vmatmul.mubr.f32.gmra.mrb[0].mxu0 %v3779
  %v4068 = vpop.f32.mrb[0].mxu0
  %v4069 = vadd.f32 0.0, %v4068
  %v4070 = vpop.f32.mrb[0].mxu0
  %4071 = vmatprep.mubr.f32.mxu0 0.0
  %4072 = vmatmul.mubr.f32.gmra.mrb[0].mxu0 %v3782
  %v4073 = vpop.f32.mrb[0].mxu0
  %v4074 = vadd.f32 0.0, %v4073
  %v4075 = vpop.f32.mrb[0].mxu0
  %4076 = vmatprep.mubr.f32.mxu0 0.0
  %4077 = vmatmul.mubr.f32.gmra.mrb[0].mxu0 %v3785
  %v4078 = vpop.f32.mrb[0].mxu0
  %v4079 = vadd.f32 0.0, %v4078
  %v4080 = vpop.f32.mrb[0].mxu0
  %4081 = vmatprep.mubr.f32.mxu0 0.0
  %4082 = vmatmul.mubr.f32.gmra.mrb[0].mxu0 %v3788
  %v4083 = vpop.f32.mrb[0].mxu0
  %v4084 = vadd.f32 0.0, %v4083
  %v4085 = vpop.f32.mrb[0].mxu0
  %4086 = vmatprep.mubr.f32.mxu0 0.0
  %4087 = vmatmul.mubr.f32.gmra.mrb[0].mxu0 %v3791
  %v4088 = vpop.f32.mrb[0].mxu0
  %v4089 = vadd.f32 0.0, %v4088
  %v4090 = vpop.f32.mrb[0].mxu0
  %4091 = vmatprep.mubr.f32.mxu0 0.0
  %4092 = vmatmul.mubr.f32.gmra.mrb[0].mxu0 %v3794
  %v4093 = vpop.f32.mrb[0].mxu0
  %v4094 = vadd.f32 0.0, %v4093
  %v4095 = vpop.f32.mrb[0].mxu0
  %4096 = vmatprep.mubr.f32.mxu0 0.0
  %4097 = vmatmul.mubr.f32.gmra.mrb[0].mxu0 %v3797
  %v4098 = vpop.f32.mrb[0].mxu0
  %v4099 = vadd.f32 0.0, %v4098
  %v4100 = vpop.f32.mrb[0].mxu0
  %4101 = vmatprep.mubr.f32.mxu0 0.0
  %4102 = vmatmul.mubr.f32.gmra.mrb[0].mxu0 %v3800
  %v4103 = vpop.f32.mrb[0].mxu0
  %v4104 = vadd.f32 0.0, %v4103
  %v4105 = vpop.f32.mrb[0].mxu0
  %4106 = vmatprep.mubr.f32.mxu0 0.0
  %4107 = vmatmul.mubr.f32.gmra.mrb[0].mxu0 %v3803
  %v4108 = vpop.f32.mrb[0].mxu0
  %v4109 = vadd.f32 0.0, %v4108
  %v4110 = vpop.f32.mrb[0].mxu0
  %4111 = vmatprep.mubr.f32.mxu0 0.0
  %4112 = vmatmul.mubr.f32.gmra.mrb[0].mxu0 %v3806
  %v4113 = vpop.f32.mrb[0].mxu0
  %v4114 = vadd.f32 0.0, %v4113
  %v4115 = vpop.f32.mrb[0].mxu0
  %4116 = vmatprep.mubr.f32.mxu0 0.0
  %4117 = vmatmul.mubr.f32.gmra.mrb[0].mxu0 %v3809
  %v4118 = vpop.f32.mrb[0].mxu0
  %v4119 = vadd.f32 0.0, %v4118
  %v4120 = vpop.f32.mrb[0].mxu0
  %4121 = vmatprep.mubr.f32.mxu0 0.0
  %4122 = vmatmul.mubr.f32.gmra.mrb[0].mxu0 %v3812
  %v4123 = vpop.f32.mrb[0].mxu0
  %v4124 = vadd.f32 0.0, %v4123
  %v4125 = vpop.f32.mrb[0].mxu0
  %4126 = vmatprep.mubr.f32.mxu0 0.0
  %4127 = vmatmul.mubr.f32.gmra.mrb[0].mxu0 %v3815
  %v4128 = vpop.f32.mrb[0].mxu0
  %v4129 = vadd.f32 0.0, %v4128
  %v4130 = vpop.f32.mrb[0].mxu0
  %4131 = vmatprep.mubr.f32.mxu0 0.0
  %4132 = vmatmul.mubr.f32.gmra.mrb[0].mxu0 %v3818
  %v4133 = vpop.f32.mrb[0].mxu0
  %v4134 = vadd.f32 0.0, %v4133
  %v4135 = vpop.f32.mrb[0].mxu0
  %4136 = vmatprep.mubr.f32.mxu0 0.0
  %4137 = vmatmul.mubr.f32.gmra.mrb[0].mxu0 %v3821
  %v4138 = vpop.f32.mrb[0].mxu0
  %v4139 = vadd.f32 0.0, %v4138
  %v4140 = vpop.f32.mrb[0].mxu0
  %4141 = vmatprep.mubr.f32.mxu0 0.0
  %4142 = vmatmul.mubr.f32.gmra.mrb[0].mxu0 %v3824
  %v4143 = vpop.f32.mrb[0].mxu0
  %v4144 = vadd.f32 0.0, %v4143
  %v4145 = vpop.f32.mrb[0].mxu0
  %4146 = vmatprep.mubr.f32.mxu0 0.0
  %4147 = vmatmul.mubr.f32.gmra.mrb[0].mxu0 %v3827
  %v4148 = vpop.f32.mrb[0].mxu0
  %v4149 = vadd.f32 0.0, %v4148
  %v4150 = vpop.f32.mrb[0].mxu0
  %4151 = vmatprep.mubr.f32.mxu0 0.0
  %4152 = vmatmul.mubr.f32.gmra.mrb[0].mxu0 %v3830
  %v4153 = vpop.f32.mrb[0].mxu0
  %v4154 = vadd.f32 0.0, %v4153
  %v4155 = vpop.f32.mrb[0].mxu0
  %4156 = vmatprep.mubr.f32.mxu0 0.0
  %4157 = vmatmul.mubr.f32.gmra.mrb[0].mxu0 %v3833
  %v4158 = vpop.f32.mrb[0].mxu0
  %v4159 = vadd.f32 0.0, %v4158
  %v4160 = vpop.f32.mrb[0].mxu0
  %4161 = vmatprep.mubr.f32.mxu0 0.0
  %4162 = vmatmul.mubr.f32.gmra.mrb[0].mxu0 %v3836
  %v4163 = vpop.f32.mrb[0].mxu0
  %v4164 = vadd.f32 0.0, %v4163
  %v4165 = vpop.f32.mrb[0].mxu0
  %4166 = vmatprep.mubr.f32.mxu0 0.0
  %4167 = vmatmul.mubr.f32.gmra.mrb[0].mxu0 %v3839
  %v4168 = vpop.f32.mrb[0].mxu0
  %v4169 = vadd.f32 0.0, %v4168
  %v4170 = vpop.f32.mrb[0].mxu0
  %4171 = vmatprep.mubr.f32.mxu0 0.0
  %4172 = vmatmul.mubr.f32.gmra.mrb[0].mxu0 %v3842
  %v4173 = vpop.f32.mrb[0].mxu0
  %v4174 = vadd.f32 0.0, %v4173
  %v4175 = vpop.f32.mrb[0].mxu0
  %4176 = vmatprep.mubr.f32.mxu0 0.0
  %4177 = vmatmul.mubr.f32.gmra.mrb[0].mxu0 %v3845
  %v4178 = vpop.f32.mrb[0].mxu0
  %v4179 = vadd.f32 0.0, %v4178
  %v4180 = vpop.f32.mrb[0].mxu0
  %4181 = vmatprep.mubr.f32.mxu0 0.0
  %4182 = vmatmul.mubr.f32.gmra.mrb[0].mxu0 %v3848
  %v4183 = vpop.f32.mrb[0].mxu0
  %v4184 = vadd.f32 0.0, %v4183
  %v4185 = vpop.f32.mrb[0].mxu0
  %4186 = vmatprep.mubr.f32.mxu0 0.0
  %4187 = vmatmul.mubr.f32.gmra.mrb[0].mxu0 %v3851
  %v4188 = vpop.f32.mrb[0].mxu0
  %v4189 = vadd.f32 0.0, %v4188
  %v4190 = vpop.f32.mrb[0].mxu0
  %4191 = vmatprep.mubr.f32.mxu0 0.0
  %4192 = vmatmul.mubr.f32.gmra.mrb[0].mxu0 %v3854
  %v4193 = vpop.f32.mrb[0].mxu0
  %v4194 = vadd.f32 0.0, %v4193
  %v4195 = vpop.f32.mrb[0].mxu0
  %4196 = vmatprep.mubr.f32.mxu0 0.0
  %4197 = vmatmul.mubr.f32.gmra.mrb[0].mxu0 %v3857
  %v4198 = vpop.f32.mrb[0].mxu0
  %v4199 = vadd.f32 0.0, %v4198
  %v4200 = vpop.f32.mrb[0].mxu0
  %4201 = vmatprep.mubr.f32.mxu0 0.0
  %4202 = vmatmul.mubr.f32.gmra.mrb[0].mxu0 %v3860
  %v4203 = vpop.f32.mrb[0].mxu0
  %v4204 = vadd.f32 0.0, %v4203
  %v4205 = vpop.f32.mrb[0].mxu0
  %4206 = vmatprep.mubr.f32.mxu0 0.0
  %4207 = vmatmul.mubr.f32.gmra.mrb[0].mxu0 %v3863
  %v4208 = vpop.f32.mrb[0].mxu0
  %v4209 = vadd.f32 0.0, %v4208
  %v4210 = vpop.f32.mrb[0].mxu0
  %4211 = vmatprep.mubr.f32.mxu0 0.0
  %4212 = vmatmul.mubr.f32.gmra.mrb[0].mxu0 %v3866
  %v4213 = vpop.f32.mrb[0].mxu0
  %v4214 = vadd.f32 0.0, %v4213
  %v4215 = vpop.f32.mrb[0].mxu0
  %4216 = vmatprep.mubr.f32.mxu0 0.0
  %4217 = vmatmul.mubr.f32.gmra.mrb[0].mxu0 %v3869
  %v4218 = vpop.f32.mrb[0].mxu0
  %v4219 = vadd.f32 0.0, %v4218
  %v4220 = vpop.f32.mrb[0].mxu0
  %4221 = vmatprep.mubr.f32.mxu0 0.0
  %4222 = vmatmul.mubr.f32.gmra.mrb[0].mxu0 %v3872
  %v4223 = vpop.f32.mrb[0].mxu0
  %v4224 = vadd.f32 0.0, %v4223
  %v4225 = vpop.f32.mrb[0].mxu0
  %4226 = vmatprep.mubr.f32.mxu0 0.0
  %4227 = vmatmul.mubr.f32.gmra.mrb[0].mxu0 %v3875
  %v4228 = vpop.f32.mrb[0].mxu0
  %v4229 = vadd.f32 0.0, %v4228
  %v4230 = vpop.f32.mrb[0].mxu0
  %4231 = vmatprep.mubr.f32.mxu0 0.0
  %4232 = vmatmul.mubr.f32.gmra.mrb[0].mxu0 %v3878
  %v4233 = vpop.f32.mrb[0].mxu0
  %v4234 = vadd.f32 0.0, %v4233
  %v4235 = vpop.f32.mrb[0].mxu0
  %4236 = vmatprep.mubr.f32.mxu0 0.0
  %4237 = vmatmul.mubr.f32.gmra.mrb[0].mxu0 %v3881
  %v4238 = vpop.f32.mrb[0].mxu0
  %v4239 = vadd.f32 0.0, %v4238
  %v4240 = vpop.f32.mrb[0].mxu0
  %4241 = vmatprep.mubr.f32.mxu0 0.0
  %4242 = vmatmul.mubr.f32.gmra.mrb[0].mxu0 %v3884
  %v4243 = vpop.f32.mrb[0].mxu0
  %v4244 = vadd.f32 0.0, %v4243
  %v4245 = vpop.f32.mrb[0].mxu0
  %4246 = vmatprep.mubr.f32.mxu0 0.0
  %4247 = vmatmul.mubr.f32.gmra.mrb[0].mxu0 %v3887
  %v4248 = vpop.f32.mrb[0].mxu0
  %v4249 = vadd.f32 0.0, %v4248
  %v4250 = vpop.f32.mrb[0].mxu0
  %4251 = vmatprep.mubr.f32.mxu0 0.0
  %4252 = vmatmul.mubr.f32.gmra.mrb[0].mxu0 %v3890
  %v4253 = vpop.f32.mrb[0].mxu0
  %v4254 = vadd.f32 0.0, %v4253
  %v4255 = vpop.f32.mrb[0].mxu0
  %4256 = vmatprep.mubr.f32.mxu0 0.0
  %4257 = vmatmul.mubr.f32.gmra.mrb[0].mxu0 %v3893
  %v4258 = vpop.f32.mrb[0].mxu0
  %v4259 = vadd.f32 0.0, %v4258
  %v4260 = vpop.f32.mrb[0].mxu0
  %4261 = vmatprep.mubr.f32.mxu0 0.0
  %4262 = vmatmul.mubr.f32.gmra.mrb[0].mxu0 %v3896
  %v4263 = vpop.f32.mrb[0].mxu0
  %v4264 = vadd.f32 0.0, %v4263
  %v4265 = vpop.f32.mrb[0].mxu0
  %4266 = vmatprep.mubr.f32.mxu0 0.0
  %4267 = vmatmul.mubr.f32.gmra.mrb[0].mxu0 %v3899
  %v4268 = vpop.f32.mrb[0].mxu0
  %v4269 = vadd.f32 0.0, %v4268
  %v4270 = vpop.f32.mrb[0].mxu0
  %4271 = vmatprep.mubr.f32.mxu0 0.0
  %4272 = vmatmul.mubr.f32.gmra.mrb[0].mxu0 %v3902
  %v4273 = vpop.f32.mrb[0].mxu0
  %v4274 = vadd.f32 0.0, %v4273
  %v4275 = vpop.f32.mrb[0].mxu0
  %4276 = vmatprep.mubr.f32.mxu0 0.0
  %4277 = vmatmul.mubr.f32.gmra.mrb[0].mxu0 %v3905
  %v4278 = vpop.f32.mrb[0].mxu0
  %v4279 = vadd.f32 0.0, %v4278
  %v4280 = vpop.f32.mrb[0].mxu0
  %4281 = vmatprep.mubr.f32.mxu0 0.0
  %4282 = vmatmul.mubr.f32.gmra.mrb[0].mxu0 %v3908
  %v4283 = vpop.f32.mrb[0].mxu0
  %v4284 = vadd.f32 0.0, %v4283
  %v4285 = vpop.f32.mrb[0].mxu0
  %4286 = vmatprep.mubr.f32.mxu0 0.0
  %4287 = vmatmul.mubr.f32.gmra.mrb[0].mxu0 %v3911
  %v4288 = vpop.f32.mrb[0].mxu0
  %v4289 = vadd.f32 0.0, %v4288
  %v4290 = vpop.f32.mrb[0].mxu0
  %4291 = vmatprep.mubr.f32.mxu0 0.0
  %4292 = vmatmul.mubr.f32.gmra.mrb[0].mxu0 %v3914
  %v4293 = vpop.f32.mrb[0].mxu0
  %v4294 = vadd.f32 0.0, %v4293
  %v4295 = vpop.f32.mrb[0].mxu0
  %4296 = vmatprep.mubr.f32.mxu0 0.0
  %4297 = vmatmul.mubr.f32.gmra.mrb[0].mxu0 %v3917
  %v4298 = vpop.f32.mrb[0].mxu0
  %v4299 = vadd.f32 0.0, %v4298
  %v4300 = vpop.f32.mrb[0].mxu0
  %4301 = vmatprep.mubr.f32.mxu0 0.0
  %4302 = vmatmul.mubr.f32.gmra.mrb[0].mxu0 %v3920
  %v4303 = vpop.f32.mrb[0].mxu0
  %v4304 = vadd.f32 0.0, %v4303
  %v4305 = vpop.f32.mrb[0].mxu0
  %4306 = vmatprep.mubr.f32.mxu0 0.0
  %4307 = vmatmul.mubr.f32.gmra.mrb[0].mxu0 %v3923
  %v4308 = vpop.f32.mrb[0].mxu0
  %v4309 = vadd.f32 0.0, %v4308
  %v4310 = vpop.f32.mrb[0].mxu0
  %4311 = vmatprep.mubr.f32.mxu0 0.0
  %4312 = vmatmul.mubr.f32.gmra.mrb[0].mxu0 %v3926
  %v4313 = vpop.f32.mrb[0].mxu0
  %v4314 = vadd.f32 0.0, %v4313
  %v4315 = vpop.f32.mrb[0].mxu0
  %4316 = vdwg.mxu0
  %4317 = vst.msk [vmem:[%s3] sm:$0xff] %vm17, %v3999
  %4318 = vst.msk [vmem:[%s3 + $0x8] sm:$0xff] %vm17, %v4004
  %4319 = vst.msk [vmem:[%s3 + $0x10] sm:$0xff] %vm17, %v4009
  %4320 = vst.msk [vmem:[%s3 + $0x18] sm:$0xff] %vm17, %v4014
  %4321 = vst.msk [vmem:[%s3 + $0x20] sm:$0xff] %vm17, %v4019
  %4322 = vst.msk [vmem:[%s3 + $0x28] sm:$0xff] %vm17, %v4024
  %4323 = vst.msk [vmem:[%s3 + $0x30] sm:$0xff] %vm17, %v4029
  %4324 = vst.msk [vmem:[%s3 + $0x38] sm:$0xff] %vm17, %v4034
  %4325 = vst.msk [vmem:[%s3 + $0x40] sm:$0xff] %vm17, %v4039
  %4326 = vst.msk [vmem:[%s3 + $0x48] sm:$0xff] %vm17, %v4044
  %4327 = vst.msk [vmem:[%s3 + $0x50] sm:$0xff] %vm17, %v4049
  %4328 = vst.msk [vmem:[%s3 + $0x58] sm:$0xff] %vm17, %v4054
  %4329 = vst.msk [vmem:[%s3 + $0x60] sm:$0xff] %vm17, %v4059
  %4330 = vst.msk [vmem:[%s3 + $0x68] sm:$0xff] %vm17, %v4064
  %4331 = vst.msk [vmem:[%s3 + $0x70] sm:$0xff] %vm17, %v4069
  %4332 = vst.msk [vmem:[%s3 + $0x78] sm:$0xff] %vm17, %v4074
  %4333 = vst.msk [vmem:[%s3 + $0x80] sm:$0xff] %vm17, %v4079
  %4334 = vst.msk [vmem:[%s3 + $0x88] sm:$0xff] %vm17, %v4084
  %4335 = vst.msk [vmem:[%s3 + $0x90] sm:$0xff] %vm17, %v4089
  %4336 = vst.msk [vmem:[%s3 + $0x98] sm:$0xff] %vm17, %v4094
  %4337 = vst.msk [vmem:[%s3 + $0xa0] sm:$0xff] %vm17, %v4099
  %4338 = vst.msk [vmem:[%s3 + $0xa8] sm:$0xff] %vm17, %v4104
  %4339 = vst.msk [vmem:[%s3 + $0xb0] sm:$0xff] %vm17, %v4109
  %4340 = vst.msk [vmem:[%s3 + $0xb8] sm:$0xff] %vm17, %v4114
  %4341 = vst.msk [vmem:[%s3 + $0xc0] sm:$0xff] %vm17, %v4119
  %4342 = vst.msk [vmem:[%s3 + $0xc8] sm:$0xff] %vm17, %v4124
  %4343 = vst.msk [vmem:[%s3 + $0xd0] sm:$0xff] %vm17, %v4129
  %4344 = vst.msk [vmem:[%s3 + $0xd8] sm:$0xff] %vm17, %v4134
  %4345 = vst.msk [vmem:[%s3 + $0xe0] sm:$0xff] %vm17, %v4139
  %4346 = vst.msk [vmem:[%s3 + $0xe8] sm:$0xff] %vm17, %v4144
  %4347 = vst.msk [vmem:[%s3 + $0xf0] sm:$0xff] %vm17, %v4149
  %4348 = vst.msk [vmem:[%s3 + $0xf8] sm:$0xff] %vm17, %v4154
  %4349 = vst.msk [vmem:[%s3 + $0x100] sm:$0xff] %vm17, %v4159
  %4350 = vst.msk [vmem:[%s3 + $0x108] sm:$0xff] %vm17, %v4164
  %4351 = vst.msk [vmem:[%s3 + $0x110] sm:$0xff] %vm17, %v4169
  %4352 = vst.msk [vmem:[%s3 + $0x118] sm:$0xff] %vm17, %v4174
  %4353 = vst.msk [vmem:[%s3 + $0x120] sm:$0xff] %vm17, %v4179
  %4354 = vst.msk [vmem:[%s3 + $0x128] sm:$0xff] %vm17, %v4184
  %4355 = vst.msk [vmem:[%s3 + $0x130] sm:$0xff] %vm17, %v4189
  %4356 = vst.msk [vmem:[%s3 + $0x138] sm:$0xff] %vm17, %v4194
  %4357 = vst.msk [vmem:[%s3 + $0x140] sm:$0xff] %vm17, %v4199
  %4358 = vst.msk [vmem:[%s3 + $0x148] sm:$0xff] %vm17, %v4204
  %4359 = vst.msk [vmem:[%s3 + $0x150] sm:$0xff] %vm17, %v4209
  %4360 = vst.msk [vmem:[%s3 + $0x158] sm:$0xff] %vm17, %v4214
  %4361 = vst.msk [vmem:[%s3 + $0x160] sm:$0xff] %vm17, %v4219
  %4362 = vst.msk [vmem:[%s3 + $0x168] sm:$0xff] %vm17, %v4224
  %4363 = vst.msk [vmem:[%s3 + $0x170] sm:$0xff] %vm17, %v4229
  %4364 = vst.msk [vmem:[%s3 + $0x178] sm:$0xff] %vm17, %v4234
  %4365 = vst.msk [vmem:[%s3 + $0x180] sm:$0xff] %vm17, %v4239
  %4366 = vst.msk [vmem:[%s3 + $0x188] sm:$0xff] %vm17, %v4244
  %4367 = vst.msk [vmem:[%s3 + $0x190] sm:$0xff] %vm17, %v4249
  %4368 = vst.msk [vmem:[%s3 + $0x198] sm:$0xff] %vm17, %v4254
  %4369 = vst.msk [vmem:[%s3 + $0x1a0] sm:$0xff] %vm17, %v4259
  %4370 = vst.msk [vmem:[%s3 + $0x1a8] sm:$0xff] %vm17, %v4264
  %4371 = vst.msk [vmem:[%s3 + $0x1b0] sm:$0xff] %vm17, %v4269
  %4372 = vst.msk [vmem:[%s3 + $0x1b8] sm:$0xff] %vm17, %v4274
  %4373 = vst.msk [vmem:[%s3 + $0x1c0] sm:$0xff] %vm17, %v4279
  %4374 = vst.msk [vmem:[%s3 + $0x1c8] sm:$0xff] %vm17, %v4284
  %4375 = vst.msk [vmem:[%s3 + $0x1d0] sm:$0xff] %vm17, %v4289
  %4376 = vst.msk [vmem:[%s3 + $0x1d8] sm:$0xff] %vm17, %v4294
  %4377 = vst.msk [vmem:[%s3 + $0x1e0] sm:$0xff] %vm17, %v4299
  %4378 = vst.msk [vmem:[%s3 + $0x1e8] sm:$0xff] %vm17, %v4304
  %4379 = vst.msk [vmem:[%s3 + $0x1f0] sm:$0xff] %vm17, %v4309
  %4380 = vst.msk [vmem:[%s3 + $0x1f8] sm:$0xff] %vm17, %v4314
  %v4381 = vsel %vm17, %v3999, 0.0
  %v4382 = vsel %vm17, %v4004, 0.0
  %v4383 = vadd.f32 %v4381, %v4382
  %v4384 = vsel %vm17, %v4009, 0.0
  %v4385 = vadd.f32 %v4383, %v4384
  %v4386 = vsel %vm17, %v4014, 0.0
  %v4387 = vadd.f32 %v4385, %v4386
  %v4388 = vsel %vm17, %v4019, 0.0
  %v4389 = vadd.f32 %v4387, %v4388
  %v4390 = vsel %vm17, %v4024, 0.0
  %v4391 = vadd.f32 %v4389, %v4390
  %v4392 = vsel %vm17, %v4029, 0.0
  %v4393 = vadd.f32 %v4391, %v4392
  %v4394 = vsel %vm17, %v4034, 0.0
  %v4395 = vadd.f32 %v4393, %v4394
  %v4396 = vsel %vm17, %v4039, 0.0
  %v4397 = vadd.f32 %v4395, %v4396
  %v4398 = vsel %vm17, %v4044, 0.0
  %v4399 = vadd.f32 %v4397, %v4398
  %v4400 = vsel %vm17, %v4049, 0.0
  %v4401 = vadd.f32 %v4399, %v4400
  %v4402 = vsel %vm17, %v4054, 0.0
  %v4403 = vadd.f32 %v4401, %v4402
  %v4404 = vsel %vm17, %v4059, 0.0
  %v4405 = vadd.f32 %v4403, %v4404
  %v4406 = vsel %vm17, %v4064, 0.0
  %v4407 = vadd.f32 %v4405, %v4406
  %v4408 = vsel %vm17, %v4069, 0.0
  %v4409 = vadd.f32 %v4407, %v4408
  %v4410 = vsel %vm17, %v4074, 0.0
  %v4411 = vadd.f32 %v4409, %v4410
  %v4412 = vsel %vm17, %v4079, 0.0
  %v4413 = vadd.f32 %v4411, %v4412
  %v4414 = vsel %vm17, %v4084, 0.0
  %v4415 = vadd.f32 %v4413, %v4414
  %v4416 = vsel %vm17, %v4089, 0.0
  %v4417 = vadd.f32 %v4415, %v4416
  %v4418 = vsel %vm17, %v4094, 0.0
  %v4419 = vadd.f32 %v4417, %v4418
  %v4420 = vsel %vm17, %v4099, 0.0
  %v4421 = vadd.f32 %v4419, %v4420
  %v4422 = vsel %vm17, %v4104, 0.0
  %v4423 = vadd.f32 %v4421, %v4422
  %v4424 = vsel %vm17, %v4109, 0.0
  %v4425 = vadd.f32 %v4423, %v4424
  %v4426 = vsel %vm17, %v4114, 0.0
  %v4427 = vadd.f32 %v4425, %v4426
  %v4428 = vsel %vm17, %v4119, 0.0
  %v4429 = vadd.f32 %v4427, %v4428
  %v4430 = vsel %vm17, %v4124, 0.0
  %v4431 = vadd.f32 %v4429, %v4430
  %v4432 = vsel %vm17, %v4129, 0.0
  %v4433 = vadd.f32 %v4431, %v4432
  %v4434 = vsel %vm17, %v4134, 0.0
  %v4435 = vadd.f32 %v4433, %v4434
  %v4436 = vsel %vm17, %v4139, 0.0
  %v4437 = vadd.f32 %v4435, %v4436
  %v4438 = vsel %vm17, %v4144, 0.0
  %v4439 = vadd.f32 %v4437, %v4438
  %v4440 = vsel %vm17, %v4149, 0.0
  %v4441 = vadd.f32 %v4439, %v4440
  %v4442 = vsel %vm17, %v4154, 0.0
  %v4443 = vadd.f32 %v4441, %v4442
  %v4444 = vsel %vm17, %v4159, 0.0
  %v4445 = vadd.f32 %v4443, %v4444
  %v4446 = vsel %vm17, %v4164, 0.0
  %v4447 = vadd.f32 %v4445, %v4446
  %v4448 = vsel %vm17, %v4169, 0.0
  %v4449 = vadd.f32 %v4447, %v4448
  %v4450 = vsel %vm17, %v4174, 0.0
  %v4451 = vadd.f32 %v4449, %v4450
  %v4452 = vsel %vm17, %v4179, 0.0
  %v4453 = vadd.f32 %v4451, %v4452
  %v4454 = vsel %vm17, %v4184, 0.0
  %v4455 = vadd.f32 %v4453, %v4454
  %v4456 = vsel %vm17, %v4189, 0.0
  %v4457 = vadd.f32 %v4455, %v4456
  %v4458 = vsel %vm17, %v4194, 0.0
  %v4459 = vadd.f32 %v4457, %v4458
  %v4460 = vsel %vm17, %v4199, 0.0
  %v4461 = vadd.f32 %v4459, %v4460
  %v4462 = vsel %vm17, %v4204, 0.0
  %v4463 = vadd.f32 %v4461, %v4462
  %v4464 = vsel %vm17, %v4209, 0.0
  %v4465 = vadd.f32 %v4463, %v4464
  %v4466 = vsel %vm17, %v4214, 0.0
  %v4467 = vadd.f32 %v4465, %v4466
  %v4468 = vsel %vm17, %v4219, 0.0
  %v4469 = vadd.f32 %v4467, %v4468
  %v4470 = vsel %vm17, %v4224, 0.0
  %v4471 = vadd.f32 %v4469, %v4470
  %v4472 = vsel %vm17, %v4229, 0.0
  %v4473 = vadd.f32 %v4471, %v4472
  %v4474 = vsel %vm17, %v4234, 0.0
  %v4475 = vadd.f32 %v4473, %v4474
  %v4476 = vsel %vm17, %v4239, 0.0
  %v4477 = vadd.f32 %v4475, %v4476
  %v4478 = vsel %vm17, %v4244, 0.0
  %v4479 = vadd.f32 %v4477, %v4478
  %v4480 = vsel %vm17, %v4249, 0.0
  %v4481 = vadd.f32 %v4479, %v4480
  %v4482 = vsel %vm17, %v4254, 0.0
  %v4483 = vadd.f32 %v4481, %v4482
  %v4484 = vsel %vm17, %v4259, 0.0
  %v4485 = vadd.f32 %v4483, %v4484
  %v4486 = vsel %vm17, %v4264, 0.0
  %v4487 = vadd.f32 %v4485, %v4486
  %v4488 = vsel %vm17, %v4269, 0.0
  %v4489 = vadd.f32 %v4487, %v4488
  %v4490 = vsel %vm17, %v4274, 0.0
  %v4491 = vadd.f32 %v4489, %v4490
  %v4492 = vsel %vm17, %v4279, 0.0
  %v4493 = vadd.f32 %v4491, %v4492
  %v4494 = vsel %vm17, %v4284, 0.0
  %v4495 = vadd.f32 %v4493, %v4494
  %v4496 = vsel %vm17, %v4289, 0.0
  %v4497 = vadd.f32 %v4495, %v4496
  %v4498 = vsel %vm17, %v4294, 0.0
  %v4499 = vadd.f32 %v4497, %v4498
  %v4500 = vsel %vm17, %v4299, 0.0
  %v4501 = vadd.f32 %v4499, %v4500
  %v4502 = vsel %vm17, %v4304, 0.0
  %v4503 = vadd.f32 %v4501, %v4502
  %v4504 = vsel %vm17, %v4309, 0.0
  %v4505 = vadd.f32 %v4503, %v4504
  %v4506 = vsel %vm17, %v4314, 0.0
  %v4507 = vadd.f32 %v4505, %v4506
  %v4508 = vrot.slane %v4507, 4
  %v4509 = vadd.f32 %v4507, %v4508
  %v4510 = vrot.slane %v4509, 2
  %v4511 = vadd.f32 %v4509, %v4510
  %v4512 = vrot.slane %v4511, 1
  %v4513 = vadd.f32 %v4511, %v4512
  %v4514 = vrcp.pop 512.0
  %v4515 = vmul.f32 %v4513, %v4514
  %v4516 = vsub.f32 %v3999, %v4515
  %v4517 = vsub.f32 %v4004, %v4515
  %v4518 = vsub.f32 %v4009, %v4515
  %v4519 = vsub.f32 %v4014, %v4515
  %v4520 = vsub.f32 %v4019, %v4515
  %v4521 = vsub.f32 %v4024, %v4515
  %v4522 = vsub.f32 %v4029, %v4515
  %v4523 = vsub.f32 %v4034, %v4515
  %v4524 = vsub.f32 %v4039, %v4515
  %v4525 = vsub.f32 %v4044, %v4515
  %v4526 = vsub.f32 %v4049, %v4515
  %v4527 = vsub.f32 %v4054, %v4515
  %v4528 = vsub.f32 %v4059, %v4515
  %v4529 = vsub.f32 %v4064, %v4515
  %v4530 = vsub.f32 %v4069, %v4515
  %v4531 = vsub.f32 %v4074, %v4515
  %v4532 = vsub.f32 %v4079, %v4515
  %v4533 = vsub.f32 %v4084, %v4515
  %v4534 = vsub.f32 %v4089, %v4515
  %v4535 = vsub.f32 %v4094, %v4515
  %v4536 = vsub.f32 %v4099, %v4515
  %v4537 = vsub.f32 %v4104, %v4515
  %v4538 = vsub.f32 %v4109, %v4515
  %v4539 = vsub.f32 %v4114, %v4515
  %v4540 = vsub.f32 %v4119, %v4515
  %v4541 = vsub.f32 %v4124, %v4515
  %v4542 = vsub.f32 %v4129, %v4515
  %v4543 = vsub.f32 %v4134, %v4515
  %v4544 = vsub.f32 %v4139, %v4515
  %v4545 = vsub.f32 %v4144, %v4515
  %v4546 = vsub.f32 %v4149, %v4515
  %v4547 = vsub.f32 %v4154, %v4515
  %v4548 = vsub.f32 %v4159, %v4515
  %v4549 = vsub.f32 %v4164, %v4515
  %v4550 = vsub.f32 %v4169, %v4515
  %v4551 = vsub.f32 %v4174, %v4515
  %v4552 = vsub.f32 %v4179, %v4515
  %v4553 = vsub.f32 %v4184, %v4515
  %v4554 = vsub.f32 %v4189, %v4515
  %v4555 = vsub.f32 %v4194, %v4515
  %v4556 = vsub.f32 %v4199, %v4515
  %v4557 = vsub.f32 %v4204, %v4515
  %v4558 = vsub.f32 %v4209, %v4515
  %v4559 = vsub.f32 %v4214, %v4515
  %v4560 = vsub.f32 %v4219, %v4515
  %v4561 = vsub.f32 %v4224, %v4515
  %v4562 = vsub.f32 %v4229, %v4515
  %v4563 = vsub.f32 %v4234, %v4515
  %v4564 = vsub.f32 %v4239, %v4515
  %v4565 = vsub.f32 %v4244, %v4515
  %v4566 = vsub.f32 %v4249, %v4515
  %v4567 = vsub.f32 %v4254, %v4515
  %v4568 = vsub.f32 %v4259, %v4515
  %v4569 = vsub.f32 %v4264, %v4515
  %v4570 = vsub.f32 %v4269, %v4515
  %v4571 = vsub.f32 %v4274, %v4515
  %v4572 = vsub.f32 %v4279, %v4515
  %v4573 = vsub.f32 %v4284, %v4515
  %v4574 = vsub.f32 %v4289, %v4515
  %v4575 = vsub.f32 %v4294, %v4515
  %v4576 = vsub.f32 %v4299, %v4515
  %v4577 = vsub.f32 %v4304, %v4515
  %v4578 = vsub.f32 %v4309, %v4515
  %v4579 = vsub.f32 %v4314, %v4515
  %v4580 = vmul.f32 %v4516, %v4516
  %v4581 = vmul.f32 %v4517, %v4517
  %v4582 = vmul.f32 %v4518, %v4518
  %v4583 = vmul.f32 %v4519, %v4519
  %v4584 = vmul.f32 %v4520, %v4520
  %v4585 = vmul.f32 %v4521, %v4521
  %v4586 = vmul.f32 %v4522, %v4522
  %v4587 = vmul.f32 %v4523, %v4523
  %v4588 = vmul.f32 %v4524, %v4524
  %v4589 = vmul.f32 %v4525, %v4525
  %v4590 = vmul.f32 %v4526, %v4526
  %v4591 = vmul.f32 %v4527, %v4527
  %v4592 = vmul.f32 %v4528, %v4528
  %v4593 = vmul.f32 %v4529, %v4529
  %v4594 = vmul.f32 %v4530, %v4530
  %v4595 = vmul.f32 %v4531, %v4531
  %v4596 = vmul.f32 %v4532, %v4532
  %v4597 = vmul.f32 %v4533, %v4533
  %v4598 = vmul.f32 %v4534, %v4534
  %v4599 = vmul.f32 %v4535, %v4535
  %v4600 = vmul.f32 %v4536, %v4536
  %v4601 = vmul.f32 %v4537, %v4537
  %v4602 = vmul.f32 %v4538, %v4538
  %v4603 = vmul.f32 %v4539, %v4539
  %v4604 = vmul.f32 %v4540, %v4540
  %v4605 = vmul.f32 %v4541, %v4541
  %v4606 = vmul.f32 %v4542, %v4542
  %v4607 = vmul.f32 %v4543, %v4543
  %v4608 = vmul.f32 %v4544, %v4544
  %v4609 = vmul.f32 %v4545, %v4545
  %v4610 = vmul.f32 %v4546, %v4546
  %v4611 = vmul.f32 %v4547, %v4547
  %v4612 = vmul.f32 %v4548, %v4548
  %v4613 = vmul.f32 %v4549, %v4549
  %v4614 = vmul.f32 %v4550, %v4550
  %v4615 = vmul.f32 %v4551, %v4551
  %v4616 = vmul.f32 %v4552, %v4552
  %v4617 = vmul.f32 %v4553, %v4553
  %v4618 = vmul.f32 %v4554, %v4554
  %v4619 = vmul.f32 %v4555, %v4555
  %v4620 = vmul.f32 %v4556, %v4556
  %v4621 = vmul.f32 %v4557, %v4557
  %v4622 = vmul.f32 %v4558, %v4558
  %v4623 = vmul.f32 %v4559, %v4559
  %v4624 = vmul.f32 %v4560, %v4560
  %v4625 = vmul.f32 %v4561, %v4561
  %v4626 = vmul.f32 %v4562, %v4562
  %v4627 = vmul.f32 %v4563, %v4563
  %v4628 = vmul.f32 %v4564, %v4564
  %v4629 = vmul.f32 %v4565, %v4565
  %v4630 = vmul.f32 %v4566, %v4566
  %v4631 = vmul.f32 %v4567, %v4567
  %v4632 = vmul.f32 %v4568, %v4568
  %v4633 = vmul.f32 %v4569, %v4569
  %v4634 = vmul.f32 %v4570, %v4570
  %v4635 = vmul.f32 %v4571, %v4571
  %v4636 = vmul.f32 %v4572, %v4572
  %v4637 = vmul.f32 %v4573, %v4573
  %v4638 = vmul.f32 %v4574, %v4574
  %v4639 = vmul.f32 %v4575, %v4575
  %v4640 = vmul.f32 %v4576, %v4576
  %v4641 = vmul.f32 %v4577, %v4577
  %v4642 = vmul.f32 %v4578, %v4578
  %v4643 = vmul.f32 %v4579, %v4579
  %v4644 = vsel %vm17, %v4580, 0.0
  %v4645 = vsel %vm17, %v4581, 0.0
  %v4646 = vadd.f32 %v4644, %v4645
  %v4647 = vsel %vm17, %v4582, 0.0
  %v4648 = vadd.f32 %v4646, %v4647
  %v4649 = vsel %vm17, %v4583, 0.0
  %v4650 = vadd.f32 %v4648, %v4649
  %v4651 = vsel %vm17, %v4584, 0.0
  %v4652 = vadd.f32 %v4650, %v4651
  %v4653 = vsel %vm17, %v4585, 0.0
  %v4654 = vadd.f32 %v4652, %v4653
  %v4655 = vsel %vm17, %v4586, 0.0
  %v4656 = vadd.f32 %v4654, %v4655
  %v4657 = vsel %vm17, %v4587, 0.0
  %v4658 = vadd.f32 %v4656, %v4657
  %v4659 = vsel %vm17, %v4588, 0.0
  %v4660 = vadd.f32 %v4658, %v4659
  %v4661 = vsel %vm17, %v4589, 0.0
  %v4662 = vadd.f32 %v4660, %v4661
  %v4663 = vsel %vm17, %v4590, 0.0
  %v4664 = vadd.f32 %v4662, %v4663
  %v4665 = vsel %vm17, %v4591, 0.0
  %v4666 = vadd.f32 %v4664, %v4665
  %v4667 = vsel %vm17, %v4592, 0.0
  %v4668 = vadd.f32 %v4666, %v4667
  %v4669 = vsel %vm17, %v4593, 0.0
  %v4670 = vadd.f32 %v4668, %v4669
  %v4671 = vsel %vm17, %v4594, 0.0
  %v4672 = vadd.f32 %v4670, %v4671
  %v4673 = vsel %vm17, %v4595, 0.0
  %v4674 = vadd.f32 %v4672, %v4673
  %v4675 = vsel %vm17, %v4596, 0.0
  %v4676 = vadd.f32 %v4674, %v4675
  %v4677 = vsel %vm17, %v4597, 0.0
  %v4678 = vadd.f32 %v4676, %v4677
  %v4679 = vsel %vm17, %v4598, 0.0
  %v4680 = vadd.f32 %v4678, %v4679
  %v4681 = vsel %vm17, %v4599, 0.0
  %v4682 = vadd.f32 %v4680, %v4681
  %v4683 = vsel %vm17, %v4600, 0.0
  %v4684 = vadd.f32 %v4682, %v4683
  %v4685 = vsel %vm17, %v4601, 0.0
  %v4686 = vadd.f32 %v4684, %v4685
  %v4687 = vsel %vm17, %v4602, 0.0
  %v4688 = vadd.f32 %v4686, %v4687
  %v4689 = vsel %vm17, %v4603, 0.0
  %v4690 = vadd.f32 %v4688, %v4689
  %v4691 = vsel %vm17, %v4604, 0.0
  %v4692 = vadd.f32 %v4690, %v4691
  %v4693 = vsel %vm17, %v4605, 0.0
  %v4694 = vadd.f32 %v4692, %v4693
  %v4695 = vsel %vm17, %v4606, 0.0
  %v4696 = vadd.f32 %v4694, %v4695
  %v4697 = vsel %vm17, %v4607, 0.0
  %v4698 = vadd.f32 %v4696, %v4697
  %v4699 = vsel %vm17, %v4608, 0.0
  %v4700 = vadd.f32 %v4698, %v4699
  %v4701 = vsel %vm17, %v4609, 0.0
  %v4702 = vadd.f32 %v4700, %v4701
  %v4703 = vsel %vm17, %v4610, 0.0
  %v4704 = vadd.f32 %v4702, %v4703
  %v4705 = vsel %vm17, %v4611, 0.0
  %v4706 = vadd.f32 %v4704, %v4705
  %v4707 = vsel %vm17, %v4612, 0.0
  %v4708 = vadd.f32 %v4706, %v4707
  %v4709 = vsel %vm17, %v4613, 0.0
  %v4710 = vadd.f32 %v4708, %v4709
  %v4711 = vsel %vm17, %v4614, 0.0
  %v4712 = vadd.f32 %v4710, %v4711
  %v4713 = vsel %vm17, %v4615, 0.0
  %v4714 = vadd.f32 %v4712, %v4713
  %v4715 = vsel %vm17, %v4616, 0.0
  %v4716 = vadd.f32 %v4714, %v4715
  %v4717 = vsel %vm17, %v4617, 0.0
  %v4718 = vadd.f32 %v4716, %v4717
  %v4719 = vsel %vm17, %v4618, 0.0
  %v4720 = vadd.f32 %v4718, %v4719
  %v4721 = vsel %vm17, %v4619, 0.0
  %v4722 = vadd.f32 %v4720, %v4721
  %v4723 = vsel %vm17, %v4620, 0.0
  %v4724 = vadd.f32 %v4722, %v4723
  %v4725 = vsel %vm17, %v4621, 0.0
  %v4726 = vadd.f32 %v4724, %v4725
  %v4727 = vsel %vm17, %v4622, 0.0
  %v4728 = vadd.f32 %v4726, %v4727
  %v4729 = vsel %vm17, %v4623, 0.0
  %v4730 = vadd.f32 %v4728, %v4729
  %v4731 = vsel %vm17, %v4624, 0.0
  %v4732 = vadd.f32 %v4730, %v4731
  %v4733 = vsel %vm17, %v4625, 0.0
  %v4734 = vadd.f32 %v4732, %v4733
  %v4735 = vsel %vm17, %v4626, 0.0
  %v4736 = vadd.f32 %v4734, %v4735
  %v4737 = vsel %vm17, %v4627, 0.0
  %v4738 = vadd.f32 %v4736, %v4737
  %v4739 = vsel %vm17, %v4628, 0.0
  %v4740 = vadd.f32 %v4738, %v4739
  %v4741 = vsel %vm17, %v4629, 0.0
  %v4742 = vadd.f32 %v4740, %v4741
  %v4743 = vsel %vm17, %v4630, 0.0
  %v4744 = vadd.f32 %v4742, %v4743
  %v4745 = vsel %vm17, %v4631, 0.0
  %v4746 = vadd.f32 %v4744, %v4745
  %v4747 = vsel %vm17, %v4632, 0.0
  %v4748 = vadd.f32 %v4746, %v4747
  %v4749 = vsel %vm17, %v4633, 0.0
  %v4750 = vadd.f32 %v4748, %v4749
  %v4751 = vsel %vm17, %v4634, 0.0
  %v4752 = vadd.f32 %v4750, %v4751
  %v4753 = vsel %vm17, %v4635, 0.0
  %v4754 = vadd.f32 %v4752, %v4753
  %v4755 = vsel %vm17, %v4636, 0.0
  %v4756 = vadd.f32 %v4754, %v4755
  %v4757 = vsel %vm17, %v4637, 0.0
  %v4758 = vadd.f32 %v4756, %v4757
  %v4759 = vsel %vm17, %v4638, 0.0
  %v4760 = vadd.f32 %v4758, %v4759
  %v4761 = vsel %vm17, %v4639, 0.0
  %v4762 = vadd.f32 %v4760, %v4761
  %v4763 = vsel %vm17, %v4640, 0.0
  %v4764 = vadd.f32 %v4762, %v4763
  %v4765 = vsel %vm17, %v4641, 0.0
  %v4766 = vadd.f32 %v4764, %v4765
  %v4767 = vsel %vm17, %v4642, 0.0
  %v4768 = vadd.f32 %v4766, %v4767
  %v4769 = vsel %vm17, %v4643, 0.0
  %v4770 = vadd.f32 %v4768, %v4769
  %v4771 = vrot.slane %v4770, 4
  %v4772 = vadd.f32 %v4770, %v4771
  %v4773 = vrot.slane %v4772, 2
  %v4774 = vadd.f32 %v4772, %v4773
  %v4775 = vrot.slane %v4774, 1
  %v4776 = vadd.f32 %v4774, %v4775
  %4777 = vst.msk [vmem:[%s4] sm:$0x1] %vm32, %v4513
  %4778 = vst.msk [vmem:[%s5] sm:$0x1] %vm32, %v4776
  // Predicated region
  $region14: #{sepconv_forward.2} parent=0 // pred_check
    _
  $region15: #{sepconv_forward.2} parent=0 // pred_check_branch
    %4780 = sbr.rel (0) target = $region17
  $region16: #{sepconv_forward.2} parent=0 // pred_region
    _
  $region17: #{sepconv_forward.2} parent=0 // pred_fallthru
    _
  // Predicated region
  $region18: #{sepconv_forward.2} parent=0 // pred_check
    _
  $region19: #{sepconv_forward.2} parent=0 // pred_check_branch
    %4782 = sbr.rel (0) target = $region21
  $region20: #{sepconv_forward.2} parent=0 // pred_region
    _
  $region21: #{sepconv_forward.2} parent=0 // pred_fallthru
    _
  // Predicated region
  $region22: #{sepconv_forward.2} parent=0 // pred_check
    _
  $region23: #{sepconv_forward.2} parent=0 // pred_check_branch
    %4784 = sbr.rel (0) target = $region25
  $region24: #{sepconv_forward.2} parent=0 // pred_region
    _
  $region25: #{sepconv_forward.2} parent=0 // pred_fallthru
    _
  // Predicated region
  $region26: #{sepconv_forward.2} parent=0 // pred_check
    _
  $region27: #{sepconv_forward.2} parent=0 // pred_check_branch
    %4786 = sbr.rel (0) target = $region29
  $region28: #{sepconv_forward.2} parent=0 // pred_region
    _
  $region29: #{sepconv_forward.2} parent=0 // pred_fallthru
    _
  // Predicated region
  $region30: #{sepconv_forward.2} parent=0 // pred_check
    _
  $region31: #{sepconv_forward.2} parent=0 // pred_check_branch
    %4788 = sbr.rel (0) target = $region33
  $region32: #{sepconv_forward.2} parent=0 // pred_region
    _
  $region33: #{sepconv_forward.2} parent=0 // pred_fallthru
    _
  // Predicated region
  $region34: #{sepconv_forward.2} parent=0 // pred_check
    _
  $region35: #{sepconv_forward.2} parent=0 // pred_check_branch
    %4790 = sbr.rel (0) target = $region37
  $region36: #{sepconv_forward.2} parent=0 // pred_region
    _
  $region37: #{sepconv_forward.2} parent=0 // pred_fallthru
    _

// kernel: sepconv_forward.3
$region0: #{sepconv_forward.3}
  #allocation0 [shape = 'u32[]', space=smem, size = 0x4, offset = 0x4, fixed_abs, tag = 'smem constant byte address 0x4 - core index']
  #allocation1 [shape = 'u32[144,128]{1,0:T(1,128)}', space=vmem, size = 0x12000, scoped, tag = 'internal scratch']
  #allocation2 [shape = 'f32[2,18,18,4]{3,2,1,0:T(8,128)}', space=vmem, size = 0x6c000, scoped, tag = 'scratch operand']
  %s0 = inlined_call_operand.vmem [shape: f32[2,16,16,4], index: 0, kind: input, shape index: {}]
  %s1 = inlined_call_operand.vmem [shape: f32[1,1,1,4], index: 1, kind: input, shape index: {}]
  %s2 = inlined_call_operand.vmem [shape: f32[1,1,1,4], index: 2, kind: input, shape index: {}]
  %s3 = inlined_call_operand.vmem [shape: f32[9,1,1,4], index: 3, kind: input, shape index: {}]
  %s4 = inlined_call_operand.vmem [shape: f32[4,8], index: 4, kind: input, shape index: {}]
  %s5 = inlined_call_operand.vmem [shape: f32[2,16,16,8], index: 5, kind: output, shape index: {0}]
  %s6 = inlined_call_operand.vmem [shape: f32[1,1,8], index: 6, kind: output, shape index: {1}]
  %s7 = inlined_call_operand.vmem [shape: f32[1,1,8], index: 7, kind: output, shape index: {2}]
  %8 = xla_tuple %s5, %s6, %s7
  %s9 = sld [smem:[#allocation0]]
  $region46: #{sepconv_forward.3} parent=0
    _
  %s11 = ssub.s32 1, %s9
  %s12 = scalar_select 0, %s11, %s9
  // Predicated region
  $region2: #{sepconv_forward.3} parent=0 // pred_check
    _
  $region3: #{sepconv_forward.3} parent=0 // pred_check_branch
    %14 = sbr.rel (0) target = $region5
  $region4: #{sepconv_forward.3} parent=0 // pred_region
    _
  $region5: #{sepconv_forward.3} parent=0 // pred_fallthru
    _
  // Predicated region
  $region6: #{sepconv_forward.3} parent=0 // pred_check
    _
  $region7: #{sepconv_forward.3} parent=0 // pred_check_branch
    %16 = sbr.rel (0) target = $region9
  $region8: #{sepconv_forward.3} parent=0 // pred_region
    _
  $region9: #{sepconv_forward.3} parent=0 // pred_fallthru
    _
  // Predicated region
  $region10: #{sepconv_forward.3} parent=0 // pred_check
    _
  $region11: #{sepconv_forward.3} parent=0 // pred_check_branch
    %18 = sbr.rel (0) target = $region13
  $region12: #{sepconv_forward.3} parent=0 // pred_region
    _
  $region13: #{sepconv_forward.3} parent=0 // pred_fallthru
    _
  // Predicated region
  $region14: #{sepconv_forward.3} parent=0 // pred_check
    _
  $region15: #{sepconv_forward.3} parent=0 // pred_check_branch
    %20 = sbr.rel (0) target = $region17
  $region16: #{sepconv_forward.3} parent=0 // pred_region
    _
  $region17: #{sepconv_forward.3} parent=0 // pred_fallthru
    _
  // Predicated region
  $region18: #{sepconv_forward.3} parent=0 // pred_check
    _
  $region19: #{sepconv_forward.3} parent=0 // pred_check_branch
    %22 = sbr.rel (0) target = $region21
  $region20: #{sepconv_forward.3} parent=0 // pred_region
    _
  $region21: #{sepconv_forward.3} parent=0 // pred_fallthru
    _
  %vm23 = vcmask 31744
  %24 = vst.msk [vmem:[#allocation2] sm:$0xff] %vm23, 0.0
  %25 = vst.msk [vmem:[#allocation2 + $0x8] sm:$0xff] %vm23, 0.0
  %vm26 = vcmask 25600
  %27 = vst.msk [vmem:[#allocation2 + $0x10] sm:$0x3] %vm26, 0.0
  %28 = vst.msk [vmem:[#allocation2 + $0x1b0] sm:$0xff] %vm23, 0.0
  %29 = vst.msk [vmem:[#allocation2 + $0x1b8] sm:$0xff] %vm23, 0.0
  %30 = vst.msk [vmem:[#allocation2 + $0x1c0] sm:$0x3] %vm26, 0.0
  %s31 = scalar_lea.vmem [#allocation2], 408
  %32 = vst.msk [vmem:[%s31] sm:$0xff] %vm23, 0.0
  %33 = vst.msk [vmem:[%s31 + $0x8] sm:$0xff] %vm23, 0.0
  %34 = vst.msk [vmem:[%s31 + $0x10] sm:$0x3] %vm26, 0.0
  %35 = vst.msk [vmem:[%s31 + $0x1b0] sm:$0xff] %vm23, 0.0
  %36 = vst.msk [vmem:[%s31 + $0x1b8] sm:$0xff] %vm23, 0.0
  %37 = vst.msk [vmem:[%s31 + $0x1c0] sm:$0x3] %vm26, 0.0
  %vm38 = vcmask 24576
  %39 = vst.msk [vmem:[#allocation2] sm:$0x1] %vm38, 0.0
  %40 = vst.msk [vmem:[#allocation2 + $0x18] sm:$0x1] %vm38, 0.0
  %41 = vst.msk [vmem:[#allocation2 + $0x30] sm:$0x1] %vm38, 0.0
  %42 = vst.msk [vmem:[#allocation2 + $0x48] sm:$0x1] %vm38, 0.0
  %43 = vst.msk [vmem:[#allocation2 + $0x60] sm:$0x1] %vm38, 0.0
  %44 = vst.msk [vmem:[#allocation2 + $0x78] sm:$0x1] %vm38, 0.0
  %45 = vst.msk [vmem:[#allocation2 + $0x90] sm:$0x1] %vm38, 0.0
  %46 = vst.msk [vmem:[#allocation2 + $0xa8] sm:$0x1] %vm38, 0.0
  %47 = vst.msk [vmem:[#allocation2 + $0xc0] sm:$0x1] %vm38, 0.0
  %48 = vst.msk [vmem:[#allocation2 + $0xd8] sm:$0x1] %vm38, 0.0
  %49 = vst.msk [vmem:[#allocation2 + $0xf0] sm:$0x1] %vm38, 0.0
  %50 = vst.msk [vmem:[#allocation2 + $0x108] sm:$0x1] %vm38, 0.0
  %51 = vst.msk [vmem:[#allocation2 + $0x120] sm:$0x1] %vm38, 0.0
  %52 = vst.msk [vmem:[#allocation2 + $0x138] sm:$0x1] %vm38, 0.0
  %53 = vst.msk [vmem:[#allocation2 + $0x150] sm:$0x1] %vm38, 0.0
  %54 = vst.msk [vmem:[#allocation2 + $0x168] sm:$0x1] %vm38, 0.0
  %55 = vst.msk [vmem:[#allocation2 + $0x180] sm:$0x1] %vm38, 0.0
  %56 = vst.msk [vmem:[#allocation2 + $0x198] sm:$0x1] %vm38, 0.0
  %57 = vst.msk [vmem:[#allocation2 + $0x1b0] sm:$0x1] %vm38, 0.0
  %58 = vst.msk [vmem:[#allocation2 + $0x1c8] sm:$0x1] %vm38, 0.0
  %59 = vst.msk [vmem:[#allocation2 + $0x1e0] sm:$0x1] %vm38, 0.0
  %60 = vst.msk [vmem:[#allocation2 + $0x1f8] sm:$0x1] %vm38, 0.0
  %61 = vst.msk [vmem:[#allocation2 + $0x210] sm:$0x1] %vm38, 0.0
  %62 = vst.msk [vmem:[#allocation2 + $0x228] sm:$0x1] %vm38, 0.0
  %63 = vst.msk [vmem:[#allocation2 + $0x240] sm:$0x1] %vm38, 0.0
  %64 = vst.msk [vmem:[#allocation2 + $0x258] sm:$0x1] %vm38, 0.0
  %65 = vst.msk [vmem:[#allocation2 + $0x270] sm:$0x1] %vm38, 0.0
  %66 = vst.msk [vmem:[#allocation2 + $0x288] sm:$0x1] %vm38, 0.0
  %67 = vst.msk [vmem:[#allocation2 + $0x2a0] sm:$0x1] %vm38, 0.0
  %68 = vst.msk [vmem:[#allocation2 + $0x2b8] sm:$0x1] %vm38, 0.0
  %69 = vst.msk [vmem:[#allocation2 + $0x2d0] sm:$0x1] %vm38, 0.0
  %70 = vst.msk [vmem:[#allocation2 + $0x2e8] sm:$0x1] %vm38, 0.0
  %71 = vst.msk [vmem:[#allocation2 + $0x300] sm:$0x1] %vm38, 0.0
  %72 = vst.msk [vmem:[#allocation2 + $0x318] sm:$0x1] %vm38, 0.0
  %73 = vst.msk [vmem:[#allocation2 + $0x330] sm:$0x1] %vm38, 0.0
  %74 = vst.msk [vmem:[#allocation2 + $0x348] sm:$0x1] %vm38, 0.0
  %75 = vst.msk [vmem:[#allocation2 + $0x11] sm:$0x1] %vm38, 0.0
  %76 = vst.msk [vmem:[#allocation2 + $0x29] sm:$0x1] %vm38, 0.0
  %77 = vst.msk [vmem:[#allocation2 + $0x41] sm:$0x1] %vm38, 0.0
  %78 = vst.msk [vmem:[#allocation2 + $0x59] sm:$0x1] %vm38, 0.0
  %79 = vst.msk [vmem:[#allocation2 + $0x71] sm:$0x1] %vm38, 0.0
  %80 = vst.msk [vmem:[#allocation2 + $0x89] sm:$0x1] %vm38, 0.0
  %81 = vst.msk [vmem:[#allocation2 + $0xa1] sm:$0x1] %vm38, 0.0
  %82 = vst.msk [vmem:[#allocation2 + $0xb9] sm:$0x1] %vm38, 0.0
  %83 = vst.msk [vmem:[#allocation2 + $0xd1] sm:$0x1] %vm38, 0.0
  %84 = vst.msk [vmem:[#allocation2 + $0xe9] sm:$0x1] %vm38, 0.0
  %85 = vst.msk [vmem:[#allocation2 + $0x101] sm:$0x1] %vm38, 0.0
  %86 = vst.msk [vmem:[#allocation2 + $0x119] sm:$0x1] %vm38, 0.0
  %87 = vst.msk [vmem:[#allocation2 + $0x131] sm:$0x1] %vm38, 0.0
  %88 = vst.msk [vmem:[#allocation2 + $0x149] sm:$0x1] %vm38, 0.0
  %89 = vst.msk [vmem:[#allocation2 + $0x161] sm:$0x1] %vm38, 0.0
  %90 = vst.msk [vmem:[#allocation2 + $0x179] sm:$0x1] %vm38, 0.0
  %91 = vst.msk [vmem:[#allocation2 + $0x191] sm:$0x1] %vm38, 0.0
  %92 = vst.msk [vmem:[#allocation2 + $0x1a9] sm:$0x1] %vm38, 0.0
  %93 = vst.msk [vmem:[#allocation2 + $0x1c1] sm:$0x1] %vm38, 0.0
  %94 = vst.msk [vmem:[#allocation2 + $0x1d9] sm:$0x1] %vm38, 0.0
  %95 = vst.msk [vmem:[#allocation2 + $0x1f1] sm:$0x1] %vm38, 0.0
  %96 = vst.msk [vmem:[#allocation2 + $0x209] sm:$0x1] %vm38, 0.0
  %97 = vst.msk [vmem:[#allocation2 + $0x221] sm:$0x1] %vm38, 0.0
  %98 = vst.msk [vmem:[#allocation2 + $0x239] sm:$0x1] %vm38, 0.0
  %99 = vst.msk [vmem:[#allocation2 + $0x251] sm:$0x1] %vm38, 0.0
  %100 = vst.msk [vmem:[#allocation2 + $0x269] sm:$0x1] %vm38, 0.0
  %101 = vst.msk [vmem:[#allocation2 + $0x281] sm:$0x1] %vm38, 0.0
  %102 = vst.msk [vmem:[#allocation2 + $0x299] sm:$0x1] %vm38, 0.0
  %103 = vst.msk [vmem:[#allocation2 + $0x2b1] sm:$0x1] %vm38, 0.0
  %104 = vst.msk [vmem:[#allocation2 + $0x2c9] sm:$0x1] %vm38, 0.0
  %105 = vst.msk [vmem:[#allocation2 + $0x2e1] sm:$0x1] %vm38, 0.0
  %106 = vst.msk [vmem:[#allocation2 + $0x2f9] sm:$0x1] %vm38, 0.0
  %107 = vst.msk [vmem:[#allocation2 + $0x311] sm:$0x1] %vm38, 0.0
  %108 = vst.msk [vmem:[#allocation2 + $0x329] sm:$0x1] %vm38, 0.0
  %109 = vst.msk [vmem:[#allocation2 + $0x341] sm:$0x1] %vm38, 0.0
  %110 = vst.msk [vmem:[#allocation2 + $0x359] sm:$0x1] %vm38, 0.0
  %v111 = vld [vmem:[%s0] sm:$0xff]
  %v112 = vld [vmem:[%s0 + $0x8] sm:$0xff]
  %v113 = vld [vmem:[%s0 + $0x10] sm:$0xff]
  %v114 = vld [vmem:[%s0 + $0x18] sm:$0xff]
  %v115 = vld [vmem:[%s0 + $0x20] sm:$0xff]
  %v116 = vld [vmem:[%s0 + $0x28] sm:$0xff]
  %v117 = vld [vmem:[%s0 + $0x30] sm:$0xff]
  %v118 = vld [vmem:[%s0 + $0x38] sm:$0xff]
  %v119 = vld [vmem:[%s0 + $0x40] sm:$0xff]
  %v120 = vld [vmem:[%s0 + $0x48] sm:$0xff]
  %v121 = vld [vmem:[%s0 + $0x50] sm:$0xff]
  %v122 = vld [vmem:[%s0 + $0x58] sm:$0xff]
  %v123 = vld [vmem:[%s0 + $0x60] sm:$0xff]
  %v124 = vld [vmem:[%s0 + $0x68] sm:$0xff]
  %v125 = vld [vmem:[%s0 + $0x70] sm:$0xff]
  %v126 = vld [vmem:[%s0 + $0x78] sm:$0xff]
  %v127 = vld [vmem:[%s0 + $0x80] sm:$0xff]
  %v128 = vld [vmem:[%s0 + $0x88] sm:$0xff]
  %v129 = vld [vmem:[%s0 + $0x90] sm:$0xff]
  %v130 = vld [vmem:[%s0 + $0x98] sm:$0xff]
  %v131 = vld [vmem:[%s0 + $0xa0] sm:$0xff]
  %v132 = vld [vmem:[%s0 + $0xa8] sm:$0xff]
  %v133 = vld [vmem:[%s0 + $0xb0] sm:$0xff]
  %v134 = vld [vmem:[%s0 + $0xb8] sm:$0xff]
  %v135 = vld [vmem:[%s0 + $0xc0] sm:$0xff]
  %v136 = vld [vmem:[%s0 + $0xc8] sm:$0xff]
  %v137 = vld [vmem:[%s0 + $0xd0] sm:$0xff]
  %v138 = vld [vmem:[%s0 + $0xd8] sm:$0xff]
  %v139 = vld [vmem:[%s0 + $0xe0] sm:$0xff]
  %v140 = vld [vmem:[%s0 + $0xe8] sm:$0xff]
  %v141 = vld [vmem:[%s0 + $0xf0] sm:$0xff]
  %v142 = vld [vmem:[%s0 + $0xf8] sm:$0xff]
  %v143 = vld [vmem:[%s0 + $0x100] sm:$0xff]
  %v144 = vld [vmem:[%s0 + $0x108] sm:$0xff]
  %v145 = vld [vmem:[%s0 + $0x110] sm:$0xff]
  %v146 = vld [vmem:[%s0 + $0x118] sm:$0xff]
  %v147 = vld [vmem:[%s0 + $0x120] sm:$0xff]
  %v148 = vld [vmem:[%s0 + $0x128] sm:$0xff]
  %v149 = vld [vmem:[%s0 + $0x130] sm:$0xff]
  %v150 = vld [vmem:[%s0 + $0x138] sm:$0xff]
  %v151 = vld [vmem:[%s0 + $0x140] sm:$0xff]
  %v152 = vld [vmem:[%s0 + $0x148] sm:$0xff]
  %v153 = vld [vmem:[%s0 + $0x150] sm:$0xff]
  %v154 = vld [vmem:[%s0 + $0x158] sm:$0xff]
  %v155 = vld [vmem:[%s0 + $0x160] sm:$0xff]
  %v156 = vld [vmem:[%s0 + $0x168] sm:$0xff]
  %v157 = vld [vmem:[%s0 + $0x170] sm:$0xff]
  %v158 = vld [vmem:[%s0 + $0x178] sm:$0xff]
  %v159 = vld [vmem:[%s0 + $0x180] sm:$0xff]
  %v160 = vld [vmem:[%s0 + $0x188] sm:$0xff]
  %v161 = vld [vmem:[%s0 + $0x190] sm:$0xff]
  %v162 = vld [vmem:[%s0 + $0x198] sm:$0xff]
  %v163 = vld [vmem:[%s0 + $0x1a0] sm:$0xff]
  %v164 = vld [vmem:[%s0 + $0x1a8] sm:$0xff]
  %v165 = vld [vmem:[%s0 + $0x1b0] sm:$0xff]
  %v166 = vld [vmem:[%s0 + $0x1b8] sm:$0xff]
  %v167 = vld [vmem:[%s0 + $0x1c0] sm:$0xff]
  %v168 = vld [vmem:[%s0 + $0x1c8] sm:$0xff]
  %v169 = vld [vmem:[%s0 + $0x1d0] sm:$0xff]
  %v170 = vld [vmem:[%s0 + $0x1d8] sm:$0xff]
  %v171 = vld [vmem:[%s0 + $0x1e0] sm:$0xff]
  %v172 = vld [vmem:[%s0 + $0x1e8] sm:$0xff]
  %v173 = vld [vmem:[%s0 + $0x1f0] sm:$0xff]
  %v174 = vld [vmem:[%s0 + $0x1f8] sm:$0xff]
  %v175 = vld [vmem:[%s1] sm:$0x1]
  %v177 = vlaneseq
  %v178 = vshrl.u32 %v177, 7
  %v179 = vsub.s32 0, %v178
  %v180 = vrot.slane %v175, %v179
  %v182 = vmul.f32 %v111, %v180
  %v183 = vmul.f32 %v112, %v180
  %v184 = vmul.f32 %v113, %v180
  %v185 = vmul.f32 %v114, %v180
  %v186 = vmul.f32 %v115, %v180
  %v187 = vmul.f32 %v116, %v180
  %v188 = vmul.f32 %v117, %v180
  %v189 = vmul.f32 %v118, %v180
  %v190 = vmul.f32 %v119, %v180
  %v191 = vmul.f32 %v120, %v180
  %v192 = vmul.f32 %v121, %v180
  %v193 = vmul.f32 %v122, %v180
  %v194 = vmul.f32 %v123, %v180
  %v195 = vmul.f32 %v124, %v180
  %v196 = vmul.f32 %v125, %v180
  %v197 = vmul.f32 %v126, %v180
  %v198 = vmul.f32 %v127, %v180
  %v199 = vmul.f32 %v128, %v180
  %v200 = vmul.f32 %v129, %v180
  %v201 = vmul.f32 %v130, %v180
  %v202 = vmul.f32 %v131, %v180
  %v203 = vmul.f32 %v132, %v180
  %v204 = vmul.f32 %v133, %v180
  %v205 = vmul.f32 %v134, %v180
  %v206 = vmul.f32 %v135, %v180
  %v207 = vmul.f32 %v136, %v180
  %v208 = vmul.f32 %v137, %v180
  %v209 = vmul.f32 %v138, %v180
  %v210 = vmul.f32 %v139, %v180
  %v211 = vmul.f32 %v140, %v180
  %v212 = vmul.f32 %v141, %v180
  %v213 = vmul.f32 %v142, %v180
  %v214 = vmul.f32 %v143, %v180
  %v215 = vmul.f32 %v144, %v180
  %v216 = vmul.f32 %v145, %v180
  %v217 = vmul.f32 %v146, %v180
  %v218 = vmul.f32 %v147, %v180
  %v219 = vmul.f32 %v148, %v180
  %v220 = vmul.f32 %v149, %v180
  %v221 = vmul.f32 %v150, %v180
  %v222 = vmul.f32 %v151, %v180
  %v223 = vmul.f32 %v152, %v180
  %v224 = vmul.f32 %v153, %v180
  %v225 = vmul.f32 %v154, %v180
  %v226 = vmul.f32 %v155, %v180
  %v227 = vmul.f32 %v156, %v180
  %v228 = vmul.f32 %v157, %v180
  %v229 = vmul.f32 %v158, %v180
  %v230 = vmul.f32 %v159, %v180
  %v231 = vmul.f32 %v160, %v180
  %v232 = vmul.f32 %v161, %v180
  %v233 = vmul.f32 %v162, %v180
  %v234 = vmul.f32 %v163, %v180
  %v235 = vmul.f32 %v164, %v180
  %v236 = vmul.f32 %v165, %v180
  %v237 = vmul.f32 %v166, %v180
  %v238 = vmul.f32 %v167, %v180
  %v239 = vmul.f32 %v168, %v180
  %v240 = vmul.f32 %v169, %v180
  %v241 = vmul.f32 %v170, %v180
  %v242 = vmul.f32 %v171, %v180
  %v243 = vmul.f32 %v172, %v180
  %v244 = vmul.f32 %v173, %v180
  %v245 = vmul.f32 %v174, %v180
  %v246 = vld [vmem:[%s2] sm:$0x1]
  %v248 = vlaneseq
  %v249 = vshrl.u32 %v248, 7
  %v250 = vsub.s32 0, %v249
  %v251 = vrot.slane %v246, %v250
  %v253 = vadd.f32 %v182, %v251
  %v254 = vadd.f32 %v183, %v251
  %v255 = vadd.f32 %v184, %v251
  %v256 = vadd.f32 %v185, %v251
  %v257 = vadd.f32 %v186, %v251
  %v258 = vadd.f32 %v187, %v251
  %v259 = vadd.f32 %v188, %v251
  %v260 = vadd.f32 %v189, %v251
  %v261 = vadd.f32 %v190, %v251
  %v262 = vadd.f32 %v191, %v251
  %v263 = vadd.f32 %v192, %v251
  %v264 = vadd.f32 %v193, %v251
  %v265 = vadd.f32 %v194, %v251
  %v266 = vadd.f32 %v195, %v251
  %v267 = vadd.f32 %v196, %v251
  %v268 = vadd.f32 %v197, %v251
  %v269 = vadd.f32 %v198, %v251
  %v270 = vadd.f32 %v199, %v251
  %v271 = vadd.f32 %v200, %v251
  %v272 = vadd.f32 %v201, %v251
  %v273 = vadd.f32 %v202, %v251
  %v274 = vadd.f32 %v203, %v251
  %v275 = vadd.f32 %v204, %v251
  %v276 = vadd.f32 %v205, %v251
  %v277 = vadd.f32 %v206, %v251
  %v278 = vadd.f32 %v207, %v251
  %v279 = vadd.f32 %v208, %v251
  %v280 = vadd.f32 %v209, %v251
  %v281 = vadd.f32 %v210, %v251
  %v282 = vadd.f32 %v211, %v251
  %v283 = vadd.f32 %v212, %v251
  %v284 = vadd.f32 %v213, %v251
  %v285 = vadd.f32 %v214, %v251
  %v286 = vadd.f32 %v215, %v251
  %v287 = vadd.f32 %v216, %v251
  %v288 = vadd.f32 %v217, %v251
  %v289 = vadd.f32 %v218, %v251
  %v290 = vadd.f32 %v219, %v251
  %v291 = vadd.f32 %v220, %v251
  %v292 = vadd.f32 %v221, %v251
  %v293 = vadd.f32 %v222, %v251
  %v294 = vadd.f32 %v223, %v251
  %v295 = vadd.f32 %v224, %v251
  %v296 = vadd.f32 %v225, %v251
  %v297 = vadd.f32 %v226, %v251
  %v298 = vadd.f32 %v227, %v251
  %v299 = vadd.f32 %v228, %v251
  %v300 = vadd.f32 %v229, %v251
  %v301 = vadd.f32 %v230, %v251
  %v302 = vadd.f32 %v231, %v251
  %v303 = vadd.f32 %v232, %v251
  %v304 = vadd.f32 %v233, %v251
  %v305 = vadd.f32 %v234, %v251
  %v306 = vadd.f32 %v235, %v251
  %v307 = vadd.f32 %v236, %v251
  %v308 = vadd.f32 %v237, %v251
  %v309 = vadd.f32 %v238, %v251
  %v310 = vadd.f32 %v239, %v251
  %v311 = vadd.f32 %v240, %v251
  %v312 = vadd.f32 %v241, %v251
  %v313 = vadd.f32 %v242, %v251
  %v314 = vadd.f32 %v243, %v251
  %v315 = vadd.f32 %v244, %v251
  %v316 = vadd.f32 %v245, %v251
  %v317 = vmax.f32 %v253, 0.0
  %v318 = vmax.f32 %v254, 0.0
  %v319 = vmax.f32 %v255, 0.0
  %v320 = vmax.f32 %v256, 0.0
  %v321 = vmax.f32 %v257, 0.0
  %v322 = vmax.f32 %v258, 0.0
  %v323 = vmax.f32 %v259, 0.0
  %v324 = vmax.f32 %v260, 0.0
  %v325 = vmax.f32 %v261, 0.0
  %v326 = vmax.f32 %v262, 0.0
  %v327 = vmax.f32 %v263, 0.0
  %v328 = vmax.f32 %v264, 0.0
  %v329 = vmax.f32 %v265, 0.0
  %v330 = vmax.f32 %v266, 0.0
  %v331 = vmax.f32 %v267, 0.0
  %v332 = vmax.f32 %v268, 0.0
  %v333 = vmax.f32 %v269, 0.0
  %v334 = vmax.f32 %v270, 0.0
  %v335 = vmax.f32 %v271, 0.0
  %v336 = vmax.f32 %v272, 0.0
  %v337 = vmax.f32 %v273, 0.0
  %v338 = vmax.f32 %v274, 0.0
  %v339 = vmax.f32 %v275, 0.0
  %v340 = vmax.f32 %v276, 0.0
  %v341 = vmax.f32 %v277, 0.0
  %v342 = vmax.f32 %v278, 0.0
  %v343 = vmax.f32 %v279, 0.0
  %v344 = vmax.f32 %v280, 0.0
  %v345 = vmax.f32 %v281, 0.0
  %v346 = vmax.f32 %v282, 0.0
  %v347 = vmax.f32 %v283, 0.0
  %v348 = vmax.f32 %v284, 0.0
  %v349 = vmax.f32 %v285, 0.0
  %v350 = vmax.f32 %v286, 0.0
  %v351 = vmax.f32 %v287, 0.0
  %v352 = vmax.f32 %v288, 0.0
  %v353 = vmax.f32 %v289, 0.0
  %v354 = vmax.f32 %v290, 0.0
  %v355 = vmax.f32 %v291, 0.0
  %v356 = vmax.f32 %v292, 0.0
  %v357 = vmax.f32 %v293, 0.0
  %v358 = vmax.f32 %v294, 0.0
  %v359 = vmax.f32 %v295, 0.0
  %v360 = vmax.f32 %v296, 0.0
  %v361 = vmax.f32 %v297, 0.0
  %v362 = vmax.f32 %v298, 0.0
  %v363 = vmax.f32 %v299, 0.0
  %v364 = vmax.f32 %v300, 0.0
  %v365 = vmax.f32 %v301, 0.0
  %v366 = vmax.f32 %v302, 0.0
  %v367 = vmax.f32 %v303, 0.0
  %v368 = vmax.f32 %v304, 0.0
  %v369 = vmax.f32 %v305, 0.0
  %v370 = vmax.f32 %v306, 0.0
  %v371 = vmax.f32 %v307, 0.0
  %v372 = vmax.f32 %v308, 0.0
  %v373 = vmax.f32 %v309, 0.0
  %v374 = vmax.f32 %v310, 0.0
  %v375 = vmax.f32 %v311, 0.0
  %v376 = vmax.f32 %v312, 0.0
  %v377 = vmax.f32 %v313, 0.0
  %v378 = vmax.f32 %v314, 0.0
  %v379 = vmax.f32 %v315, 0.0
  %v380 = vmax.f32 %v316, 0.0
  %s381 = scalar_lea.vmem [#allocation2], 24
  %382 = vst.msk [vmem:[%s381 + $0x1] sm:$0xff] %vm23, %v317
  %383 = vst.msk [vmem:[%s381 + $0x9] sm:$0xff] %vm23, %v318
  %384 = vst.msk [vmem:[%s381 + $0x19] sm:$0xff] %vm23, %v319
  %385 = vst.msk [vmem:[%s381 + $0x21] sm:$0xff] %vm23, %v320
  %386 = vst.msk [vmem:[%s381 + $0x31] sm:$0xff] %vm23, %v321
  %387 = vst.msk [vmem:[%s381 + $0x39] sm:$0xff] %vm23, %v322
  %388 = vst.msk [vmem:[%s381 + $0x49] sm:$0xff] %vm23, %v323
  %389 = vst.msk [vmem:[%s381 + $0x51] sm:$0xff] %vm23, %v324
  %390 = vst.msk [vmem:[%s381 + $0x61] sm:$0xff] %vm23, %v325
  %391 = vst.msk [vmem:[%s381 + $0x69] sm:$0xff] %vm23, %v326
  %392 = vst.msk [vmem:[%s381 + $0x79] sm:$0xff] %vm23, %v327
  %393 = vst.msk [vmem:[%s381 + $0x81] sm:$0xff] %vm23, %v328
  %394 = vst.msk [vmem:[%s381 + $0x91] sm:$0xff] %vm23, %v329
  %395 = vst.msk [vmem:[%s381 + $0x99] sm:$0xff] %vm23, %v330
  %396 = vst.msk [vmem:[%s381 + $0xa9] sm:$0xff] %vm23, %v331
  %397 = vst.msk [vmem:[%s381 + $0xb1] sm:$0xff] %vm23, %v332
  %398 = vst.msk [vmem:[%s381 + $0xc1] sm:$0xff] %vm23, %v333
  %399 = vst.msk [vmem:[%s381 + $0xc9] sm:$0xff] %vm23, %v334
  %400 = vst.msk [vmem:[%s381 + $0xd9] sm:$0xff] %vm23, %v335
  %401 = vst.msk [vmem:[%s381 + $0xe1] sm:$0xff] %vm23, %v336
  %402 = vst.msk [vmem:[%s381 + $0xf1] sm:$0xff] %vm23, %v337
  %403 = vst.msk [vmem:[%s381 + $0xf9] sm:$0xff] %vm23, %v338
  %404 = vst.msk [vmem:[%s381 + $0x109] sm:$0xff] %vm23, %v339
  %405 = vst.msk [vmem:[%s381 + $0x111] sm:$0xff] %vm23, %v340
  %406 = vst.msk [vmem:[%s381 + $0x121] sm:$0xff] %vm23, %v341
  %407 = vst.msk [vmem:[%s381 + $0x129] sm:$0xff] %vm23, %v342
  %408 = vst.msk [vmem:[%s381 + $0x139] sm:$0xff] %vm23, %v343
  %409 = vst.msk [vmem:[%s381 + $0x141] sm:$0xff] %vm23, %v344
  %410 = vst.msk [vmem:[%s381 + $0x151] sm:$0xff] %vm23, %v345
  %411 = vst.msk [vmem:[%s381 + $0x159] sm:$0xff] %vm23, %v346
  %412 = vst.msk [vmem:[%s381 + $0x169] sm:$0xff] %vm23, %v347
  %413 = vst.msk [vmem:[%s381 + $0x171] sm:$0xff] %vm23, %v348
  %414 = vst.msk [vmem:[%s381 + $0x1b1] sm:$0xff] %vm23, %v349
  %415 = vst.msk [vmem:[%s381 + $0x1b9] sm:$0xff] %vm23, %v350
  %416 = vst.msk [vmem:[%s381 + $0x1c9] sm:$0xff] %vm23, %v351
  %417 = vst.msk [vmem:[%s381 + $0x1d1] sm:$0xff] %vm23, %v352
  %418 = vst.msk [vmem:[%s381 + $0x1e1] sm:$0xff] %vm23, %v353
  %419 = vst.msk [vmem:[%s381 + $0x1e9] sm:$0xff] %vm23, %v354
  %420 = vst.msk [vmem:[%s381 + $0x1f9] sm:$0xff] %vm23, %v355
  %421 = vst.msk [vmem:[%s381 + $0x201] sm:$0xff] %vm23, %v356
  %422 = vst.msk [vmem:[%s381 + $0x211] sm:$0xff] %vm23, %v357
  %423 = vst.msk [vmem:[%s381 + $0x219] sm:$0xff] %vm23, %v358
  %424 = vst.msk [vmem:[%s381 + $0x229] sm:$0xff] %vm23, %v359
  %425 = vst.msk [vmem:[%s381 + $0x231] sm:$0xff] %vm23, %v360
  %426 = vst.msk [vmem:[%s381 + $0x241] sm:$0xff] %vm23, %v361
  %427 = vst.msk [vmem:[%s381 + $0x249] sm:$0xff] %vm23, %v362
  %428 = vst.msk [vmem:[%s381 + $0x259] sm:$0xff] %vm23, %v363
  %429 = vst.msk [vmem:[%s381 + $0x261] sm:$0xff] %vm23, %v364
  %430 = vst.msk [vmem:[%s381 + $0x271] sm:$0xff] %vm23, %v365
  %431 = vst.msk [vmem:[%s381 + $0x279] sm:$0xff] %vm23, %v366
  %432 = vst.msk [vmem:[%s381 + $0x289] sm:$0xff] %vm23, %v367
  %433 = vst.msk [vmem:[%s381 + $0x291] sm:$0xff] %vm23, %v368
  %434 = vst.msk [vmem:[%s381 + $0x2a1] sm:$0xff] %vm23, %v369
  %435 = vst.msk [vmem:[%s381 + $0x2a9] sm:$0xff] %vm23, %v370
  %436 = vst.msk [vmem:[%s381 + $0x2b9] sm:$0xff] %vm23, %v371
  %437 = vst.msk [vmem:[%s381 + $0x2c1] sm:$0xff] %vm23, %v372
  %438 = vst.msk [vmem:[%s381 + $0x2d1] sm:$0xff] %vm23, %v373
  %439 = vst.msk [vmem:[%s381 + $0x2d9] sm:$0xff] %vm23, %v374
  %440 = vst.msk [vmem:[%s381 + $0x2e9] sm:$0xff] %vm23, %v375
  %441 = vst.msk [vmem:[%s381 + $0x2f1] sm:$0xff] %vm23, %v376
  %442 = vst.msk [vmem:[%s381 + $0x301] sm:$0xff] %vm23, %v377
  %443 = vst.msk [vmem:[%s381 + $0x309] sm:$0xff] %vm23, %v378
  %444 = vst.msk [vmem:[%s381 + $0x319] sm:$0xff] %vm23, %v379
  %445 = vst.msk [vmem:[%s381 + $0x321] sm:$0xff] %vm23, %v380
  %v446 = vld [vmem:[#allocation2] sm:$0xff]
  %v447 = vld [vmem:[#allocation2 + $0x8] sm:$0xff]
  %v448 = vld [vmem:[#allocation2 + $0x10] sm:$0x3]
  %v449 = vld [vmem:[#allocation2 + $0x18] sm:$0xff]
  %v450 = vld [vmem:[#allocation2 + $0x20] sm:$0xff]
  %v451 = vld [vmem:[#allocation2 + $0x28] sm:$0x3]
  %v452 = vld [vmem:[#allocation2 + $0x30] sm:$0xff]
  %v453 = vld [vmem:[#allocation2 + $0x38] sm:$0xff]
  %v454 = vld [vmem:[#allocation2 + $0x40] sm:$0x3]
  %v455 = vld [vmem:[#allocation2 + $0x48] sm:$0xff]
  %v456 = vld [vmem:[#allocation2 + $0x50] sm:$0xff]
  %v457 = vld [vmem:[#allocation2 + $0x58] sm:$0x3]
  %v458 = vld [vmem:[#allocation2 + $0x60] sm:$0xff]
  %v459 = vld [vmem:[#allocation2 + $0x68] sm:$0xff]
  %v460 = vld [vmem:[#allocation2 + $0x70] sm:$0x3]
  %v461 = vld [vmem:[#allocation2 + $0x78] sm:$0xff]
  %v462 = vld [vmem:[#allocation2 + $0x80] sm:$0xff]
  %v463 = vld [vmem:[#allocation2 + $0x88] sm:$0x3]
  %v464 = vld [vmem:[#allocation2 + $0x90] sm:$0xff]
  %v465 = vld [vmem:[#allocation2 + $0x98] sm:$0xff]
  %v466 = vld [vmem:[#allocation2 + $0xa0] sm:$0x3]
  %v467 = vld [vmem:[#allocation2 + $0xa8] sm:$0xff]
  %v468 = vld [vmem:[#allocation2 + $0xb0] sm:$0xff]
  %v469 = vld [vmem:[#allocation2 + $0xb8] sm:$0x3]
  %v470 = vld [vmem:[#allocation2 + $0xc0] sm:$0xff]
  %v471 = vld [vmem:[#allocation2 + $0xc8] sm:$0xff]
  %v472 = vld [vmem:[#allocation2 + $0xd0] sm:$0x3]
  %v473 = vld [vmem:[#allocation2 + $0xd8] sm:$0xff]
  %v474 = vld [vmem:[#allocation2 + $0xe0] sm:$0xff]
  %v475 = vld [vmem:[#allocation2 + $0xe8] sm:$0x3]
  %v476 = vld [vmem:[#allocation2 + $0xf0] sm:$0xff]
  %v477 = vld [vmem:[#allocation2 + $0xf8] sm:$0xff]
  %v478 = vld [vmem:[#allocation2 + $0x100] sm:$0x3]
  %v479 = vld [vmem:[#allocation2 + $0x108] sm:$0xff]
  %v480 = vld [vmem:[#allocation2 + $0x110] sm:$0xff]
  %v481 = vld [vmem:[#allocation2 + $0x118] sm:$0x3]
  %v482 = vld [vmem:[#allocation2 + $0x120] sm:$0xff]
  %v483 = vld [vmem:[#allocation2 + $0x128] sm:$0xff]
  %v484 = vld [vmem:[#allocation2 + $0x130] sm:$0x3]
  %v485 = vld [vmem:[#allocation2 + $0x138] sm:$0xff]
  %v486 = vld [vmem:[#allocation2 + $0x140] sm:$0xff]
  %v487 = vld [vmem:[#allocation2 + $0x148] sm:$0x3]
  %v488 = vld [vmem:[#allocation2 + $0x150] sm:$0xff]
  %v489 = vld [vmem:[#allocation2 + $0x158] sm:$0xff]
  %v490 = vld [vmem:[#allocation2 + $0x160] sm:$0x3]
  %v491 = vld [vmem:[#allocation2 + $0x168] sm:$0xff]
  %v492 = vld [vmem:[#allocation2 + $0x170] sm:$0xff]
  %v493 = vld [vmem:[#allocation2 + $0x178] sm:$0x3]
  %v494 = vld [vmem:[#allocation2 + $0x180] sm:$0xff]
  %v495 = vld [vmem:[#allocation2 + $0x188] sm:$0xff]
  %v496 = vld [vmem:[#allocation2 + $0x190] sm:$0x3]
  %v497 = vld [vmem:[#allocation2 + $0x198] sm:$0xff]
  %v498 = vld [vmem:[#allocation2 + $0x1a0] sm:$0xff]
  %v499 = vld [vmem:[#allocation2 + $0x1a8] sm:$0x3]
  %v500 = vld [vmem:[#allocation2 + $0x1b0] sm:$0xff]
  %v501 = vld [vmem:[#allocation2 + $0x1b8] sm:$0xff]
  %v502 = vld [vmem:[#allocation2 + $0x1c0] sm:$0x3]
  %v503 = vld [vmem:[#allocation2 + $0x1c8] sm:$0xff]
  %v504 = vld [vmem:[#allocation2 + $0x1d0] sm:$0xff]
  %v505 = vld [vmem:[#allocation2 + $0x1d8] sm:$0x3]
  %v506 = vld [vmem:[#allocation2 + $0x1e0] sm:$0xff]
  %v507 = vld [vmem:[#allocation2 + $0x1e8] sm:$0xff]
  %v508 = vld [vmem:[#allocation2 + $0x1f0] sm:$0x3]
  %v509 = vld [vmem:[#allocation2 + $0x1f8] sm:$0xff]
  %v510 = vld [vmem:[#allocation2 + $0x200] sm:$0xff]
  %v511 = vld [vmem:[#allocation2 + $0x208] sm:$0x3]
  %v512 = vld [vmem:[#allocation2 + $0x210] sm:$0xff]
  %v513 = vld [vmem:[#allocation2 + $0x218] sm:$0xff]
  %v514 = vld [vmem:[#allocation2 + $0x220] sm:$0x3]
  %v515 = vld [vmem:[#allocation2 + $0x228] sm:$0xff]
  %v516 = vld [vmem:[#allocation2 + $0x230] sm:$0xff]
  %v517 = vld [vmem:[#allocation2 + $0x238] sm:$0x3]
  %v518 = vld [vmem:[#allocation2 + $0x240] sm:$0xff]
  %v519 = vld [vmem:[#allocation2 + $0x248] sm:$0xff]
  %v520 = vld [vmem:[#allocation2 + $0x250] sm:$0x3]
  %v521 = vld [vmem:[#allocation2 + $0x258] sm:$0xff]
  %v522 = vld [vmem:[#allocation2 + $0x260] sm:$0xff]
  %v523 = vld [vmem:[#allocation2 + $0x268] sm:$0x3]
  %v524 = vld [vmem:[#allocation2 + $0x270] sm:$0xff]
  %v525 = vld [vmem:[#allocation2 + $0x278] sm:$0xff]
  %v526 = vld [vmem:[#allocation2 + $0x280] sm:$0x3]
  %v527 = vld [vmem:[#allocation2 + $0x288] sm:$0xff]
  %v528 = vld [vmem:[#allocation2 + $0x290] sm:$0xff]
  %v529 = vld [vmem:[#allocation2 + $0x298] sm:$0x3]
  %v530 = vld [vmem:[#allocation2 + $0x2a0] sm:$0xff]
  %v531 = vld [vmem:[#allocation2 + $0x2a8] sm:$0xff]
  %v532 = vld [vmem:[#allocation2 + $0x2b0] sm:$0x3]
  %v533 = vld [vmem:[#allocation2 + $0x2b8] sm:$0xff]
  %v534 = vld [vmem:[#allocation2 + $0x2c0] sm:$0xff]
  %v535 = vld [vmem:[#allocation2 + $0x2c8] sm:$0x3]
  %v536 = vld [vmem:[#allocation2 + $0x2d0] sm:$0xff]
  %v537 = vld [vmem:[#allocation2 + $0x2d8] sm:$0xff]
  %v538 = vld [vmem:[#allocation2 + $0x2e0] sm:$0x3]
  %v539 = vld [vmem:[#allocation2 + $0x2e8] sm:$0xff]
  %v540 = vld [vmem:[#allocation2 + $0x2f0] sm:$0xff]
  %v541 = vld [vmem:[#allocation2 + $0x2f8] sm:$0x3]
  %v542 = vld [vmem:[#allocation2 + $0x300] sm:$0xff]
  %v543 = vld [vmem:[#allocation2 + $0x308] sm:$0xff]
  %v544 = vld [vmem:[#allocation2 + $0x310] sm:$0x3]
  %v545 = vld [vmem:[#allocation2 + $0x318] sm:$0xff]
  %v546 = vld [vmem:[#allocation2 + $0x320] sm:$0xff]
  %v547 = vld [vmem:[#allocation2 + $0x328] sm:$0x3]
  %v548 = vld [vmem:[#allocation2 + $0x330] sm:$0xff]
  %v549 = vld [vmem:[#allocation2 + $0x338] sm:$0xff]
  %v550 = vld [vmem:[#allocation2 + $0x340] sm:$0x3]
  %v551 = vld [vmem:[#allocation2 + $0x348] sm:$0xff]
  %v552 = vld [vmem:[#allocation2 + $0x350] sm:$0xff]
  %v553 = vld [vmem:[#allocation2 + $0x358] sm:$0x3]
  %v554 = vld [vmem:[%s3] sm:$0x1]
  %v555 = vld [vmem:[%s3 + $0x1] sm:$0x1]
  %v556 = vld [vmem:[%s3 + $0x2] sm:$0x1]
  %v557 = vld [vmem:[%s3 + $0x3] sm:$0x1]
  %v558 = vld [vmem:[%s3 + $0x4] sm:$0x1]
  %v559 = vld [vmem:[%s3 + $0x5] sm:$0x1]
  %v560 = vld [vmem:[%s3 + $0x6] sm:$0x1]
  %v561 = vld [vmem:[%s3 + $0x7] sm:$0x1]
  %v562 = vld [vmem:[%s3 + $0x8] sm:$0x1]
  %v564 = vlaneseq
  %v565 = vshrl.u32 %v564, 7
  %v566 = vsub.s32 0, %v565
  %v567 = vrot.slane %v554, %v566
  %v569 = vmul.f32 %v446, %v567
  %v570 = vmul.f32 %v447, %v567
  %v571 = vmul.f32 %v449, %v567
  %v572 = vmul.f32 %v450, %v567
  %v573 = vmul.f32 %v452, %v567
  %v574 = vmul.f32 %v453, %v567
  %v575 = vmul.f32 %v455, %v567
  %v576 = vmul.f32 %v456, %v567
  %v577 = vmul.f32 %v458, %v567
  %v578 = vmul.f32 %v459, %v567
  %v579 = vmul.f32 %v461, %v567
  %v580 = vmul.f32 %v462, %v567
  %v581 = vmul.f32 %v464, %v567
  %v582 = vmul.f32 %v465, %v567
  %v583 = vmul.f32 %v467, %v567
  %v584 = vmul.f32 %v468, %v567
  %v585 = vmul.f32 %v470, %v567
  %v586 = vmul.f32 %v471, %v567
  %v587 = vmul.f32 %v473, %v567
  %v588 = vmul.f32 %v474, %v567
  %v589 = vmul.f32 %v476, %v567
  %v590 = vmul.f32 %v477, %v567
  %v591 = vmul.f32 %v479, %v567
  %v592 = vmul.f32 %v480, %v567
  %v593 = vmul.f32 %v482, %v567
  %v594 = vmul.f32 %v483, %v567
  %v595 = vmul.f32 %v485, %v567
  %v596 = vmul.f32 %v486, %v567
  %v597 = vmul.f32 %v488, %v567
  %v598 = vmul.f32 %v489, %v567
  %v599 = vmul.f32 %v491, %v567
  %v600 = vmul.f32 %v492, %v567
  %v601 = vmul.f32 %v500, %v567
  %v602 = vmul.f32 %v501, %v567
  %v603 = vmul.f32 %v503, %v567
  %v604 = vmul.f32 %v504, %v567
  %v605 = vmul.f32 %v506, %v567
  %v606 = vmul.f32 %v507, %v567
  %v607 = vmul.f32 %v509, %v567
  %v608 = vmul.f32 %v510, %v567
  %v609 = vmul.f32 %v512, %v567
  %v610 = vmul.f32 %v513, %v567
  %v611 = vmul.f32 %v515, %v567
  %v612 = vmul.f32 %v516, %v567
  %v613 = vmul.f32 %v518, %v567
  %v614 = vmul.f32 %v519, %v567
  %v615 = vmul.f32 %v521, %v567
  %v616 = vmul.f32 %v522, %v567
  %v617 = vmul.f32 %v524, %v567
  %v618 = vmul.f32 %v525, %v567
  %v619 = vmul.f32 %v527, %v567
  %v620 = vmul.f32 %v528, %v567
  %v621 = vmul.f32 %v530, %v567
  %v622 = vmul.f32 %v531, %v567
  %v623 = vmul.f32 %v533, %v567
  %v624 = vmul.f32 %v534, %v567
  %v625 = vmul.f32 %v536, %v567
  %v626 = vmul.f32 %v537, %v567
  %v627 = vmul.f32 %v539, %v567
  %v628 = vmul.f32 %v540, %v567
  %v629 = vmul.f32 %v542, %v567
  %v630 = vmul.f32 %v543, %v567
  %v631 = vmul.f32 %v545, %v567
  %v632 = vmul.f32 %v546, %v567
  %v633 = vadd.f32 %v569, 0.0
  %v634 = vadd.f32 %v570, 0.0
  %v635 = vadd.f32 %v571, 0.0
  %v636 = vadd.f32 %v572, 0.0
  %v637 = vadd.f32 %v573, 0.0
  %v638 = vadd.f32 %v574, 0.0
  %v639 = vadd.f32 %v575, 0.0
  %v640 = vadd.f32 %v576, 0.0
  %v641 = vadd.f32 %v577, 0.0
  %v642 = vadd.f32 %v578, 0.0
  %v643 = vadd.f32 %v579, 0.0
  %v644 = vadd.f32 %v580, 0.0
  %v645 = vadd.f32 %v581, 0.0
  %v646 = vadd.f32 %v582, 0.0
  %v647 = vadd.f32 %v583, 0.0
  %v648 = vadd.f32 %v584, 0.0
  %v649 = vadd.f32 %v585, 0.0
  %v650 = vadd.f32 %v586, 0.0
  %v651 = vadd.f32 %v587, 0.0
  %v652 = vadd.f32 %v588, 0.0
  %v653 = vadd.f32 %v589, 0.0
  %v654 = vadd.f32 %v590, 0.0
  %v655 = vadd.f32 %v591, 0.0
  %v656 = vadd.f32 %v592, 0.0
  %v657 = vadd.f32 %v593, 0.0
  %v658 = vadd.f32 %v594, 0.0
  %v659 = vadd.f32 %v595, 0.0
  %v660 = vadd.f32 %v596, 0.0
  %v661 = vadd.f32 %v597, 0.0
  %v662 = vadd.f32 %v598, 0.0
  %v663 = vadd.f32 %v599, 0.0
  %v664 = vadd.f32 %v600, 0.0
  %v665 = vadd.f32 %v601, 0.0
  %v666 = vadd.f32 %v602, 0.0
  %v667 = vadd.f32 %v603, 0.0
  %v668 = vadd.f32 %v604, 0.0
  %v669 = vadd.f32 %v605, 0.0
  %v670 = vadd.f32 %v606, 0.0
  %v671 = vadd.f32 %v607, 0.0
  %v672 = vadd.f32 %v608, 0.0
  %v673 = vadd.f32 %v609, 0.0
  %v674 = vadd.f32 %v610, 0.0
  %v675 = vadd.f32 %v611, 0.0
  %v676 = vadd.f32 %v612, 0.0
  %v677 = vadd.f32 %v613, 0.0
  %v678 = vadd.f32 %v614, 0.0
  %v679 = vadd.f32 %v615, 0.0
  %v680 = vadd.f32 %v616, 0.0
  %v681 = vadd.f32 %v617, 0.0
  %v682 = vadd.f32 %v618, 0.0
  %v683 = vadd.f32 %v619, 0.0
  %v684 = vadd.f32 %v620, 0.0
  %v685 = vadd.f32 %v621, 0.0
  %v686 = vadd.f32 %v622, 0.0
  %v687 = vadd.f32 %v623, 0.0
  %v688 = vadd.f32 %v624, 0.0
  %v689 = vadd.f32 %v625, 0.0
  %v690 = vadd.f32 %v626, 0.0
  %v691 = vadd.f32 %v627, 0.0
  %v692 = vadd.f32 %v628, 0.0
  %v693 = vadd.f32 %v629, 0.0
  %v694 = vadd.f32 %v630, 0.0
  %v695 = vadd.f32 %v631, 0.0
  %v696 = vadd.f32 %v632, 0.0
  %v698 = vlaneseq
  %v699 = vshrl.u32 %v698, 7
  %v700 = vsub.s32 0, %v699
  %v701 = vrot.slane %v555, %v700
  %v703 = vmul.f32 %v446, %v701
  %v704 = vmul.f32 %v447, %v701
  %v705 = vmul.f32 %v448, %v701
  %v706 = vmul.f32 %v449, %v701
  %v707 = vmul.f32 %v450, %v701
  %v708 = vmul.f32 %v451, %v701
  %v709 = vmul.f32 %v452, %v701
  %v710 = vmul.f32 %v453, %v701
  %v711 = vmul.f32 %v454, %v701
  %v712 = vmul.f32 %v455, %v701
  %v713 = vmul.f32 %v456, %v701
  %v714 = vmul.f32 %v457, %v701
  %v715 = vmul.f32 %v458, %v701
  %v716 = vmul.f32 %v459, %v701
  %v717 = vmul.f32 %v460, %v701
  %v718 = vmul.f32 %v461, %v701
  %v719 = vmul.f32 %v462, %v701
  %v720 = vmul.f32 %v463, %v701
  %v721 = vmul.f32 %v464, %v701
  %v722 = vmul.f32 %v465, %v701
  %v723 = vmul.f32 %v466, %v701
  %v724 = vmul.f32 %v467, %v701
  %v725 = vmul.f32 %v468, %v701
  %v726 = vmul.f32 %v469, %v701
  %v727 = vmul.f32 %v470, %v701
  %v728 = vmul.f32 %v471, %v701
  %v729 = vmul.f32 %v472, %v701
  %v730 = vmul.f32 %v473, %v701
  %v731 = vmul.f32 %v474, %v701
  %v732 = vmul.f32 %v475, %v701
  %v733 = vmul.f32 %v476, %v701
  %v734 = vmul.f32 %v477, %v701
  %v735 = vmul.f32 %v478, %v701
  %v736 = vmul.f32 %v479, %v701
  %v737 = vmul.f32 %v480, %v701
  %v738 = vmul.f32 %v481, %v701
  %v739 = vmul.f32 %v482, %v701
  %v740 = vmul.f32 %v483, %v701
  %v741 = vmul.f32 %v484, %v701
  %v742 = vmul.f32 %v485, %v701
  %v743 = vmul.f32 %v486, %v701
  %v744 = vmul.f32 %v487, %v701
  %v745 = vmul.f32 %v488, %v701
  %v746 = vmul.f32 %v489, %v701
  %v747 = vmul.f32 %v490, %v701
  %v748 = vmul.f32 %v491, %v701
  %v749 = vmul.f32 %v492, %v701
  %v750 = vmul.f32 %v493, %v701
  %v751 = vmul.f32 %v500, %v701
  %v752 = vmul.f32 %v501, %v701
  %v753 = vmul.f32 %v502, %v701
  %v754 = vmul.f32 %v503, %v701
  %v755 = vmul.f32 %v504, %v701
  %v756 = vmul.f32 %v505, %v701
  %v757 = vmul.f32 %v506, %v701
  %v758 = vmul.f32 %v507, %v701
  %v759 = vmul.f32 %v508, %v701
  %v760 = vmul.f32 %v509, %v701
  %v761 = vmul.f32 %v510, %v701
  %v762 = vmul.f32 %v511, %v701
  %v763 = vmul.f32 %v512, %v701
  %v764 = vmul.f32 %v513, %v701
  %v765 = vmul.f32 %v514, %v701
  %v766 = vmul.f32 %v515, %v701
  %v767 = vmul.f32 %v516, %v701
  %v768 = vmul.f32 %v517, %v701
  %v769 = vmul.f32 %v518, %v701
  %v770 = vmul.f32 %v519, %v701
  %v771 = vmul.f32 %v520, %v701
  %v772 = vmul.f32 %v521, %v701
  %v773 = vmul.f32 %v522, %v701
  %v774 = vmul.f32 %v523, %v701
  %v775 = vmul.f32 %v524, %v701
  %v776 = vmul.f32 %v525, %v701
  %v777 = vmul.f32 %v526, %v701
  %v778 = vmul.f32 %v527, %v701
  %v779 = vmul.f32 %v528, %v701
  %v780 = vmul.f32 %v529, %v701
  %v781 = vmul.f32 %v530, %v701
  %v782 = vmul.f32 %v531, %v701
  %v783 = vmul.f32 %v532, %v701
  %v784 = vmul.f32 %v533, %v701
  %v785 = vmul.f32 %v534, %v701
  %v786 = vmul.f32 %v535, %v701
  %v787 = vmul.f32 %v536, %v701
  %v788 = vmul.f32 %v537, %v701
  %v789 = vmul.f32 %v538, %v701
  %v790 = vmul.f32 %v539, %v701
  %v791 = vmul.f32 %v540, %v701
  %v792 = vmul.f32 %v541, %v701
  %v793 = vmul.f32 %v542, %v701
  %v794 = vmul.f32 %v543, %v701
  %v795 = vmul.f32 %v544, %v701
  %v796 = vmul.f32 %v545, %v701
  %v797 = vmul.f32 %v546, %v701
  %v798 = vmul.f32 %v547, %v701
  %vm895 = vcmask 1046528
  %v896 = vrot.slane %v703, 1
  %v897 = vrot.slane %v704, 1
  %v898 = vsel %vm895, %v896, %v897
  %v899 = vrot.slane %v705, 1
  %v900 = vsel %vm895, %v897, %v899
  %v901 = vrot.slane %v706, 1
  %v902 = vrot.slane %v707, 1
  %v903 = vsel %vm895, %v901, %v902
  %v904 = vrot.slane %v708, 1
  %v905 = vsel %vm895, %v902, %v904
  %v906 = vrot.slane %v709, 1
  %v907 = vrot.slane %v710, 1
  %v908 = vsel %vm895, %v906, %v907
  %v909 = vrot.slane %v711, 1
  %v910 = vsel %vm895, %v907, %v909
  %v911 = vrot.slane %v712, 1
  %v912 = vrot.slane %v713, 1
  %v913 = vsel %vm895, %v911, %v912
  %v914 = vrot.slane %v714, 1
  %v915 = vsel %vm895, %v912, %v914
  %v916 = vrot.slane %v715, 1
  %v917 = vrot.slane %v716, 1
  %v918 = vsel %vm895, %v916, %v917
  %v919 = vrot.slane %v717, 1
  %v920 = vsel %vm895, %v917, %v919
  %v921 = vrot.slane %v718, 1
  %v922 = vrot.slane %v719, 1
  %v923 = vsel %vm895, %v921, %v922
  %v924 = vrot.slane %v720, 1
  %v925 = vsel %vm895, %v922, %v924
  %v926 = vrot.slane %v721, 1
  %v927 = vrot.slane %v722, 1
  %v928 = vsel %vm895, %v926, %v927
  %v929 = vrot.slane %v723, 1
  %v930 = vsel %vm895, %v927, %v929
  %v931 = vrot.slane %v724, 1
  %v932 = vrot.slane %v725, 1
  %v933 = vsel %vm895, %v931, %v932
  %v934 = vrot.slane %v726, 1
  %v935 = vsel %vm895, %v932, %v934
  %v936 = vrot.slane %v727, 1
  %v937 = vrot.slane %v728, 1
  %v938 = vsel %vm895, %v936, %v937
  %v939 = vrot.slane %v729, 1
  %v940 = vsel %vm895, %v937, %v939
  %v941 = vrot.slane %v730, 1
  %v942 = vrot.slane %v731, 1
  %v943 = vsel %vm895, %v941, %v942
  %v944 = vrot.slane %v732, 1
  %v945 = vsel %vm895, %v942, %v944
  %v946 = vrot.slane %v733, 1
  %v947 = vrot.slane %v734, 1
  %v948 = vsel %vm895, %v946, %v947
  %v949 = vrot.slane %v735, 1
  %v950 = vsel %vm895, %v947, %v949
  %v951 = vrot.slane %v736, 1
  %v952 = vrot.slane %v737, 1
  %v953 = vsel %vm895, %v951, %v952
  %v954 = vrot.slane %v738, 1
  %v955 = vsel %vm895, %v952, %v954
  %v956 = vrot.slane %v739, 1
  %v957 = vrot.slane %v740, 1
  %v958 = vsel %vm895, %v956, %v957
  %v959 = vrot.slane %v741, 1
  %v960 = vsel %vm895, %v957, %v959
  %v961 = vrot.slane %v742, 1
  %v962 = vrot.slane %v743, 1
  %v963 = vsel %vm895, %v961, %v962
  %v964 = vrot.slane %v744, 1
  %v965 = vsel %vm895, %v962, %v964
  %v966 = vrot.slane %v745, 1
  %v967 = vrot.slane %v746, 1
  %v968 = vsel %vm895, %v966, %v967
  %v969 = vrot.slane %v747, 1
  %v970 = vsel %vm895, %v967, %v969
  %v971 = vrot.slane %v748, 1
  %v972 = vrot.slane %v749, 1
  %v973 = vsel %vm895, %v971, %v972
  %v974 = vrot.slane %v750, 1
  %v975 = vsel %vm895, %v972, %v974
  %v976 = vrot.slane %v751, 1
  %v977 = vrot.slane %v752, 1
  %v978 = vsel %vm895, %v976, %v977
  %v979 = vrot.slane %v753, 1
  %v980 = vsel %vm895, %v977, %v979
  %v981 = vrot.slane %v754, 1
  %v982 = vrot.slane %v755, 1
  %v983 = vsel %vm895, %v981, %v982
  %v984 = vrot.slane %v756, 1
  %v985 = vsel %vm895, %v982, %v984
  %v986 = vrot.slane %v757, 1
  %v987 = vrot.slane %v758, 1
  %v988 = vsel %vm895, %v986, %v987
  %v989 = vrot.slane %v759, 1
  %v990 = vsel %vm895, %v987, %v989
  %v991 = vrot.slane %v760, 1
  %v992 = vrot.slane %v761, 1
  %v993 = vsel %vm895, %v991, %v992
  %v994 = vrot.slane %v762, 1
  %v995 = vsel %vm895, %v992, %v994
  %v996 = vrot.slane %v763, 1
  %v997 = vrot.slane %v764, 1
  %v998 = vsel %vm895, %v996, %v997
  %v999 = vrot.slane %v765, 1
  %v1000 = vsel %vm895, %v997, %v999
  %v1001 = vrot.slane %v766, 1
  %v1002 = vrot.slane %v767, 1
  %v1003 = vsel %vm895, %v1001, %v1002
  %v1004 = vrot.slane %v768, 1
  %v1005 = vsel %vm895, %v1002, %v1004
  %v1006 = vrot.slane %v769, 1
  %v1007 = vrot.slane %v770, 1
  %v1008 = vsel %vm895, %v1006, %v1007
  %v1009 = vrot.slane %v771, 1
  %v1010 = vsel %vm895, %v1007, %v1009
  %v1011 = vrot.slane %v772, 1
  %v1012 = vrot.slane %v773, 1
  %v1013 = vsel %vm895, %v1011, %v1012
  %v1014 = vrot.slane %v774, 1
  %v1015 = vsel %vm895, %v1012, %v1014
  %v1016 = vrot.slane %v775, 1
  %v1017 = vrot.slane %v776, 1
  %v1018 = vsel %vm895, %v1016, %v1017
  %v1019 = vrot.slane %v777, 1
  %v1020 = vsel %vm895, %v1017, %v1019
  %v1021 = vrot.slane %v778, 1
  %v1022 = vrot.slane %v779, 1
  %v1023 = vsel %vm895, %v1021, %v1022
  %v1024 = vrot.slane %v780, 1
  %v1025 = vsel %vm895, %v1022, %v1024
  %v1026 = vrot.slane %v781, 1
  %v1027 = vrot.slane %v782, 1
  %v1028 = vsel %vm895, %v1026, %v1027
  %v1029 = vrot.slane %v783, 1
  %v1030 = vsel %vm895, %v1027, %v1029
  %v1031 = vrot.slane %v784, 1
  %v1032 = vrot.slane %v785, 1
  %v1033 = vsel %vm895, %v1031, %v1032
  %v1034 = vrot.slane %v786, 1
  %v1035 = vsel %vm895, %v1032, %v1034
  %v1036 = vrot.slane %v787, 1
  %v1037 = vrot.slane %v788, 1
  %v1038 = vsel %vm895, %v1036, %v1037
  %v1039 = vrot.slane %v789, 1
  %v1040 = vsel %vm895, %v1037, %v1039
  %v1041 = vrot.slane %v790, 1
  %v1042 = vrot.slane %v791, 1
  %v1043 = vsel %vm895, %v1041, %v1042
  %v1044 = vrot.slane %v792, 1
  %v1045 = vsel %vm895, %v1042, %v1044
  %v1046 = vrot.slane %v793, 1
  %v1047 = vrot.slane %v794, 1
  %v1048 = vsel %vm895, %v1046, %v1047
  %v1049 = vrot.slane %v795, 1
  %v1050 = vsel %vm895, %v1047, %v1049
  %v1051 = vrot.slane %v796, 1
  %v1052 = vrot.slane %v797, 1
  %v1053 = vsel %vm895, %v1051, %v1052
  %v1054 = vrot.slane %v798, 1
  %v1055 = vsel %vm895, %v1052, %v1054
  %v1120 = vadd.f32 %v633, %v898
  %v1121 = vadd.f32 %v634, %v900
  %v1122 = vadd.f32 %v635, %v903
  %v1123 = vadd.f32 %v636, %v905
  %v1124 = vadd.f32 %v637, %v908
  %v1125 = vadd.f32 %v638, %v910
  %v1126 = vadd.f32 %v639, %v913
  %v1127 = vadd.f32 %v640, %v915
  %v1128 = vadd.f32 %v641, %v918
  %v1129 = vadd.f32 %v642, %v920
  %v1130 = vadd.f32 %v643, %v923
  %v1131 = vadd.f32 %v644, %v925
  %v1132 = vadd.f32 %v645, %v928
  %v1133 = vadd.f32 %v646, %v930
  %v1134 = vadd.f32 %v647, %v933
  %v1135 = vadd.f32 %v648, %v935
  %v1136 = vadd.f32 %v649, %v938
  %v1137 = vadd.f32 %v650, %v940
  %v1138 = vadd.f32 %v651, %v943
  %v1139 = vadd.f32 %v652, %v945
  %v1140 = vadd.f32 %v653, %v948
  %v1141 = vadd.f32 %v654, %v950
  %v1142 = vadd.f32 %v655, %v953
  %v1143 = vadd.f32 %v656, %v955
  %v1144 = vadd.f32 %v657, %v958
  %v1145 = vadd.f32 %v658, %v960
  %v1146 = vadd.f32 %v659, %v963
  %v1147 = vadd.f32 %v660, %v965
  %v1148 = vadd.f32 %v661, %v968
  %v1149 = vadd.f32 %v662, %v970
  %v1150 = vadd.f32 %v663, %v973
  %v1151 = vadd.f32 %v664, %v975
  %v1152 = vadd.f32 %v665, %v978
  %v1153 = vadd.f32 %v666, %v980
  %v1154 = vadd.f32 %v667, %v983
  %v1155 = vadd.f32 %v668, %v985
  %v1156 = vadd.f32 %v669, %v988
  %v1157 = vadd.f32 %v670, %v990
  %v1158 = vadd.f32 %v671, %v993
  %v1159 = vadd.f32 %v672, %v995
  %v1160 = vadd.f32 %v673, %v998
  %v1161 = vadd.f32 %v674, %v1000
  %v1162 = vadd.f32 %v675, %v1003
  %v1163 = vadd.f32 %v676, %v1005
  %v1164 = vadd.f32 %v677, %v1008
  %v1165 = vadd.f32 %v678, %v1010
  %v1166 = vadd.f32 %v679, %v1013
  %v1167 = vadd.f32 %v680, %v1015
  %v1168 = vadd.f32 %v681, %v1018
  %v1169 = vadd.f32 %v682, %v1020
  %v1170 = vadd.f32 %v683, %v1023
  %v1171 = vadd.f32 %v684, %v1025
  %v1172 = vadd.f32 %v685, %v1028
  %v1173 = vadd.f32 %v686, %v1030
  %v1174 = vadd.f32 %v687, %v1033
  %v1175 = vadd.f32 %v688, %v1035
  %v1176 = vadd.f32 %v689, %v1038
  %v1177 = vadd.f32 %v690, %v1040
  %v1178 = vadd.f32 %v691, %v1043
  %v1179 = vadd.f32 %v692, %v1045
  %v1180 = vadd.f32 %v693, %v1048
  %v1181 = vadd.f32 %v694, %v1050
  %v1182 = vadd.f32 %v695, %v1053
  %v1183 = vadd.f32 %v696, %v1055
  %v1185 = vlaneseq
  %v1186 = vshrl.u32 %v1185, 7
  %v1187 = vsub.s32 0, %v1186
  %v1188 = vrot.slane %v556, %v1187
  %v1190 = vmul.f32 %v446, %v1188
  %v1191 = vmul.f32 %v447, %v1188
  %v1192 = vmul.f32 %v448, %v1188
  %v1193 = vmul.f32 %v449, %v1188
  %v1194 = vmul.f32 %v450, %v1188
  %v1195 = vmul.f32 %v451, %v1188
  %v1196 = vmul.f32 %v452, %v1188
  %v1197 = vmul.f32 %v453, %v1188
  %v1198 = vmul.f32 %v454, %v1188
  %v1199 = vmul.f32 %v455, %v1188
  %v1200 = vmul.f32 %v456, %v1188
  %v1201 = vmul.f32 %v457, %v1188
  %v1202 = vmul.f32 %v458, %v1188
  %v1203 = vmul.f32 %v459, %v1188
  %v1204 = vmul.f32 %v460, %v1188
  %v1205 = vmul.f32 %v461, %v1188
  %v1206 = vmul.f32 %v462, %v1188
  %v1207 = vmul.f32 %v463, %v1188
  %v1208 = vmul.f32 %v464, %v1188
  %v1209 = vmul.f32 %v465, %v1188
  %v1210 = vmul.f32 %v466, %v1188
  %v1211 = vmul.f32 %v467, %v1188
  %v1212 = vmul.f32 %v468, %v1188
  %v1213 = vmul.f32 %v469, %v1188
  %v1214 = vmul.f32 %v470, %v1188
  %v1215 = vmul.f32 %v471, %v1188
  %v1216 = vmul.f32 %v472, %v1188
  %v1217 = vmul.f32 %v473, %v1188
  %v1218 = vmul.f32 %v474, %v1188
  %v1219 = vmul.f32 %v475, %v1188
  %v1220 = vmul.f32 %v476, %v1188
  %v1221 = vmul.f32 %v477, %v1188
  %v1222 = vmul.f32 %v478, %v1188
  %v1223 = vmul.f32 %v479, %v1188
  %v1224 = vmul.f32 %v480, %v1188
  %v1225 = vmul.f32 %v481, %v1188
  %v1226 = vmul.f32 %v482, %v1188
  %v1227 = vmul.f32 %v483, %v1188
  %v1228 = vmul.f32 %v484, %v1188
  %v1229 = vmul.f32 %v485, %v1188
  %v1230 = vmul.f32 %v486, %v1188
  %v1231 = vmul.f32 %v487, %v1188
  %v1232 = vmul.f32 %v488, %v1188
  %v1233 = vmul.f32 %v489, %v1188
  %v1234 = vmul.f32 %v490, %v1188
  %v1235 = vmul.f32 %v491, %v1188
  %v1236 = vmul.f32 %v492, %v1188
  %v1237 = vmul.f32 %v493, %v1188
  %v1238 = vmul.f32 %v500, %v1188
  %v1239 = vmul.f32 %v501, %v1188
  %v1240 = vmul.f32 %v502, %v1188
  %v1241 = vmul.f32 %v503, %v1188
  %v1242 = vmul.f32 %v504, %v1188
  %v1243 = vmul.f32 %v505, %v1188
  %v1244 = vmul.f32 %v506, %v1188
  %v1245 = vmul.f32 %v507, %v1188
  %v1246 = vmul.f32 %v508, %v1188
  %v1247 = vmul.f32 %v509, %v1188
  %v1248 = vmul.f32 %v510, %v1188
  %v1249 = vmul.f32 %v511, %v1188
  %v1250 = vmul.f32 %v512, %v1188
  %v1251 = vmul.f32 %v513, %v1188
  %v1252 = vmul.f32 %v514, %v1188
  %v1253 = vmul.f32 %v515, %v1188
  %v1254 = vmul.f32 %v516, %v1188
  %v1255 = vmul.f32 %v517, %v1188
  %v1256 = vmul.f32 %v518, %v1188
  %v1257 = vmul.f32 %v519, %v1188
  %v1258 = vmul.f32 %v520, %v1188
  %v1259 = vmul.f32 %v521, %v1188
  %v1260 = vmul.f32 %v522, %v1188
  %v1261 = vmul.f32 %v523, %v1188
  %v1262 = vmul.f32 %v524, %v1188
  %v1263 = vmul.f32 %v525, %v1188
  %v1264 = vmul.f32 %v526, %v1188
  %v1265 = vmul.f32 %v527, %v1188
  %v1266 = vmul.f32 %v528, %v1188
  %v1267 = vmul.f32 %v529, %v1188
  %v1268 = vmul.f32 %v530, %v1188
  %v1269 = vmul.f32 %v531, %v1188
  %v1270 = vmul.f32 %v532, %v1188
  %v1271 = vmul.f32 %v533, %v1188
  %v1272 = vmul.f32 %v534, %v1188
  %v1273 = vmul.f32 %v535, %v1188
  %v1274 = vmul.f32 %v536, %v1188
  %v1275 = vmul.f32 %v537, %v1188
  %v1276 = vmul.f32 %v538, %v1188
  %v1277 = vmul.f32 %v539, %v1188
  %v1278 = vmul.f32 %v540, %v1188
  %v1279 = vmul.f32 %v541, %v1188
  %v1280 = vmul.f32 %v542, %v1188
  %v1281 = vmul.f32 %v543, %v1188
  %v1282 = vmul.f32 %v544, %v1188
  %v1283 = vmul.f32 %v545, %v1188
  %v1284 = vmul.f32 %v546, %v1188
  %v1285 = vmul.f32 %v547, %v1188
  %vm1382 = vcmask 1045504
  %v1383 = vrot.slane %v1190, 2
  %v1384 = vrot.slane %v1191, 2
  %v1385 = vsel %vm1382, %v1383, %v1384
  %v1386 = vrot.slane %v1192, 2
  %v1387 = vsel %vm1382, %v1384, %v1386
  %v1388 = vrot.slane %v1193, 2
  %v1389 = vrot.slane %v1194, 2
  %v1390 = vsel %vm1382, %v1388, %v1389
  %v1391 = vrot.slane %v1195, 2
  %v1392 = vsel %vm1382, %v1389, %v1391
  %v1393 = vrot.slane %v1196, 2
  %v1394 = vrot.slane %v1197, 2
  %v1395 = vsel %vm1382, %v1393, %v1394
  %v1396 = vrot.slane %v1198, 2
  %v1397 = vsel %vm1382, %v1394, %v1396
  %v1398 = vrot.slane %v1199, 2
  %v1399 = vrot.slane %v1200, 2
  %v1400 = vsel %vm1382, %v1398, %v1399
  %v1401 = vrot.slane %v1201, 2
  %v1402 = vsel %vm1382, %v1399, %v1401
  %v1403 = vrot.slane %v1202, 2
  %v1404 = vrot.slane %v1203, 2
  %v1405 = vsel %vm1382, %v1403, %v1404
  %v1406 = vrot.slane %v1204, 2
  %v1407 = vsel %vm1382, %v1404, %v1406
  %v1408 = vrot.slane %v1205, 2
  %v1409 = vrot.slane %v1206, 2
  %v1410 = vsel %vm1382, %v1408, %v1409
  %v1411 = vrot.slane %v1207, 2
  %v1412 = vsel %vm1382, %v1409, %v1411
  %v1413 = vrot.slane %v1208, 2
  %v1414 = vrot.slane %v1209, 2
  %v1415 = vsel %vm1382, %v1413, %v1414
  %v1416 = vrot.slane %v1210, 2
  %v1417 = vsel %vm1382, %v1414, %v1416
  %v1418 = vrot.slane %v1211, 2
  %v1419 = vrot.slane %v1212, 2
  %v1420 = vsel %vm1382, %v1418, %v1419
  %v1421 = vrot.slane %v1213, 2
  %v1422 = vsel %vm1382, %v1419, %v1421
  %v1423 = vrot.slane %v1214, 2
  %v1424 = vrot.slane %v1215, 2
  %v1425 = vsel %vm1382, %v1423, %v1424
  %v1426 = vrot.slane %v1216, 2
  %v1427 = vsel %vm1382, %v1424, %v1426
  %v1428 = vrot.slane %v1217, 2
  %v1429 = vrot.slane %v1218, 2
  %v1430 = vsel %vm1382, %v1428, %v1429
  %v1431 = vrot.slane %v1219, 2
  %v1432 = vsel %vm1382, %v1429, %v1431
  %v1433 = vrot.slane %v1220, 2
  %v1434 = vrot.slane %v1221, 2
  %v1435 = vsel %vm1382, %v1433, %v1434
  %v1436 = vrot.slane %v1222, 2
  %v1437 = vsel %vm1382, %v1434, %v1436
  %v1438 = vrot.slane %v1223, 2
  %v1439 = vrot.slane %v1224, 2
  %v1440 = vsel %vm1382, %v1438, %v1439
  %v1441 = vrot.slane %v1225, 2
  %v1442 = vsel %vm1382, %v1439, %v1441
  %v1443 = vrot.slane %v1226, 2
  %v1444 = vrot.slane %v1227, 2
  %v1445 = vsel %vm1382, %v1443, %v1444
  %v1446 = vrot.slane %v1228, 2
  %v1447 = vsel %vm1382, %v1444, %v1446
  %v1448 = vrot.slane %v1229, 2
  %v1449 = vrot.slane %v1230, 2
  %v1450 = vsel %vm1382, %v1448, %v1449
  %v1451 = vrot.slane %v1231, 2
  %v1452 = vsel %vm1382, %v1449, %v1451
  %v1453 = vrot.slane %v1232, 2
  %v1454 = vrot.slane %v1233, 2
  %v1455 = vsel %vm1382, %v1453, %v1454
  %v1456 = vrot.slane %v1234, 2
  %v1457 = vsel %vm1382, %v1454, %v1456
  %v1458 = vrot.slane %v1235, 2
  %v1459 = vrot.slane %v1236, 2
  %v1460 = vsel %vm1382, %v1458, %v1459
  %v1461 = vrot.slane %v1237, 2
  %v1462 = vsel %vm1382, %v1459, %v1461
  %v1463 = vrot.slane %v1238, 2
  %v1464 = vrot.slane %v1239, 2
  %v1465 = vsel %vm1382, %v1463, %v1464
  %v1466 = vrot.slane %v1240, 2
  %v1467 = vsel %vm1382, %v1464, %v1466
  %v1468 = vrot.slane %v1241, 2
  %v1469 = vrot.slane %v1242, 2
  %v1470 = vsel %vm1382, %v1468, %v1469
  %v1471 = vrot.slane %v1243, 2
  %v1472 = vsel %vm1382, %v1469, %v1471
  %v1473 = vrot.slane %v1244, 2
  %v1474 = vrot.slane %v1245, 2
  %v1475 = vsel %vm1382, %v1473, %v1474
  %v1476 = vrot.slane %v1246, 2
  %v1477 = vsel %vm1382, %v1474, %v1476
  %v1478 = vrot.slane %v1247, 2
  %v1479 = vrot.slane %v1248, 2
  %v1480 = vsel %vm1382, %v1478, %v1479
  %v1481 = vrot.slane %v1249, 2
  %v1482 = vsel %vm1382, %v1479, %v1481
  %v1483 = vrot.slane %v1250, 2
  %v1484 = vrot.slane %v1251, 2
  %v1485 = vsel %vm1382, %v1483, %v1484
  %v1486 = vrot.slane %v1252, 2
  %v1487 = vsel %vm1382, %v1484, %v1486
  %v1488 = vrot.slane %v1253, 2
  %v1489 = vrot.slane %v1254, 2
  %v1490 = vsel %vm1382, %v1488, %v1489
  %v1491 = vrot.slane %v1255, 2
  %v1492 = vsel %vm1382, %v1489, %v1491
  %v1493 = vrot.slane %v1256, 2
  %v1494 = vrot.slane %v1257, 2
  %v1495 = vsel %vm1382, %v1493, %v1494
  %v1496 = vrot.slane %v1258, 2
  %v1497 = vsel %vm1382, %v1494, %v1496
  %v1498 = vrot.slane %v1259, 2
  %v1499 = vrot.slane %v1260, 2
  %v1500 = vsel %vm1382, %v1498, %v1499
  %v1501 = vrot.slane %v1261, 2
  %v1502 = vsel %vm1382, %v1499, %v1501
  %v1503 = vrot.slane %v1262, 2
  %v1504 = vrot.slane %v1263, 2
  %v1505 = vsel %vm1382, %v1503, %v1504
  %v1506 = vrot.slane %v1264, 2
  %v1507 = vsel %vm1382, %v1504, %v1506
  %v1508 = vrot.slane %v1265, 2
  %v1509 = vrot.slane %v1266, 2
  %v1510 = vsel %vm1382, %v1508, %v1509
  %v1511 = vrot.slane %v1267, 2
  %v1512 = vsel %vm1382, %v1509, %v1511
  %v1513 = vrot.slane %v1268, 2
  %v1514 = vrot.slane %v1269, 2
  %v1515 = vsel %vm1382, %v1513, %v1514
  %v1516 = vrot.slane %v1270, 2
  %v1517 = vsel %vm1382, %v1514, %v1516
  %v1518 = vrot.slane %v1271, 2
  %v1519 = vrot.slane %v1272, 2
  %v1520 = vsel %vm1382, %v1518, %v1519
  %v1521 = vrot.slane %v1273, 2
  %v1522 = vsel %vm1382, %v1519, %v1521
  %v1523 = vrot.slane %v1274, 2
  %v1524 = vrot.slane %v1275, 2
  %v1525 = vsel %vm1382, %v1523, %v1524
  %v1526 = vrot.slane %v1276, 2
  %v1527 = vsel %vm1382, %v1524, %v1526
  %v1528 = vrot.slane %v1277, 2
  %v1529 = vrot.slane %v1278, 2
  %v1530 = vsel %vm1382, %v1528, %v1529
  %v1531 = vrot.slane %v1279, 2
  %v1532 = vsel %vm1382, %v1529, %v1531
  %v1533 = vrot.slane %v1280, 2
  %v1534 = vrot.slane %v1281, 2
  %v1535 = vsel %vm1382, %v1533, %v1534
  %v1536 = vrot.slane %v1282, 2
  %v1537 = vsel %vm1382, %v1534, %v1536
  %v1538 = vrot.slane %v1283, 2
  %v1539 = vrot.slane %v1284, 2
  %v1540 = vsel %vm1382, %v1538, %v1539
  %v1541 = vrot.slane %v1285, 2
  %v1542 = vsel %vm1382, %v1539, %v1541
  %v1607 = vadd.f32 %v1120, %v1385
  %v1608 = vadd.f32 %v1121, %v1387
  %v1609 = vadd.f32 %v1122, %v1390
  %v1610 = vadd.f32 %v1123, %v1392
  %v1611 = vadd.f32 %v1124, %v1395
  %v1612 = vadd.f32 %v1125, %v1397
  %v1613 = vadd.f32 %v1126, %v1400
  %v1614 = vadd.f32 %v1127, %v1402
  %v1615 = vadd.f32 %v1128, %v1405
  %v1616 = vadd.f32 %v1129, %v1407
  %v1617 = vadd.f32 %v1130, %v1410
  %v1618 = vadd.f32 %v1131, %v1412
  %v1619 = vadd.f32 %v1132, %v1415
  %v1620 = vadd.f32 %v1133, %v1417
  %v1621 = vadd.f32 %v1134, %v1420
  %v1622 = vadd.f32 %v1135, %v1422
  %v1623 = vadd.f32 %v1136, %v1425
  %v1624 = vadd.f32 %v1137, %v1427
  %v1625 = vadd.f32 %v1138, %v1430
  %v1626 = vadd.f32 %v1139, %v1432
  %v1627 = vadd.f32 %v1140, %v1435
  %v1628 = vadd.f32 %v1141, %v1437
  %v1629 = vadd.f32 %v1142, %v1440
  %v1630 = vadd.f32 %v1143, %v1442
  %v1631 = vadd.f32 %v1144, %v1445
  %v1632 = vadd.f32 %v1145, %v1447
  %v1633 = vadd.f32 %v1146, %v1450
  %v1634 = vadd.f32 %v1147, %v1452
  %v1635 = vadd.f32 %v1148, %v1455
  %v1636 = vadd.f32 %v1149, %v1457
  %v1637 = vadd.f32 %v1150, %v1460
  %v1638 = vadd.f32 %v1151, %v1462
  %v1639 = vadd.f32 %v1152, %v1465
  %v1640 = vadd.f32 %v1153, %v1467
  %v1641 = vadd.f32 %v1154, %v1470
  %v1642 = vadd.f32 %v1155, %v1472
  %v1643 = vadd.f32 %v1156, %v1475
  %v1644 = vadd.f32 %v1157, %v1477
  %v1645 = vadd.f32 %v1158, %v1480
  %v1646 = vadd.f32 %v1159, %v1482
  %v1647 = vadd.f32 %v1160, %v1485
  %v1648 = vadd.f32 %v1161, %v1487
  %v1649 = vadd.f32 %v1162, %v1490
  %v1650 = vadd.f32 %v1163, %v1492
  %v1651 = vadd.f32 %v1164, %v1495
  %v1652 = vadd.f32 %v1165, %v1497
  %v1653 = vadd.f32 %v1166, %v1500
  %v1654 = vadd.f32 %v1167, %v1502
  %v1655 = vadd.f32 %v1168, %v1505
  %v1656 = vadd.f32 %v1169, %v1507
  %v1657 = vadd.f32 %v1170, %v1510
  %v1658 = vadd.f32 %v1171, %v1512
  %v1659 = vadd.f32 %v1172, %v1515
  %v1660 = vadd.f32 %v1173, %v1517
  %v1661 = vadd.f32 %v1174, %v1520
  %v1662 = vadd.f32 %v1175, %v1522
  %v1663 = vadd.f32 %v1176, %v1525
  %v1664 = vadd.f32 %v1177, %v1527
  %v1665 = vadd.f32 %v1178, %v1530
  %v1666 = vadd.f32 %v1179, %v1532
  %v1667 = vadd.f32 %v1180, %v1535
  %v1668 = vadd.f32 %v1181, %v1537
  %v1669 = vadd.f32 %v1182, %v1540
  %v1670 = vadd.f32 %v1183, %v1542
  %v1672 = vlaneseq
  %v1673 = vshrl.u32 %v1672, 7
  %v1674 = vsub.s32 0, %v1673
  %v1675 = vrot.slane %v557, %v1674
  %v1677 = vmul.f32 %v449, %v1675
  %v1678 = vmul.f32 %v450, %v1675
  %v1679 = vmul.f32 %v452, %v1675
  %v1680 = vmul.f32 %v453, %v1675
  %v1681 = vmul.f32 %v455, %v1675
  %v1682 = vmul.f32 %v456, %v1675
  %v1683 = vmul.f32 %v458, %v1675
  %v1684 = vmul.f32 %v459, %v1675
  %v1685 = vmul.f32 %v461, %v1675
  %v1686 = vmul.f32 %v462, %v1675
  %v1687 = vmul.f32 %v464, %v1675
  %v1688 = vmul.f32 %v465, %v1675
  %v1689 = vmul.f32 %v467, %v1675
  %v1690 = vmul.f32 %v468, %v1675
  %v1691 = vmul.f32 %v470, %v1675
  %v1692 = vmul.f32 %v471, %v1675
  %v1693 = vmul.f32 %v473, %v1675
  %v1694 = vmul.f32 %v474, %v1675
  %v1695 = vmul.f32 %v476, %v1675
  %v1696 = vmul.f32 %v477, %v1675
  %v1697 = vmul.f32 %v479, %v1675
  %v1698 = vmul.f32 %v480, %v1675
  %v1699 = vmul.f32 %v482, %v1675
  %v1700 = vmul.f32 %v483, %v1675
  %v1701 = vmul.f32 %v485, %v1675
  %v1702 = vmul.f32 %v486, %v1675
  %v1703 = vmul.f32 %v488, %v1675
  %v1704 = vmul.f32 %v489, %v1675
  %v1705 = vmul.f32 %v491, %v1675
  %v1706 = vmul.f32 %v492, %v1675
  %v1707 = vmul.f32 %v494, %v1675
  %v1708 = vmul.f32 %v495, %v1675
  %v1709 = vmul.f32 %v503, %v1675
  %v1710 = vmul.f32 %v504, %v1675
  %v1711 = vmul.f32 %v506, %v1675
  %v1712 = vmul.f32 %v507, %v1675
  %v1713 = vmul.f32 %v509, %v1675
  %v1714 = vmul.f32 %v510, %v1675
  %v1715 = vmul.f32 %v512, %v1675
  %v1716 = vmul.f32 %v513, %v1675
  %v1717 = vmul.f32 %v515, %v1675
  %v1718 = vmul.f32 %v516, %v1675
  %v1719 = vmul.f32 %v518, %v1675
  %v1720 = vmul.f32 %v519, %v1675
  %v1721 = vmul.f32 %v521, %v1675
  %v1722 = vmul.f32 %v522, %v1675
  %v1723 = vmul.f32 %v524, %v1675
  %v1724 = vmul.f32 %v525, %v1675
  %v1725 = vmul.f32 %v527, %v1675
  %v1726 = vmul.f32 %v528, %v1675
  %v1727 = vmul.f32 %v530, %v1675
  %v1728 = vmul.f32 %v531, %v1675
  %v1729 = vmul.f32 %v533, %v1675
  %v1730 = vmul.f32 %v534, %v1675
  %v1731 = vmul.f32 %v536, %v1675
  %v1732 = vmul.f32 %v537, %v1675
  %v1733 = vmul.f32 %v539, %v1675
  %v1734 = vmul.f32 %v540, %v1675
  %v1735 = vmul.f32 %v542, %v1675
  %v1736 = vmul.f32 %v543, %v1675
  %v1737 = vmul.f32 %v545, %v1675
  %v1738 = vmul.f32 %v546, %v1675
  %v1739 = vmul.f32 %v548, %v1675
  %v1740 = vmul.f32 %v549, %v1675
  %v1741 = vadd.f32 %v1607, %v1677
  %v1742 = vadd.f32 %v1608, %v1678
  %v1743 = vadd.f32 %v1609, %v1679
  %v1744 = vadd.f32 %v1610, %v1680
  %v1745 = vadd.f32 %v1611, %v1681
  %v1746 = vadd.f32 %v1612, %v1682
  %v1747 = vadd.f32 %v1613, %v1683
  %v1748 = vadd.f32 %v1614, %v1684
  %v1749 = vadd.f32 %v1615, %v1685
  %v1750 = vadd.f32 %v1616, %v1686
  %v1751 = vadd.f32 %v1617, %v1687
  %v1752 = vadd.f32 %v1618, %v1688
  %v1753 = vadd.f32 %v1619, %v1689
  %v1754 = vadd.f32 %v1620, %v1690
  %v1755 = vadd.f32 %v1621, %v1691
  %v1756 = vadd.f32 %v1622, %v1692
  %v1757 = vadd.f32 %v1623, %v1693
  %v1758 = vadd.f32 %v1624, %v1694
  %v1759 = vadd.f32 %v1625, %v1695
  %v1760 = vadd.f32 %v1626, %v1696
  %v1761 = vadd.f32 %v1627, %v1697
  %v1762 = vadd.f32 %v1628, %v1698
  %v1763 = vadd.f32 %v1629, %v1699
  %v1764 = vadd.f32 %v1630, %v1700
  %v1765 = vadd.f32 %v1631, %v1701
  %v1766 = vadd.f32 %v1632, %v1702
  %v1767 = vadd.f32 %v1633, %v1703
  %v1768 = vadd.f32 %v1634, %v1704
  %v1769 = vadd.f32 %v1635, %v1705
  %v1770 = vadd.f32 %v1636, %v1706
  %v1771 = vadd.f32 %v1637, %v1707
  %v1772 = vadd.f32 %v1638, %v1708
  %v1773 = vadd.f32 %v1639, %v1709
  %v1774 = vadd.f32 %v1640, %v1710
  %v1775 = vadd.f32 %v1641, %v1711
  %v1776 = vadd.f32 %v1642, %v1712
  %v1777 = vadd.f32 %v1643, %v1713
  %v1778 = vadd.f32 %v1644, %v1714
  %v1779 = vadd.f32 %v1645, %v1715
  %v1780 = vadd.f32 %v1646, %v1716
  %v1781 = vadd.f32 %v1647, %v1717
  %v1782 = vadd.f32 %v1648, %v1718
  %v1783 = vadd.f32 %v1649, %v1719
  %v1784 = vadd.f32 %v1650, %v1720
  %v1785 = vadd.f32 %v1651, %v1721
  %v1786 = vadd.f32 %v1652, %v1722
  %v1787 = vadd.f32 %v1653, %v1723
  %v1788 = vadd.f32 %v1654, %v1724
  %v1789 = vadd.f32 %v1655, %v1725
  %v1790 = vadd.f32 %v1656, %v1726
  %v1791 = vadd.f32 %v1657, %v1727
  %v1792 = vadd.f32 %v1658, %v1728
  %v1793 = vadd.f32 %v1659, %v1729
  %v1794 = vadd.f32 %v1660, %v1730
  %v1795 = vadd.f32 %v1661, %v1731
  %v1796 = vadd.f32 %v1662, %v1732
  %v1797 = vadd.f32 %v1663, %v1733
  %v1798 = vadd.f32 %v1664, %v1734
  %v1799 = vadd.f32 %v1665, %v1735
  %v1800 = vadd.f32 %v1666, %v1736
  %v1801 = vadd.f32 %v1667, %v1737
  %v1802 = vadd.f32 %v1668, %v1738
  %v1803 = vadd.f32 %v1669, %v1739
  %v1804 = vadd.f32 %v1670, %v1740
  %v1806 = vlaneseq
  %v1807 = vshrl.u32 %v1806, 7
  %v1808 = vsub.s32 0, %v1807
  %v1809 = vrot.slane %v558, %v1808
  %v1811 = vmul.f32 %v449, %v1809
  %v1812 = vmul.f32 %v450, %v1809
  %v1813 = vmul.f32 %v451, %v1809
  %v1814 = vmul.f32 %v452, %v1809
  %v1815 = vmul.f32 %v453, %v1809
  %v1816 = vmul.f32 %v454, %v1809
  %v1817 = vmul.f32 %v455, %v1809
  %v1818 = vmul.f32 %v456, %v1809
  %v1819 = vmul.f32 %v457, %v1809
  %v1820 = vmul.f32 %v458, %v1809
  %v1821 = vmul.f32 %v459, %v1809
  %v1822 = vmul.f32 %v460, %v1809
  %v1823 = vmul.f32 %v461, %v1809
  %v1824 = vmul.f32 %v462, %v1809
  %v1825 = vmul.f32 %v463, %v1809
  %v1826 = vmul.f32 %v464, %v1809
  %v1827 = vmul.f32 %v465, %v1809
  %v1828 = vmul.f32 %v466, %v1809
  %v1829 = vmul.f32 %v467, %v1809
  %v1830 = vmul.f32 %v468, %v1809
  %v1831 = vmul.f32 %v469, %v1809
  %v1832 = vmul.f32 %v470, %v1809
  %v1833 = vmul.f32 %v471, %v1809
  %v1834 = vmul.f32 %v472, %v1809
  %v1835 = vmul.f32 %v473, %v1809
  %v1836 = vmul.f32 %v474, %v1809
  %v1837 = vmul.f32 %v475, %v1809
  %v1838 = vmul.f32 %v476, %v1809
  %v1839 = vmul.f32 %v477, %v1809
  %v1840 = vmul.f32 %v478, %v1809
  %v1841 = vmul.f32 %v479, %v1809
  %v1842 = vmul.f32 %v480, %v1809
  %v1843 = vmul.f32 %v481, %v1809
  %v1844 = vmul.f32 %v482, %v1809
  %v1845 = vmul.f32 %v483, %v1809
  %v1846 = vmul.f32 %v484, %v1809
  %v1847 = vmul.f32 %v485, %v1809
  %v1848 = vmul.f32 %v486, %v1809
  %v1849 = vmul.f32 %v487, %v1809
  %v1850 = vmul.f32 %v488, %v1809
  %v1851 = vmul.f32 %v489, %v1809
  %v1852 = vmul.f32 %v490, %v1809
  %v1853 = vmul.f32 %v491, %v1809
  %v1854 = vmul.f32 %v492, %v1809
  %v1855 = vmul.f32 %v493, %v1809
  %v1856 = vmul.f32 %v494, %v1809
  %v1857 = vmul.f32 %v495, %v1809
  %v1858 = vmul.f32 %v496, %v1809
  %v1859 = vmul.f32 %v503, %v1809
  %v1860 = vmul.f32 %v504, %v1809
  %v1861 = vmul.f32 %v505, %v1809
  %v1862 = vmul.f32 %v506, %v1809
  %v1863 = vmul.f32 %v507, %v1809
  %v1864 = vmul.f32 %v508, %v1809
  %v1865 = vmul.f32 %v509, %v1809
  %v1866 = vmul.f32 %v510, %v1809
  %v1867 = vmul.f32 %v511, %v1809
  %v1868 = vmul.f32 %v512, %v1809
  %v1869 = vmul.f32 %v513, %v1809
  %v1870 = vmul.f32 %v514, %v1809
  %v1871 = vmul.f32 %v515, %v1809
  %v1872 = vmul.f32 %v516, %v1809
  %v1873 = vmul.f32 %v517, %v1809
  %v1874 = vmul.f32 %v518, %v1809
  %v1875 = vmul.f32 %v519, %v1809
  %v1876 = vmul.f32 %v520, %v1809
  %v1877 = vmul.f32 %v521, %v1809
  %v1878 = vmul.f32 %v522, %v1809
  %v1879 = vmul.f32 %v523, %v1809
  %v1880 = vmul.f32 %v524, %v1809
  %v1881 = vmul.f32 %v525, %v1809
  %v1882 = vmul.f32 %v526, %v1809
  %v1883 = vmul.f32 %v527, %v1809
  %v1884 = vmul.f32 %v528, %v1809
  %v1885 = vmul.f32 %v529, %v1809
  %v1886 = vmul.f32 %v530, %v1809
  %v1887 = vmul.f32 %v531, %v1809
  %v1888 = vmul.f32 %v532, %v1809
  %v1889 = vmul.f32 %v533, %v1809
  %v1890 = vmul.f32 %v534, %v1809
  %v1891 = vmul.f32 %v535, %v1809
  %v1892 = vmul.f32 %v536, %v1809
  %v1893 = vmul.f32 %v537, %v1809
  %v1894 = vmul.f32 %v538, %v1809
  %v1895 = vmul.f32 %v539, %v1809
  %v1896 = vmul.f32 %v540, %v1809
  %v1897 = vmul.f32 %v541, %v1809
  %v1898 = vmul.f32 %v542, %v1809
  %v1899 = vmul.f32 %v543, %v1809
  %v1900 = vmul.f32 %v544, %v1809
  %v1901 = vmul.f32 %v545, %v1809
  %v1902 = vmul.f32 %v546, %v1809
  %v1903 = vmul.f32 %v547, %v1809
  %v1904 = vmul.f32 %v548, %v1809
  %v1905 = vmul.f32 %v549, %v1809
  %v1906 = vmul.f32 %v550, %v1809
  %v2003 = vrot.slane %v1811, 1
  %v2004 = vrot.slane %v1812, 1
  %v2005 = vsel %vm895, %v2003, %v2004
  %v2006 = vrot.slane %v1813, 1
  %v2007 = vsel %vm895, %v2004, %v2006
  %v2008 = vrot.slane %v1814, 1
  %v2009 = vrot.slane %v1815, 1
  %v2010 = vsel %vm895, %v2008, %v2009
  %v2011 = vrot.slane %v1816, 1
  %v2012 = vsel %vm895, %v2009, %v2011
  %v2013 = vrot.slane %v1817, 1
  %v2014 = vrot.slane %v1818, 1
  %v2015 = vsel %vm895, %v2013, %v2014
  %v2016 = vrot.slane %v1819, 1
  %v2017 = vsel %vm895, %v2014, %v2016
  %v2018 = vrot.slane %v1820, 1
  %v2019 = vrot.slane %v1821, 1
  %v2020 = vsel %vm895, %v2018, %v2019
  %v2021 = vrot.slane %v1822, 1
  %v2022 = vsel %vm895, %v2019, %v2021
  %v2023 = vrot.slane %v1823, 1
  %v2024 = vrot.slane %v1824, 1
  %v2025 = vsel %vm895, %v2023, %v2024
  %v2026 = vrot.slane %v1825, 1
  %v2027 = vsel %vm895, %v2024, %v2026
  %v2028 = vrot.slane %v1826, 1
  %v2029 = vrot.slane %v1827, 1
  %v2030 = vsel %vm895, %v2028, %v2029
  %v2031 = vrot.slane %v1828, 1
  %v2032 = vsel %vm895, %v2029, %v2031
  %v2033 = vrot.slane %v1829, 1
  %v2034 = vrot.slane %v1830, 1
  %v2035 = vsel %vm895, %v2033, %v2034
  %v2036 = vrot.slane %v1831, 1
  %v2037 = vsel %vm895, %v2034, %v2036
  %v2038 = vrot.slane %v1832, 1
  %v2039 = vrot.slane %v1833, 1
  %v2040 = vsel %vm895, %v2038, %v2039
  %v2041 = vrot.slane %v1834, 1
  %v2042 = vsel %vm895, %v2039, %v2041
  %v2043 = vrot.slane %v1835, 1
  %v2044 = vrot.slane %v1836, 1
  %v2045 = vsel %vm895, %v2043, %v2044
  %v2046 = vrot.slane %v1837, 1
  %v2047 = vsel %vm895, %v2044, %v2046
  %v2048 = vrot.slane %v1838, 1
  %v2049 = vrot.slane %v1839, 1
  %v2050 = vsel %vm895, %v2048, %v2049
  %v2051 = vrot.slane %v1840, 1
  %v2052 = vsel %vm895, %v2049, %v2051
  %v2053 = vrot.slane %v1841, 1
  %v2054 = vrot.slane %v1842, 1
  %v2055 = vsel %vm895, %v2053, %v2054
  %v2056 = vrot.slane %v1843, 1
  %v2057 = vsel %vm895, %v2054, %v2056
  %v2058 = vrot.slane %v1844, 1
  %v2059 = vrot.slane %v1845, 1
  %v2060 = vsel %vm895, %v2058, %v2059
  %v2061 = vrot.slane %v1846, 1
  %v2062 = vsel %vm895, %v2059, %v2061
  %v2063 = vrot.slane %v1847, 1
  %v2064 = vrot.slane %v1848, 1
  %v2065 = vsel %vm895, %v2063, %v2064
  %v2066 = vrot.slane %v1849, 1
  %v2067 = vsel %vm895, %v2064, %v2066
  %v2068 = vrot.slane %v1850, 1
  %v2069 = vrot.slane %v1851, 1
  %v2070 = vsel %vm895, %v2068, %v2069
  %v2071 = vrot.slane %v1852, 1
  %v2072 = vsel %vm895, %v2069, %v2071
  %v2073 = vrot.slane %v1853, 1
  %v2074 = vrot.slane %v1854, 1
  %v2075 = vsel %vm895, %v2073, %v2074
  %v2076 = vrot.slane %v1855, 1
  %v2077 = vsel %vm895, %v2074, %v2076
  %v2078 = vrot.slane %v1856, 1
  %v2079 = vrot.slane %v1857, 1
  %v2080 = vsel %vm895, %v2078, %v2079
  %v2081 = vrot.slane %v1858, 1
  %v2082 = vsel %vm895, %v2079, %v2081
  %v2083 = vrot.slane %v1859, 1
  %v2084 = vrot.slane %v1860, 1
  %v2085 = vsel %vm895, %v2083, %v2084
  %v2086 = vrot.slane %v1861, 1
  %v2087 = vsel %vm895, %v2084, %v2086
  %v2088 = vrot.slane %v1862, 1
  %v2089 = vrot.slane %v1863, 1
  %v2090 = vsel %vm895, %v2088, %v2089
  %v2091 = vrot.slane %v1864, 1
  %v2092 = vsel %vm895, %v2089, %v2091
  %v2093 = vrot.slane %v1865, 1
  %v2094 = vrot.slane %v1866, 1
  %v2095 = vsel %vm895, %v2093, %v2094
  %v2096 = vrot.slane %v1867, 1
  %v2097 = vsel %vm895, %v2094, %v2096
  %v2098 = vrot.slane %v1868, 1
  %v2099 = vrot.slane %v1869, 1
  %v2100 = vsel %vm895, %v2098, %v2099
  %v2101 = vrot.slane %v1870, 1
  %v2102 = vsel %vm895, %v2099, %v2101
  %v2103 = vrot.slane %v1871, 1
  %v2104 = vrot.slane %v1872, 1
  %v2105 = vsel %vm895, %v2103, %v2104
  %v2106 = vrot.slane %v1873, 1
  %v2107 = vsel %vm895, %v2104, %v2106
  %v2108 = vrot.slane %v1874, 1
  %v2109 = vrot.slane %v1875, 1
  %v2110 = vsel %vm895, %v2108, %v2109
  %v2111 = vrot.slane %v1876, 1
  %v2112 = vsel %vm895, %v2109, %v2111
  %v2113 = vrot.slane %v1877, 1
  %v2114 = vrot.slane %v1878, 1
  %v2115 = vsel %vm895, %v2113, %v2114
  %v2116 = vrot.slane %v1879, 1
  %v2117 = vsel %vm895, %v2114, %v2116
  %v2118 = vrot.slane %v1880, 1
  %v2119 = vrot.slane %v1881, 1
  %v2120 = vsel %vm895, %v2118, %v2119
  %v2121 = vrot.slane %v1882, 1
  %v2122 = vsel %vm895, %v2119, %v2121
  %v2123 = vrot.slane %v1883, 1
  %v2124 = vrot.slane %v1884, 1
  %v2125 = vsel %vm895, %v2123, %v2124
  %v2126 = vrot.slane %v1885, 1
  %v2127 = vsel %vm895, %v2124, %v2126
  %v2128 = vrot.slane %v1886, 1
  %v2129 = vrot.slane %v1887, 1
  %v2130 = vsel %vm895, %v2128, %v2129
  %v2131 = vrot.slane %v1888, 1
  %v2132 = vsel %vm895, %v2129, %v2131
  %v2133 = vrot.slane %v1889, 1
  %v2134 = vrot.slane %v1890, 1
  %v2135 = vsel %vm895, %v2133, %v2134
  %v2136 = vrot.slane %v1891, 1
  %v2137 = vsel %vm895, %v2134, %v2136
  %v2138 = vrot.slane %v1892, 1
  %v2139 = vrot.slane %v1893, 1
  %v2140 = vsel %vm895, %v2138, %v2139
  %v2141 = vrot.slane %v1894, 1
  %v2142 = vsel %vm895, %v2139, %v2141
  %v2143 = vrot.slane %v1895, 1
  %v2144 = vrot.slane %v1896, 1
  %v2145 = vsel %vm895, %v2143, %v2144
  %v2146 = vrot.slane %v1897, 1
  %v2147 = vsel %vm895, %v2144, %v2146
  %v2148 = vrot.slane %v1898, 1
  %v2149 = vrot.slane %v1899, 1
  %v2150 = vsel %vm895, %v2148, %v2149
  %v2151 = vrot.slane %v1900, 1
  %v2152 = vsel %vm895, %v2149, %v2151
  %v2153 = vrot.slane %v1901, 1
  %v2154 = vrot.slane %v1902, 1
  %v2155 = vsel %vm895, %v2153, %v2154
  %v2156 = vrot.slane %v1903, 1
  %v2157 = vsel %vm895, %v2154, %v2156
  %v2158 = vrot.slane %v1904, 1
  %v2159 = vrot.slane %v1905, 1
  %v2160 = vsel %vm895, %v2158, %v2159
  %v2161 = vrot.slane %v1906, 1
  %v2162 = vsel %vm895, %v2159, %v2161
  %v2227 = vadd.f32 %v1741, %v2005
  %v2228 = vadd.f32 %v1742, %v2007
  %v2229 = vadd.f32 %v1743, %v2010
  %v2230 = vadd.f32 %v1744, %v2012
  %v2231 = vadd.f32 %v1745, %v2015
  %v2232 = vadd.f32 %v1746, %v2017
  %v2233 = vadd.f32 %v1747, %v2020
  %v2234 = vadd.f32 %v1748, %v2022
  %v2235 = vadd.f32 %v1749, %v2025
  %v2236 = vadd.f32 %v1750, %v2027
  %v2237 = vadd.f32 %v1751, %v2030
  %v2238 = vadd.f32 %v1752, %v2032
  %v2239 = vadd.f32 %v1753, %v2035
  %v2240 = vadd.f32 %v1754, %v2037
  %v2241 = vadd.f32 %v1755, %v2040
  %v2242 = vadd.f32 %v1756, %v2042
  %v2243 = vadd.f32 %v1757, %v2045
  %v2244 = vadd.f32 %v1758, %v2047
  %v2245 = vadd.f32 %v1759, %v2050
  %v2246 = vadd.f32 %v1760, %v2052
  %v2247 = vadd.f32 %v1761, %v2055
  %v2248 = vadd.f32 %v1762, %v2057
  %v2249 = vadd.f32 %v1763, %v2060
  %v2250 = vadd.f32 %v1764, %v2062
  %v2251 = vadd.f32 %v1765, %v2065
  %v2252 = vadd.f32 %v1766, %v2067
  %v2253 = vadd.f32 %v1767, %v2070
  %v2254 = vadd.f32 %v1768, %v2072
  %v2255 = vadd.f32 %v1769, %v2075
  %v2256 = vadd.f32 %v1770, %v2077
  %v2257 = vadd.f32 %v1771, %v2080
  %v2258 = vadd.f32 %v1772, %v2082
  %v2259 = vadd.f32 %v1773, %v2085
  %v2260 = vadd.f32 %v1774, %v2087
  %v2261 = vadd.f32 %v1775, %v2090
  %v2262 = vadd.f32 %v1776, %v2092
  %v2263 = vadd.f32 %v1777, %v2095
  %v2264 = vadd.f32 %v1778, %v2097
  %v2265 = vadd.f32 %v1779, %v2100
  %v2266 = vadd.f32 %v1780, %v2102
  %v2267 = vadd.f32 %v1781, %v2105
  %v2268 = vadd.f32 %v1782, %v2107
  %v2269 = vadd.f32 %v1783, %v2110
  %v2270 = vadd.f32 %v1784, %v2112
  %v2271 = vadd.f32 %v1785, %v2115
  %v2272 = vadd.f32 %v1786, %v2117
  %v2273 = vadd.f32 %v1787, %v2120
  %v2274 = vadd.f32 %v1788, %v2122
  %v2275 = vadd.f32 %v1789, %v2125
  %v2276 = vadd.f32 %v1790, %v2127
  %v2277 = vadd.f32 %v1791, %v2130
  %v2278 = vadd.f32 %v1792, %v2132
  %v2279 = vadd.f32 %v1793, %v2135
  %v2280 = vadd.f32 %v1794, %v2137
  %v2281 = vadd.f32 %v1795, %v2140
  %v2282 = vadd.f32 %v1796, %v2142
  %v2283 = vadd.f32 %v1797, %v2145
  %v2284 = vadd.f32 %v1798, %v2147
  %v2285 = vadd.f32 %v1799, %v2150
  %v2286 = vadd.f32 %v1800, %v2152
  %v2287 = vadd.f32 %v1801, %v2155
  %v2288 = vadd.f32 %v1802, %v2157
  %v2289 = vadd.f32 %v1803, %v2160
  %v2290 = vadd.f32 %v1804, %v2162
  %v2292 = vlaneseq
  %v2293 = vshrl.u32 %v2292, 7
  %v2294 = vsub.s32 0, %v2293
  %v2295 = vrot.slane %v559, %v2294
  %v2297 = vmul.f32 %v449, %v2295
  %v2298 = vmul.f32 %v450, %v2295
  %v2299 = vmul.f32 %v451, %v2295
  %v2300 = vmul.f32 %v452, %v2295
  %v2301 = vmul.f32 %v453, %v2295
  %v2302 = vmul.f32 %v454, %v2295
  %v2303 = vmul.f32 %v455, %v2295
  %v2304 = vmul.f32 %v456, %v2295
  %v2305 = vmul.f32 %v457, %v2295
  %v2306 = vmul.f32 %v458, %v2295
  %v2307 = vmul.f32 %v459, %v2295
  %v2308 = vmul.f32 %v460, %v2295
  %v2309 = vmul.f32 %v461, %v2295
  %v2310 = vmul.f32 %v462, %v2295
  %v2311 = vmul.f32 %v463, %v2295
  %v2312 = vmul.f32 %v464, %v2295
  %v2313 = vmul.f32 %v465, %v2295
  %v2314 = vmul.f32 %v466, %v2295
  %v2315 = vmul.f32 %v467, %v2295
  %v2316 = vmul.f32 %v468, %v2295
  %v2317 = vmul.f32 %v469, %v2295
  %v2318 = vmul.f32 %v470, %v2295
  %v2319 = vmul.f32 %v471, %v2295
  %v2320 = vmul.f32 %v472, %v2295
  %v2321 = vmul.f32 %v473, %v2295
  %v2322 = vmul.f32 %v474, %v2295
  %v2323 = vmul.f32 %v475, %v2295
  %v2324 = vmul.f32 %v476, %v2295
  %v2325 = vmul.f32 %v477, %v2295
  %v2326 = vmul.f32 %v478, %v2295
  %v2327 = vmul.f32 %v479, %v2295
  %v2328 = vmul.f32 %v480, %v2295
  %v2329 = vmul.f32 %v481, %v2295
  %v2330 = vmul.f32 %v482, %v2295
  %v2331 = vmul.f32 %v483, %v2295
  %v2332 = vmul.f32 %v484, %v2295
  %v2333 = vmul.f32 %v485, %v2295
  %v2334 = vmul.f32 %v486, %v2295
  %v2335 = vmul.f32 %v487, %v2295
  %v2336 = vmul.f32 %v488, %v2295
  %v2337 = vmul.f32 %v489, %v2295
  %v2338 = vmul.f32 %v490, %v2295
  %v2339 = vmul.f32 %v491, %v2295
  %v2340 = vmul.f32 %v492, %v2295
  %v2341 = vmul.f32 %v493, %v2295
  %v2342 = vmul.f32 %v494, %v2295
  %v2343 = vmul.f32 %v495, %v2295
  %v2344 = vmul.f32 %v496, %v2295
  %v2345 = vmul.f32 %v503, %v2295
  %v2346 = vmul.f32 %v504, %v2295
  %v2347 = vmul.f32 %v505, %v2295
  %v2348 = vmul.f32 %v506, %v2295
  %v2349 = vmul.f32 %v507, %v2295
  %v2350 = vmul.f32 %v508, %v2295
  %v2351 = vmul.f32 %v509, %v2295
  %v2352 = vmul.f32 %v510, %v2295
  %v2353 = vmul.f32 %v511, %v2295
  %v2354 = vmul.f32 %v512, %v2295
  %v2355 = vmul.f32 %v513, %v2295
  %v2356 = vmul.f32 %v514, %v2295
  %v2357 = vmul.f32 %v515, %v2295
  %v2358 = vmul.f32 %v516, %v2295
  %v2359 = vmul.f32 %v517, %v2295
  %v2360 = vmul.f32 %v518, %v2295
  %v2361 = vmul.f32 %v519, %v2295
  %v2362 = vmul.f32 %v520, %v2295
  %v2363 = vmul.f32 %v521, %v2295
  %v2364 = vmul.f32 %v522, %v2295
  %v2365 = vmul.f32 %v523, %v2295
  %v2366 = vmul.f32 %v524, %v2295
  %v2367 = vmul.f32 %v525, %v2295
  %v2368 = vmul.f32 %v526, %v2295
  %v2369 = vmul.f32 %v527, %v2295
  %v2370 = vmul.f32 %v528, %v2295
  %v2371 = vmul.f32 %v529, %v2295
  %v2372 = vmul.f32 %v530, %v2295
  %v2373 = vmul.f32 %v531, %v2295
  %v2374 = vmul.f32 %v532, %v2295
  %v2375 = vmul.f32 %v533, %v2295
  %v2376 = vmul.f32 %v534, %v2295
  %v2377 = vmul.f32 %v535, %v2295
  %v2378 = vmul.f32 %v536, %v2295
  %v2379 = vmul.f32 %v537, %v2295
  %v2380 = vmul.f32 %v538, %v2295
  %v2381 = vmul.f32 %v539, %v2295
  %v2382 = vmul.f32 %v540, %v2295
  %v2383 = vmul.f32 %v541, %v2295
  %v2384 = vmul.f32 %v542, %v2295
  %v2385 = vmul.f32 %v543, %v2295
  %v2386 = vmul.f32 %v544, %v2295
  %v2387 = vmul.f32 %v545, %v2295
  %v2388 = vmul.f32 %v546, %v2295
  %v2389 = vmul.f32 %v547, %v2295
  %v2390 = vmul.f32 %v548, %v2295
  %v2391 = vmul.f32 %v549, %v2295
  %v2392 = vmul.f32 %v550, %v2295
  %v2489 = vrot.slane %v2297, 2
  %v2490 = vrot.slane %v2298, 2
  %v2491 = vsel %vm1382, %v2489, %v2490
  %v2492 = vrot.slane %v2299, 2
  %v2493 = vsel %vm1382, %v2490, %v2492
  %v2494 = vrot.slane %v2300, 2
  %v2495 = vrot.slane %v2301, 2
  %v2496 = vsel %vm1382, %v2494, %v2495
  %v2497 = vrot.slane %v2302, 2
  %v2498 = vsel %vm1382, %v2495, %v2497
  %v2499 = vrot.slane %v2303, 2
  %v2500 = vrot.slane %v2304, 2
  %v2501 = vsel %vm1382, %v2499, %v2500
  %v2502 = vrot.slane %v2305, 2
  %v2503 = vsel %vm1382, %v2500, %v2502
  %v2504 = vrot.slane %v2306, 2
  %v2505 = vrot.slane %v2307, 2
  %v2506 = vsel %vm1382, %v2504, %v2505
  %v2507 = vrot.slane %v2308, 2
  %v2508 = vsel %vm1382, %v2505, %v2507
  %v2509 = vrot.slane %v2309, 2
  %v2510 = vrot.slane %v2310, 2
  %v2511 = vsel %vm1382, %v2509, %v2510
  %v2512 = vrot.slane %v2311, 2
  %v2513 = vsel %vm1382, %v2510, %v2512
  %v2514 = vrot.slane %v2312, 2
  %v2515 = vrot.slane %v2313, 2
  %v2516 = vsel %vm1382, %v2514, %v2515
  %v2517 = vrot.slane %v2314, 2
  %v2518 = vsel %vm1382, %v2515, %v2517
  %v2519 = vrot.slane %v2315, 2
  %v2520 = vrot.slane %v2316, 2
  %v2521 = vsel %vm1382, %v2519, %v2520
  %v2522 = vrot.slane %v2317, 2
  %v2523 = vsel %vm1382, %v2520, %v2522
  %v2524 = vrot.slane %v2318, 2
  %v2525 = vrot.slane %v2319, 2
  %v2526 = vsel %vm1382, %v2524, %v2525
  %v2527 = vrot.slane %v2320, 2
  %v2528 = vsel %vm1382, %v2525, %v2527
  %v2529 = vrot.slane %v2321, 2
  %v2530 = vrot.slane %v2322, 2
  %v2531 = vsel %vm1382, %v2529, %v2530
  %v2532 = vrot.slane %v2323, 2
  %v2533 = vsel %vm1382, %v2530, %v2532
  %v2534 = vrot.slane %v2324, 2
  %v2535 = vrot.slane %v2325, 2
  %v2536 = vsel %vm1382, %v2534, %v2535
  %v2537 = vrot.slane %v2326, 2
  %v2538 = vsel %vm1382, %v2535, %v2537
  %v2539 = vrot.slane %v2327, 2
  %v2540 = vrot.slane %v2328, 2
  %v2541 = vsel %vm1382, %v2539, %v2540
  %v2542 = vrot.slane %v2329, 2
  %v2543 = vsel %vm1382, %v2540, %v2542
  %v2544 = vrot.slane %v2330, 2
  %v2545 = vrot.slane %v2331, 2
  %v2546 = vsel %vm1382, %v2544, %v2545
  %v2547 = vrot.slane %v2332, 2
  %v2548 = vsel %vm1382, %v2545, %v2547
  %v2549 = vrot.slane %v2333, 2
  %v2550 = vrot.slane %v2334, 2
  %v2551 = vsel %vm1382, %v2549, %v2550
  %v2552 = vrot.slane %v2335, 2
  %v2553 = vsel %vm1382, %v2550, %v2552
  %v2554 = vrot.slane %v2336, 2
  %v2555 = vrot.slane %v2337, 2
  %v2556 = vsel %vm1382, %v2554, %v2555
  %v2557 = vrot.slane %v2338, 2
  %v2558 = vsel %vm1382, %v2555, %v2557
  %v2559 = vrot.slane %v2339, 2
  %v2560 = vrot.slane %v2340, 2
  %v2561 = vsel %vm1382, %v2559, %v2560
  %v2562 = vrot.slane %v2341, 2
  %v2563 = vsel %vm1382, %v2560, %v2562
  %v2564 = vrot.slane %v2342, 2
  %v2565 = vrot.slane %v2343, 2
  %v2566 = vsel %vm1382, %v2564, %v2565
  %v2567 = vrot.slane %v2344, 2
  %v2568 = vsel %vm1382, %v2565, %v2567
  %v2569 = vrot.slane %v2345, 2
  %v2570 = vrot.slane %v2346, 2
  %v2571 = vsel %vm1382, %v2569, %v2570
  %v2572 = vrot.slane %v2347, 2
  %v2573 = vsel %vm1382, %v2570, %v2572
  %v2574 = vrot.slane %v2348, 2
  %v2575 = vrot.slane %v2349, 2
  %v2576 = vsel %vm1382, %v2574, %v2575
  %v2577 = vrot.slane %v2350, 2
  %v2578 = vsel %vm1382, %v2575, %v2577
  %v2579 = vrot.slane %v2351, 2
  %v2580 = vrot.slane %v2352, 2
  %v2581 = vsel %vm1382, %v2579, %v2580
  %v2582 = vrot.slane %v2353, 2
  %v2583 = vsel %vm1382, %v2580, %v2582
  %v2584 = vrot.slane %v2354, 2
  %v2585 = vrot.slane %v2355, 2
  %v2586 = vsel %vm1382, %v2584, %v2585
  %v2587 = vrot.slane %v2356, 2
  %v2588 = vsel %vm1382, %v2585, %v2587
  %v2589 = vrot.slane %v2357, 2
  %v2590 = vrot.slane %v2358, 2
  %v2591 = vsel %vm1382, %v2589, %v2590
  %v2592 = vrot.slane %v2359, 2
  %v2593 = vsel %vm1382, %v2590, %v2592
  %v2594 = vrot.slane %v2360, 2
  %v2595 = vrot.slane %v2361, 2
  %v2596 = vsel %vm1382, %v2594, %v2595
  %v2597 = vrot.slane %v2362, 2
  %v2598 = vsel %vm1382, %v2595, %v2597
  %v2599 = vrot.slane %v2363, 2
  %v2600 = vrot.slane %v2364, 2
  %v2601 = vsel %vm1382, %v2599, %v2600
  %v2602 = vrot.slane %v2365, 2
  %v2603 = vsel %vm1382, %v2600, %v2602
  %v2604 = vrot.slane %v2366, 2
  %v2605 = vrot.slane %v2367, 2
  %v2606 = vsel %vm1382, %v2604, %v2605
  %v2607 = vrot.slane %v2368, 2
  %v2608 = vsel %vm1382, %v2605, %v2607
  %v2609 = vrot.slane %v2369, 2
  %v2610 = vrot.slane %v2370, 2
  %v2611 = vsel %vm1382, %v2609, %v2610
  %v2612 = vrot.slane %v2371, 2
  %v2613 = vsel %vm1382, %v2610, %v2612
  %v2614 = vrot.slane %v2372, 2
  %v2615 = vrot.slane %v2373, 2
  %v2616 = vsel %vm1382, %v2614, %v2615
  %v2617 = vrot.slane %v2374, 2
  %v2618 = vsel %vm1382, %v2615, %v2617
  %v2619 = vrot.slane %v2375, 2
  %v2620 = vrot.slane %v2376, 2
  %v2621 = vsel %vm1382, %v2619, %v2620
  %v2622 = vrot.slane %v2377, 2
  %v2623 = vsel %vm1382, %v2620, %v2622
  %v2624 = vrot.slane %v2378, 2
  %v2625 = vrot.slane %v2379, 2
  %v2626 = vsel %vm1382, %v2624, %v2625
  %v2627 = vrot.slane %v2380, 2
  %v2628 = vsel %vm1382, %v2625, %v2627
  %v2629 = vrot.slane %v2381, 2
  %v2630 = vrot.slane %v2382, 2
  %v2631 = vsel %vm1382, %v2629, %v2630
  %v2632 = vrot.slane %v2383, 2
  %v2633 = vsel %vm1382, %v2630, %v2632
  %v2634 = vrot.slane %v2384, 2
  %v2635 = vrot.slane %v2385, 2
  %v2636 = vsel %vm1382, %v2634, %v2635
  %v2637 = vrot.slane %v2386, 2
  %v2638 = vsel %vm1382, %v2635, %v2637
  %v2639 = vrot.slane %v2387, 2
  %v2640 = vrot.slane %v2388, 2
  %v2641 = vsel %vm1382, %v2639, %v2640
  %v2642 = vrot.slane %v2389, 2
  %v2643 = vsel %vm1382, %v2640, %v2642
  %v2644 = vrot.slane %v2390, 2
  %v2645 = vrot.slane %v2391, 2
  %v2646 = vsel %vm1382, %v2644, %v2645
  %v2647 = vrot.slane %v2392, 2
  %v2648 = vsel %vm1382, %v2645, %v2647
  %v2713 = vadd.f32 %v2227, %v2491
  %v2714 = vadd.f32 %v2228, %v2493
  %v2715 = vadd.f32 %v2229, %v2496
  %v2716 = vadd.f32 %v2230, %v2498
  %v2717 = vadd.f32 %v2231, %v2501
  %v2718 = vadd.f32 %v2232, %v2503
  %v2719 = vadd.f32 %v2233, %v2506
  %v2720 = vadd.f32 %v2234, %v2508
  %v2721 = vadd.f32 %v2235, %v2511
  %v2722 = vadd.f32 %v2236, %v2513
  %v2723 = vadd.f32 %v2237, %v2516
  %v2724 = vadd.f32 %v2238, %v2518
  %v2725 = vadd.f32 %v2239, %v2521
  %v2726 = vadd.f32 %v2240, %v2523
  %v2727 = vadd.f32 %v2241, %v2526
  %v2728 = vadd.f32 %v2242, %v2528
  %v2729 = vadd.f32 %v2243, %v2531
  %v2730 = vadd.f32 %v2244, %v2533
  %v2731 = vadd.f32 %v2245, %v2536
  %v2732 = vadd.f32 %v2246, %v2538
  %v2733 = vadd.f32 %v2247, %v2541
  %v2734 = vadd.f32 %v2248, %v2543
  %v2735 = vadd.f32 %v2249, %v2546
  %v2736 = vadd.f32 %v2250, %v2548
  %v2737 = vadd.f32 %v2251, %v2551
  %v2738 = vadd.f32 %v2252, %v2553
  %v2739 = vadd.f32 %v2253, %v2556
  %v2740 = vadd.f32 %v2254, %v2558
  %v2741 = vadd.f32 %v2255, %v2561
  %v2742 = vadd.f32 %v2256, %v2563
  %v2743 = vadd.f32 %v2257, %v2566
  %v2744 = vadd.f32 %v2258, %v2568
  %v2745 = vadd.f32 %v2259, %v2571
  %v2746 = vadd.f32 %v2260, %v2573
  %v2747 = vadd.f32 %v2261, %v2576
  %v2748 = vadd.f32 %v2262, %v2578
  %v2749 = vadd.f32 %v2263, %v2581
  %v2750 = vadd.f32 %v2264, %v2583
  %v2751 = vadd.f32 %v2265, %v2586
  %v2752 = vadd.f32 %v2266, %v2588
  %v2753 = vadd.f32 %v2267, %v2591
  %v2754 = vadd.f32 %v2268, %v2593
  %v2755 = vadd.f32 %v2269, %v2596
  %v2756 = vadd.f32 %v2270, %v2598
  %v2757 = vadd.f32 %v2271, %v2601
  %v2758 = vadd.f32 %v2272, %v2603
  %v2759 = vadd.f32 %v2273, %v2606
  %v2760 = vadd.f32 %v2274, %v2608
  %v2761 = vadd.f32 %v2275, %v2611
  %v2762 = vadd.f32 %v2276, %v2613
  %v2763 = vadd.f32 %v2277, %v2616
  %v2764 = vadd.f32 %v2278, %v2618
  %v2765 = vadd.f32 %v2279, %v2621
  %v2766 = vadd.f32 %v2280, %v2623
  %v2767 = vadd.f32 %v2281, %v2626
  %v2768 = vadd.f32 %v2282, %v2628
  %v2769 = vadd.f32 %v2283, %v2631
  %v2770 = vadd.f32 %v2284, %v2633
  %v2771 = vadd.f32 %v2285, %v2636
  %v2772 = vadd.f32 %v2286, %v2638
  %v2773 = vadd.f32 %v2287, %v2641
  %v2774 = vadd.f32 %v2288, %v2643
  %v2775 = vadd.f32 %v2289, %v2646
  %v2776 = vadd.f32 %v2290, %v2648
  %v2778 = vlaneseq
  %v2779 = vshrl.u32 %v2778, 7
  %v2780 = vsub.s32 0, %v2779
  %v2781 = vrot.slane %v560, %v2780
  %v2783 = vmul.f32 %v452, %v2781
  %v2784 = vmul.f32 %v453, %v2781
  %v2785 = vmul.f32 %v455, %v2781
  %v2786 = vmul.f32 %v456, %v2781
  %v2787 = vmul.f32 %v458, %v2781
  %v2788 = vmul.f32 %v459, %v2781
  %v2789 = vmul.f32 %v461, %v2781
  %v2790 = vmul.f32 %v462, %v2781
  %v2791 = vmul.f32 %v464, %v2781
  %v2792 = vmul.f32 %v465, %v2781
  %v2793 = vmul.f32 %v467, %v2781
  %v2794 = vmul.f32 %v468, %v2781
  %v2795 = vmul.f32 %v470, %v2781
  %v2796 = vmul.f32 %v471, %v2781
  %v2797 = vmul.f32 %v473, %v2781
  %v2798 = vmul.f32 %v474, %v2781
  %v2799 = vmul.f32 %v476, %v2781
  %v2800 = vmul.f32 %v477, %v2781
  %v2801 = vmul.f32 %v479, %v2781
  %v2802 = vmul.f32 %v480, %v2781
  %v2803 = vmul.f32 %v482, %v2781
  %v2804 = vmul.f32 %v483, %v2781
  %v2805 = vmul.f32 %v485, %v2781
  %v2806 = vmul.f32 %v486, %v2781
  %v2807 = vmul.f32 %v488, %v2781
  %v2808 = vmul.f32 %v489, %v2781
  %v2809 = vmul.f32 %v491, %v2781
  %v2810 = vmul.f32 %v492, %v2781
  %v2811 = vmul.f32 %v494, %v2781
  %v2812 = vmul.f32 %v495, %v2781
  %v2813 = vmul.f32 %v497, %v2781
  %v2814 = vmul.f32 %v498, %v2781
  %v2815 = vmul.f32 %v506, %v2781
  %v2816 = vmul.f32 %v507, %v2781
  %v2817 = vmul.f32 %v509, %v2781
  %v2818 = vmul.f32 %v510, %v2781
  %v2819 = vmul.f32 %v512, %v2781
  %v2820 = vmul.f32 %v513, %v2781
  %v2821 = vmul.f32 %v515, %v2781
  %v2822 = vmul.f32 %v516, %v2781
  %v2823 = vmul.f32 %v518, %v2781
  %v2824 = vmul.f32 %v519, %v2781
  %v2825 = vmul.f32 %v521, %v2781
  %v2826 = vmul.f32 %v522, %v2781
  %v2827 = vmul.f32 %v524, %v2781
  %v2828 = vmul.f32 %v525, %v2781
  %v2829 = vmul.f32 %v527, %v2781
  %v2830 = vmul.f32 %v528, %v2781
  %v2831 = vmul.f32 %v530, %v2781
  %v2832 = vmul.f32 %v531, %v2781
  %v2833 = vmul.f32 %v533, %v2781
  %v2834 = vmul.f32 %v534, %v2781
  %v2835 = vmul.f32 %v536, %v2781
  %v2836 = vmul.f32 %v537, %v2781
  %v2837 = vmul.f32 %v539, %v2781
  %v2838 = vmul.f32 %v540, %v2781
  %v2839 = vmul.f32 %v542, %v2781
  %v2840 = vmul.f32 %v543, %v2781
  %v2841 = vmul.f32 %v545, %v2781
  %v2842 = vmul.f32 %v546, %v2781
  %v2843 = vmul.f32 %v548, %v2781
  %v2844 = vmul.f32 %v549, %v2781
  %v2845 = vmul.f32 %v551, %v2781
  %v2846 = vmul.f32 %v552, %v2781
  %v2847 = vadd.f32 %v2713, %v2783
  %v2848 = vadd.f32 %v2714, %v2784
  %v2849 = vadd.f32 %v2715, %v2785
  %v2850 = vadd.f32 %v2716, %v2786
  %v2851 = vadd.f32 %v2717, %v2787
  %v2852 = vadd.f32 %v2718, %v2788
  %v2853 = vadd.f32 %v2719, %v2789
  %v2854 = vadd.f32 %v2720, %v2790
  %v2855 = vadd.f32 %v2721, %v2791
  %v2856 = vadd.f32 %v2722, %v2792
  %v2857 = vadd.f32 %v2723, %v2793
  %v2858 = vadd.f32 %v2724, %v2794
  %v2859 = vadd.f32 %v2725, %v2795
  %v2860 = vadd.f32 %v2726, %v2796
  %v2861 = vadd.f32 %v2727, %v2797
  %v2862 = vadd.f32 %v2728, %v2798
  %v2863 = vadd.f32 %v2729, %v2799
  %v2864 = vadd.f32 %v2730, %v2800
  %v2865 = vadd.f32 %v2731, %v2801
  %v2866 = vadd.f32 %v2732, %v2802
  %v2867 = vadd.f32 %v2733, %v2803
  %v2868 = vadd.f32 %v2734, %v2804
  %v2869 = vadd.f32 %v2735, %v2805
  %v2870 = vadd.f32 %v2736, %v2806
  %v2871 = vadd.f32 %v2737, %v2807
  %v2872 = vadd.f32 %v2738, %v2808
  %v2873 = vadd.f32 %v2739, %v2809
  %v2874 = vadd.f32 %v2740, %v2810
  %v2875 = vadd.f32 %v2741, %v2811
  %v2876 = vadd.f32 %v2742, %v2812
  %v2877 = vadd.f32 %v2743, %v2813
  %v2878 = vadd.f32 %v2744, %v2814
  %v2879 = vadd.f32 %v2745, %v2815
  %v2880 = vadd.f32 %v2746, %v2816
  %v2881 = vadd.f32 %v2747, %v2817
  %v2882 = vadd.f32 %v2748, %v2818
  %v2883 = vadd.f32 %v2749, %v2819
  %v2884 = vadd.f32 %v2750, %v2820
  %v2885 = vadd.f32 %v2751, %v2821
  %v2886 = vadd.f32 %v2752, %v2822
  %v2887 = vadd.f32 %v2753, %v2823
  %v2888 = vadd.f32 %v2754, %v2824
  %v2889 = vadd.f32 %v2755, %v2825
  %v2890 = vadd.f32 %v2756, %v2826
  %v2891 = vadd.f32 %v2757, %v2827
  %v2892 = vadd.f32 %v2758, %v2828
  %v2893 = vadd.f32 %v2759, %v2829
  %v2894 = vadd.f32 %v2760, %v2830
  %v2895 = vadd.f32 %v2761, %v2831
  %v2896 = vadd.f32 %v2762, %v2832
  %v2897 = vadd.f32 %v2763, %v2833
  %v2898 = vadd.f32 %v2764, %v2834
  %v2899 = vadd.f32 %v2765, %v2835
  %v2900 = vadd.f32 %v2766, %v2836
  %v2901 = vadd.f32 %v2767, %v2837
  %v2902 = vadd.f32 %v2768, %v2838
  %v2903 = vadd.f32 %v2769, %v2839
  %v2904 = vadd.f32 %v2770, %v2840
  %v2905 = vadd.f32 %v2771, %v2841
  %v2906 = vadd.f32 %v2772, %v2842
  %v2907 = vadd.f32 %v2773, %v2843
  %v2908 = vadd.f32 %v2774, %v2844
  %v2909 = vadd.f32 %v2775, %v2845
  %v2910 = vadd.f32 %v2776, %v2846
  %v2912 = vlaneseq
  %v2913 = vshrl.u32 %v2912, 7
  %v2914 = vsub.s32 0, %v2913
  %v2915 = vrot.slane %v561, %v2914
  %v2917 = vmul.f32 %v452, %v2915
  %v2918 = vmul.f32 %v453, %v2915
  %v2919 = vmul.f32 %v454, %v2915
  %v2920 = vmul.f32 %v455, %v2915
  %v2921 = vmul.f32 %v456, %v2915
  %v2922 = vmul.f32 %v457, %v2915
  %v2923 = vmul.f32 %v458, %v2915
  %v2924 = vmul.f32 %v459, %v2915
  %v2925 = vmul.f32 %v460, %v2915
  %v2926 = vmul.f32 %v461, %v2915
  %v2927 = vmul.f32 %v462, %v2915
  %v2928 = vmul.f32 %v463, %v2915
  %v2929 = vmul.f32 %v464, %v2915
  %v2930 = vmul.f32 %v465, %v2915
  %v2931 = vmul.f32 %v466, %v2915
  %v2932 = vmul.f32 %v467, %v2915
  %v2933 = vmul.f32 %v468, %v2915
  %v2934 = vmul.f32 %v469, %v2915
  %v2935 = vmul.f32 %v470, %v2915
  %v2936 = vmul.f32 %v471, %v2915
  %v2937 = vmul.f32 %v472, %v2915
  %v2938 = vmul.f32 %v473, %v2915
  %v2939 = vmul.f32 %v474, %v2915
  %v2940 = vmul.f32 %v475, %v2915
  %v2941 = vmul.f32 %v476, %v2915
  %v2942 = vmul.f32 %v477, %v2915
  %v2943 = vmul.f32 %v478, %v2915
  %v2944 = vmul.f32 %v479, %v2915
  %v2945 = vmul.f32 %v480, %v2915
  %v2946 = vmul.f32 %v481, %v2915
  %v2947 = vmul.f32 %v482, %v2915
  %v2948 = vmul.f32 %v483, %v2915
  %v2949 = vmul.f32 %v484, %v2915
  %v2950 = vmul.f32 %v485, %v2915
  %v2951 = vmul.f32 %v486, %v2915
  %v2952 = vmul.f32 %v487, %v2915
  %v2953 = vmul.f32 %v488, %v2915
  %v2954 = vmul.f32 %v489, %v2915
  %v2955 = vmul.f32 %v490, %v2915
  %v2956 = vmul.f32 %v491, %v2915
  %v2957 = vmul.f32 %v492, %v2915
  %v2958 = vmul.f32 %v493, %v2915
  %v2959 = vmul.f32 %v494, %v2915
  %v2960 = vmul.f32 %v495, %v2915
  %v2961 = vmul.f32 %v496, %v2915
  %v2962 = vmul.f32 %v497, %v2915
  %v2963 = vmul.f32 %v498, %v2915
  %v2964 = vmul.f32 %v499, %v2915
  %v2965 = vmul.f32 %v506, %v2915
  %v2966 = vmul.f32 %v507, %v2915
  %v2967 = vmul.f32 %v508, %v2915
  %v2968 = vmul.f32 %v509, %v2915
  %v2969 = vmul.f32 %v510, %v2915
  %v2970 = vmul.f32 %v511, %v2915
  %v2971 = vmul.f32 %v512, %v2915
  %v2972 = vmul.f32 %v513, %v2915
  %v2973 = vmul.f32 %v514, %v2915
  %v2974 = vmul.f32 %v515, %v2915
  %v2975 = vmul.f32 %v516, %v2915
  %v2976 = vmul.f32 %v517, %v2915
  %v2977 = vmul.f32 %v518, %v2915
  %v2978 = vmul.f32 %v519, %v2915
  %v2979 = vmul.f32 %v520, %v2915
  %v2980 = vmul.f32 %v521, %v2915
  %v2981 = vmul.f32 %v522, %v2915
  %v2982 = vmul.f32 %v523, %v2915
  %v2983 = vmul.f32 %v524, %v2915
  %v2984 = vmul.f32 %v525, %v2915
  %v2985 = vmul.f32 %v526, %v2915
  %v2986 = vmul.f32 %v527, %v2915
  %v2987 = vmul.f32 %v528, %v2915
  %v2988 = vmul.f32 %v529, %v2915
  %v2989 = vmul.f32 %v530, %v2915
  %v2990 = vmul.f32 %v531, %v2915
  %v2991 = vmul.f32 %v532, %v2915
  %v2992 = vmul.f32 %v533, %v2915
  %v2993 = vmul.f32 %v534, %v2915
  %v2994 = vmul.f32 %v535, %v2915
  %v2995 = vmul.f32 %v536, %v2915
  %v2996 = vmul.f32 %v537, %v2915
  %v2997 = vmul.f32 %v538, %v2915
  %v2998 = vmul.f32 %v539, %v2915
  %v2999 = vmul.f32 %v540, %v2915
  %v3000 = vmul.f32 %v541, %v2915
  %v3001 = vmul.f32 %v542, %v2915
  %v3002 = vmul.f32 %v543, %v2915
  %v3003 = vmul.f32 %v544, %v2915
  %v3004 = vmul.f32 %v545, %v2915
  %v3005 = vmul.f32 %v546, %v2915
  %v3006 = vmul.f32 %v547, %v2915
  %v3007 = vmul.f32 %v548, %v2915
  %v3008 = vmul.f32 %v549, %v2915
  %v3009 = vmul.f32 %v550, %v2915
  %v3010 = vmul.f32 %v551, %v2915
  %v3011 = vmul.f32 %v552, %v2915
  %v3012 = vmul.f32 %v553, %v2915
  %v3109 = vrot.slane %v2917, 1
  %v3110 = vrot.slane %v2918, 1
  %v3111 = vsel %vm895, %v3109, %v3110
  %v3112 = vrot.slane %v2919, 1
  %v3113 = vsel %vm895, %v3110, %v3112
  %v3114 = vrot.slane %v2920, 1
  %v3115 = vrot.slane %v2921, 1
  %v3116 = vsel %vm895, %v3114, %v3115
  %v3117 = vrot.slane %v2922, 1
  %v3118 = vsel %vm895, %v3115, %v3117
  %v3119 = vrot.slane %v2923, 1
  %v3120 = vrot.slane %v2924, 1
  %v3121 = vsel %vm895, %v3119, %v3120
  %v3122 = vrot.slane %v2925, 1
  %v3123 = vsel %vm895, %v3120, %v3122
  %v3124 = vrot.slane %v2926, 1
  %v3125 = vrot.slane %v2927, 1
  %v3126 = vsel %vm895, %v3124, %v3125
  %v3127 = vrot.slane %v2928, 1
  %v3128 = vsel %vm895, %v3125, %v3127
  %v3129 = vrot.slane %v2929, 1
  %v3130 = vrot.slane %v2930, 1
  %v3131 = vsel %vm895, %v3129, %v3130
  %v3132 = vrot.slane %v2931, 1
  %v3133 = vsel %vm895, %v3130, %v3132
  %v3134 = vrot.slane %v2932, 1
  %v3135 = vrot.slane %v2933, 1
  %v3136 = vsel %vm895, %v3134, %v3135
  %v3137 = vrot.slane %v2934, 1
  %v3138 = vsel %vm895, %v3135, %v3137
  %v3139 = vrot.slane %v2935, 1
  %v3140 = vrot.slane %v2936, 1
  %v3141 = vsel %vm895, %v3139, %v3140
  %v3142 = vrot.slane %v2937, 1
  %v3143 = vsel %vm895, %v3140, %v3142
  %v3144 = vrot.slane %v2938, 1
  %v3145 = vrot.slane %v2939, 1
  %v3146 = vsel %vm895, %v3144, %v3145
  %v3147 = vrot.slane %v2940, 1
  %v3148 = vsel %vm895, %v3145, %v3147
  %v3149 = vrot.slane %v2941, 1
  %v3150 = vrot.slane %v2942, 1
  %v3151 = vsel %vm895, %v3149, %v3150
  %v3152 = vrot.slane %v2943, 1
  %v3153 = vsel %vm895, %v3150, %v3152
  %v3154 = vrot.slane %v2944, 1
  %v3155 = vrot.slane %v2945, 1
  %v3156 = vsel %vm895, %v3154, %v3155
  %v3157 = vrot.slane %v2946, 1
  %v3158 = vsel %vm895, %v3155, %v3157
  %v3159 = vrot.slane %v2947, 1
  %v3160 = vrot.slane %v2948, 1
  %v3161 = vsel %vm895, %v3159, %v3160
  %v3162 = vrot.slane %v2949, 1
  %v3163 = vsel %vm895, %v3160, %v3162
  %v3164 = vrot.slane %v2950, 1
  %v3165 = vrot.slane %v2951, 1
  %v3166 = vsel %vm895, %v3164, %v3165
  %v3167 = vrot.slane %v2952, 1
  %v3168 = vsel %vm895, %v3165, %v3167
  %v3169 = vrot.slane %v2953, 1
  %v3170 = vrot.slane %v2954, 1
  %v3171 = vsel %vm895, %v3169, %v3170
  %v3172 = vrot.slane %v2955, 1
  %v3173 = vsel %vm895, %v3170, %v3172
  %v3174 = vrot.slane %v2956, 1
  %v3175 = vrot.slane %v2957, 1
  %v3176 = vsel %vm895, %v3174, %v3175
  %v3177 = vrot.slane %v2958, 1
  %v3178 = vsel %vm895, %v3175, %v3177
  %v3179 = vrot.slane %v2959, 1
  %v3180 = vrot.slane %v2960, 1
  %v3181 = vsel %vm895, %v3179, %v3180
  %v3182 = vrot.slane %v2961, 1
  %v3183 = vsel %vm895, %v3180, %v3182
  %v3184 = vrot.slane %v2962, 1
  %v3185 = vrot.slane %v2963, 1
  %v3186 = vsel %vm895, %v3184, %v3185
  %v3187 = vrot.slane %v2964, 1
  %v3188 = vsel %vm895, %v3185, %v3187
  %v3189 = vrot.slane %v2965, 1
  %v3190 = vrot.slane %v2966, 1
  %v3191 = vsel %vm895, %v3189, %v3190
  %v3192 = vrot.slane %v2967, 1
  %v3193 = vsel %vm895, %v3190, %v3192
  %v3194 = vrot.slane %v2968, 1
  %v3195 = vrot.slane %v2969, 1
  %v3196 = vsel %vm895, %v3194, %v3195
  %v3197 = vrot.slane %v2970, 1
  %v3198 = vsel %vm895, %v3195, %v3197
  %v3199 = vrot.slane %v2971, 1
  %v3200 = vrot.slane %v2972, 1
  %v3201 = vsel %vm895, %v3199, %v3200
  %v3202 = vrot.slane %v2973, 1
  %v3203 = vsel %vm895, %v3200, %v3202
  %v3204 = vrot.slane %v2974, 1
  %v3205 = vrot.slane %v2975, 1
  %v3206 = vsel %vm895, %v3204, %v3205
  %v3207 = vrot.slane %v2976, 1
  %v3208 = vsel %vm895, %v3205, %v3207
  %v3209 = vrot.slane %v2977, 1
  %v3210 = vrot.slane %v2978, 1
  %v3211 = vsel %vm895, %v3209, %v3210
  %v3212 = vrot.slane %v2979, 1
  %v3213 = vsel %vm895, %v3210, %v3212
  %v3214 = vrot.slane %v2980, 1
  %v3215 = vrot.slane %v2981, 1
  %v3216 = vsel %vm895, %v3214, %v3215
  %v3217 = vrot.slane %v2982, 1
  %v3218 = vsel %vm895, %v3215, %v3217
  %v3219 = vrot.slane %v2983, 1
  %v3220 = vrot.slane %v2984, 1
  %v3221 = vsel %vm895, %v3219, %v3220
  %v3222 = vrot.slane %v2985, 1
  %v3223 = vsel %vm895, %v3220, %v3222
  %v3224 = vrot.slane %v2986, 1
  %v3225 = vrot.slane %v2987, 1
  %v3226 = vsel %vm895, %v3224, %v3225
  %v3227 = vrot.slane %v2988, 1
  %v3228 = vsel %vm895, %v3225, %v3227
  %v3229 = vrot.slane %v2989, 1
  %v3230 = vrot.slane %v2990, 1
  %v3231 = vsel %vm895, %v3229, %v3230
  %v3232 = vrot.slane %v2991, 1
  %v3233 = vsel %vm895, %v3230, %v3232
  %v3234 = vrot.slane %v2992, 1
  %v3235 = vrot.slane %v2993, 1
  %v3236 = vsel %vm895, %v3234, %v3235
  %v3237 = vrot.slane %v2994, 1
  %v3238 = vsel %vm895, %v3235, %v3237
  %v3239 = vrot.slane %v2995, 1
  %v3240 = vrot.slane %v2996, 1
  %v3241 = vsel %vm895, %v3239, %v3240
  %v3242 = vrot.slane %v2997, 1
  %v3243 = vsel %vm895, %v3240, %v3242
  %v3244 = vrot.slane %v2998, 1
  %v3245 = vrot.slane %v2999, 1
  %v3246 = vsel %vm895, %v3244, %v3245
  %v3247 = vrot.slane %v3000, 1
  %v3248 = vsel %vm895, %v3245, %v3247
  %v3249 = vrot.slane %v3001, 1
  %v3250 = vrot.slane %v3002, 1
  %v3251 = vsel %vm895, %v3249, %v3250
  %v3252 = vrot.slane %v3003, 1
  %v3253 = vsel %vm895, %v3250, %v3252
  %v3254 = vrot.slane %v3004, 1
  %v3255 = vrot.slane %v3005, 1
  %v3256 = vsel %vm895, %v3254, %v3255
  %v3257 = vrot.slane %v3006, 1
  %v3258 = vsel %vm895, %v3255, %v3257
  %v3259 = vrot.slane %v3007, 1
  %v3260 = vrot.slane %v3008, 1
  %v3261 = vsel %vm895, %v3259, %v3260
  %v3262 = vrot.slane %v3009, 1
  %v3263 = vsel %vm895, %v3260, %v3262
  %v3264 = vrot.slane %v3010, 1
  %v3265 = vrot.slane %v3011, 1
  %v3266 = vsel %vm895, %v3264, %v3265
  %v3267 = vrot.slane %v3012, 1
  %v3268 = vsel %vm895, %v3265, %v3267
  %v3333 = vadd.f32 %v2847, %v3111
  %v3334 = vadd.f32 %v2848, %v3113
  %v3335 = vadd.f32 %v2849, %v3116
  %v3336 = vadd.f32 %v2850, %v3118
  %v3337 = vadd.f32 %v2851, %v3121
  %v3338 = vadd.f32 %v2852, %v3123
  %v3339 = vadd.f32 %v2853, %v3126
  %v3340 = vadd.f32 %v2854, %v3128
  %v3341 = vadd.f32 %v2855, %v3131
  %v3342 = vadd.f32 %v2856, %v3133
  %v3343 = vadd.f32 %v2857, %v3136
  %v3344 = vadd.f32 %v2858, %v3138
  %v3345 = vadd.f32 %v2859, %v3141
  %v3346 = vadd.f32 %v2860, %v3143
  %v3347 = vadd.f32 %v2861, %v3146
  %v3348 = vadd.f32 %v2862, %v3148
  %v3349 = vadd.f32 %v2863, %v3151
  %v3350 = vadd.f32 %v2864, %v3153
  %v3351 = vadd.f32 %v2865, %v3156
  %v3352 = vadd.f32 %v2866, %v3158
  %v3353 = vadd.f32 %v2867, %v3161
  %v3354 = vadd.f32 %v2868, %v3163
  %v3355 = vadd.f32 %v2869, %v3166
  %v3356 = vadd.f32 %v2870, %v3168
  %v3357 = vadd.f32 %v2871, %v3171
  %v3358 = vadd.f32 %v2872, %v3173
  %v3359 = vadd.f32 %v2873, %v3176
  %v3360 = vadd.f32 %v2874, %v3178
  %v3361 = vadd.f32 %v2875, %v3181
  %v3362 = vadd.f32 %v2876, %v3183
  %v3363 = vadd.f32 %v2877, %v3186
  %v3364 = vadd.f32 %v2878, %v3188
  %v3365 = vadd.f32 %v2879, %v3191
  %v3366 = vadd.f32 %v2880, %v3193
  %v3367 = vadd.f32 %v2881, %v3196
  %v3368 = vadd.f32 %v2882, %v3198
  %v3369 = vadd.f32 %v2883, %v3201
  %v3370 = vadd.f32 %v2884, %v3203
  %v3371 = vadd.f32 %v2885, %v3206
  %v3372 = vadd.f32 %v2886, %v3208
  %v3373 = vadd.f32 %v2887, %v3211
  %v3374 = vadd.f32 %v2888, %v3213
  %v3375 = vadd.f32 %v2889, %v3216
  %v3376 = vadd.f32 %v2890, %v3218
  %v3377 = vadd.f32 %v2891, %v3221
  %v3378 = vadd.f32 %v2892, %v3223
  %v3379 = vadd.f32 %v2893, %v3226
  %v3380 = vadd.f32 %v2894, %v3228
  %v3381 = vadd.f32 %v2895, %v3231
  %v3382 = vadd.f32 %v2896, %v3233
  %v3383 = vadd.f32 %v2897, %v3236
  %v3384 = vadd.f32 %v2898, %v3238
  %v3385 = vadd.f32 %v2899, %v3241
  %v3386 = vadd.f32 %v2900, %v3243
  %v3387 = vadd.f32 %v2901, %v3246
  %v3388 = vadd.f32 %v2902, %v3248
  %v3389 = vadd.f32 %v2903, %v3251
  %v3390 = vadd.f32 %v2904, %v3253
  %v3391 = vadd.f32 %v2905, %v3256
  %v3392 = vadd.f32 %v2906, %v3258
  %v3393 = vadd.f32 %v2907, %v3261
  %v3394 = vadd.f32 %v2908, %v3263
  %v3395 = vadd.f32 %v2909, %v3266
  %v3396 = vadd.f32 %v2910, %v3268
  %v3398 = vlaneseq
  %v3399 = vshrl.u32 %v3398, 7
  %v3400 = vsub.s32 0, %v3399
  %v3401 = vrot.slane %v562, %v3400
  %v3403 = vmul.f32 %v452, %v3401
  %v3404 = vmul.f32 %v453, %v3401
  %v3405 = vmul.f32 %v454, %v3401
  %v3406 = vmul.f32 %v455, %v3401
  %v3407 = vmul.f32 %v456, %v3401
  %v3408 = vmul.f32 %v457, %v3401
  %v3409 = vmul.f32 %v458, %v3401
  %v3410 = vmul.f32 %v459, %v3401
  %v3411 = vmul.f32 %v460, %v3401
  %v3412 = vmul.f32 %v461, %v3401
  %v3413 = vmul.f32 %v462, %v3401
  %v3414 = vmul.f32 %v463, %v3401
  %v3415 = vmul.f32 %v464, %v3401
  %v3416 = vmul.f32 %v465, %v3401
  %v3417 = vmul.f32 %v466, %v3401
  %v3418 = vmul.f32 %v467, %v3401
  %v3419 = vmul.f32 %v468, %v3401
  %v3420 = vmul.f32 %v469, %v3401
  %v3421 = vmul.f32 %v470, %v3401
  %v3422 = vmul.f32 %v471, %v3401
  %v3423 = vmul.f32 %v472, %v3401
  %v3424 = vmul.f32 %v473, %v3401
  %v3425 = vmul.f32 %v474, %v3401
  %v3426 = vmul.f32 %v475, %v3401
  %v3427 = vmul.f32 %v476, %v3401
  %v3428 = vmul.f32 %v477, %v3401
  %v3429 = vmul.f32 %v478, %v3401
  %v3430 = vmul.f32 %v479, %v3401
  %v3431 = vmul.f32 %v480, %v3401
  %v3432 = vmul.f32 %v481, %v3401
  %v3433 = vmul.f32 %v482, %v3401
  %v3434 = vmul.f32 %v483, %v3401
  %v3435 = vmul.f32 %v484, %v3401
  %v3436 = vmul.f32 %v485, %v3401
  %v3437 = vmul.f32 %v486, %v3401
  %v3438 = vmul.f32 %v487, %v3401
  %v3439 = vmul.f32 %v488, %v3401
  %v3440 = vmul.f32 %v489, %v3401
  %v3441 = vmul.f32 %v490, %v3401
  %v3442 = vmul.f32 %v491, %v3401
  %v3443 = vmul.f32 %v492, %v3401
  %v3444 = vmul.f32 %v493, %v3401
  %v3445 = vmul.f32 %v494, %v3401
  %v3446 = vmul.f32 %v495, %v3401
  %v3447 = vmul.f32 %v496, %v3401
  %v3448 = vmul.f32 %v497, %v3401
  %v3449 = vmul.f32 %v498, %v3401
  %v3450 = vmul.f32 %v499, %v3401
  %v3451 = vmul.f32 %v506, %v3401
  %v3452 = vmul.f32 %v507, %v3401
  %v3453 = vmul.f32 %v508, %v3401
  %v3454 = vmul.f32 %v509, %v3401
  %v3455 = vmul.f32 %v510, %v3401
  %v3456 = vmul.f32 %v511, %v3401
  %v3457 = vmul.f32 %v512, %v3401
  %v3458 = vmul.f32 %v513, %v3401
  %v3459 = vmul.f32 %v514, %v3401
  %v3460 = vmul.f32 %v515, %v3401
  %v3461 = vmul.f32 %v516, %v3401
  %v3462 = vmul.f32 %v517, %v3401
  %v3463 = vmul.f32 %v518, %v3401
  %v3464 = vmul.f32 %v519, %v3401
  %v3465 = vmul.f32 %v520, %v3401
  %v3466 = vmul.f32 %v521, %v3401
  %v3467 = vmul.f32 %v522, %v3401
  %v3468 = vmul.f32 %v523, %v3401
  %v3469 = vmul.f32 %v524, %v3401
  %v3470 = vmul.f32 %v525, %v3401
  %v3471 = vmul.f32 %v526, %v3401
  %v3472 = vmul.f32 %v527, %v3401
  %v3473 = vmul.f32 %v528, %v3401
  %v3474 = vmul.f32 %v529, %v3401
  %v3475 = vmul.f32 %v530, %v3401
  %v3476 = vmul.f32 %v531, %v3401
  %v3477 = vmul.f32 %v532, %v3401
  %v3478 = vmul.f32 %v533, %v3401
  %v3479 = vmul.f32 %v534, %v3401
  %v3480 = vmul.f32 %v535, %v3401
  %v3481 = vmul.f32 %v536, %v3401
  %v3482 = vmul.f32 %v537, %v3401
  %v3483 = vmul.f32 %v538, %v3401
  %v3484 = vmul.f32 %v539, %v3401
  %v3485 = vmul.f32 %v540, %v3401
  %v3486 = vmul.f32 %v541, %v3401
  %v3487 = vmul.f32 %v542, %v3401
  %v3488 = vmul.f32 %v543, %v3401
  %v3489 = vmul.f32 %v544, %v3401
  %v3490 = vmul.f32 %v545, %v3401
  %v3491 = vmul.f32 %v546, %v3401
  %v3492 = vmul.f32 %v547, %v3401
  %v3493 = vmul.f32 %v548, %v3401
  %v3494 = vmul.f32 %v549, %v3401
  %v3495 = vmul.f32 %v550, %v3401
  %v3496 = vmul.f32 %v551, %v3401
  %v3497 = vmul.f32 %v552, %v3401
  %v3498 = vmul.f32 %v553, %v3401
  %v3595 = vrot.slane %v3403, 2
  %v3596 = vrot.slane %v3404, 2
  %v3597 = vsel %vm1382, %v3595, %v3596
  %v3598 = vrot.slane %v3405, 2
  %v3599 = vsel %vm1382, %v3596, %v3598
  %v3600 = vrot.slane %v3406, 2
  %v3601 = vrot.slane %v3407, 2
  %v3602 = vsel %vm1382, %v3600, %v3601
  %v3603 = vrot.slane %v3408, 2
  %v3604 = vsel %vm1382, %v3601, %v3603
  %v3605 = vrot.slane %v3409, 2
  %v3606 = vrot.slane %v3410, 2
  %v3607 = vsel %vm1382, %v3605, %v3606
  %v3608 = vrot.slane %v3411, 2
  %v3609 = vsel %vm1382, %v3606, %v3608
  %v3610 = vrot.slane %v3412, 2
  %v3611 = vrot.slane %v3413, 2
  %v3612 = vsel %vm1382, %v3610, %v3611
  %v3613 = vrot.slane %v3414, 2
  %v3614 = vsel %vm1382, %v3611, %v3613
  %v3615 = vrot.slane %v3415, 2
  %v3616 = vrot.slane %v3416, 2
  %v3617 = vsel %vm1382, %v3615, %v3616
  %v3618 = vrot.slane %v3417, 2
  %v3619 = vsel %vm1382, %v3616, %v3618
  %v3620 = vrot.slane %v3418, 2
  %v3621 = vrot.slane %v3419, 2
  %v3622 = vsel %vm1382, %v3620, %v3621
  %v3623 = vrot.slane %v3420, 2
  %v3624 = vsel %vm1382, %v3621, %v3623
  %v3625 = vrot.slane %v3421, 2
  %v3626 = vrot.slane %v3422, 2
  %v3627 = vsel %vm1382, %v3625, %v3626
  %v3628 = vrot.slane %v3423, 2
  %v3629 = vsel %vm1382, %v3626, %v3628
  %v3630 = vrot.slane %v3424, 2
  %v3631 = vrot.slane %v3425, 2
  %v3632 = vsel %vm1382, %v3630, %v3631
  %v3633 = vrot.slane %v3426, 2
  %v3634 = vsel %vm1382, %v3631, %v3633
  %v3635 = vrot.slane %v3427, 2
  %v3636 = vrot.slane %v3428, 2
  %v3637 = vsel %vm1382, %v3635, %v3636
  %v3638 = vrot.slane %v3429, 2
  %v3639 = vsel %vm1382, %v3636, %v3638
  %v3640 = vrot.slane %v3430, 2
  %v3641 = vrot.slane %v3431, 2
  %v3642 = vsel %vm1382, %v3640, %v3641
  %v3643 = vrot.slane %v3432, 2
  %v3644 = vsel %vm1382, %v3641, %v3643
  %v3645 = vrot.slane %v3433, 2
  %v3646 = vrot.slane %v3434, 2
  %v3647 = vsel %vm1382, %v3645, %v3646
  %v3648 = vrot.slane %v3435, 2
  %v3649 = vsel %vm1382, %v3646, %v3648
  %v3650 = vrot.slane %v3436, 2
  %v3651 = vrot.slane %v3437, 2
  %v3652 = vsel %vm1382, %v3650, %v3651
  %v3653 = vrot.slane %v3438, 2
  %v3654 = vsel %vm1382, %v3651, %v3653
  %v3655 = vrot.slane %v3439, 2
  %v3656 = vrot.slane %v3440, 2
  %v3657 = vsel %vm1382, %v3655, %v3656
  %v3658 = vrot.slane %v3441, 2
  %v3659 = vsel %vm1382, %v3656, %v3658
  %v3660 = vrot.slane %v3442, 2
  %v3661 = vrot.slane %v3443, 2
  %v3662 = vsel %vm1382, %v3660, %v3661
  %v3663 = vrot.slane %v3444, 2
  %v3664 = vsel %vm1382, %v3661, %v3663
  %v3665 = vrot.slane %v3445, 2
  %v3666 = vrot.slane %v3446, 2
  %v3667 = vsel %vm1382, %v3665, %v3666
  %v3668 = vrot.slane %v3447, 2
  %v3669 = vsel %vm1382, %v3666, %v3668
  %v3670 = vrot.slane %v3448, 2
  %v3671 = vrot.slane %v3449, 2
  %v3672 = vsel %vm1382, %v3670, %v3671
  %v3673 = vrot.slane %v3450, 2
  %v3674 = vsel %vm1382, %v3671, %v3673
  %v3675 = vrot.slane %v3451, 2
  %v3676 = vrot.slane %v3452, 2
  %v3677 = vsel %vm1382, %v3675, %v3676
  %v3678 = vrot.slane %v3453, 2
  %v3679 = vsel %vm1382, %v3676, %v3678
  %v3680 = vrot.slane %v3454, 2
  %v3681 = vrot.slane %v3455, 2
  %v3682 = vsel %vm1382, %v3680, %v3681
  %v3683 = vrot.slane %v3456, 2
  %v3684 = vsel %vm1382, %v3681, %v3683
  %v3685 = vrot.slane %v3457, 2
  %v3686 = vrot.slane %v3458, 2
  %v3687 = vsel %vm1382, %v3685, %v3686
  %v3688 = vrot.slane %v3459, 2
  %v3689 = vsel %vm1382, %v3686, %v3688
  %v3690 = vrot.slane %v3460, 2
  %v3691 = vrot.slane %v3461, 2
  %v3692 = vsel %vm1382, %v3690, %v3691
  %v3693 = vrot.slane %v3462, 2
  %v3694 = vsel %vm1382, %v3691, %v3693
  %v3695 = vrot.slane %v3463, 2
  %v3696 = vrot.slane %v3464, 2
  %v3697 = vsel %vm1382, %v3695, %v3696
  %v3698 = vrot.slane %v3465, 2
  %v3699 = vsel %vm1382, %v3696, %v3698
  %v3700 = vrot.slane %v3466, 2
  %v3701 = vrot.slane %v3467, 2
  %v3702 = vsel %vm1382, %v3700, %v3701
  %v3703 = vrot.slane %v3468, 2
  %v3704 = vsel %vm1382, %v3701, %v3703
  %v3705 = vrot.slane %v3469, 2
  %v3706 = vrot.slane %v3470, 2
  %v3707 = vsel %vm1382, %v3705, %v3706
  %v3708 = vrot.slane %v3471, 2
  %v3709 = vsel %vm1382, %v3706, %v3708
  %v3710 = vrot.slane %v3472, 2
  %v3711 = vrot.slane %v3473, 2
  %v3712 = vsel %vm1382, %v3710, %v3711
  %v3713 = vrot.slane %v3474, 2
  %v3714 = vsel %vm1382, %v3711, %v3713
  %v3715 = vrot.slane %v3475, 2
  %v3716 = vrot.slane %v3476, 2
  %v3717 = vsel %vm1382, %v3715, %v3716
  %v3718 = vrot.slane %v3477, 2
  %v3719 = vsel %vm1382, %v3716, %v3718
  %v3720 = vrot.slane %v3478, 2
  %v3721 = vrot.slane %v3479, 2
  %v3722 = vsel %vm1382, %v3720, %v3721
  %v3723 = vrot.slane %v3480, 2
  %v3724 = vsel %vm1382, %v3721, %v3723
  %v3725 = vrot.slane %v3481, 2
  %v3726 = vrot.slane %v3482, 2
  %v3727 = vsel %vm1382, %v3725, %v3726
  %v3728 = vrot.slane %v3483, 2
  %v3729 = vsel %vm1382, %v3726, %v3728
  %v3730 = vrot.slane %v3484, 2
  %v3731 = vrot.slane %v3485, 2
  %v3732 = vsel %vm1382, %v3730, %v3731
  %v3733 = vrot.slane %v3486, 2
  %v3734 = vsel %vm1382, %v3731, %v3733
  %v3735 = vrot.slane %v3487, 2
  %v3736 = vrot.slane %v3488, 2
  %v3737 = vsel %vm1382, %v3735, %v3736
  %v3738 = vrot.slane %v3489, 2
  %v3739 = vsel %vm1382, %v3736, %v3738
  %v3740 = vrot.slane %v3490, 2
  %v3741 = vrot.slane %v3491, 2
  %v3742 = vsel %vm1382, %v3740, %v3741
  %v3743 = vrot.slane %v3492, 2
  %v3744 = vsel %vm1382, %v3741, %v3743
  %v3745 = vrot.slane %v3493, 2
  %v3746 = vrot.slane %v3494, 2
  %v3747 = vsel %vm1382, %v3745, %v3746
  %v3748 = vrot.slane %v3495, 2
  %v3749 = vsel %vm1382, %v3746, %v3748
  %v3750 = vrot.slane %v3496, 2
  %v3751 = vrot.slane %v3497, 2
  %v3752 = vsel %vm1382, %v3750, %v3751
  %v3753 = vrot.slane %v3498, 2
  %v3754 = vsel %vm1382, %v3751, %v3753
  %v3819 = vadd.f32 %v3333, %v3597
  %v3820 = vadd.f32 %v3334, %v3599
  %v3821 = vadd.f32 %v3335, %v3602
  %v3822 = vadd.f32 %v3336, %v3604
  %v3823 = vadd.f32 %v3337, %v3607
  %v3824 = vadd.f32 %v3338, %v3609
  %v3825 = vadd.f32 %v3339, %v3612
  %v3826 = vadd.f32 %v3340, %v3614
  %v3827 = vadd.f32 %v3341, %v3617
  %v3828 = vadd.f32 %v3342, %v3619
  %v3829 = vadd.f32 %v3343, %v3622
  %v3830 = vadd.f32 %v3344, %v3624
  %v3831 = vadd.f32 %v3345, %v3627
  %v3832 = vadd.f32 %v3346, %v3629
  %v3833 = vadd.f32 %v3347, %v3632
  %v3834 = vadd.f32 %v3348, %v3634
  %v3835 = vadd.f32 %v3349, %v3637
  %v3836 = vadd.f32 %v3350, %v3639
  %v3837 = vadd.f32 %v3351, %v3642
  %v3838 = vadd.f32 %v3352, %v3644
  %v3839 = vadd.f32 %v3353, %v3647
  %v3840 = vadd.f32 %v3354, %v3649
  %v3841 = vadd.f32 %v3355, %v3652
  %v3842 = vadd.f32 %v3356, %v3654
  %v3843 = vadd.f32 %v3357, %v3657
  %v3844 = vadd.f32 %v3358, %v3659
  %v3845 = vadd.f32 %v3359, %v3662
  %v3846 = vadd.f32 %v3360, %v3664
  %v3847 = vadd.f32 %v3361, %v3667
  %v3848 = vadd.f32 %v3362, %v3669
  %v3849 = vadd.f32 %v3363, %v3672
  %v3850 = vadd.f32 %v3364, %v3674
  %v3851 = vadd.f32 %v3365, %v3677
  %v3852 = vadd.f32 %v3366, %v3679
  %v3853 = vadd.f32 %v3367, %v3682
  %v3854 = vadd.f32 %v3368, %v3684
  %v3855 = vadd.f32 %v3369, %v3687
  %v3856 = vadd.f32 %v3370, %v3689
  %v3857 = vadd.f32 %v3371, %v3692
  %v3858 = vadd.f32 %v3372, %v3694
  %v3859 = vadd.f32 %v3373, %v3697
  %v3860 = vadd.f32 %v3374, %v3699
  %v3861 = vadd.f32 %v3375, %v3702
  %v3862 = vadd.f32 %v3376, %v3704
  %v3863 = vadd.f32 %v3377, %v3707
  %v3864 = vadd.f32 %v3378, %v3709
  %v3865 = vadd.f32 %v3379, %v3712
  %v3866 = vadd.f32 %v3380, %v3714
  %v3867 = vadd.f32 %v3381, %v3717
  %v3868 = vadd.f32 %v3382, %v3719
  %v3869 = vadd.f32 %v3383, %v3722
  %v3870 = vadd.f32 %v3384, %v3724
  %v3871 = vadd.f32 %v3385, %v3727
  %v3872 = vadd.f32 %v3386, %v3729
  %v3873 = vadd.f32 %v3387, %v3732
  %v3874 = vadd.f32 %v3388, %v3734
  %v3875 = vadd.f32 %v3389, %v3737
  %v3876 = vadd.f32 %v3390, %v3739
  %v3877 = vadd.f32 %v3391, %v3742
  %v3878 = vadd.f32 %v3392, %v3744
  %v3879 = vadd.f32 %v3393, %v3747
  %v3880 = vadd.f32 %v3394, %v3749
  %v3881 = vadd.f32 %v3395, %v3752
  %v3882 = vadd.f32 %v3396, %v3754
  %v3883 = vld [vmem:[%s4] sm:$0xf]
  %v3885 = vsel %vm23, %v3819, 0
  %v3888 = vsel %vm23, %v3820, 0
  %v3891 = vsel %vm23, %v3821, 0
  %v3894 = vsel %vm23, %v3822, 0
  %v3897 = vsel %vm23, %v3823, 0
  %v3900 = vsel %vm23, %v3824, 0
  %v3903 = vsel %vm23, %v3825, 0
  %v3906 = vsel %vm23, %v3826, 0
  %v3909 = vsel %vm23, %v3827, 0
  %v3912 = vsel %vm23, %v3828, 0
  %v3915 = vsel %vm23, %v3829, 0
  %v3918 = vsel %vm23, %v3830, 0
  %v3921 = vsel %vm23, %v3831, 0
  %v3924 = vsel %vm23, %v3832, 0
  %v3927 = vsel %vm23, %v3833, 0
  %v3930 = vsel %vm23, %v3834, 0
  %v3933 = vsel %vm23, %v3835, 0
  %v3936 = vsel %vm23, %v3836, 0
  %v3939 = vsel %vm23, %v3837, 0
  %v3942 = vsel %vm23, %v3838, 0
  %v3945 = vsel %vm23, %v3839, 0
  %v3948 = vsel %vm23, %v3840, 0
  %v3951 = vsel %vm23, %v3841, 0
  %v3954 = vsel %vm23, %v3842, 0
  %v3957 = vsel %vm23, %v3843, 0
  %v3960 = vsel %vm23, %v3844, 0
  %v3963 = vsel %vm23, %v3845, 0
  %v3966 = vsel %vm23, %v3846, 0
  %v3969 = vsel %vm23, %v3847, 0
  %v3972 = vsel %vm23, %v3848, 0
  %v3975 = vsel %vm23, %v3849, 0
  %v3978 = vsel %vm23, %v3850, 0
  %v3981 = vsel %vm23, %v3851, 0
  %v3984 = vsel %vm23, %v3852, 0
  %v3987 = vsel %vm23, %v3853, 0
  %v3990 = vsel %vm23, %v3854, 0
  %v3993 = vsel %vm23, %v3855, 0
  %v3996 = vsel %vm23, %v3856, 0
  %v3999 = vsel %vm23, %v3857, 0
  %v4002 = vsel %vm23, %v3858, 0
  %v4005 = vsel %vm23, %v3859, 0
  %v4008 = vsel %vm23, %v3860, 0
  %v4011 = vsel %vm23, %v3861, 0
  %v4014 = vsel %vm23, %v3862, 0
  %v4017 = vsel %vm23, %v3863, 0
  %v4020 = vsel %vm23, %v3864, 0
  %v4023 = vsel %vm23, %v3865, 0
  %v4026 = vsel %vm23, %v3866, 0
  %v4029 = vsel %vm23, %v3867, 0
  %v4032 = vsel %vm23, %v3868, 0
  %v4035 = vsel %vm23, %v3869, 0
  %v4038 = vsel %vm23, %v3870, 0
  %v4041 = vsel %vm23, %v3871, 0
  %v4044 = vsel %vm23, %v3872, 0
  %v4047 = vsel %vm23, %v3873, 0
  %v4050 = vsel %vm23, %v3874, 0
  %v4053 = vsel %vm23, %v3875, 0
  %v4056 = vsel %vm23, %v3876, 0
  %v4059 = vsel %vm23, %v3877, 0
  %v4062 = vsel %vm23, %v3878, 0
  %v4065 = vsel %vm23, %v3879, 0
  %v4068 = vsel %vm23, %v3880, 0
  %v4071 = vsel %vm23, %v3881, 0
  %v4074 = vsel %vm23, %v3882, 0
  %vm4076 = vcmask 1043456
  %v4078 = vsel %vm4076, %v3883, 0
  %4080 = vmatprep.subr.mxu0 0.0
  %4081 = vmatpush1.msra.mxu0 %v4078
  %4082 = vmatprep.subr.mxu0 0.0
  %4083 = vmatpush1.msra.mxu0 0.0
  %4084 = vmatprep.subr.mxu0 0.0
  %4085 = vmatpush1.msra.mxu0 0.0
  %4086 = vmatprep.subr.mxu0 0.0
  %4087 = vmatpush1.msra.mxu0 0.0
  %4088 = vmatprep.subr.mxu0 0.0
  %4089 = vmatpush1.msra.mxu0 0.0
  %4090 = vmatprep.subr.mxu0 0.0
  %4091 = vmatpush1.msra.mxu0 0.0
  %4092 = vmatprep.subr.mxu0 0.0
  %4093 = vmatpush1.msra.mxu0 0.0
  %4094 = vmatprep.subr.mxu0 0.0
  %4095 = vmatpush1.msra.mxu0 0.0
  %4096 = vmatprep.subr.mxu0 0.0
  %4097 = vmatpush1.msra.mxu0 0.0
  %4098 = vmatprep.subr.mxu0 0.0
  %4099 = vmatpush1.msra.mxu0 0.0
  %4100 = vmatprep.subr.mxu0 0.0
  %4101 = vmatpush1.msra.mxu0 0.0
  %4102 = vmatprep.subr.mxu0 0.0
  %4103 = vmatpush1.msra.mxu0 0.0
  %4104 = vmatprep.subr.mxu0 0.0
  %4105 = vmatpush1.msra.mxu0 0.0
  %4106 = vmatprep.subr.mxu0 0.0
  %4107 = vmatpush1.msra.mxu0 0.0
  %4108 = vmatprep.subr.mxu0 0.0
  %4109 = vmatpush1.msra.mxu0 0.0
  %4110 = vmatprep.subr.mxu0 0.0
  %4111 = vmatpush1.msra.mxu0 0.0
  %4112 = vmatprep.subr.mxu0 0.0
  %4113 = vmatpush1.msra.mxu0 0.0
  %4114 = vmatprep.subr.mxu0 0.0
  %4115 = vmatpush1.msra.mxu0 0.0
  %4116 = vmatprep.subr.mxu0 0.0
  %4117 = vmatpush1.msra.mxu0 0.0
  %4118 = vmatprep.subr.mxu0 0.0
  %4119 = vmatpush1.msra.mxu0 0.0
  %4120 = vmatprep.subr.mxu0 0.0
  %4121 = vmatpush1.msra.mxu0 0.0
  %4122 = vmatprep.subr.mxu0 0.0
  %4123 = vmatpush1.msra.mxu0 0.0
  %4124 = vmatprep.subr.mxu0 0.0
  %4125 = vmatpush1.msra.mxu0 0.0
  %4126 = vmatprep.subr.mxu0 0.0
  %4127 = vmatpush1.msra.mxu0 0.0
  %4128 = vmatprep.subr.mxu0 0.0
  %4129 = vmatpush1.msra.mxu0 0.0
  %4130 = vmatprep.subr.mxu0 0.0
  %4131 = vmatpush1.msra.mxu0 0.0
  %4132 = vmatprep.subr.mxu0 0.0
  %4133 = vmatpush1.msra.mxu0 0.0
  %4134 = vmatprep.subr.mxu0 0.0
  %4135 = vmatpush1.msra.mxu0 0.0
  %4136 = vmatprep.subr.mxu0 0.0
  %4137 = vmatpush1.msra.mxu0 0.0
  %4138 = vmatprep.subr.mxu0 0.0
  %4139 = vmatpush1.msra.mxu0 0.0
  %4140 = vmatprep.subr.mxu0 0.0
  %4141 = vmatpush1.msra.mxu0 0.0
  %4142 = vmatprep.subr.mxu0 0.0
  %4143 = vmatpush1.msra.mxu0 0.0
  %4144 = vmatprep.mubr.f32.mxu0 0.0
  %4145 = vmatmul.mubr.f32.gmra.mrb[0].mxu0 %v3885
  %v4146 = vpop.f32.mrb[0].mxu0
  %v4147 = vadd.f32 0.0, %v4146
  %v4148 = vpop.f32.mrb[0].mxu0
  %4149 = vmatprep.mubr.f32.mxu0 0.0
  %4150 = vmatmul.mubr.f32.gmra.mrb[0].mxu0 %v3888
  %v4151 = vpop.f32.mrb[0].mxu0
  %v4152 = vadd.f32 0.0, %v4151
  %v4153 = vpop.f32.mrb[0].mxu0
  %4154 = vmatprep.mubr.f32.mxu0 0.0
  %4155 = vmatmul.mubr.f32.gmra.mrb[0].mxu0 %v3891
  %v4156 = vpop.f32.mrb[0].mxu0
  %v4157 = vadd.f32 0.0, %v4156
  %v4158 = vpop.f32.mrb[0].mxu0
  %4159 = vmatprep.mubr.f32.mxu0 0.0
  %4160 = vmatmul.mubr.f32.gmra.mrb[0].mxu0 %v3894
  %v4161 = vpop.f32.mrb[0].mxu0
  %v4162 = vadd.f32 0.0, %v4161
  %v4163 = vpop.f32.mrb[0].mxu0
  %4164 = vmatprep.mubr.f32.mxu0 0.0
  %4165 = vmatmul.mubr.f32.gmra.mrb[0].mxu0 %v3897
  %v4166 = vpop.f32.mrb[0].mxu0
  %v4167 = vadd.f32 0.0, %v4166
  %v4168 = vpop.f32.mrb[0].mxu0
  %4169 = vmatprep.mubr.f32.mxu0 0.0
  %4170 = vmatmul.mubr.f32.gmra.mrb[0].mxu0 %v3900
  %v4171 = vpop.f32.mrb[0].mxu0
  %v4172 = vadd.f32 0.0, %v4171
  %v4173 = vpop.f32.mrb[0].mxu0
  %4174 = vmatprep.mubr.f32.mxu0 0.0
  %4175 = vmatmul.mubr.f32.gmra.mrb[0].mxu0 %v3903
  %v4176 = vpop.f32.mrb[0].mxu0
  %v4177 = vadd.f32 0.0, %v4176
  %v4178 = vpop.f32.mrb[0].mxu0
  %4179 = vmatprep.mubr.f32.mxu0 0.0
  %4180 = vmatmul.mubr.f32.gmra.mrb[0].mxu0 %v3906
  %v4181 = vpop.f32.mrb[0].mxu0
  %v4182 = vadd.f32 0.0, %v4181
  %v4183 = vpop.f32.mrb[0].mxu0
  %4184 = vmatprep.mubr.f32.mxu0 0.0
  %4185 = vmatmul.mubr.f32.gmra.mrb[0].mxu0 %v3909
  %v4186 = vpop.f32.mrb[0].mxu0
  %v4187 = vadd.f32 0.0, %v4186
  %v4188 = vpop.f32.mrb[0].mxu0
  %4189 = vmatprep.mubr.f32.mxu0 0.0
  %4190 = vmatmul.mubr.f32.gmra.mrb[0].mxu0 %v3912
  %v4191 = vpop.f32.mrb[0].mxu0
  %v4192 = vadd.f32 0.0, %v4191
  %v4193 = vpop.f32.mrb[0].mxu0
  %4194 = vmatprep.mubr.f32.mxu0 0.0
  %4195 = vmatmul.mubr.f32.gmra.mrb[0].mxu0 %v3915
  %v4196 = vpop.f32.mrb[0].mxu0
  %v4197 = vadd.f32 0.0, %v4196
  %v4198 = vpop.f32.mrb[0].mxu0
  %4199 = vmatprep.mubr.f32.mxu0 0.0
  %4200 = vmatmul.mubr.f32.gmra.mrb[0].mxu0 %v3918
  %v4201 = vpop.f32.mrb[0].mxu0
  %v4202 = vadd.f32 0.0, %v4201
  %v4203 = vpop.f32.mrb[0].mxu0
  %4204 = vmatprep.mubr.f32.mxu0 0.0
  %4205 = vmatmul.mubr.f32.gmra.mrb[0].mxu0 %v3921
  %v4206 = vpop.f32.mrb[0].mxu0
  %v4207 = vadd.f32 0.0, %v4206
  %v4208 = vpop.f32.mrb[0].mxu0
  %4209 = vmatprep.mubr.f32.mxu0 0.0
  %4210 = vmatmul.mubr.f32.gmra.mrb[0].mxu0 %v3924
  %v4211 = vpop.f32.mrb[0].mxu0
  %v4212 = vadd.f32 0.0, %v4211
  %v4213 = vpop.f32.mrb[0].mxu0
  %4214 = vmatprep.mubr.f32.mxu0 0.0
  %4215 = vmatmul.mubr.f32.gmra.mrb[0].mxu0 %v3927
  %v4216 = vpop.f32.mrb[0].mxu0
  %v4217 = vadd.f32 0.0, %v4216
  %v4218 = vpop.f32.mrb[0].mxu0
  %4219 = vmatprep.mubr.f32.mxu0 0.0
  %4220 = vmatmul.mubr.f32.gmra.mrb[0].mxu0 %v3930
  %v4221 = vpop.f32.mrb[0].mxu0
  %v4222 = vadd.f32 0.0, %v4221
  %v4223 = vpop.f32.mrb[0].mxu0
  %4224 = vmatprep.mubr.f32.mxu0 0.0
  %4225 = vmatmul.mubr.f32.gmra.mrb[0].mxu0 %v3933
  %v4226 = vpop.f32.mrb[0].mxu0
  %v4227 = vadd.f32 0.0, %v4226
  %v4228 = vpop.f32.mrb[0].mxu0
  %4229 = vmatprep.mubr.f32.mxu0 0.0
  %4230 = vmatmul.mubr.f32.gmra.mrb[0].mxu0 %v3936
  %v4231 = vpop.f32.mrb[0].mxu0
  %v4232 = vadd.f32 0.0, %v4231
  %v4233 = vpop.f32.mrb[0].mxu0
  %4234 = vmatprep.mubr.f32.mxu0 0.0
  %4235 = vmatmul.mubr.f32.gmra.mrb[0].mxu0 %v3939
  %v4236 = vpop.f32.mrb[0].mxu0
  %v4237 = vadd.f32 0.0, %v4236
  %v4238 = vpop.f32.mrb[0].mxu0
  %4239 = vmatprep.mubr.f32.mxu0 0.0
  %4240 = vmatmul.mubr.f32.gmra.mrb[0].mxu0 %v3942
  %v4241 = vpop.f32.mrb[0].mxu0
  %v4242 = vadd.f32 0.0, %v4241
  %v4243 = vpop.f32.mrb[0].mxu0
  %4244 = vmatprep.mubr.f32.mxu0 0.0
  %4245 = vmatmul.mubr.f32.gmra.mrb[0].mxu0 %v3945
  %v4246 = vpop.f32.mrb[0].mxu0
  %v4247 = vadd.f32 0.0, %v4246
  %v4248 = vpop.f32.mrb[0].mxu0
  %4249 = vmatprep.mubr.f32.mxu0 0.0
  %4250 = vmatmul.mubr.f32.gmra.mrb[0].mxu0 %v3948
  %v4251 = vpop.f32.mrb[0].mxu0
  %v4252 = vadd.f32 0.0, %v4251
  %v4253 = vpop.f32.mrb[0].mxu0
  %4254 = vmatprep.mubr.f32.mxu0 0.0
  %4255 = vmatmul.mubr.f32.gmra.mrb[0].mxu0 %v3951
  %v4256 = vpop.f32.mrb[0].mxu0
  %v4257 = vadd.f32 0.0, %v4256
  %v4258 = vpop.f32.mrb[0].mxu0
  %4259 = vmatprep.mubr.f32.mxu0 0.0
  %4260 = vmatmul.mubr.f32.gmra.mrb[0].mxu0 %v3954
  %v4261 = vpop.f32.mrb[0].mxu0
  %v4262 = vadd.f32 0.0, %v4261
  %v4263 = vpop.f32.mrb[0].mxu0
  %4264 = vmatprep.mubr.f32.mxu0 0.0
  %4265 = vmatmul.mubr.f32.gmra.mrb[0].mxu0 %v3957
  %v4266 = vpop.f32.mrb[0].mxu0
  %v4267 = vadd.f32 0.0, %v4266
  %v4268 = vpop.f32.mrb[0].mxu0
  %4269 = vmatprep.mubr.f32.mxu0 0.0
  %4270 = vmatmul.mubr.f32.gmra.mrb[0].mxu0 %v3960
  %v4271 = vpop.f32.mrb[0].mxu0
  %v4272 = vadd.f32 0.0, %v4271
  %v4273 = vpop.f32.mrb[0].mxu0
  %4274 = vmatprep.mubr.f32.mxu0 0.0
  %4275 = vmatmul.mubr.f32.gmra.mrb[0].mxu0 %v3963
  %v4276 = vpop.f32.mrb[0].mxu0
  %v4277 = vadd.f32 0.0, %v4276
  %v4278 = vpop.f32.mrb[0].mxu0
  %4279 = vmatprep.mubr.f32.mxu0 0.0
  %4280 = vmatmul.mubr.f32.gmra.mrb[0].mxu0 %v3966
  %v4281 = vpop.f32.mrb[0].mxu0
  %v4282 = vadd.f32 0.0, %v4281
  %v4283 = vpop.f32.mrb[0].mxu0
  %4284 = vmatprep.mubr.f32.mxu0 0.0
  %4285 = vmatmul.mubr.f32.gmra.mrb[0].mxu0 %v3969
  %v4286 = vpop.f32.mrb[0].mxu0
  %v4287 = vadd.f32 0.0, %v4286
  %v4288 = vpop.f32.mrb[0].mxu0
  %4289 = vmatprep.mubr.f32.mxu0 0.0
  %4290 = vmatmul.mubr.f32.gmra.mrb[0].mxu0 %v3972
  %v4291 = vpop.f32.mrb[0].mxu0
  %v4292 = vadd.f32 0.0, %v4291
  %v4293 = vpop.f32.mrb[0].mxu0
  %4294 = vmatprep.mubr.f32.mxu0 0.0
  %4295 = vmatmul.mubr.f32.gmra.mrb[0].mxu0 %v3975
  %v4296 = vpop.f32.mrb[0].mxu0
  %v4297 = vadd.f32 0.0, %v4296
  %v4298 = vpop.f32.mrb[0].mxu0
  %4299 = vmatprep.mubr.f32.mxu0 0.0
  %4300 = vmatmul.mubr.f32.gmra.mrb[0].mxu0 %v3978
  %v4301 = vpop.f32.mrb[0].mxu0
  %v4302 = vadd.f32 0.0, %v4301
  %v4303 = vpop.f32.mrb[0].mxu0
  %4304 = vmatprep.mubr.f32.mxu0 0.0
  %4305 = vmatmul.mubr.f32.gmra.mrb[0].mxu0 %v3981
  %v4306 = vpop.f32.mrb[0].mxu0
  %v4307 = vadd.f32 0.0, %v4306
  %v4308 = vpop.f32.mrb[0].mxu0
  %4309 = vmatprep.mubr.f32.mxu0 0.0
  %4310 = vmatmul.mubr.f32.gmra.mrb[0].mxu0 %v3984
  %v4311 = vpop.f32.mrb[0].mxu0
  %v4312 = vadd.f32 0.0, %v4311
  %v4313 = vpop.f32.mrb[0].mxu0
  %4314 = vmatprep.mubr.f32.mxu0 0.0
  %4315 = vmatmul.mubr.f32.gmra.mrb[0].mxu0 %v3987
  %v4316 = vpop.f32.mrb[0].mxu0
  %v4317 = vadd.f32 0.0, %v4316
  %v4318 = vpop.f32.mrb[0].mxu0
  %4319 = vmatprep.mubr.f32.mxu0 0.0
  %4320 = vmatmul.mubr.f32.gmra.mrb[0].mxu0 %v3990
  %v4321 = vpop.f32.mrb[0].mxu0
  %v4322 = vadd.f32 0.0, %v4321
  %v4323 = vpop.f32.mrb[0].mxu0
  %4324 = vmatprep.mubr.f32.mxu0 0.0
  %4325 = vmatmul.mubr.f32.gmra.mrb[0].mxu0 %v3993
  %v4326 = vpop.f32.mrb[0].mxu0
  %v4327 = vadd.f32 0.0, %v4326
  %v4328 = vpop.f32.mrb[0].mxu0
  %4329 = vmatprep.mubr.f32.mxu0 0.0
  %4330 = vmatmul.mubr.f32.gmra.mrb[0].mxu0 %v3996
  %v4331 = vpop.f32.mrb[0].mxu0
  %v4332 = vadd.f32 0.0, %v4331
  %v4333 = vpop.f32.mrb[0].mxu0
  %4334 = vmatprep.mubr.f32.mxu0 0.0
  %4335 = vmatmul.mubr.f32.gmra.mrb[0].mxu0 %v3999
  %v4336 = vpop.f32.mrb[0].mxu0
  %v4337 = vadd.f32 0.0, %v4336
  %v4338 = vpop.f32.mrb[0].mxu0
  %4339 = vmatprep.mubr.f32.mxu0 0.0
  %4340 = vmatmul.mubr.f32.gmra.mrb[0].mxu0 %v4002
  %v4341 = vpop.f32.mrb[0].mxu0
  %v4342 = vadd.f32 0.0, %v4341
  %v4343 = vpop.f32.mrb[0].mxu0
  %4344 = vmatprep.mubr.f32.mxu0 0.0
  %4345 = vmatmul.mubr.f32.gmra.mrb[0].mxu0 %v4005
  %v4346 = vpop.f32.mrb[0].mxu0
  %v4347 = vadd.f32 0.0, %v4346
  %v4348 = vpop.f32.mrb[0].mxu0
  %4349 = vmatprep.mubr.f32.mxu0 0.0
  %4350 = vmatmul.mubr.f32.gmra.mrb[0].mxu0 %v4008
  %v4351 = vpop.f32.mrb[0].mxu0
  %v4352 = vadd.f32 0.0, %v4351
  %v4353 = vpop.f32.mrb[0].mxu0
  %4354 = vmatprep.mubr.f32.mxu0 0.0
  %4355 = vmatmul.mubr.f32.gmra.mrb[0].mxu0 %v4011
  %v4356 = vpop.f32.mrb[0].mxu0
  %v4357 = vadd.f32 0.0, %v4356
  %v4358 = vpop.f32.mrb[0].mxu0
  %4359 = vmatprep.mubr.f32.mxu0 0.0
  %4360 = vmatmul.mubr.f32.gmra.mrb[0].mxu0 %v4014
  %v4361 = vpop.f32.mrb[0].mxu0
  %v4362 = vadd.f32 0.0, %v4361
  %v4363 = vpop.f32.mrb[0].mxu0
  %4364 = vmatprep.mubr.f32.mxu0 0.0
  %4365 = vmatmul.mubr.f32.gmra.mrb[0].mxu0 %v4017
  %v4366 = vpop.f32.mrb[0].mxu0
  %v4367 = vadd.f32 0.0, %v4366
  %v4368 = vpop.f32.mrb[0].mxu0
  %4369 = vmatprep.mubr.f32.mxu0 0.0
  %4370 = vmatmul.mubr.f32.gmra.mrb[0].mxu0 %v4020
  %v4371 = vpop.f32.mrb[0].mxu0
  %v4372 = vadd.f32 0.0, %v4371
  %v4373 = vpop.f32.mrb[0].mxu0
  %4374 = vmatprep.mubr.f32.mxu0 0.0
  %4375 = vmatmul.mubr.f32.gmra.mrb[0].mxu0 %v4023
  %v4376 = vpop.f32.mrb[0].mxu0
  %v4377 = vadd.f32 0.0, %v4376
  %v4378 = vpop.f32.mrb[0].mxu0
  %4379 = vmatprep.mubr.f32.mxu0 0.0
  %4380 = vmatmul.mubr.f32.gmra.mrb[0].mxu0 %v4026
  %v4381 = vpop.f32.mrb[0].mxu0
  %v4382 = vadd.f32 0.0, %v4381
  %v4383 = vpop.f32.mrb[0].mxu0
  %4384 = vmatprep.mubr.f32.mxu0 0.0
  %4385 = vmatmul.mubr.f32.gmra.mrb[0].mxu0 %v4029
  %v4386 = vpop.f32.mrb[0].mxu0
  %v4387 = vadd.f32 0.0, %v4386
  %v4388 = vpop.f32.mrb[0].mxu0
  %4389 = vmatprep.mubr.f32.mxu0 0.0
  %4390 = vmatmul.mubr.f32.gmra.mrb[0].mxu0 %v4032
  %v4391 = vpop.f32.mrb[0].mxu0
  %v4392 = vadd.f32 0.0, %v4391
  %v4393 = vpop.f32.mrb[0].mxu0
  %4394 = vmatprep.mubr.f32.mxu0 0.0
  %4395 = vmatmul.mubr.f32.gmra.mrb[0].mxu0 %v4035
  %v4396 = vpop.f32.mrb[0].mxu0
  %v4397 = vadd.f32 0.0, %v4396
  %v4398 = vpop.f32.mrb[0].mxu0
  %4399 = vmatprep.mubr.f32.mxu0 0.0
  %4400 = vmatmul.mubr.f32.gmra.mrb[0].mxu0 %v4038
  %v4401 = vpop.f32.mrb[0].mxu0
  %v4402 = vadd.f32 0.0, %v4401
  %v4403 = vpop.f32.mrb[0].mxu0
  %4404 = vmatprep.mubr.f32.mxu0 0.0
  %4405 = vmatmul.mubr.f32.gmra.mrb[0].mxu0 %v4041
  %v4406 = vpop.f32.mrb[0].mxu0
  %v4407 = vadd.f32 0.0, %v4406
  %v4408 = vpop.f32.mrb[0].mxu0
  %4409 = vmatprep.mubr.f32.mxu0 0.0
  %4410 = vmatmul.mubr.f32.gmra.mrb[0].mxu0 %v4044
  %v4411 = vpop.f32.mrb[0].mxu0
  %v4412 = vadd.f32 0.0, %v4411
  %v4413 = vpop.f32.mrb[0].mxu0
  %4414 = vmatprep.mubr.f32.mxu0 0.0
  %4415 = vmatmul.mubr.f32.gmra.mrb[0].mxu0 %v4047
  %v4416 = vpop.f32.mrb[0].mxu0
  %v4417 = vadd.f32 0.0, %v4416
  %v4418 = vpop.f32.mrb[0].mxu0
  %4419 = vmatprep.mubr.f32.mxu0 0.0
  %4420 = vmatmul.mubr.f32.gmra.mrb[0].mxu0 %v4050
  %v4421 = vpop.f32.mrb[0].mxu0
  %v4422 = vadd.f32 0.0, %v4421
  %v4423 = vpop.f32.mrb[0].mxu0
  %4424 = vmatprep.mubr.f32.mxu0 0.0
  %4425 = vmatmul.mubr.f32.gmra.mrb[0].mxu0 %v4053
  %v4426 = vpop.f32.mrb[0].mxu0
  %v4427 = vadd.f32 0.0, %v4426
  %v4428 = vpop.f32.mrb[0].mxu0
  %4429 = vmatprep.mubr.f32.mxu0 0.0
  %4430 = vmatmul.mubr.f32.gmra.mrb[0].mxu0 %v4056
  %v4431 = vpop.f32.mrb[0].mxu0
  %v4432 = vadd.f32 0.0, %v4431
  %v4433 = vpop.f32.mrb[0].mxu0
  %4434 = vmatprep.mubr.f32.mxu0 0.0
  %4435 = vmatmul.mubr.f32.gmra.mrb[0].mxu0 %v4059
  %v4436 = vpop.f32.mrb[0].mxu0
  %v4437 = vadd.f32 0.0, %v4436
  %v4438 = vpop.f32.mrb[0].mxu0
  %4439 = vmatprep.mubr.f32.mxu0 0.0
  %4440 = vmatmul.mubr.f32.gmra.mrb[0].mxu0 %v4062
  %v4441 = vpop.f32.mrb[0].mxu0
  %v4442 = vadd.f32 0.0, %v4441
  %v4443 = vpop.f32.mrb[0].mxu0
  %4444 = vmatprep.mubr.f32.mxu0 0.0
  %4445 = vmatmul.mubr.f32.gmra.mrb[0].mxu0 %v4065
  %v4446 = vpop.f32.mrb[0].mxu0
  %v4447 = vadd.f32 0.0, %v4446
  %v4448 = vpop.f32.mrb[0].mxu0
  %4449 = vmatprep.mubr.f32.mxu0 0.0
  %4450 = vmatmul.mubr.f32.gmra.mrb[0].mxu0 %v4068
  %v4451 = vpop.f32.mrb[0].mxu0
  %v4452 = vadd.f32 0.0, %v4451
  %v4453 = vpop.f32.mrb[0].mxu0
  %4454 = vmatprep.mubr.f32.mxu0 0.0
  %4455 = vmatmul.mubr.f32.gmra.mrb[0].mxu0 %v4071
  %v4456 = vpop.f32.mrb[0].mxu0
  %v4457 = vadd.f32 0.0, %v4456
  %v4458 = vpop.f32.mrb[0].mxu0
  %4459 = vmatprep.mubr.f32.mxu0 0.0
  %4460 = vmatmul.mubr.f32.gmra.mrb[0].mxu0 %v4074
  %v4461 = vpop.f32.mrb[0].mxu0
  %v4462 = vadd.f32 0.0, %v4461
  %v4463 = vpop.f32.mrb[0].mxu0
  %4464 = vdwg.mxu0
  %vm4465 = vcmask 64512
  %4466 = vst.msk [vmem:[%s5] sm:$0xff] %vm4465, %v4147
  %4467 = vst.msk [vmem:[%s5 + $0x8] sm:$0xff] %vm4465, %v4152
  %4468 = vst.msk [vmem:[%s5 + $0x10] sm:$0xff] %vm4465, %v4157
  %4469 = vst.msk [vmem:[%s5 + $0x18] sm:$0xff] %vm4465, %v4162
  %4470 = vst.msk [vmem:[%s5 + $0x20] sm:$0xff] %vm4465, %v4167
  %4471 = vst.msk [vmem:[%s5 + $0x28] sm:$0xff] %vm4465, %v4172
  %4472 = vst.msk [vmem:[%s5 + $0x30] sm:$0xff] %vm4465, %v4177
  %4473 = vst.msk [vmem:[%s5 + $0x38] sm:$0xff] %vm4465, %v4182
  %4474 = vst.msk [vmem:[%s5 + $0x40] sm:$0xff] %vm4465, %v4187
  %4475 = vst.msk [vmem:[%s5 + $0x48] sm:$0xff] %vm4465, %v4192
  %4476 = vst.msk [vmem:[%s5 + $0x50] sm:$0xff] %vm4465, %v4197
  %4477 = vst.msk [vmem:[%s5 + $0x58] sm:$0xff] %vm4465, %v4202
  %4478 = vst.msk [vmem:[%s5 + $0x60] sm:$0xff] %vm4465, %v4207
  %4479 = vst.msk [vmem:[%s5 + $0x68] sm:$0xff] %vm4465, %v4212
  %4480 = vst.msk [vmem:[%s5 + $0x70] sm:$0xff] %vm4465, %v4217
  %4481 = vst.msk [vmem:[%s5 + $0x78] sm:$0xff] %vm4465, %v4222
  %4482 = vst.msk [vmem:[%s5 + $0x80] sm:$0xff] %vm4465, %v4227
  %4483 = vst.msk [vmem:[%s5 + $0x88] sm:$0xff] %vm4465, %v4232
  %4484 = vst.msk [vmem:[%s5 + $0x90] sm:$0xff] %vm4465, %v4237
  %4485 = vst.msk [vmem:[%s5 + $0x98] sm:$0xff] %vm4465, %v4242
  %4486 = vst.msk [vmem:[%s5 + $0xa0] sm:$0xff] %vm4465, %v4247
  %4487 = vst.msk [vmem:[%s5 + $0xa8] sm:$0xff] %vm4465, %v4252
  %4488 = vst.msk [vmem:[%s5 + $0xb0] sm:$0xff] %vm4465, %v4257
  %4489 = vst.msk [vmem:[%s5 + $0xb8] sm:$0xff] %vm4465, %v4262
  %4490 = vst.msk [vmem:[%s5 + $0xc0] sm:$0xff] %vm4465, %v4267
  %4491 = vst.msk [vmem:[%s5 + $0xc8] sm:$0xff] %vm4465, %v4272
  %4492 = vst.msk [vmem:[%s5 + $0xd0] sm:$0xff] %vm4465, %v4277
  %4493 = vst.msk [vmem:[%s5 + $0xd8] sm:$0xff] %vm4465, %v4282
  %4494 = vst.msk [vmem:[%s5 + $0xe0] sm:$0xff] %vm4465, %v4287
  %4495 = vst.msk [vmem:[%s5 + $0xe8] sm:$0xff] %vm4465, %v4292
  %4496 = vst.msk [vmem:[%s5 + $0xf0] sm:$0xff] %vm4465, %v4297
  %4497 = vst.msk [vmem:[%s5 + $0xf8] sm:$0xff] %vm4465, %v4302
  %4498 = vst.msk [vmem:[%s5 + $0x100] sm:$0xff] %vm4465, %v4307
  %4499 = vst.msk [vmem:[%s5 + $0x108] sm:$0xff] %vm4465, %v4312
  %4500 = vst.msk [vmem:[%s5 + $0x110] sm:$0xff] %vm4465, %v4317
  %4501 = vst.msk [vmem:[%s5 + $0x118] sm:$0xff] %vm4465, %v4322
  %4502 = vst.msk [vmem:[%s5 + $0x120] sm:$0xff] %vm4465, %v4327
  %4503 = vst.msk [vmem:[%s5 + $0x128] sm:$0xff] %vm4465, %v4332
  %4504 = vst.msk [vmem:[%s5 + $0x130] sm:$0xff] %vm4465, %v4337
  %4505 = vst.msk [vmem:[%s5 + $0x138] sm:$0xff] %vm4465, %v4342
  %4506 = vst.msk [vmem:[%s5 + $0x140] sm:$0xff] %vm4465, %v4347
  %4507 = vst.msk [vmem:[%s5 + $0x148] sm:$0xff] %vm4465, %v4352
  %4508 = vst.msk [vmem:[%s5 + $0x150] sm:$0xff] %vm4465, %v4357
  %4509 = vst.msk [vmem:[%s5 + $0x158] sm:$0xff] %vm4465, %v4362
  %4510 = vst.msk [vmem:[%s5 + $0x160] sm:$0xff] %vm4465, %v4367
  %4511 = vst.msk [vmem:[%s5 + $0x168] sm:$0xff] %vm4465, %v4372
  %4512 = vst.msk [vmem:[%s5 + $0x170] sm:$0xff] %vm4465, %v4377
  %4513 = vst.msk [vmem:[%s5 + $0x178] sm:$0xff] %vm4465, %v4382
  %4514 = vst.msk [vmem:[%s5 + $0x180] sm:$0xff] %vm4465, %v4387
  %4515 = vst.msk [vmem:[%s5 + $0x188] sm:$0xff] %vm4465, %v4392
  %4516 = vst.msk [vmem:[%s5 + $0x190] sm:$0xff] %vm4465, %v4397
  %4517 = vst.msk [vmem:[%s5 + $0x198] sm:$0xff] %vm4465, %v4402
  %4518 = vst.msk [vmem:[%s5 + $0x1a0] sm:$0xff] %vm4465, %v4407
  %4519 = vst.msk [vmem:[%s5 + $0x1a8] sm:$0xff] %vm4465, %v4412
  %4520 = vst.msk [vmem:[%s5 + $0x1b0] sm:$0xff] %vm4465, %v4417
  %4521 = vst.msk [vmem:[%s5 + $0x1b8] sm:$0xff] %vm4465, %v4422
  %4522 = vst.msk [vmem:[%s5 + $0x1c0] sm:$0xff] %vm4465, %v4427
  %4523 = vst.msk [vmem:[%s5 + $0x1c8] sm:$0xff] %vm4465, %v4432
  %4524 = vst.msk [vmem:[%s5 + $0x1d0] sm:$0xff] %vm4465, %v4437
  %4525 = vst.msk [vmem:[%s5 + $0x1d8] sm:$0xff] %vm4465, %v4442
  %4526 = vst.msk [vmem:[%s5 + $0x1e0] sm:$0xff] %vm4465, %v4447
  %4527 = vst.msk [vmem:[%s5 + $0x1e8] sm:$0xff] %vm4465, %v4452
  %4528 = vst.msk [vmem:[%s5 + $0x1f0] sm:$0xff] %vm4465, %v4457
  %4529 = vst.msk [vmem:[%s5 + $0x1f8] sm:$0xff] %vm4465, %v4462
  %v4530 = vsel %vm4465, %v4147, 0.0
  %v4531 = vsel %vm4465, %v4152, 0.0
  %v4532 = vadd.f32 %v4530, %v4531
  %v4533 = vsel %vm4465, %v4157, 0.0
  %v4534 = vadd.f32 %v4532, %v4533
  %v4535 = vsel %vm4465, %v4162, 0.0
  %v4536 = vadd.f32 %v4534, %v4535
  %v4537 = vsel %vm4465, %v4167, 0.0
  %v4538 = vadd.f32 %v4536, %v4537
  %v4539 = vsel %vm4465, %v4172, 0.0
  %v4540 = vadd.f32 %v4538, %v4539
  %v4541 = vsel %vm4465, %v4177, 0.0
  %v4542 = vadd.f32 %v4540, %v4541
  %v4543 = vsel %vm4465, %v4182, 0.0
  %v4544 = vadd.f32 %v4542, %v4543
  %v4545 = vsel %vm4465, %v4187, 0.0
  %v4546 = vadd.f32 %v4544, %v4545
  %v4547 = vsel %vm4465, %v4192, 0.0
  %v4548 = vadd.f32 %v4546, %v4547
  %v4549 = vsel %vm4465, %v4197, 0.0
  %v4550 = vadd.f32 %v4548, %v4549
  %v4551 = vsel %vm4465, %v4202, 0.0
  %v4552 = vadd.f32 %v4550, %v4551
  %v4553 = vsel %vm4465, %v4207, 0.0
  %v4554 = vadd.f32 %v4552, %v4553
  %v4555 = vsel %vm4465, %v4212, 0.0
  %v4556 = vadd.f32 %v4554, %v4555
  %v4557 = vsel %vm4465, %v4217, 0.0
  %v4558 = vadd.f32 %v4556, %v4557
  %v4559 = vsel %vm4465, %v4222, 0.0
  %v4560 = vadd.f32 %v4558, %v4559
  %v4561 = vsel %vm4465, %v4227, 0.0
  %v4562 = vadd.f32 %v4560, %v4561
  %v4563 = vsel %vm4465, %v4232, 0.0
  %v4564 = vadd.f32 %v4562, %v4563
  %v4565 = vsel %vm4465, %v4237, 0.0
  %v4566 = vadd.f32 %v4564, %v4565
  %v4567 = vsel %vm4465, %v4242, 0.0
  %v4568 = vadd.f32 %v4566, %v4567
  %v4569 = vsel %vm4465, %v4247, 0.0
  %v4570 = vadd.f32 %v4568, %v4569
  %v4571 = vsel %vm4465, %v4252, 0.0
  %v4572 = vadd.f32 %v4570, %v4571
  %v4573 = vsel %vm4465, %v4257, 0.0
  %v4574 = vadd.f32 %v4572, %v4573
  %v4575 = vsel %vm4465, %v4262, 0.0
  %v4576 = vadd.f32 %v4574, %v4575
  %v4577 = vsel %vm4465, %v4267, 0.0
  %v4578 = vadd.f32 %v4576, %v4577
  %v4579 = vsel %vm4465, %v4272, 0.0
  %v4580 = vadd.f32 %v4578, %v4579
  %v4581 = vsel %vm4465, %v4277, 0.0
  %v4582 = vadd.f32 %v4580, %v4581
  %v4583 = vsel %vm4465, %v4282, 0.0
  %v4584 = vadd.f32 %v4582, %v4583
  %v4585 = vsel %vm4465, %v4287, 0.0
  %v4586 = vadd.f32 %v4584, %v4585
  %v4587 = vsel %vm4465, %v4292, 0.0
  %v4588 = vadd.f32 %v4586, %v4587
  %v4589 = vsel %vm4465, %v4297, 0.0
  %v4590 = vadd.f32 %v4588, %v4589
  %v4591 = vsel %vm4465, %v4302, 0.0
  %v4592 = vadd.f32 %v4590, %v4591
  %v4593 = vsel %vm4465, %v4307, 0.0
  %v4594 = vadd.f32 %v4592, %v4593
  %v4595 = vsel %vm4465, %v4312, 0.0
  %v4596 = vadd.f32 %v4594, %v4595
  %v4597 = vsel %vm4465, %v4317, 0.0
  %v4598 = vadd.f32 %v4596, %v4597
  %v4599 = vsel %vm4465, %v4322, 0.0
  %v4600 = vadd.f32 %v4598, %v4599
  %v4601 = vsel %vm4465, %v4327, 0.0
  %v4602 = vadd.f32 %v4600, %v4601
  %v4603 = vsel %vm4465, %v4332, 0.0
  %v4604 = vadd.f32 %v4602, %v4603
  %v4605 = vsel %vm4465, %v4337, 0.0
  %v4606 = vadd.f32 %v4604, %v4605
  %v4607 = vsel %vm4465, %v4342, 0.0
  %v4608 = vadd.f32 %v4606, %v4607
  %v4609 = vsel %vm4465, %v4347, 0.0
  %v4610 = vadd.f32 %v4608, %v4609
  %v4611 = vsel %vm4465, %v4352, 0.0
  %v4612 = vadd.f32 %v4610, %v4611
  %v4613 = vsel %vm4465, %v4357, 0.0
  %v4614 = vadd.f32 %v4612, %v4613
  %v4615 = vsel %vm4465, %v4362, 0.0
  %v4616 = vadd.f32 %v4614, %v4615
  %v4617 = vsel %vm4465, %v4367, 0.0
  %v4618 = vadd.f32 %v4616, %v4617
  %v4619 = vsel %vm4465, %v4372, 0.0
  %v4620 = vadd.f32 %v4618, %v4619
  %v4621 = vsel %vm4465, %v4377, 0.0
  %v4622 = vadd.f32 %v4620, %v4621
  %v4623 = vsel %vm4465, %v4382, 0.0
  %v4624 = vadd.f32 %v4622, %v4623
  %v4625 = vsel %vm4465, %v4387, 0.0
  %v4626 = vadd.f32 %v4624, %v4625
  %v4627 = vsel %vm4465, %v4392, 0.0
  %v4628 = vadd.f32 %v4626, %v4627
  %v4629 = vsel %vm4465, %v4397, 0.0
  %v4630 = vadd.f32 %v4628, %v4629
  %v4631 = vsel %vm4465, %v4402, 0.0
  %v4632 = vadd.f32 %v4630, %v4631
  %v4633 = vsel %vm4465, %v4407, 0.0
  %v4634 = vadd.f32 %v4632, %v4633
  %v4635 = vsel %vm4465, %v4412, 0.0
  %v4636 = vadd.f32 %v4634, %v4635
  %v4637 = vsel %vm4465, %v4417, 0.0
  %v4638 = vadd.f32 %v4636, %v4637
  %v4639 = vsel %vm4465, %v4422, 0.0
  %v4640 = vadd.f32 %v4638, %v4639
  %v4641 = vsel %vm4465, %v4427, 0.0
  %v4642 = vadd.f32 %v4640, %v4641
  %v4643 = vsel %vm4465, %v4432, 0.0
  %v4644 = vadd.f32 %v4642, %v4643
  %v4645 = vsel %vm4465, %v4437, 0.0
  %v4646 = vadd.f32 %v4644, %v4645
  %v4647 = vsel %vm4465, %v4442, 0.0
  %v4648 = vadd.f32 %v4646, %v4647
  %v4649 = vsel %vm4465, %v4447, 0.0
  %v4650 = vadd.f32 %v4648, %v4649
  %v4651 = vsel %vm4465, %v4452, 0.0
  %v4652 = vadd.f32 %v4650, %v4651
  %v4653 = vsel %vm4465, %v4457, 0.0
  %v4654 = vadd.f32 %v4652, %v4653
  %v4655 = vsel %vm4465, %v4462, 0.0
  %v4656 = vadd.f32 %v4654, %v4655
  %v4657 = vrot.slane %v4656, 4
  %v4658 = vadd.f32 %v4656, %v4657
  %v4659 = vrot.slane %v4658, 2
  %v4660 = vadd.f32 %v4658, %v4659
  %v4661 = vrot.slane %v4660, 1
  %v4662 = vadd.f32 %v4660, %v4661
  %v4663 = vrcp.pop 512.0
  %v4664 = vmul.f32 %v4662, %v4663
  %v4665 = vsub.f32 %v4147, %v4664
  %v4666 = vsub.f32 %v4152, %v4664
  %v4667 = vsub.f32 %v4157, %v4664
  %v4668 = vsub.f32 %v4162, %v4664
  %v4669 = vsub.f32 %v4167, %v4664
  %v4670 = vsub.f32 %v4172, %v4664
  %v4671 = vsub.f32 %v4177, %v4664
  %v4672 = vsub.f32 %v4182, %v4664
  %v4673 = vsub.f32 %v4187, %v4664
  %v4674 = vsub.f32 %v4192, %v4664
  %v4675 = vsub.f32 %v4197, %v4664
  %v4676 = vsub.f32 %v4202, %v4664
  %v4677 = vsub.f32 %v4207, %v4664
  %v4678 = vsub.f32 %v4212, %v4664
  %v4679 = vsub.f32 %v4217, %v4664
  %v4680 = vsub.f32 %v4222, %v4664
  %v4681 = vsub.f32 %v4227, %v4664
  %v4682 = vsub.f32 %v4232, %v4664
  %v4683 = vsub.f32 %v4237, %v4664
  %v4684 = vsub.f32 %v4242, %v4664
  %v4685 = vsub.f32 %v4247, %v4664
  %v4686 = vsub.f32 %v4252, %v4664
  %v4687 = vsub.f32 %v4257, %v4664
  %v4688 = vsub.f32 %v4262, %v4664
  %v4689 = vsub.f32 %v4267, %v4664
  %v4690 = vsub.f32 %v4272, %v4664
  %v4691 = vsub.f32 %v4277, %v4664
  %v4692 = vsub.f32 %v4282, %v4664
  %v4693 = vsub.f32 %v4287, %v4664
  %v4694 = vsub.f32 %v4292, %v4664
  %v4695 = vsub.f32 %v4297, %v4664
  %v4696 = vsub.f32 %v4302, %v4664
  %v4697 = vsub.f32 %v4307, %v4664
  %v4698 = vsub.f32 %v4312, %v4664
  %v4699 = vsub.f32 %v4317, %v4664
  %v4700 = vsub.f32 %v4322, %v4664
  %v4701 = vsub.f32 %v4327, %v4664
  %v4702 = vsub.f32 %v4332, %v4664
  %v4703 = vsub.f32 %v4337, %v4664
  %v4704 = vsub.f32 %v4342, %v4664
  %v4705 = vsub.f32 %v4347, %v4664
  %v4706 = vsub.f32 %v4352, %v4664
  %v4707 = vsub.f32 %v4357, %v4664
  %v4708 = vsub.f32 %v4362, %v4664
  %v4709 = vsub.f32 %v4367, %v4664
  %v4710 = vsub.f32 %v4372, %v4664
  %v4711 = vsub.f32 %v4377, %v4664
  %v4712 = vsub.f32 %v4382, %v4664
  %v4713 = vsub.f32 %v4387, %v4664
  %v4714 = vsub.f32 %v4392, %v4664
  %v4715 = vsub.f32 %v4397, %v4664
  %v4716 = vsub.f32 %v4402, %v4664
  %v4717 = vsub.f32 %v4407, %v4664
  %v4718 = vsub.f32 %v4412, %v4664
  %v4719 = vsub.f32 %v4417, %v4664
  %v4720 = vsub.f32 %v4422, %v4664
  %v4721 = vsub.f32 %v4427, %v4664
  %v4722 = vsub.f32 %v4432, %v4664
  %v4723 = vsub.f32 %v4437, %v4664
  %v4724 = vsub.f32 %v4442, %v4664
  %v4725 = vsub.f32 %v4447, %v4664
  %v4726 = vsub.f32 %v4452, %v4664
  %v4727 = vsub.f32 %v4457, %v4664
  %v4728 = vsub.f32 %v4462, %v4664
  %v4729 = vmul.f32 %v4665, %v4665
  %v4730 = vmul.f32 %v4666, %v4666
  %v4731 = vmul.f32 %v4667, %v4667
  %v4732 = vmul.f32 %v4668, %v4668
  %v4733 = vmul.f32 %v4669, %v4669
  %v4734 = vmul.f32 %v4670, %v4670
  %v4735 = vmul.f32 %v4671, %v4671
  %v4736 = vmul.f32 %v4672, %v4672
  %v4737 = vmul.f32 %v4673, %v4673
  %v4738 = vmul.f32 %v4674, %v4674
  %v4739 = vmul.f32 %v4675, %v4675
  %v4740 = vmul.f32 %v4676, %v4676
  %v4741 = vmul.f32 %v4677, %v4677
  %v4742 = vmul.f32 %v4678, %v4678
  %v4743 = vmul.f32 %v4679, %v4679
  %v4744 = vmul.f32 %v4680, %v4680
  %v4745 = vmul.f32 %v4681, %v4681
  %v4746 = vmul.f32 %v4682, %v4682
  %v4747 = vmul.f32 %v4683, %v4683
  %v4748 = vmul.f32 %v4684, %v4684
  %v4749 = vmul.f32 %v4685, %v4685
  %v4750 = vmul.f32 %v4686, %v4686
  %v4751 = vmul.f32 %v4687, %v4687
  %v4752 = vmul.f32 %v4688, %v4688
  %v4753 = vmul.f32 %v4689, %v4689
  %v4754 = vmul.f32 %v4690, %v4690
  %v4755 = vmul.f32 %v4691, %v4691
  %v4756 = vmul.f32 %v4692, %v4692
  %v4757 = vmul.f32 %v4693, %v4693
  %v4758 = vmul.f32 %v4694, %v4694
  %v4759 = vmul.f32 %v4695, %v4695
  %v4760 = vmul.f32 %v4696, %v4696
  %v4761 = vmul.f32 %v4697, %v4697
  %v4762 = vmul.f32 %v4698, %v4698
  %v4763 = vmul.f32 %v4699, %v4699
  %v4764 = vmul.f32 %v4700, %v4700
  %v4765 = vmul.f32 %v4701, %v4701
  %v4766 = vmul.f32 %v4702, %v4702
  %v4767 = vmul.f32 %v4703, %v4703
  %v4768 = vmul.f32 %v4704, %v4704
  %v4769 = vmul.f32 %v4705, %v4705
  %v4770 = vmul.f32 %v4706, %v4706
  %v4771 = vmul.f32 %v4707, %v4707
  %v4772 = vmul.f32 %v4708, %v4708
  %v4773 = vmul.f32 %v4709, %v4709
  %v4774 = vmul.f32 %v4710, %v4710
  %v4775 = vmul.f32 %v4711, %v4711
  %v4776 = vmul.f32 %v4712, %v4712
  %v4777 = vmul.f32 %v4713, %v4713
  %v4778 = vmul.f32 %v4714, %v4714
  %v4779 = vmul.f32 %v4715, %v4715
  %v4780 = vmul.f32 %v4716, %v4716
  %v4781 = vmul.f32 %v4717, %v4717
  %v4782 = vmul.f32 %v4718, %v4718
  %v4783 = vmul.f32 %v4719, %v4719
  %v4784 = vmul.f32 %v4720, %v4720
  %v4785 = vmul.f32 %v4721, %v4721
  %v4786 = vmul.f32 %v4722, %v4722
  %v4787 = vmul.f32 %v4723, %v4723
  %v4788 = vmul.f32 %v4724, %v4724
  %v4789 = vmul.f32 %v4725, %v4725
  %v4790 = vmul.f32 %v4726, %v4726
  %v4791 = vmul.f32 %v4727, %v4727
  %v4792 = vmul.f32 %v4728, %v4728
  %v4793 = vsel %vm4465, %v4729, 0.0
  %v4794 = vsel %vm4465, %v4730, 0.0
  %v4795 = vadd.f32 %v4793, %v4794
  %v4796 = vsel %vm4465, %v4731, 0.0
  %v4797 = vadd.f32 %v4795, %v4796
  %v4798 = vsel %vm4465, %v4732, 0.0
  %v4799 = vadd.f32 %v4797, %v4798
  %v4800 = vsel %vm4465, %v4733, 0.0
  %v4801 = vadd.f32 %v4799, %v4800
  %v4802 = vsel %vm4465, %v4734, 0.0
  %v4803 = vadd.f32 %v4801, %v4802
  %v4804 = vsel %vm4465, %v4735, 0.0
  %v4805 = vadd.f32 %v4803, %v4804
  %v4806 = vsel %vm4465, %v4736, 0.0
  %v4807 = vadd.f32 %v4805, %v4806
  %v4808 = vsel %vm4465, %v4737, 0.0
  %v4809 = vadd.f32 %v4807, %v4808
  %v4810 = vsel %vm4465, %v4738, 0.0
  %v4811 = vadd.f32 %v4809, %v4810
  %v4812 = vsel %vm4465, %v4739, 0.0
  %v4813 = vadd.f32 %v4811, %v4812
  %v4814 = vsel %vm4465, %v4740, 0.0
  %v4815 = vadd.f32 %v4813, %v4814
  %v4816 = vsel %vm4465, %v4741, 0.0
  %v4817 = vadd.f32 %v4815, %v4816
  %v4818 = vsel %vm4465, %v4742, 0.0
  %v4819 = vadd.f32 %v4817, %v4818
  %v4820 = vsel %vm4465, %v4743, 0.0
  %v4821 = vadd.f32 %v4819, %v4820
  %v4822 = vsel %vm4465, %v4744, 0.0
  %v4823 = vadd.f32 %v4821, %v4822
  %v4824 = vsel %vm4465, %v4745, 0.0
  %v4825 = vadd.f32 %v4823, %v4824
  %v4826 = vsel %vm4465, %v4746, 0.0
  %v4827 = vadd.f32 %v4825, %v4826
  %v4828 = vsel %vm4465, %v4747, 0.0
  %v4829 = vadd.f32 %v4827, %v4828
  %v4830 = vsel %vm4465, %v4748, 0.0
  %v4831 = vadd.f32 %v4829, %v4830
  %v4832 = vsel %vm4465, %v4749, 0.0
  %v4833 = vadd.f32 %v4831, %v4832
  %v4834 = vsel %vm4465, %v4750, 0.0
  %v4835 = vadd.f32 %v4833, %v4834
  %v4836 = vsel %vm4465, %v4751, 0.0
  %v4837 = vadd.f32 %v4835, %v4836
  %v4838 = vsel %vm4465, %v4752, 0.0
  %v4839 = vadd.f32 %v4837, %v4838
  %v4840 = vsel %vm4465, %v4753, 0.0
  %v4841 = vadd.f32 %v4839, %v4840
  %v4842 = vsel %vm4465, %v4754, 0.0
  %v4843 = vadd.f32 %v4841, %v4842
  %v4844 = vsel %vm4465, %v4755, 0.0
  %v4845 = vadd.f32 %v4843, %v4844
  %v4846 = vsel %vm4465, %v4756, 0.0
  %v4847 = vadd.f32 %v4845, %v4846
  %v4848 = vsel %vm4465, %v4757, 0.0
  %v4849 = vadd.f32 %v4847, %v4848
  %v4850 = vsel %vm4465, %v4758, 0.0
  %v4851 = vadd.f32 %v4849, %v4850
  %v4852 = vsel %vm4465, %v4759, 0.0
  %v4853 = vadd.f32 %v4851, %v4852
  %v4854 = vsel %vm4465, %v4760, 0.0
  %v4855 = vadd.f32 %v4853, %v4854
  %v4856 = vsel %vm4465, %v4761, 0.0
  %v4857 = vadd.f32 %v4855, %v4856
  %v4858 = vsel %vm4465, %v4762, 0.0
  %v4859 = vadd.f32 %v4857, %v4858
  %v4860 = vsel %vm4465, %v4763, 0.0
  %v4861 = vadd.f32 %v4859, %v4860
  %v4862 = vsel %vm4465, %v4764, 0.0
  %v4863 = vadd.f32 %v4861, %v4862
  %v4864 = vsel %vm4465, %v4765, 0.0
  %v4865 = vadd.f32 %v4863, %v4864
  %v4866 = vsel %vm4465, %v4766, 0.0
  %v4867 = vadd.f32 %v4865, %v4866
  %v4868 = vsel %vm4465, %v4767, 0.0
  %v4869 = vadd.f32 %v4867, %v4868
  %v4870 = vsel %vm4465, %v4768, 0.0
  %v4871 = vadd.f32 %v4869, %v4870
  %v4872 = vsel %vm4465, %v4769, 0.0
  %v4873 = vadd.f32 %v4871, %v4872
  %v4874 = vsel %vm4465, %v4770, 0.0
  %v4875 = vadd.f32 %v4873, %v4874
  %v4876 = vsel %vm4465, %v4771, 0.0
  %v4877 = vadd.f32 %v4875, %v4876
  %v4878 = vsel %vm4465, %v4772, 0.0
  %v4879 = vadd.f32 %v4877, %v4878
  %v4880 = vsel %vm4465, %v4773, 0.0
  %v4881 = vadd.f32 %v4879, %v4880
  %v4882 = vsel %vm4465, %v4774, 0.0
  %v4883 = vadd.f32 %v4881, %v4882
  %v4884 = vsel %vm4465, %v4775, 0.0
  %v4885 = vadd.f32 %v4883, %v4884
  %v4886 = vsel %vm4465, %v4776, 0.0
  %v4887 = vadd.f32 %v4885, %v4886
  %v4888 = vsel %vm4465, %v4777, 0.0
  %v4889 = vadd.f32 %v4887, %v4888
  %v4890 = vsel %vm4465, %v4778, 0.0
  %v4891 = vadd.f32 %v4889, %v4890
  %v4892 = vsel %vm4465, %v4779, 0.0
  %v4893 = vadd.f32 %v4891, %v4892
  %v4894 = vsel %vm4465, %v4780, 0.0
  %v4895 = vadd.f32 %v4893, %v4894
  %v4896 = vsel %vm4465, %v4781, 0.0
  %v4897 = vadd.f32 %v4895, %v4896
  %v4898 = vsel %vm4465, %v4782, 0.0
  %v4899 = vadd.f32 %v4897, %v4898
  %v4900 = vsel %vm4465, %v4783, 0.0
  %v4901 = vadd.f32 %v4899, %v4900
  %v4902 = vsel %vm4465, %v4784, 0.0
  %v4903 = vadd.f32 %v4901, %v4902
  %v4904 = vsel %vm4465, %v4785, 0.0
  %v4905 = vadd.f32 %v4903, %v4904
  %v4906 = vsel %vm4465, %v4786, 0.0
  %v4907 = vadd.f32 %v4905, %v4906
  %v4908 = vsel %vm4465, %v4787, 0.0
  %v4909 = vadd.f32 %v4907, %v4908
  %v4910 = vsel %vm4465, %v4788, 0.0
  %v4911 = vadd.f32 %v4909, %v4910
  %v4912 = vsel %vm4465, %v4789, 0.0
  %v4913 = vadd.f32 %v4911, %v4912
  %v4914 = vsel %vm4465, %v4790, 0.0
  %v4915 = vadd.f32 %v4913, %v4914
  %v4916 = vsel %vm4465, %v4791, 0.0
  %v4917 = vadd.f32 %v4915, %v4916
  %v4918 = vsel %vm4465, %v4792, 0.0
  %v4919 = vadd.f32 %v4917, %v4918
  %v4920 = vrot.slane %v4919, 4
  %v4921 = vadd.f32 %v4919, %v4920
  %v4922 = vrot.slane %v4921, 2
  %v4923 = vadd.f32 %v4921, %v4922
  %v4924 = vrot.slane %v4923, 1
  %v4925 = vadd.f32 %v4923, %v4924
  %vm4926 = vcmask 57344
  %4927 = vst.msk [vmem:[%s6] sm:$0x1] %vm4926, %v4662
  %4928 = vst.msk [vmem:[%s7] sm:$0x1] %vm4926, %v4925
  // Predicated region
  $region22: #{sepconv_forward.3} parent=0 // pred_check
    _
  $region23: #{sepconv_forward.3} parent=0 // pred_check_branch
    %4930 = sbr.rel (0) target = $region25
  $region24: #{sepconv_forward.3} parent=0 // pred_region
    _
  $region25: #{sepconv_forward.3} parent=0 // pred_fallthru
    _
  // Predicated region
  $region26: #{sepconv_forward.3} parent=0 // pred_check
    _
  $region27: #{sepconv_forward.3} parent=0 // pred_check_branch
    %4932 = sbr.rel (0) target = $region29
  $region28: #{sepconv_forward.3} parent=0 // pred_region
    _
  $region29: #{sepconv_forward.3} parent=0 // pred_fallthru
    _
  // Predicated region
  $region30: #{sepconv_forward.3} parent=0 // pred_check
    _
  $region31: #{sepconv_forward.3} parent=0 // pred_check_branch
    %4934 = sbr.rel (0) target = $region33
  $region32: #{sepconv_forward.3} parent=0 // pred_region
    _
  $region33: #{sepconv_forward.3} parent=0 // pred_fallthru
    _
  // Predicated region
  $region34: #{sepconv_forward.3} parent=0 // pred_check
    _
  $region35: #{sepconv_forward.3} parent=0 // pred_check_branch
    %4936 = sbr.rel (0) target = $region37
  $region36: #{sepconv_forward.3} parent=0 // pred_region
    _
  $region37: #{sepconv_forward.3} parent=0 // pred_fallthru
    _
  // Predicated region
  $region38: #{sepconv_forward.3} parent=0 // pred_check
    _
  $region39: #{sepconv_forward.3} parent=0 // pred_check_branch
    %4938 = sbr.rel (0) target = $region41
  $region40: #{sepconv_forward.3} parent=0 // pred_region
    _
  $region41: #{sepconv_forward.3} parent=0 // pred_fallthru
    _
  // Predicated region
  $region42: #{sepconv_forward.3} parent=0 // pred_check
    _
  $region43: #{sepconv_forward.3} parent=0 // pred_check_branch
    %4940 = sbr.rel (0) target = $region45
  $region44: #{sepconv_forward.3} parent=0 // pred_region
    _
  $region45: #{sepconv_forward.3} parent=0 // pred_fallthru
    _

</llo_original>
